<compile_context>
chip_gen: v5e
topology: v5e:2x2
jax: 0.10.0
libtpu: 0.0.40
codegen_flags: <defaults>
</compile_context>

<pallas_src>
import functools

import jax
import jax.numpy as jnp
from jax import lax
from jax.experimental import pallas as pl
from jax.experimental.pallas import tpu as pltpu

LANE = 128      # TPU lane width
SUBLANE = 8     # TPU sublane count


def _round_up(x, m):
    return (x + m - 1) // m * m


# ----------------------------- fused Pallas kernel -------------------------- #

def _bilstm_mlp_kernel(x_ref, m_ref, wih_ref, whh_ref, b_ref,
                       w1_ref, b1_ref, w2_ref, b2_ref, w3_ref, b3_ref,
                       o_ref, gx_scr, yf_scr, yb_scr, *, L, Bp, Hp):
    """Fused bidirectional LSTM recurrence + 3-layer ReLU MLP epilogue.

    x_ref : [L, Bp, Ep]  bf16 embeddings (time-major, batch padded to Bp)
    m_ref : [L, Bp, Hp]  f32 validity mask (1.0 while t < length else 0.0)
    wih_ref:[Ep, 8*Hp]   bf16 input->gate weights, columns = [fwd i,f,g,o | bwd i,f,g,o]
    whh_ref:[2*Hp, 8*Hp] bf16 block-diagonal recurrent weights (rows = [h_fwd | h_bwd])
    b_ref : [1, 8*Hp]    f32 (b_ih + b_hh), same column layout as wih
    w1..b3: fused MLP weights, [2*Hp,512]/[512,256]/[256,128] (bf16) + f32 biases
    o_ref : [L, Bp, 128] f32 MLP output (real scalar in lane 0)
    gx_scr: [L, Bp, 8*Hp] f32 hoisted input-projection gates
    yf_scr/yb_scr: [L, Bp, Hp] f32 per-direction LSTM outputs
    """
    Ep = x_ref.shape[2]
    G4 = 4 * Hp

    # ---- hoisted input projection (both directions + bias in ONE matmul) ----
    x2d = x_ref[...].reshape(L * Bp, Ep)
    gx = jnp.dot(x2d, wih_ref[...], preferred_element_type=jnp.float32) + b_ref[...]
    gx_scr[...] = gx.reshape(L, Bp, 8 * Hp)

    # ---- fused forward/backward recurrence (fully unrolled, L is static) ----
    def step(s, carry):
        h_f, h_b, c_f, c_b = carry
        t_b = L - 1 - s

        # one block-diagonal recurrent matmul covers both directions
        h_cat = jnp.concatenate([h_f, h_b], axis=-1).astype(whh_ref.dtype)  # [Bp, 2Hp]
        g_rec = jnp.dot(h_cat, whh_ref[...],
                        preferred_element_type=jnp.float32)                 # [Bp, 8Hp]

        g_f = gx_scr[s][:, 0:G4] + g_rec[:, 0:G4]
        g_b = gx_scr[t_b][:, G4:2 * G4] + g_rec[:, G4:2 * G4]

        def cell(g, c_prev):
            i_g = jax.nn.sigmoid(g[:, 0 * Hp:1 * Hp])     # 128-lane aligned slices
            f_g = jax.nn.sigmoid(g[:, 1 * Hp:2 * Hp])
            g_g = jnp.tanh(g[:, 2 * Hp:3 * Hp])
            o_g = jax.nn.sigmoid(g[:, 3 * Hp:4 * Hp])
            c_new = f_g * c_prev + i_g * g_g
            h_new = o_g * jnp.tanh(c_new)
            return h_new, c_new

        hf_new, cf_new = cell(g_f, c_f)
        hb_new, cb_new = cell(g_b, c_b)

        valid_f = m_ref[s] > 0.0          # [Bp, Hp]
        valid_b = m_ref[t_b] > 0.0

        # packed-sequence semantics: freeze state + emit exact zeros past length
        yf_scr[s] = jnp.where(valid_f, hf_new, 0.0)
        yb_scr[t_b] = jnp.where(valid_b, hb_new, 0.0)

        return (jnp.where(valid_f, hf_new, h_f),
                jnp.where(valid_b, hb_new, h_b),
                jnp.where(valid_f, cf_new, c_f),
                jnp.where(valid_b, cb_new, c_b))

    z = jnp.zeros((Bp, Hp), jnp.float32)
    lax.fori_loop(0, L, step, (z, z, z, z), unroll=True)

    # ---- fused 3-layer ReLU MLP epilogue (dropout = identity in eval) ----
    y2d = jnp.concatenate([yf_scr[...].reshape(L * Bp, Hp),
                           yb_scr[...].reshape(L * Bp, Hp)], axis=-1)       # [L*Bp, 2Hp]
    h1 = jnp.maximum(
        jnp.dot(y2d.astype(w1_ref.dtype), w1_ref[...],
                preferred_element_type=jnp.float32) + b1_ref[...], 0.0)
    h2 = jnp.maximum(
        jnp.dot(h1.astype(w2_ref.dtype), w2_ref[...],
                preferred_element_type=jnp.float32) + b2_ref[...], 0.0)
    h3 = jnp.maximum(
        jnp.dot(h2.astype(w3_ref.dtype), w3_ref[...],
                preferred_element_type=jnp.float32) + b3_ref[...], 0.0)     # [L*Bp, 128]
    o_ref[...] = h3.reshape(L, Bp, w3_ref.shape[1]).astype(o_ref.dtype)


def _bilstm_mlp_call(x_tm, mask_tm, kp, *, L, Bp, Hp):
    vmem = pl.BlockSpec(memory_space=pltpu.MemorySpace.VMEM)
    kernel = functools.partial(_bilstm_mlp_kernel, L=L, Bp=Bp, Hp=Hp)
    # TODO(synk): for large L/B/H this single-invocation, whole-array-in-VMEM kernel
    # should get a time-chunked grid + vmem_limit_bytes (sized for v7x's 64 MiB VMEM);
    # at these shapes everything (<2 MiB) fits trivially.
    return pl.pallas_call(
        kernel,
        out_shape=jax.ShapeDtypeStruct((L, Bp, kp["w3"].shape[1]), jnp.float32),
        in_specs=[vmem] * 11,
        out_specs=vmem,
        scratch_shapes=[
            pltpu.VMEM((L, Bp, 8 * Hp), jnp.float32),   # hoisted input-projection gates
            pltpu.VMEM((L, Bp, Hp), jnp.float32),       # forward-direction outputs
            pltpu.VMEM((L, Bp, Hp), jnp.float32),       # backward-direction outputs
        ],
    )(x_tm, mask_tm, kp["wih"], kp["whh"], kp["b"],
      kp["w1"], kp["b1"], kp["w2"], kp["b2"], kp["w3"], kp["b3"])


# ------------------------------ model wrapper ------------------------------- #

def lstm_model_forward(kp, data):
    """data: [B, max_length] int32 tokens (0 = padding). Returns [B, max_length, 1]."""
    B, L = data.shape
    Hp = kp["b"].shape[1] // 8
    Bp = max(_round_up(B, SUBLANE), SUBLANE)

    # packed-sequence lengths: index of first 0 token, else full length
    is_pad = data == 0
    has_pad = jnp.any(is_pad, axis=1)
    first_pad = jnp.argmax(is_pad, axis=1)
    lengths = jnp.where(has_pad, first_pad, L).astype(jnp.int32)

    # embedding gather + batch/sublane padding + time-major transpose stay in XLA
    emb = jnp.take(kp["embed"], data, axis=0)                       # [B, L, Ep] bf16
    emb = jnp.pad(emb, ((0, Bp - B), (0, 0), (0, 0)))               # [Bp, L, Ep]
    x_tm = jnp.transpose(emb, (1, 0, 2))                            # [L, Bp, Ep]

    t_idx = jnp.arange(L, dtype=jnp.int32)
    mask = (t_idx[None, :] < lengths[:, None]).astype(jnp.float32)  # [B, L]
    mask = jnp.pad(mask, ((0, Bp - B), (0, 0)))                     # [Bp, L]
    mask_tm = jnp.broadcast_to(jnp.transpose(mask)[:, :, None], (L, Bp, Hp))

    out_pad = _bilstm_mlp_call(x_tm, mask_tm, kp, L=L, Bp=Bp, Hp=Hp)  # [L, Bp, 128]
    out = out_pad[:, :B, 0:1]                                         # [L, B, 1]
    return jnp.transpose(out, (1, 0, 2))                              # [B, L, 1]


# ------------------------------ params -------------------------------------- #

def init_params(key, vocab_size, embed_size, hidden_size):
    """PyTorch-layout parameters (gate order i, f, g, o; linear weights [out, in])."""
    ks = jax.random.split(key, 16)
    H, E = hidden_size, embed_size
    k_lstm = 1.0 / jnp.sqrt(jnp.float32(H))

    def u(k, shape, bound):
        return jax.random.uniform(k, shape, jnp.float32, -bound, bound)

    return {
        "embed": jax.random.normal(ks[0], (vocab_size, E), jnp.float32),
        "w_ih_f": u(ks[1], (4 * H, E), k_lstm),
        "w_hh_f": u(ks[2], (4 * H, H), k_lstm),
        "b_ih_f": u(ks[3], (4 * H,), k_lstm),
        "b_hh_f": u(ks[4], (4 * H,), k_lstm),
        "w_ih_b": u(ks[5], (4 * H, E), k_lstm),
        "w_hh_b": u(ks[6], (4 * H, H), k_lstm),
        "b_ih_b": u(ks[7], (4 * H,), k_lstm),
        "b_hh_b": u(ks[8], (4 * H,), k_lstm),
        "w1": u(ks[9], (512, 2 * H), 1.0 / jnp.sqrt(2.0 * H)),
        "b1": u(ks[10], (512,), 1.0 / jnp.sqrt(2.0 * H)),
        "w2": u(ks[11], (256, 512), 1.0 / jnp.sqrt(512.0)),
        "b2": u(ks[12], (256,), 1.0 / jnp.sqrt(512.0)),
        "w3": u(ks[13], (1, 256), 1.0 / jnp.sqrt(256.0)),
        "b3": u(ks[14], (1,), 1.0 / jnp.sqrt(256.0)),
    }


def pack_params(p, *, embed_size, hidden_size):
    """Pack PyTorch-layout params into the lane-aligned, gate-blocked kernel layout."""
    E, H = embed_size, hidden_size
    Ep = _round_up(E, LANE)
    Hp = _round_up(H, LANE)
    f32, bf16 = jnp.float32, jnp.bfloat16

    embed = jnp.zeros((p["embed"].shape[0], Ep), f32).at[:, :E].set(p["embed"])

    wih = jnp.zeros((Ep, 8 * Hp), f32)       # columns: [fwd i,f,g,o | bwd i,f,g,o]
    whh = jnp.zeros((2 * Hp, 8 * Hp), f32)   # block-diagonal: rows [h_fwd | h_bwd]
    bias = jnp.zeros((1, 8 * Hp), f32)
    for d, sfx in enumerate(("f", "b")):
        w_ih = p["w_ih_" + sfx]                      # [4H, E]
        w_hh = p["w_hh_" + sfx]                      # [4H, H]
        b = p["b_ih_" + sfx] + p["b_hh_" + sfx]      # [4H]
        for g in range(4):
            col = d * 4 * Hp + g * Hp
            wih = wih.at[:E, col:col + H].set(w_ih[g * H:(g + 1) * H, :].T)
            whh = whh.at[d * Hp:d * Hp + H, col:col + H].set(
                w_hh[g * H:(g + 1) * H, :].T)
            bias = bias.at[0, col:col + H].set(b[g * H:(g + 1) * H])

    # MLP: linear_1 input order is [fwd H | bwd H] -> rows 0:H and Hp:Hp+H
    w1 = jnp.zeros((2 * Hp, 512), f32)
    w1 = w1.at[0:H, :].set(p["w1"][:, 0:H].T)
    w1 = w1.at[Hp:Hp + H, :].set(p["w1"][:, H:2 * H].T)
    w3 = jnp.zeros((256, LANE), f32).at[:, 0].set(p["w3"][0, :])   # pad out dim to 128
    b3 = jnp.zeros((1, LANE), f32).at[0, 0].set(p["b3"][0])

    return {
        "embed": embed.astype(bf16),
        "wih": wih.astype(bf16),
        "whh": whh.astype(bf16),
        "b": bias,
        "w1": w1.astype(bf16),
        "b1": p["b1"].reshape(1, 512).astype(f32),
        "w2": p["w2"].T.astype(bf16),
        "b2": p["b2"].reshape(1, 256).astype(f32),
        "w3": w3.astype(bf16),
        "b3": b3,
    }


# -------------------------------- main --------------------------------------- #

if __name__ == "__main__":
    vocab_size, embed_size, max_length, hidden_size = 20, 32, 8, 32
    B = 2

    key = jax.random.PRNGKey(0)
    k_params, k_tok = jax.random.split(key)
    params = init_params(k_params, vocab_size, embed_size, hidden_size)
    kp = pack_params(params, embed_size=embed_size, hidden_size=hidden_size)

    tokens = jax.random.randint(k_tok, (B, max_length), 1, vocab_size, jnp.int32)
    valid_lengths = jnp.array([6, max_length], dtype=jnp.int32)   # example 0 is padded
    data = jnp.where(jnp.arange(max_length)[None, :] < valid_lengths[:, None],
                     tokens, 0)

    out = jax.jit(lstm_model_forward)(kp, data)
    out = jax.block_until_ready(out)

    assert out.shape == (B, max_length, 1), out.shape
    assert bool(jnp.all(jnp.isfinite(out)))
    print("KERNEL_OK")
</pallas_src>

<mosaic_0001>
module attributes {stable_mosaic.version = 11 : i64} {
  func.func @_bilstm_mlp_kernel(%arg0: memref<8x8x128xbf16, #tpu.memory_space<vmem>>, %arg1: memref<8x8x128xf32, #tpu.memory_space<vmem>>, %arg2: memref<128x1024xbf16, #tpu.memory_space<vmem>>, %arg3: memref<256x1024xbf16, #tpu.memory_space<vmem>>, %arg4: memref<1x1024xf32, #tpu.memory_space<vmem>>, %arg5: memref<256x512xbf16, #tpu.memory_space<vmem>>, %arg6: memref<1x512xf32, #tpu.memory_space<vmem>>, %arg7: memref<512x256xbf16, #tpu.memory_space<vmem>>, %arg8: memref<1x256xf32, #tpu.memory_space<vmem>>, %arg9: memref<256x128xbf16, #tpu.memory_space<vmem>>, %arg10: memref<1x128xf32, #tpu.memory_space<vmem>>, %arg11: memref<8x8x128xf32, #tpu.memory_space<vmem>>, %arg12: memref<8x8x1024xf32, #tpu.memory_space<vmem>>, %arg13: memref<8x8x128xf32, #tpu.memory_space<vmem>>, %arg14: memref<8x8x128xf32, #tpu.memory_space<vmem>>) attributes {dimension_semantics = [], scalar_prefetch = 0 : i64, scratch_operands = 3 : i64, tpu.core_type = #tpu.core_type<tc>} {
    %c0 = arith.constant 0 : index
    %c0_0 = arith.constant 0 : index
    %c0_1 = arith.constant 0 : index
    %0 = vector.load %arg0[%c0, %c0_0, %c0_1] : memref<8x8x128xbf16, #tpu.memory_space<vmem>>, vector<8x8x128xbf16>
    %1 = vector.shape_cast %0 : vector<8x8x128xbf16> to vector<64x128xbf16>
    %c0_2 = arith.constant 0 : index
    %c0_3 = arith.constant 0 : index
    %2 = vector.load %arg2[%c0_2, %c0_3] : memref<128x1024xbf16, #tpu.memory_space<vmem>>, vector<128x1024xbf16>
    %cst = arith.constant dense<0.000000e+00> : vector<64x1024xf32>
    %3 = tpu.matmul %1, %2, %cst {dimension_numbers = #tpu.dot_dimension_numbers<[1], [0], [0], [1], [0, 0, 1, 1], [], []>} : vector<64x128xbf16>, vector<128x1024xbf16>, vector<64x1024xf32> -> vector<64x1024xf32>
    %c0_4 = arith.constant 0 : index
    %c0_5 = arith.constant 0 : index
    %4 = vector.load %arg4[%c0_4, %c0_5] : memref<1x1024xf32, #tpu.memory_space<vmem>>, vector<1x1024xf32>
    %5 = vector.broadcast %4 : vector<1x1024xf32> to vector<64x1024xf32>
    %6 = arith.addf %3, %5 : vector<64x1024xf32>
    %7 = vector.shape_cast %6 : vector<64x1024xf32> to vector<8x8x1024xf32>
    %c0_6 = arith.constant 0 : index
    %c0_7 = arith.constant 0 : index
    %c0_8 = arith.constant 0 : index
    %8 = vector.load %arg12[%c0_6, %c0_7, %c0_8] : memref<8x8x1024xf32, #tpu.memory_space<vmem>>, vector<8x8x1024xf32>
    tpu.vector_store %arg12[%c0_6, %c0_7, %c0_8], %7 {strides = array<i32>} : memref<8x8x1024xf32, #tpu.memory_space<vmem>>, vector<8x8x1024xf32>,
    %cst_9 = arith.constant 0.000000e+00 : f32
    %9 = vector.broadcast %cst_9 : f32 to vector<8x128xf32>
    %c0_i32 = arith.constant 0 : i32
    %c7_i32 = arith.constant 7 : i32
    %10 = arith.subi %c7_i32, %c0_i32 : i32
    %11 = tpu.concatenate %9, %9 in 1 : vector<8x128xf32>, vector<8x128xf32> -> vector<8x256xf32>
    %12 = arith.truncf %11 : vector<8x256xf32> to vector<8x256xbf16>
    %c0_10 = arith.constant 0 : index
    %c0_11 = arith.constant 0 : index
    %13 = vector.load %arg3[%c0_10, %c0_11] : memref<256x1024xbf16, #tpu.memory_space<vmem>>, vector<256x1024xbf16>
    %cst_12 = arith.constant dense<0.000000e+00> : vector<8x1024xf32>
    %14 = tpu.matmul %12, %13, %cst_12 {dimension_numbers = #tpu.dot_dimension_numbers<[1], [0], [0], [1], [0, 0, 1, 1], [], []>} : vector<8x256xbf16>, vector<256x1024xbf16>, vector<8x1024xf32> -> vector<8x1024xf32>
    %15 = arith.index_cast %c0_i32 : i32 to index
    %c0_13 = arith.constant 0 : index
    %c0_14 = arith.constant 0 : index
    %16 = vector.load %arg12[%15, %c0_13, %c0_14] : memref<8x8x1024xf32, #tpu.memory_space<vmem>>, vector<1x8x1024xf32>
    %17 = vector.shape_cast %16 : vector<1x8x1024xf32> to vector<8x1024xf32>
    %18 = vector.extract_strided_slice %17 {offsets = [0, 0], sizes = [8, 512], strides = [1, 1]} : vector<8x1024xf32> to vector<8x512xf32>
    %19 = vector.extract_strided_slice %14 {offsets = [0, 0], sizes = [8, 512], strides = [1, 1]} : vector<8x1024xf32> to vector<8x512xf32>
    %20 = arith.addf %18, %19 : vector<8x512xf32>
    %21 = arith.index_cast %10 : i32 to index
    %c0_15 = arith.constant 0 : index
    %c0_16 = arith.constant 0 : index
    %22 = vector.load %arg12[%21, %c0_15, %c0_16] : memref<8x8x1024xf32, #tpu.memory_space<vmem>>, vector<1x8x1024xf32>
    %23 = vector.shape_cast %22 : vector<1x8x1024xf32> to vector<8x1024xf32>
    %24 = vector.extract_strided_slice %23 {offsets = [0, 512], sizes = [8, 512], strides = [1, 1]} : vector<8x1024xf32> to vector<8x512xf32>
    %25 = vector.extract_strided_slice %14 {offsets = [0, 512], sizes = [8, 512], strides = [1, 1]} : vector<8x1024xf32> to vector<8x512xf32>
    %26 = arith.addf %24, %25 : vector<8x512xf32>
    %27 = vector.extract_strided_slice %20 {offsets = [0, 0], sizes = [8, 128], strides = [1, 1]} : vector<8x512xf32> to vector<8x128xf32>
    %28 = arith.negf %27 : vector<8x128xf32>
    %29 = math.exp %28 : vector<8x128xf32>
    %cst_17 = arith.constant 1.000000e+00 : f32
    %30 = vector.broadcast %cst_17 : f32 to vector<8x128xf32>
    %31 = arith.addf %30, %29 : vector<8x128xf32>
    %32 = arith.divf %30, %31 : vector<8x128xf32>
    %33 = vector.extract_strided_slice %20 {offsets = [0, 128], sizes = [8, 128], strides = [1, 1]} : vector<8x512xf32> to vector<8x128xf32>
    %34 = arith.negf %33 : vector<8x128xf32>
    %35 = math.exp %34 : vector<8x128xf32>
    %cst_18 = arith.constant 1.000000e+00 : f32
    %36 = vector.broadcast %cst_18 : f32 to vector<8x128xf32>
    %37 = arith.addf %36, %35 : vector<8x128xf32>
    %38 = arith.divf %36, %37 : vector<8x128xf32>
    %39 = vector.extract_strided_slice %20 {offsets = [0, 256], sizes = [8, 128], strides = [1, 1]} : vector<8x512xf32> to vector<8x128xf32>
    %40 = math.tanh %39 : vector<8x128xf32>
    %41 = vector.extract_strided_slice %20 {offsets = [0, 384], sizes = [8, 128], strides = [1, 1]} : vector<8x512xf32> to vector<8x128xf32>
    %42 = arith.negf %41 : vector<8x128xf32>
    %43 = math.exp %42 : vector<8x128xf32>
    %cst_19 = arith.constant 1.000000e+00 : f32
    %44 = vector.broadcast %cst_19 : f32 to vector<8x128xf32>
    %45 = arith.addf %44, %43 : vector<8x128xf32>
    %46 = arith.divf %44, %45 : vector<8x128xf32>
    %47 = arith.mulf %38, %9 : vector<8x128xf32>
    %48 = arith.mulf %32, %40 : vector<8x128xf32>
    %49 = arith.addf %47, %48 : vector<8x128xf32>
    %50 = math.tanh %49 : vector<8x128xf32>
    %51 = arith.mulf %46, %50 : vector<8x128xf32>
    %52 = vector.extract_strided_slice %26 {offsets = [0, 0], sizes = [8, 128], strides = [1, 1]} : vector<8x512xf32> to vector<8x128xf32>
    %53 = arith.negf %52 : vector<8x128xf32>
    %54 = math.exp %53 : vector<8x128xf32>
    %cst_20 = arith.constant 1.000000e+00 : f32
    %55 = vector.broadcast %cst_20 : f32 to vector<8x128xf32>
    %56 = arith.addf %55, %54 : vector<8x128xf32>
    %57 = arith.divf %55, %56 : vector<8x128xf32>
    %58 = vector.extract_strided_slice %26 {offsets = [0, 128], sizes = [8, 128], strides = [1, 1]} : vector<8x512xf32> to vector<8x128xf32>
    %59 = arith.negf %58 : vector<8x128xf32>
    %60 = math.exp %59 : vector<8x128xf32>
    %cst_21 = arith.constant 1.000000e+00 : f32
    %61 = vector.broadcast %cst_21 : f32 to vector<8x128xf32>
    %62 = arith.addf %61, %60 : vector<8x128xf32>
    %63 = arith.divf %61, %62 : vector<8x128xf32>
    %64 = vector.extract_strided_slice %26 {offsets = [0, 256], sizes = [8, 128], strides = [1, 1]} : vector<8x512xf32> to vector<8x128xf32>
    %65 = math.tanh %64 : vector<8x128xf32>
    %66 = vector.extract_strided_slice %26 {offsets = [0, 384], sizes = [8, 128], strides = [1, 1]} : vector<8x512xf32> to vector<8x128xf32>
    %67 = arith.negf %66 : vector<8x128xf32>
    %68 = math.exp %67 : vector<8x128xf32>
    %cst_22 = arith.constant 1.000000e+00 : f32
    %69 = vector.broadcast %cst_22 : f32 to vector<8x128xf32>
    %70 = arith.addf %69, %68 : vector<8x128xf32>
    %71 = arith.divf %69, %70 : vector<8x128xf32>
    %72 = arith.mulf %63, %9 : vector<8x128xf32>
    %73 = arith.mulf %57, %65 : vector<8x128xf32>
    %74 = arith.addf %72, %73 : vector<8x128xf32>
    %75 = math.tanh %74 : vector<8x128xf32>
    %76 = arith.mulf %71, %75 : vector<8x128xf32>
    %77 = arith.index_cast %c0_i32 : i32 to index
    %c0_23 = arith.constant 0 : index
    %c0_24 = arith.constant 0 : index
    %78 = vector.load %arg1[%77, %c0_23, %c0_24] : memref<8x8x128xf32, #tpu.memory_space<vmem>>, vector<1x8x128xf32>
    %79 = vector.shape_cast %78 : vector<1x8x128xf32> to vector<8x128xf32>
    %cst_25 = arith.constant 0.000000e+00 : f32
    %80 = vector.broadcast %cst_25 : f32 to vector<8x128xf32>
    %81 = arith.cmpf ogt, %79, %80 : vector<8x128xf32>
    %82 = arith.index_cast %10 : i32 to index
    %c0_26 = arith.constant 0 : index
    %c0_27 = arith.constant 0 : index
    %83 = vector.load %arg1[%82, %c0_26, %c0_27] : memref<8x8x128xf32, #tpu.memory_space<vmem>>, vector<1x8x128xf32>
    %84 = vector.shape_cast %83 : vector<1x8x128xf32> to vector<8x128xf32>
    %cst_28 = arith.constant 0.000000e+00 : f32
    %85 = vector.broadcast %cst_28 : f32 to vector<8x128xf32>
    %86 = arith.cmpf ogt, %84, %85 : vector<8x128xf32>
    %cst_29 = arith.constant 0.000000e+00 : f32
    %87 = vector.broadcast %cst_29 : f32 to vector<8x128xf32>
    %88 = arith.select %81, %51, %87 : vector<8x128xi1>, vector<8x128xf32>
    %89 = arith.index_cast %c0_i32 : i32 to index
    %c0_30 = arith.constant 0 : index
    %c0_31 = arith.constant 0 : index
    %90 = vector.load %arg13[%89, %c0_30, %c0_31] : memref<8x8x128xf32, #tpu.memory_space<vmem>>, vector<1x8x128xf32>
    %91 = vector.shape_cast %90 : vector<1x8x128xf32> to vector<8x128xf32>
    %92 = vector.shape_cast %88 : vector<8x128xf32> to vector<1x8x128xf32>
    tpu.vector_store %arg13[%89, %c0_30, %c0_31], %92 {strides = array<i32>} : memref<8x8x128xf32, #tpu.memory_space<vmem>>, vector<1x8x128xf32>,
    %cst_32 = arith.constant 0.000000e+00 : f32
    %93 = vector.broadcast %cst_32 : f32 to vector<8x128xf32>
    %94 = arith.select %86, %76, %93 : vector<8x128xi1>, vector<8x128xf32>
    %95 = arith.index_cast %10 : i32 to index
    %c0_33 = arith.constant 0 : index
    %c0_34 = arith.constant 0 : index
    %96 = vector.load %arg14[%95, %c0_33, %c0_34] : memref<8x8x128xf32, #tpu.memory_space<vmem>>, vector<1x8x128xf32>
    %97 = vector.shape_cast %96 : vector<1x8x128xf32> to vector<8x128xf32>
    %98 = vector.shape_cast %94 : vector<8x128xf32> to vector<1x8x128xf32>
    tpu.vector_store %arg14[%95, %c0_33, %c0_34], %98 {strides = array<i32>} : memref<8x8x128xf32, #tpu.memory_space<vmem>>, vector<1x8x128xf32>,
    %99 = arith.select %81, %51, %9 : vector<8x128xi1>, vector<8x128xf32>
    %100 = arith.select %86, %76, %9 : vector<8x128xi1>, vector<8x128xf32>
    %101 = arith.select %81, %49, %9 : vector<8x128xi1>, vector<8x128xf32>
    %102 = arith.select %86, %74, %9 : vector<8x128xi1>, vector<8x128xf32>
    %c1_i32 = arith.constant 1 : i32
    %c7_i32_35 = arith.constant 7 : i32
    %103 = arith.subi %c7_i32_35, %c1_i32 : i32
    %104 = tpu.concatenate %99, %100 in 1 : vector<8x128xf32>, vector<8x128xf32> -> vector<8x256xf32>
    %105 = arith.truncf %104 : vector<8x256xf32> to vector<8x256xbf16>
    %c0_36 = arith.constant 0 : index
    %c0_37 = arith.constant 0 : index
    %106 = vector.load %arg3[%c0_36, %c0_37] : memref<256x1024xbf16, #tpu.memory_space<vmem>>, vector<256x1024xbf16>
    %cst_38 = arith.constant dense<0.000000e+00> : vector<8x1024xf32>
    %107 = tpu.matmul %105, %106, %cst_38 {dimension_numbers = #tpu.dot_dimension_numbers<[1], [0], [0], [1], [0, 0, 1, 1], [], []>} : vector<8x256xbf16>, vector<256x1024xbf16>, vector<8x1024xf32> -> vector<8x1024xf32>
    %108 = arith.index_cast %c1_i32 : i32 to index
    %c0_39 = arith.constant 0 : index
    %c0_40 = arith.constant 0 : index
    %109 = vector.load %arg12[%108, %c0_39, %c0_40] : memref<8x8x1024xf32, #tpu.memory_space<vmem>>, vector<1x8x1024xf32>
    %110 = vector.shape_cast %109 : vector<1x8x1024xf32> to vector<8x1024xf32>
    %111 = vector.extract_strided_slice %110 {offsets = [0, 0], sizes = [8, 512], strides = [1, 1]} : vector<8x1024xf32> to vector<8x512xf32>
    %112 = vector.extract_strided_slice %107 {offsets = [0, 0], sizes = [8, 512], strides = [1, 1]} : vector<8x1024xf32> to vector<8x512xf32>
    %113 = arith.addf %111, %112 : vector<8x512xf32>
    %114 = arith.index_cast %103 : i32 to index
    %c0_41 = arith.constant 0 : index
    %c0_42 = arith.constant 0 : index
    %115 = vector.load %arg12[%114, %c0_41, %c0_42] : memref<8x8x1024xf32, #tpu.memory_space<vmem>>, vector<1x8x1024xf32>
    %116 = vector.shape_cast %115 : vector<1x8x1024xf32> to vector<8x1024xf32>
    %117 = vector.extract_strided_slice %116 {offsets = [0, 512], sizes = [8, 512], strides = [1, 1]} : vector<8x1024xf32> to vector<8x512xf32>
    %118 = vector.extract_strided_slice %107 {offsets = [0, 512], sizes = [8, 512], strides = [1, 1]} : vector<8x1024xf32> to vector<8x512xf32>
    %119 = arith.addf %117, %118 : vector<8x512xf32>
    %120 = vector.extract_strided_slice %113 {offsets = [0, 0], sizes = [8, 128], strides = [1, 1]} : vector<8x512xf32> to vector<8x128xf32>
    %121 = arith.negf %120 : vector<8x128xf32>
    %122 = math.exp %121 : vector<8x128xf32>
    %cst_43 = arith.constant 1.000000e+00 : f32
    %123 = vector.broadcast %cst_43 : f32 to vector<8x128xf32>
    %124 = arith.addf %123, %122 : vector<8x128xf32>
    %125 = arith.divf %123, %124 : vector<8x128xf32>
    %126 = vector.extract_strided_slice %113 {offsets = [0, 128], sizes = [8, 128], strides = [1, 1]} : vector<8x512xf32> to vector<8x128xf32>
    %127 = arith.negf %126 : vector<8x128xf32>
    %128 = math.exp %127 : vector<8x128xf32>
    %cst_44 = arith.constant 1.000000e+00 : f32
    %129 = vector.broadcast %cst_44 : f32 to vector<8x128xf32>
    %130 = arith.addf %129, %128 : vector<8x128xf32>
    %131 = arith.divf %129, %130 : vector<8x128xf32>
    %132 = vector.extract_strided_slice %113 {offsets = [0, 256], sizes = [8, 128], strides = [1, 1]} : vector<8x512xf32> to vector<8x128xf32>
    %133 = math.tanh %132 : vector<8x128xf32>
    %134 = vector.extract_strided_slice %113 {offsets = [0, 384], sizes = [8, 128], strides = [1, 1]} : vector<8x512xf32> to vector<8x128xf32>
    %135 = arith.negf %134 : vector<8x128xf32>
    %136 = math.exp %135 : vector<8x128xf32>
    %cst_45 = arith.constant 1.000000e+00 : f32
    %137 = vector.broadcast %cst_45 : f32 to vector<8x128xf32>
    %138 = arith.addf %137, %136 : vector<8x128xf32>
    %139 = arith.divf %137, %138 : vector<8x128xf32>
    %140 = arith.mulf %131, %101 : vector<8x128xf32>
    %141 = arith.mulf %125, %133 : vector<8x128xf32>
    %142 = arith.addf %140, %141 : vector<8x128xf32>
    %143 = math.tanh %142 : vector<8x128xf32>
    %144 = arith.mulf %139, %143 : vector<8x128xf32>
    %145 = vector.extract_strided_slice %119 {offsets = [0, 0], sizes = [8, 128], strides = [1, 1]} : vector<8x512xf32> to vector<8x128xf32>
    %146 = arith.negf %145 : vector<8x128xf32>
    %147 = math.exp %146 : vector<8x128xf32>
    %cst_46 = arith.constant 1.000000e+00 : f32
    %148 = vector.broadcast %cst_46 : f32 to vector<8x128xf32>
    %149 = arith.addf %148, %147 : vector<8x128xf32>
    %150 = arith.divf %148, %149 : vector<8x128xf32>
    %151 = vector.extract_strided_slice %119 {offsets = [0, 128], sizes = [8, 128], strides = [1, 1]} : vector<8x512xf32> to vector<8x128xf32>
    %152 = arith.negf %151 : vector<8x128xf32>
    %153 = math.exp %152 : vector<8x128xf32>
    %cst_47 = arith.constant 1.000000e+00 : f32
    %154 = vector.broadcast %cst_47 : f32 to vector<8x128xf32>
    %155 = arith.addf %154, %153 : vector<8x128xf32>
    %156 = arith.divf %154, %155 : vector<8x128xf32>
    %157 = vector.extract_strided_slice %119 {offsets = [0, 256], sizes = [8, 128], strides = [1, 1]} : vector<8x512xf32> to vector<8x128xf32>
    %158 = math.tanh %157 : vector<8x128xf32>
    %159 = vector.extract_strided_slice %119 {offsets = [0, 384], sizes = [8, 128], strides = [1, 1]} : vector<8x512xf32> to vector<8x128xf32>
    %160 = arith.negf %159 : vector<8x128xf32>
    %161 = math.exp %160 : vector<8x128xf32>
    %cst_48 = arith.constant 1.000000e+00 : f32
    %162 = vector.broadcast %cst_48 : f32 to vector<8x128xf32>
    %163 = arith.addf %162, %161 : vector<8x128xf32>
    %164 = arith.divf %162, %163 : vector<8x128xf32>
    %165 = arith.mulf %156, %102 : vector<8x128xf32>
    %166 = arith.mulf %150, %158 : vector<8x128xf32>
    %167 = arith.addf %165, %166 : vector<8x128xf32>
    %168 = math.tanh %167 : vector<8x128xf32>
    %169 = arith.mulf %164, %168 : vector<8x128xf32>
    %170 = arith.index_cast %c1_i32 : i32 to index
    %c0_49 = arith.constant 0 : index
    %c0_50 = arith.constant 0 : index
    %171 = vector.load %arg1[%170, %c0_49, %c0_50] : memref<8x8x128xf32, #tpu.memory_space<vmem>>, vector<1x8x128xf32>
    %172 = vector.shape_cast %171 : vector<1x8x128xf32> to vector<8x128xf32>
    %cst_51 = arith.constant 0.000000e+00 : f32
    %173 = vector.broadcast %cst_51 : f32 to vector<8x128xf32>
    %174 = arith.cmpf ogt, %172, %173 : vector<8x128xf32>
    %175 = arith.index_cast %103 : i32 to index
    %c0_52 = arith.constant 0 : index
    %c0_53 = arith.constant 0 : index
    %176 = vector.load %arg1[%175, %c0_52, %c0_53] : memref<8x8x128xf32, #tpu.memory_space<vmem>>, vector<1x8x128xf32>
    %177 = vector.shape_cast %176 : vector<1x8x128xf32> to vector<8x128xf32>
    %cst_54 = arith.constant 0.000000e+00 : f32
    %178 = vector.broadcast %cst_54 : f32 to vector<8x128xf32>
    %179 = arith.cmpf ogt, %177, %178 : vector<8x128xf32>
    %cst_55 = arith.constant 0.000000e+00 : f32
    %180 = vector.broadcast %cst_55 : f32 to vector<8x128xf32>
    %181 = arith.select %174, %144, %180 : vector<8x128xi1>, vector<8x128xf32>
    %182 = arith.index_cast %c1_i32 : i32 to index
    %c0_56 = arith.constant 0 : index
    %c0_57 = arith.constant 0 : index
    %183 = vector.load %arg13[%182, %c0_56, %c0_57] : memref<8x8x128xf32, #tpu.memory_space<vmem>>, vector<1x8x128xf32>
    %184 = vector.shape_cast %183 : vector<1x8x128xf32> to vector<8x128xf32>
    %185 = vector.shape_cast %181 : vector<8x128xf32> to vector<1x8x128xf32>
    tpu.vector_store %arg13[%182, %c0_56, %c0_57], %185 {strides = array<i32>} : memref<8x8x128xf32, #tpu.memory_space<vmem>>, vector<1x8x128xf32>,
    %cst_58 = arith.constant 0.000000e+00 : f32
    %186 = vector.broadcast %cst_58 : f32 to vector<8x128xf32>
    %187 = arith.select %179, %169, %186 : vector<8x128xi1>, vector<8x128xf32>
    %188 = arith.index_cast %103 : i32 to index
    %c0_59 = arith.constant 0 : index
    %c0_60 = arith.constant 0 : index
    %189 = vector.load %arg14[%188, %c0_59, %c0_60] : memref<8x8x128xf32, #tpu.memory_space<vmem>>, vector<1x8x128xf32>
    %190 = vector.shape_cast %189 : vector<1x8x128xf32> to vector<8x128xf32>
    %191 = vector.shape_cast %187 : vector<8x128xf32> to vector<1x8x128xf32>
    tpu.vector_store %arg14[%188, %c0_59, %c0_60], %191 {strides = array<i32>} : memref<8x8x128xf32, #tpu.memory_space<vmem>>, vector<1x8x128xf32>,
    %192 = arith.select %174, %144, %99 : vector<8x128xi1>, vector<8x128xf32>
    %193 = arith.select %179, %169, %100 : vector<8x128xi1>, vector<8x128xf32>
    %194 = arith.select %174, %142, %101 : vector<8x128xi1>, vector<8x128xf32>
    %195 = arith.select %179, %167, %102 : vector<8x128xi1>, vector<8x128xf32>
    %c2_i32 = arith.constant 2 : i32
    %c7_i32_61 = arith.constant 7 : i32
    %196 = arith.subi %c7_i32_61, %c2_i32 : i32
    %197 = tpu.concatenate %192, %193 in 1 : vector<8x128xf32>, vector<8x128xf32> -> vector<8x256xf32>
    %198 = arith.truncf %197 : vector<8x256xf32> to vector<8x256xbf16>
    %c0_62 = arith.constant 0 : index
    %c0_63 = arith.constant 0 : index
    %199 = vector.load %arg3[%c0_62, %c0_63] : memref<256x1024xbf16, #tpu.memory_space<vmem>>, vector<256x1024xbf16>
    %cst_64 = arith.constant dense<0.000000e+00> : vector<8x1024xf32>
    %200 = tpu.matmul %198, %199, %cst_64 {dimension_numbers = #tpu.dot_dimension_numbers<[1], [0], [0], [1], [0, 0, 1, 1], [], []>} : vector<8x256xbf16>, vector<256x1024xbf16>, vector<8x1024xf32> -> vector<8x1024xf32>
    %201 = arith.index_cast %c2_i32 : i32 to index
    %c0_65 = arith.constant 0 : index
    %c0_66 = arith.constant 0 : index
    %202 = vector.load %arg12[%201, %c0_65, %c0_66] : memref<8x8x1024xf32, #tpu.memory_space<vmem>>, vector<1x8x1024xf32>
    %203 = vector.shape_cast %202 : vector<1x8x1024xf32> to vector<8x1024xf32>
    %204 = vector.extract_strided_slice %203 {offsets = [0, 0], sizes = [8, 512], strides = [1, 1]} : vector<8x1024xf32> to vector<8x512xf32>
    %205 = vector.extract_strided_slice %200 {offsets = [0, 0], sizes = [8, 512], strides = [1, 1]} : vector<8x1024xf32> to vector<8x512xf32>
    %206 = arith.addf %204, %205 : vector<8x512xf32>
    %207 = arith.index_cast %196 : i32 to index
    %c0_67 = arith.constant 0 : index
    %c0_68 = arith.constant 0 : index
    %208 = vector.load %arg12[%207, %c0_67, %c0_68] : memref<8x8x1024xf32, #tpu.memory_space<vmem>>, vector<1x8x1024xf32>
    %209 = vector.shape_cast %208 : vector<1x8x1024xf32> to vector<8x1024xf32>
    %210 = vector.extract_strided_slice %209 {offsets = [0, 512], sizes = [8, 512], strides = [1, 1]} : vector<8x1024xf32> to vector<8x512xf32>
    %211 = vector.extract_strided_slice %200 {offsets = [0, 512], sizes = [8, 512], strides = [1, 1]} : vector<8x1024xf32> to vector<8x512xf32>
    %212 = arith.addf %210, %211 : vector<8x512xf32>
    %213 = vector.extract_strided_slice %206 {offsets = [0, 0], sizes = [8, 128], strides = [1, 1]} : vector<8x512xf32> to vector<8x128xf32>
    %214 = arith.negf %213 : vector<8x128xf32>
    %215 = math.exp %214 : vector<8x128xf32>
    %cst_69 = arith.constant 1.000000e+00 : f32
    %216 = vector.broadcast %cst_69 : f32 to vector<8x128xf32>
    %217 = arith.addf %216, %215 : vector<8x128xf32>
    %218 = arith.divf %216, %217 : vector<8x128xf32>
    %219 = vector.extract_strided_slice %206 {offsets = [0, 128], sizes = [8, 128], strides = [1, 1]} : vector<8x512xf32> to vector<8x128xf32>
    %220 = arith.negf %219 : vector<8x128xf32>
    %221 = math.exp %220 : vector<8x128xf32>
    %cst_70 = arith.constant 1.000000e+00 : f32
    %222 = vector.broadcast %cst_70 : f32 to vector<8x128xf32>
    %223 = arith.addf %222, %221 : vector<8x128xf32>
    %224 = arith.divf %222, %223 : vector<8x128xf32>
    %225 = vector.extract_strided_slice %206 {offsets = [0, 256], sizes = [8, 128], strides = [1, 1]} : vector<8x512xf32> to vector<8x128xf32>
    %226 = math.tanh %225 : vector<8x128xf32>
    %227 = vector.extract_strided_slice %206 {offsets = [0, 384], sizes = [8, 128], strides = [1, 1]} : vector<8x512xf32> to vector<8x128xf32>
    %228 = arith.negf %227 : vector<8x128xf32>
    %229 = math.exp %228 : vector<8x128xf32>
    %cst_71 = arith.constant 1.000000e+00 : f32
    %230 = vector.broadcast %cst_71 : f32 to vector<8x128xf32>
    %231 = arith.addf %230, %229 : vector<8x128xf32>
    %232 = arith.divf %230, %231 : vector<8x128xf32>
    %233 = arith.mulf %224, %194 : vector<8x128xf32>
    %234 = arith.mulf %218, %226 : vector<8x128xf32>
    %235 = arith.addf %233, %234 : vector<8x128xf32>
    %236 = math.tanh %235 : vector<8x128xf32>
    %237 = arith.mulf %232, %236 : vector<8x128xf32>
    %238 = vector.extract_strided_slice %212 {offsets = [0, 0], sizes = [8, 128], strides = [1, 1]} : vector<8x512xf32> to vector<8x128xf32>
    %239 = arith.negf %238 : vector<8x128xf32>
    %240 = math.exp %239 : vector<8x128xf32>
    %cst_72 = arith.constant 1.000000e+00 : f32
    %241 = vector.broadcast %cst_72 : f32 to vector<8x128xf32>
    %242 = arith.addf %241, %240 : vector<8x128xf32>
    %243 = arith.divf %241, %242 : vector<8x128xf32>
    %244 = vector.extract_strided_slice %212 {offsets = [0, 128], sizes = [8, 128], strides = [1, 1]} : vector<8x512xf32> to vector<8x128xf32>
    %245 = arith.negf %244 : vector<8x128xf32>
    %246 = math.exp %245 : vector<8x128xf32>
    %cst_73 = arith.constant 1.000000e+00 : f32
    %247 = vector.broadcast %cst_73 : f32 to vector<8x128xf32>
    %248 = arith.addf %247, %246 : vector<8x128xf32>
    %249 = arith.divf %247, %248 : vector<8x128xf32>
    %250 = vector.extract_strided_slice %212 {offsets = [0, 256], sizes = [8, 128], strides = [1, 1]} : vector<8x512xf32> to vector<8x128xf32>
    %251 = math.tanh %250 : vector<8x128xf32>
    %252 = vector.extract_strided_slice %212 {offsets = [0, 384], sizes = [8, 128], strides = [1, 1]} : vector<8x512xf32> to vector<8x128xf32>
    %253 = arith.negf %252 : vector<8x128xf32>
    %254 = math.exp %253 : vector<8x128xf32>
    %cst_74 = arith.constant 1.000000e+00 : f32
    %255 = vector.broadcast %cst_74 : f32 to vector<8x128xf32>
    %256 = arith.addf %255, %254 : vector<8x128xf32>
    %257 = arith.divf %255, %256 : vector<8x128xf32>
    %258 = arith.mulf %249, %195 : vector<8x128xf32>
    %259 = arith.mulf %243, %251 : vector<8x128xf32>
    %260 = arith.addf %258, %259 : vector<8x128xf32>
    %261 = math.tanh %260 : vector<8x128xf32>
    %262 = arith.mulf %257, %261 : vector<8x128xf32>
    %263 = arith.index_cast %c2_i32 : i32 to index
    %c0_75 = arith.constant 0 : index
    %c0_76 = arith.constant 0 : index
    %264 = vector.load %arg1[%263, %c0_75, %c0_76] : memref<8x8x128xf32, #tpu.memory_space<vmem>>, vector<1x8x128xf32>
    %265 = vector.shape_cast %264 : vector<1x8x128xf32> to vector<8x128xf32>
    %cst_77 = arith.constant 0.000000e+00 : f32
    %266 = vector.broadcast %cst_77 : f32 to vector<8x128xf32>
    %267 = arith.cmpf ogt, %265, %266 : vector<8x128xf32>
    %268 = arith.index_cast %196 : i32 to index
    %c0_78 = arith.constant 0 : index
    %c0_79 = arith.constant 0 : index
    %269 = vector.load %arg1[%268, %c0_78, %c0_79] : memref<8x8x128xf32, #tpu.memory_space<vmem>>, vector<1x8x128xf32>
    %270 = vector.shape_cast %269 : vector<1x8x128xf32> to vector<8x128xf32>
    %cst_80 = arith.constant 0.000000e+00 : f32
    %271 = vector.broadcast %cst_80 : f32 to vector<8x128xf32>
    %272 = arith.cmpf ogt, %270, %271 : vector<8x128xf32>
    %cst_81 = arith.constant 0.000000e+00 : f32
    %273 = vector.broadcast %cst_81 : f32 to vector<8x128xf32>
    %274 = arith.select %267, %237, %273 : vector<8x128xi1>, vector<8x128xf32>
    %275 = arith.index_cast %c2_i32 : i32 to index
    %c0_82 = arith.constant 0 : index
    %c0_83 = arith.constant 0 : index
    %276 = vector.load %arg13[%275, %c0_82, %c0_83] : memref<8x8x128xf32, #tpu.memory_space<vmem>>, vector<1x8x128xf32>
    %277 = vector.shape_cast %276 : vector<1x8x128xf32> to vector<8x128xf32>
    %278 = vector.shape_cast %274 : vector<8x128xf32> to vector<1x8x128xf32>
    tpu.vector_store %arg13[%275, %c0_82, %c0_83], %278 {strides = array<i32>} : memref<8x8x128xf32, #tpu.memory_space<vmem>>, vector<1x8x128xf32>,
    %cst_84 = arith.constant 0.000000e+00 : f32
    %279 = vector.broadcast %cst_84 : f32 to vector<8x128xf32>
    %280 = arith.select %272, %262, %279 : vector<8x128xi1>, vector<8x128xf32>
    %281 = arith.index_cast %196 : i32 to index
    %c0_85 = arith.constant 0 : index
    %c0_86 = arith.constant 0 : index
    %282 = vector.load %arg14[%281, %c0_85, %c0_86] : memref<8x8x128xf32, #tpu.memory_space<vmem>>, vector<1x8x128xf32>
    %283 = vector.shape_cast %282 : vector<1x8x128xf32> to vector<8x128xf32>
    %284 = vector.shape_cast %280 : vector<8x128xf32> to vector<1x8x128xf32>
    tpu.vector_store %arg14[%281, %c0_85, %c0_86], %284 {strides = array<i32>} : memref<8x8x128xf32, #tpu.memory_space<vmem>>, vector<1x8x128xf32>,
    %285 = arith.select %267, %237, %192 : vector<8x128xi1>, vector<8x128xf32>
    %286 = arith.select %272, %262, %193 : vector<8x128xi1>, vector<8x128xf32>
    %287 = arith.select %267, %235, %194 : vector<8x128xi1>, vector<8x128xf32>
    %288 = arith.select %272, %260, %195 : vector<8x128xi1>, vector<8x128xf32>
    %c3_i32 = arith.constant 3 : i32
    %c7_i32_87 = arith.constant 7 : i32
    %289 = arith.subi %c7_i32_87, %c3_i32 : i32
    %290 = tpu.concatenate %285, %286 in 1 : vector<8x128xf32>, vector<8x128xf32> -> vector<8x256xf32>
    %291 = arith.truncf %290 : vector<8x256xf32> to vector<8x256xbf16>
    %c0_88 = arith.constant 0 : index
    %c0_89 = arith.constant 0 : index
    %292 = vector.load %arg3[%c0_88, %c0_89] : memref<256x1024xbf16, #tpu.memory_space<vmem>>, vector<256x1024xbf16>
    %cst_90 = arith.constant dense<0.000000e+00> : vector<8x1024xf32>
    %293 = tpu.matmul %291, %292, %cst_90 {dimension_numbers = #tpu.dot_dimension_numbers<[1], [0], [0], [1], [0, 0, 1, 1], [], []>} : vector<8x256xbf16>, vector<256x1024xbf16>, vector<8x1024xf32> -> vector<8x1024xf32>
    %294 = arith.index_cast %c3_i32 : i32 to index
    %c0_91 = arith.constant 0 : index
    %c0_92 = arith.constant 0 : index
    %295 = vector.load %arg12[%294, %c0_91, %c0_92] : memref<8x8x1024xf32, #tpu.memory_space<vmem>>, vector<1x8x1024xf32>
    %296 = vector.shape_cast %295 : vector<1x8x1024xf32> to vector<8x1024xf32>
    %297 = vector.extract_strided_slice %296 {offsets = [0, 0], sizes = [8, 512], strides = [1, 1]} : vector<8x1024xf32> to vector<8x512xf32>
    %298 = vector.extract_strided_slice %293 {offsets = [0, 0], sizes = [8, 512], strides = [1, 1]} : vector<8x1024xf32> to vector<8x512xf32>
    %299 = arith.addf %297, %298 : vector<8x512xf32>
    %300 = arith.index_cast %289 : i32 to index
    %c0_93 = arith.constant 0 : index
    %c0_94 = arith.constant 0 : index
    %301 = vector.load %arg12[%300, %c0_93, %c0_94] : memref<8x8x1024xf32, #tpu.memory_space<vmem>>, vector<1x8x1024xf32>
    %302 = vector.shape_cast %301 : vector<1x8x1024xf32> to vector<8x1024xf32>
    %303 = vector.extract_strided_slice %302 {offsets = [0, 512], sizes = [8, 512], strides = [1, 1]} : vector<8x1024xf32> to vector<8x512xf32>
    %304 = vector.extract_strided_slice %293 {offsets = [0, 512], sizes = [8, 512], strides = [1, 1]} : vector<8x1024xf32> to vector<8x512xf32>
    %305 = arith.addf %303, %304 : vector<8x512xf32>
    %306 = vector.extract_strided_slice %299 {offsets = [0, 0], sizes = [8, 128], strides = [1, 1]} : vector<8x512xf32> to vector<8x128xf32>
    %307 = arith.negf %306 : vector<8x128xf32>
    %308 = math.exp %307 : vector<8x128xf32>
    %cst_95 = arith.constant 1.000000e+00 : f32
    %309 = vector.broadcast %cst_95 : f32 to vector<8x128xf32>
    %310 = arith.addf %309, %308 : vector<8x128xf32>
    %311 = arith.divf %309, %310 : vector<8x128xf32>
    %312 = vector.extract_strided_slice %299 {offsets = [0, 128], sizes = [8, 128], strides = [1, 1]} : vector<8x512xf32> to vector<8x128xf32>
    %313 = arith.negf %312 : vector<8x128xf32>
    %314 = math.exp %313 : vector<8x128xf32>
    %cst_96 = arith.constant 1.000000e+00 : f32
    %315 = vector.broadcast %cst_96 : f32 to vector<8x128xf32>
    %316 = arith.addf %315, %314 : vector<8x128xf32>
    %317 = arith.divf %315, %316 : vector<8x128xf32>
    %318 = vector.extract_strided_slice %299 {offsets = [0, 256], sizes = [8, 128], strides = [1, 1]} : vector<8x512xf32> to vector<8x128xf32>
    %319 = math.tanh %318 : vector<8x128xf32>
    %320 = vector.extract_strided_slice %299 {offsets = [0, 384], sizes = [8, 128], strides = [1, 1]} : vector<8x512xf32> to vector<8x128xf32>
    %321 = arith.negf %320 : vector<8x128xf32>
    %322 = math.exp %321 : vector<8x128xf32>
    %cst_97 = arith.constant 1.000000e+00 : f32
    %323 = vector.broadcast %cst_97 : f32 to vector<8x128xf32>
    %324 = arith.addf %323, %322 : vector<8x128xf32>
    %325 = arith.divf %323, %324 : vector<8x128xf32>
    %326 = arith.mulf %317, %287 : vector<8x128xf32>
    %327 = arith.mulf %311, %319 : vector<8x128xf32>
    %328 = arith.addf %326, %327 : vector<8x128xf32>
    %329 = math.tanh %328 : vector<8x128xf32>
    %330 = arith.mulf %325, %329 : vector<8x128xf32>
    %331 = vector.extract_strided_slice %305 {offsets = [0, 0], sizes = [8, 128], strides = [1, 1]} : vector<8x512xf32> to vector<8x128xf32>
    %332 = arith.negf %331 : vector<8x128xf32>
    %333 = math.exp %332 : vector<8x128xf32>
    %cst_98 = arith.constant 1.000000e+00 : f32
    %334 = vector.broadcast %cst_98 : f32 to vector<8x128xf32>
    %335 = arith.addf %334, %333 : vector<8x128xf32>
    %336 = arith.divf %334, %335 : vector<8x128xf32>
    %337 = vector.extract_strided_slice %305 {offsets = [0, 128], sizes = [8, 128], strides = [1, 1]} : vector<8x512xf32> to vector<8x128xf32>
    %338 = arith.negf %337 : vector<8x128xf32>
    %339 = math.exp %338 : vector<8x128xf32>
    %cst_99 = arith.constant 1.000000e+00 : f32
    %340 = vector.broadcast %cst_99 : f32 to vector<8x128xf32>
    %341 = arith.addf %340, %339 : vector<8x128xf32>
    %342 = arith.divf %340, %341 : vector<8x128xf32>
    %343 = vector.extract_strided_slice %305 {offsets = [0, 256], sizes = [8, 128], strides = [1, 1]} : vector<8x512xf32> to vector<8x128xf32>
    %344 = math.tanh %343 : vector<8x128xf32>
    %345 = vector.extract_strided_slice %305 {offsets = [0, 384], sizes = [8, 128], strides = [1, 1]} : vector<8x512xf32> to vector<8x128xf32>
    %346 = arith.negf %345 : vector<8x128xf32>
    %347 = math.exp %346 : vector<8x128xf32>
    %cst_100 = arith.constant 1.000000e+00 : f32
    %348 = vector.broadcast %cst_100 : f32 to vector<8x128xf32>
    %349 = arith.addf %348, %347 : vector<8x128xf32>
    %350 = arith.divf %348, %349 : vector<8x128xf32>
    %351 = arith.mulf %342, %288 : vector<8x128xf32>
    %352 = arith.mulf %336, %344 : vector<8x128xf32>
    %353 = arith.addf %351, %352 : vector<8x128xf32>
    %354 = math.tanh %353 : vector<8x128xf32>
    %355 = arith.mulf %350, %354 : vector<8x128xf32>
    %356 = arith.index_cast %c3_i32 : i32 to index
    %c0_101 = arith.constant 0 : index
    %c0_102 = arith.constant 0 : index
    %357 = vector.load %arg1[%356, %c0_101, %c0_102] : memref<8x8x128xf32, #tpu.memory_space<vmem>>, vector<1x8x128xf32>
    %358 = vector.shape_cast %357 : vector<1x8x128xf32> to vector<8x128xf32>
    %cst_103 = arith.constant 0.000000e+00 : f32
    %359 = vector.broadcast %cst_103 : f32 to vector<8x128xf32>
    %360 = arith.cmpf ogt, %358, %359 : vector<8x128xf32>
    %361 = arith.index_cast %289 : i32 to index
    %c0_104 = arith.constant 0 : index
    %c0_105 = arith.constant 0 : index
    %362 = vector.load %arg1[%361, %c0_104, %c0_105] : memref<8x8x128xf32, #tpu.memory_space<vmem>>, vector<1x8x128xf32>
    %363 = vector.shape_cast %362 : vector<1x8x128xf32> to vector<8x128xf32>
    %cst_106 = arith.constant 0.000000e+00 : f32
    %364 = vector.broadcast %cst_106 : f32 to vector<8x128xf32>
    %365 = arith.cmpf ogt, %363, %364 : vector<8x128xf32>
    %cst_107 = arith.constant 0.000000e+00 : f32
    %366 = vector.broadcast %cst_107 : f32 to vector<8x128xf32>
    %367 = arith.select %360, %330, %366 : vector<8x128xi1>, vector<8x128xf32>
    %368 = arith.index_cast %c3_i32 : i32 to index
    %c0_108 = arith.constant 0 : index
    %c0_109 = arith.constant 0 : index
    %369 = vector.load %arg13[%368, %c0_108, %c0_109] : memref<8x8x128xf32, #tpu.memory_space<vmem>>, vector<1x8x128xf32>
    %370 = vector.shape_cast %369 : vector<1x8x128xf32> to vector<8x128xf32>
    %371 = vector.shape_cast %367 : vector<8x128xf32> to vector<1x8x128xf32>
    tpu.vector_store %arg13[%368, %c0_108, %c0_109], %371 {strides = array<i32>} : memref<8x8x128xf32, #tpu.memory_space<vmem>>, vector<1x8x128xf32>,
    %cst_110 = arith.constant 0.000000e+00 : f32
    %372 = vector.broadcast %cst_110 : f32 to vector<8x128xf32>
    %373 = arith.select %365, %355, %372 : vector<8x128xi1>, vector<8x128xf32>
    %374 = arith.index_cast %289 : i32 to index
    %c0_111 = arith.constant 0 : index
    %c0_112 = arith.constant 0 : index
    %375 = vector.load %arg14[%374, %c0_111, %c0_112] : memref<8x8x128xf32, #tpu.memory_space<vmem>>, vector<1x8x128xf32>
    %376 = vector.shape_cast %375 : vector<1x8x128xf32> to vector<8x128xf32>
    %377 = vector.shape_cast %373 : vector<8x128xf32> to vector<1x8x128xf32>
    tpu.vector_store %arg14[%374, %c0_111, %c0_112], %377 {strides = array<i32>} : memref<8x8x128xf32, #tpu.memory_space<vmem>>, vector<1x8x128xf32>,
    %378 = arith.select %360, %330, %285 : vector<8x128xi1>, vector<8x128xf32>
    %379 = arith.select %365, %355, %286 : vector<8x128xi1>, vector<8x128xf32>
    %380 = arith.select %360, %328, %287 : vector<8x128xi1>, vector<8x128xf32>
    %381 = arith.select %365, %353, %288 : vector<8x128xi1>, vector<8x128xf32>
    %c4_i32 = arith.constant 4 : i32
    %c7_i32_113 = arith.constant 7 : i32
    %382 = arith.subi %c7_i32_113, %c4_i32 : i32
    %383 = tpu.concatenate %378, %379 in 1 : vector<8x128xf32>, vector<8x128xf32> -> vector<8x256xf32>
    %384 = arith.truncf %383 : vector<8x256xf32> to vector<8x256xbf16>
    %c0_114 = arith.constant 0 : index
    %c0_115 = arith.constant 0 : index
    %385 = vector.load %arg3[%c0_114, %c0_115] : memref<256x1024xbf16, #tpu.memory_space<vmem>>, vector<256x1024xbf16>
    %cst_116 = arith.constant dense<0.000000e+00> : vector<8x1024xf32>
    %386 = tpu.matmul %384, %385, %cst_116 {dimension_numbers = #tpu.dot_dimension_numbers<[1], [0], [0], [1], [0, 0, 1, 1], [], []>} : vector<8x256xbf16>, vector<256x1024xbf16>, vector<8x1024xf32> -> vector<8x1024xf32>
    %387 = arith.index_cast %c4_i32 : i32 to index
    %c0_117 = arith.constant 0 : index
    %c0_118 = arith.constant 0 : index
    %388 = vector.load %arg12[%387, %c0_117, %c0_118] : memref<8x8x1024xf32, #tpu.memory_space<vmem>>, vector<1x8x1024xf32>
    %389 = vector.shape_cast %388 : vector<1x8x1024xf32> to vector<8x1024xf32>
    %390 = vector.extract_strided_slice %389 {offsets = [0, 0], sizes = [8, 512], strides = [1, 1]} : vector<8x1024xf32> to vector<8x512xf32>
    %391 = vector.extract_strided_slice %386 {offsets = [0, 0], sizes = [8, 512], strides = [1, 1]} : vector<8x1024xf32> to vector<8x512xf32>
    %392 = arith.addf %390, %391 : vector<8x512xf32>
    %393 = arith.index_cast %382 : i32 to index
    %c0_119 = arith.constant 0 : index
    %c0_120 = arith.constant 0 : index
    %394 = vector.load %arg12[%393, %c0_119, %c0_120] : memref<8x8x1024xf32, #tpu.memory_space<vmem>>, vector<1x8x1024xf32>
    %395 = vector.shape_cast %394 : vector<1x8x1024xf32> to vector<8x1024xf32>
    %396 = vector.extract_strided_slice %395 {offsets = [0, 512], sizes = [8, 512], strides = [1, 1]} : vector<8x1024xf32> to vector<8x512xf32>
    %397 = vector.extract_strided_slice %386 {offsets = [0, 512], sizes = [8, 512], strides = [1, 1]} : vector<8x1024xf32> to vector<8x512xf32>
    %398 = arith.addf %396, %397 : vector<8x512xf32>
    %399 = vector.extract_strided_slice %392 {offsets = [0, 0], sizes = [8, 128], strides = [1, 1]} : vector<8x512xf32> to vector<8x128xf32>
    %400 = arith.negf %399 : vector<8x128xf32>
    %401 = math.exp %400 : vector<8x128xf32>
    %cst_121 = arith.constant 1.000000e+00 : f32
    %402 = vector.broadcast %cst_121 : f32 to vector<8x128xf32>
    %403 = arith.addf %402, %401 : vector<8x128xf32>
    %404 = arith.divf %402, %403 : vector<8x128xf32>
    %405 = vector.extract_strided_slice %392 {offsets = [0, 128], sizes = [8, 128], strides = [1, 1]} : vector<8x512xf32> to vector<8x128xf32>
    %406 = arith.negf %405 : vector<8x128xf32>
    %407 = math.exp %406 : vector<8x128xf32>
    %cst_122 = arith.constant 1.000000e+00 : f32
    %408 = vector.broadcast %cst_122 : f32 to vector<8x128xf32>
    %409 = arith.addf %408, %407 : vector<8x128xf32>
    %410 = arith.divf %408, %409 : vector<8x128xf32>
    %411 = vector.extract_strided_slice %392 {offsets = [0, 256], sizes = [8, 128], strides = [1, 1]} : vector<8x512xf32> to vector<8x128xf32>
    %412 = math.tanh %411 : vector<8x128xf32>
    %413 = vector.extract_strided_slice %392 {offsets = [0, 384], sizes = [8, 128], strides = [1, 1]} : vector<8x512xf32> to vector<8x128xf32>
    %414 = arith.negf %413 : vector<8x128xf32>
    %415 = math.exp %414 : vector<8x128xf32>
    %cst_123 = arith.constant 1.000000e+00 : f32
    %416 = vector.broadcast %cst_123 : f32 to vector<8x128xf32>
    %417 = arith.addf %416, %415 : vector<8x128xf32>
    %418 = arith.divf %416, %417 : vector<8x128xf32>
    %419 = arith.mulf %410, %380 : vector<8x128xf32>
    %420 = arith.mulf %404, %412 : vector<8x128xf32>
    %421 = arith.addf %419, %420 : vector<8x128xf32>
    %422 = math.tanh %421 : vector<8x128xf32>
    %423 = arith.mulf %418, %422 : vector<8x128xf32>
    %424 = vector.extract_strided_slice %398 {offsets = [0, 0], sizes = [8, 128], strides = [1, 1]} : vector<8x512xf32> to vector<8x128xf32>
    %425 = arith.negf %424 : vector<8x128xf32>
    %426 = math.exp %425 : vector<8x128xf32>
    %cst_124 = arith.constant 1.000000e+00 : f32
    %427 = vector.broadcast %cst_124 : f32 to vector<8x128xf32>
    %428 = arith.addf %427, %426 : vector<8x128xf32>
    %429 = arith.divf %427, %428 : vector<8x128xf32>
    %430 = vector.extract_strided_slice %398 {offsets = [0, 128], sizes = [8, 128], strides = [1, 1]} : vector<8x512xf32> to vector<8x128xf32>
    %431 = arith.negf %430 : vector<8x128xf32>
    %432 = math.exp %431 : vector<8x128xf32>
    %cst_125 = arith.constant 1.000000e+00 : f32
    %433 = vector.broadcast %cst_125 : f32 to vector<8x128xf32>
    %434 = arith.addf %433, %432 : vector<8x128xf32>
    %435 = arith.divf %433, %434 : vector<8x128xf32>
    %436 = vector.extract_strided_slice %398 {offsets = [0, 256], sizes = [8, 128], strides = [1, 1]} : vector<8x512xf32> to vector<8x128xf32>
    %437 = math.tanh %436 : vector<8x128xf32>
    %438 = vector.extract_strided_slice %398 {offsets = [0, 384], sizes = [8, 128], strides = [1, 1]} : vector<8x512xf32> to vector<8x128xf32>
    %439 = arith.negf %438 : vector<8x128xf32>
    %440 = math.exp %439 : vector<8x128xf32>
    %cst_126 = arith.constant 1.000000e+00 : f32
    %441 = vector.broadcast %cst_126 : f32 to vector<8x128xf32>
    %442 = arith.addf %441, %440 : vector<8x128xf32>
    %443 = arith.divf %441, %442 : vector<8x128xf32>
    %444 = arith.mulf %435, %381 : vector<8x128xf32>
    %445 = arith.mulf %429, %437 : vector<8x128xf32>
    %446 = arith.addf %444, %445 : vector<8x128xf32>
    %447 = math.tanh %446 : vector<8x128xf32>
    %448 = arith.mulf %443, %447 : vector<8x128xf32>
    %449 = arith.index_cast %c4_i32 : i32 to index
    %c0_127 = arith.constant 0 : index
    %c0_128 = arith.constant 0 : index
    %450 = vector.load %arg1[%449, %c0_127, %c0_128] : memref<8x8x128xf32, #tpu.memory_space<vmem>>, vector<1x8x128xf32>
    %451 = vector.shape_cast %450 : vector<1x8x128xf32> to vector<8x128xf32>
    %cst_129 = arith.constant 0.000000e+00 : f32
    %452 = vector.broadcast %cst_129 : f32 to vector<8x128xf32>
    %453 = arith.cmpf ogt, %451, %452 : vector<8x128xf32>
    %454 = arith.index_cast %382 : i32 to index
    %c0_130 = arith.constant 0 : index
    %c0_131 = arith.constant 0 : index
    %455 = vector.load %arg1[%454, %c0_130, %c0_131] : memref<8x8x128xf32, #tpu.memory_space<vmem>>, vector<1x8x128xf32>
    %456 = vector.shape_cast %455 : vector<1x8x128xf32> to vector<8x128xf32>
    %cst_132 = arith.constant 0.000000e+00 : f32
    %457 = vector.broadcast %cst_132 : f32 to vector<8x128xf32>
    %458 = arith.cmpf ogt, %456, %457 : vector<8x128xf32>
    %cst_133 = arith.constant 0.000000e+00 : f32
    %459 = vector.broadcast %cst_133 : f32 to vector<8x128xf32>
    %460 = arith.select %453, %423, %459 : vector<8x128xi1>, vector<8x128xf32>
    %461 = arith.index_cast %c4_i32 : i32 to index
    %c0_134 = arith.constant 0 : index
    %c0_135 = arith.constant 0 : index
    %462 = vector.load %arg13[%461, %c0_134, %c0_135] : memref<8x8x128xf32, #tpu.memory_space<vmem>>, vector<1x8x128xf32>
    %463 = vector.shape_cast %462 : vector<1x8x128xf32> to vector<8x128xf32>
    %464 = vector.shape_cast %460 : vector<8x128xf32> to vector<1x8x128xf32>
    tpu.vector_store %arg13[%461, %c0_134, %c0_135], %464 {strides = array<i32>} : memref<8x8x128xf32, #tpu.memory_space<vmem>>, vector<1x8x128xf32>,
    %cst_136 = arith.constant 0.000000e+00 : f32
    %465 = vector.broadcast %cst_136 : f32 to vector<8x128xf32>
    %466 = arith.select %458, %448, %465 : vector<8x128xi1>, vector<8x128xf32>
    %467 = arith.index_cast %382 : i32 to index
    %c0_137 = arith.constant 0 : index
    %c0_138 = arith.constant 0 : index
    %468 = vector.load %arg14[%467, %c0_137, %c0_138] : memref<8x8x128xf32, #tpu.memory_space<vmem>>, vector<1x8x128xf32>
    %469 = vector.shape_cast %468 : vector<1x8x128xf32> to vector<8x128xf32>
    %470 = vector.shape_cast %466 : vector<8x128xf32> to vector<1x8x128xf32>
    tpu.vector_store %arg14[%467, %c0_137, %c0_138], %470 {strides = array<i32>} : memref<8x8x128xf32, #tpu.memory_space<vmem>>, vector<1x8x128xf32>,
    %471 = arith.select %453, %423, %378 : vector<8x128xi1>, vector<8x128xf32>
    %472 = arith.select %458, %448, %379 : vector<8x128xi1>, vector<8x128xf32>
    %473 = arith.select %453, %421, %380 : vector<8x128xi1>, vector<8x128xf32>
    %474 = arith.select %458, %446, %381 : vector<8x128xi1>, vector<8x128xf32>
    %c5_i32 = arith.constant 5 : i32
    %c7_i32_139 = arith.constant 7 : i32
    %475 = arith.subi %c7_i32_139, %c5_i32 : i32
    %476 = tpu.concatenate %471, %472 in 1 : vector<8x128xf32>, vector<8x128xf32> -> vector<8x256xf32>
    %477 = arith.truncf %476 : vector<8x256xf32> to vector<8x256xbf16>
    %c0_140 = arith.constant 0 : index
    %c0_141 = arith.constant 0 : index
    %478 = vector.load %arg3[%c0_140, %c0_141] : memref<256x1024xbf16, #tpu.memory_space<vmem>>, vector<256x1024xbf16>
    %cst_142 = arith.constant dense<0.000000e+00> : vector<8x1024xf32>
    %479 = tpu.matmul %477, %478, %cst_142 {dimension_numbers = #tpu.dot_dimension_numbers<[1], [0], [0], [1], [0, 0, 1, 1], [], []>} : vector<8x256xbf16>, vector<256x1024xbf16>, vector<8x1024xf32> -> vector<8x1024xf32>
    %480 = arith.index_cast %c5_i32 : i32 to index
    %c0_143 = arith.constant 0 : index
    %c0_144 = arith.constant 0 : index
    %481 = vector.load %arg12[%480, %c0_143, %c0_144] : memref<8x8x1024xf32, #tpu.memory_space<vmem>>, vector<1x8x1024xf32>
    %482 = vector.shape_cast %481 : vector<1x8x1024xf32> to vector<8x1024xf32>
    %483 = vector.extract_strided_slice %482 {offsets = [0, 0], sizes = [8, 512], strides = [1, 1]} : vector<8x1024xf32> to vector<8x512xf32>
    %484 = vector.extract_strided_slice %479 {offsets = [0, 0], sizes = [8, 512], strides = [1, 1]} : vector<8x1024xf32> to vector<8x512xf32>
    %485 = arith.addf %483, %484 : vector<8x512xf32>
    %486 = arith.index_cast %475 : i32 to index
    %c0_145 = arith.constant 0 : index
    %c0_146 = arith.constant 0 : index
    %487 = vector.load %arg12[%486, %c0_145, %c0_146] : memref<8x8x1024xf32, #tpu.memory_space<vmem>>, vector<1x8x1024xf32>
    %488 = vector.shape_cast %487 : vector<1x8x1024xf32> to vector<8x1024xf32>
    %489 = vector.extract_strided_slice %488 {offsets = [0, 512], sizes = [8, 512], strides = [1, 1]} : vector<8x1024xf32> to vector<8x512xf32>
    %490 = vector.extract_strided_slice %479 {offsets = [0, 512], sizes = [8, 512], strides = [1, 1]} : vector<8x1024xf32> to vector<8x512xf32>
    %491 = arith.addf %489, %490 : vector<8x512xf32>
    %492 = vector.extract_strided_slice %485 {offsets = [0, 0], sizes = [8, 128], strides = [1, 1]} : vector<8x512xf32> to vector<8x128xf32>
    %493 = arith.negf %492 : vector<8x128xf32>
    %494 = math.exp %493 : vector<8x128xf32>
    %cst_147 = arith.constant 1.000000e+00 : f32
    %495 = vector.broadcast %cst_147 : f32 to vector<8x128xf32>
    %496 = arith.addf %495, %494 : vector<8x128xf32>
    %497 = arith.divf %495, %496 : vector<8x128xf32>
    %498 = vector.extract_strided_slice %485 {offsets = [0, 128], sizes = [8, 128], strides = [1, 1]} : vector<8x512xf32> to vector<8x128xf32>
    %499 = arith.negf %498 : vector<8x128xf32>
    %500 = math.exp %499 : vector<8x128xf32>
    %cst_148 = arith.constant 1.000000e+00 : f32
    %501 = vector.broadcast %cst_148 : f32 to vector<8x128xf32>
    %502 = arith.addf %501, %500 : vector<8x128xf32>
    %503 = arith.divf %501, %502 : vector<8x128xf32>
    %504 = vector.extract_strided_slice %485 {offsets = [0, 256], sizes = [8, 128], strides = [1, 1]} : vector<8x512xf32> to vector<8x128xf32>
    %505 = math.tanh %504 : vector<8x128xf32>
    %506 = vector.extract_strided_slice %485 {offsets = [0, 384], sizes = [8, 128], strides = [1, 1]} : vector<8x512xf32> to vector<8x128xf32>
    %507 = arith.negf %506 : vector<8x128xf32>
    %508 = math.exp %507 : vector<8x128xf32>
    %cst_149 = arith.constant 1.000000e+00 : f32
    %509 = vector.broadcast %cst_149 : f32 to vector<8x128xf32>
    %510 = arith.addf %509, %508 : vector<8x128xf32>
    %511 = arith.divf %509, %510 : vector<8x128xf32>
    %512 = arith.mulf %503, %473 : vector<8x128xf32>
    %513 = arith.mulf %497, %505 : vector<8x128xf32>
    %514 = arith.addf %512, %513 : vector<8x128xf32>
    %515 = math.tanh %514 : vector<8x128xf32>
    %516 = arith.mulf %511, %515 : vector<8x128xf32>
    %517 = vector.extract_strided_slice %491 {offsets = [0, 0], sizes = [8, 128], strides = [1, 1]} : vector<8x512xf32> to vector<8x128xf32>
    %518 = arith.negf %517 : vector<8x128xf32>
    %519 = math.exp %518 : vector<8x128xf32>
    %cst_150 = arith.constant 1.000000e+00 : f32
    %520 = vector.broadcast %cst_150 : f32 to vector<8x128xf32>
    %521 = arith.addf %520, %519 : vector<8x128xf32>
    %522 = arith.divf %520, %521 : vector<8x128xf32>
    %523 = vector.extract_strided_slice %491 {offsets = [0, 128], sizes = [8, 128], strides = [1, 1]} : vector<8x512xf32> to vector<8x128xf32>
    %524 = arith.negf %523 : vector<8x128xf32>
    %525 = math.exp %524 : vector<8x128xf32>
    %cst_151 = arith.constant 1.000000e+00 : f32
    %526 = vector.broadcast %cst_151 : f32 to vector<8x128xf32>
    %527 = arith.addf %526, %525 : vector<8x128xf32>
    %528 = arith.divf %526, %527 : vector<8x128xf32>
    %529 = vector.extract_strided_slice %491 {offsets = [0, 256], sizes = [8, 128], strides = [1, 1]} : vector<8x512xf32> to vector<8x128xf32>
    %530 = math.tanh %529 : vector<8x128xf32>
    %531 = vector.extract_strided_slice %491 {offsets = [0, 384], sizes = [8, 128], strides = [1, 1]} : vector<8x512xf32> to vector<8x128xf32>
    %532 = arith.negf %531 : vector<8x128xf32>
    %533 = math.exp %532 : vector<8x128xf32>
    %cst_152 = arith.constant 1.000000e+00 : f32
    %534 = vector.broadcast %cst_152 : f32 to vector<8x128xf32>
    %535 = arith.addf %534, %533 : vector<8x128xf32>
    %536 = arith.divf %534, %535 : vector<8x128xf32>
    %537 = arith.mulf %528, %474 : vector<8x128xf32>
    %538 = arith.mulf %522, %530 : vector<8x128xf32>
    %539 = arith.addf %537, %538 : vector<8x128xf32>
    %540 = math.tanh %539 : vector<8x128xf32>
    %541 = arith.mulf %536, %540 : vector<8x128xf32>
    %542 = arith.index_cast %c5_i32 : i32 to index
    %c0_153 = arith.constant 0 : index
    %c0_154 = arith.constant 0 : index
    %543 = vector.load %arg1[%542, %c0_153, %c0_154] : memref<8x8x128xf32, #tpu.memory_space<vmem>>, vector<1x8x128xf32>
    %544 = vector.shape_cast %543 : vector<1x8x128xf32> to vector<8x128xf32>
    %cst_155 = arith.constant 0.000000e+00 : f32
    %545 = vector.broadcast %cst_155 : f32 to vector<8x128xf32>
    %546 = arith.cmpf ogt, %544, %545 : vector<8x128xf32>
    %547 = arith.index_cast %475 : i32 to index
    %c0_156 = arith.constant 0 : index
    %c0_157 = arith.constant 0 : index
    %548 = vector.load %arg1[%547, %c0_156, %c0_157] : memref<8x8x128xf32, #tpu.memory_space<vmem>>, vector<1x8x128xf32>
    %549 = vector.shape_cast %548 : vector<1x8x128xf32> to vector<8x128xf32>
    %cst_158 = arith.constant 0.000000e+00 : f32
    %550 = vector.broadcast %cst_158 : f32 to vector<8x128xf32>
    %551 = arith.cmpf ogt, %549, %550 : vector<8x128xf32>
    %cst_159 = arith.constant 0.000000e+00 : f32
    %552 = vector.broadcast %cst_159 : f32 to vector<8x128xf32>
    %553 = arith.select %546, %516, %552 : vector<8x128xi1>, vector<8x128xf32>
    %554 = arith.index_cast %c5_i32 : i32 to index
    %c0_160 = arith.constant 0 : index
    %c0_161 = arith.constant 0 : index
    %555 = vector.load %arg13[%554, %c0_160, %c0_161] : memref<8x8x128xf32, #tpu.memory_space<vmem>>, vector<1x8x128xf32>
    %556 = vector.shape_cast %555 : vector<1x8x128xf32> to vector<8x128xf32>
    %557 = vector.shape_cast %553 : vector<8x128xf32> to vector<1x8x128xf32>
    tpu.vector_store %arg13[%554, %c0_160, %c0_161], %557 {strides = array<i32>} : memref<8x8x128xf32, #tpu.memory_space<vmem>>, vector<1x8x128xf32>,
    %cst_162 = arith.constant 0.000000e+00 : f32
    %558 = vector.broadcast %cst_162 : f32 to vector<8x128xf32>
    %559 = arith.select %551, %541, %558 : vector<8x128xi1>, vector<8x128xf32>
    %560 = arith.index_cast %475 : i32 to index
    %c0_163 = arith.constant 0 : index
    %c0_164 = arith.constant 0 : index
    %561 = vector.load %arg14[%560, %c0_163, %c0_164] : memref<8x8x128xf32, #tpu.memory_space<vmem>>, vector<1x8x128xf32>
    %562 = vector.shape_cast %561 : vector<1x8x128xf32> to vector<8x128xf32>
    %563 = vector.shape_cast %559 : vector<8x128xf32> to vector<1x8x128xf32>
    tpu.vector_store %arg14[%560, %c0_163, %c0_164], %563 {strides = array<i32>} : memref<8x8x128xf32, #tpu.memory_space<vmem>>, vector<1x8x128xf32>,
    %564 = arith.select %546, %516, %471 : vector<8x128xi1>, vector<8x128xf32>
    %565 = arith.select %551, %541, %472 : vector<8x128xi1>, vector<8x128xf32>
    %566 = arith.select %546, %514, %473 : vector<8x128xi1>, vector<8x128xf32>
    %567 = arith.select %551, %539, %474 : vector<8x128xi1>, vector<8x128xf32>
    %c6_i32 = arith.constant 6 : i32
    %c7_i32_165 = arith.constant 7 : i32
    %568 = arith.subi %c7_i32_165, %c6_i32 : i32
    %569 = tpu.concatenate %564, %565 in 1 : vector<8x128xf32>, vector<8x128xf32> -> vector<8x256xf32>
    %570 = arith.truncf %569 : vector<8x256xf32> to vector<8x256xbf16>
    %c0_166 = arith.constant 0 : index
    %c0_167 = arith.constant 0 : index
    %571 = vector.load %arg3[%c0_166, %c0_167] : memref<256x1024xbf16, #tpu.memory_space<vmem>>, vector<256x1024xbf16>
    %cst_168 = arith.constant dense<0.000000e+00> : vector<8x1024xf32>
    %572 = tpu.matmul %570, %571, %cst_168 {dimension_numbers = #tpu.dot_dimension_numbers<[1], [0], [0], [1], [0, 0, 1, 1], [], []>} : vector<8x256xbf16>, vector<256x1024xbf16>, vector<8x1024xf32> -> vector<8x1024xf32>
    %573 = arith.index_cast %c6_i32 : i32 to index
    %c0_169 = arith.constant 0 : index
    %c0_170 = arith.constant 0 : index
    %574 = vector.load %arg12[%573, %c0_169, %c0_170] : memref<8x8x1024xf32, #tpu.memory_space<vmem>>, vector<1x8x1024xf32>
    %575 = vector.shape_cast %574 : vector<1x8x1024xf32> to vector<8x1024xf32>
    %576 = vector.extract_strided_slice %575 {offsets = [0, 0], sizes = [8, 512], strides = [1, 1]} : vector<8x1024xf32> to vector<8x512xf32>
    %577 = vector.extract_strided_slice %572 {offsets = [0, 0], sizes = [8, 512], strides = [1, 1]} : vector<8x1024xf32> to vector<8x512xf32>
    %578 = arith.addf %576, %577 : vector<8x512xf32>
    %579 = arith.index_cast %568 : i32 to index
    %c0_171 = arith.constant 0 : index
    %c0_172 = arith.constant 0 : index
    %580 = vector.load %arg12[%579, %c0_171, %c0_172] : memref<8x8x1024xf32, #tpu.memory_space<vmem>>, vector<1x8x1024xf32>
    %581 = vector.shape_cast %580 : vector<1x8x1024xf32> to vector<8x1024xf32>
    %582 = vector.extract_strided_slice %581 {offsets = [0, 512], sizes = [8, 512], strides = [1, 1]} : vector<8x1024xf32> to vector<8x512xf32>
    %583 = vector.extract_strided_slice %572 {offsets = [0, 512], sizes = [8, 512], strides = [1, 1]} : vector<8x1024xf32> to vector<8x512xf32>
    %584 = arith.addf %582, %583 : vector<8x512xf32>
    %585 = vector.extract_strided_slice %578 {offsets = [0, 0], sizes = [8, 128], strides = [1, 1]} : vector<8x512xf32> to vector<8x128xf32>
    %586 = arith.negf %585 : vector<8x128xf32>
    %587 = math.exp %586 : vector<8x128xf32>
    %cst_173 = arith.constant 1.000000e+00 : f32
    %588 = vector.broadcast %cst_173 : f32 to vector<8x128xf32>
    %589 = arith.addf %588, %587 : vector<8x128xf32>
    %590 = arith.divf %588, %589 : vector<8x128xf32>
    %591 = vector.extract_strided_slice %578 {offsets = [0, 128], sizes = [8, 128], strides = [1, 1]} : vector<8x512xf32> to vector<8x128xf32>
    %592 = arith.negf %591 : vector<8x128xf32>
    %593 = math.exp %592 : vector<8x128xf32>
    %cst_174 = arith.constant 1.000000e+00 : f32
    %594 = vector.broadcast %cst_174 : f32 to vector<8x128xf32>
    %595 = arith.addf %594, %593 : vector<8x128xf32>
    %596 = arith.divf %594, %595 : vector<8x128xf32>
    %597 = vector.extract_strided_slice %578 {offsets = [0, 256], sizes = [8, 128], strides = [1, 1]} : vector<8x512xf32> to vector<8x128xf32>
    %598 = math.tanh %597 : vector<8x128xf32>
    %599 = vector.extract_strided_slice %578 {offsets = [0, 384], sizes = [8, 128], strides = [1, 1]} : vector<8x512xf32> to vector<8x128xf32>
    %600 = arith.negf %599 : vector<8x128xf32>
    %601 = math.exp %600 : vector<8x128xf32>
    %cst_175 = arith.constant 1.000000e+00 : f32
    %602 = vector.broadcast %cst_175 : f32 to vector<8x128xf32>
    %603 = arith.addf %602, %601 : vector<8x128xf32>
    %604 = arith.divf %602, %603 : vector<8x128xf32>
    %605 = arith.mulf %596, %566 : vector<8x128xf32>
    %606 = arith.mulf %590, %598 : vector<8x128xf32>
    %607 = arith.addf %605, %606 : vector<8x128xf32>
    %608 = math.tanh %607 : vector<8x128xf32>
    %609 = arith.mulf %604, %608 : vector<8x128xf32>
    %610 = vector.extract_strided_slice %584 {offsets = [0, 0], sizes = [8, 128], strides = [1, 1]} : vector<8x512xf32> to vector<8x128xf32>
    %611 = arith.negf %610 : vector<8x128xf32>
    %612 = math.exp %611 : vector<8x128xf32>
    %cst_176 = arith.constant 1.000000e+00 : f32
    %613 = vector.broadcast %cst_176 : f32 to vector<8x128xf32>
    %614 = arith.addf %613, %612 : vector<8x128xf32>
    %615 = arith.divf %613, %614 : vector<8x128xf32>
    %616 = vector.extract_strided_slice %584 {offsets = [0, 128], sizes = [8, 128], strides = [1, 1]} : vector<8x512xf32> to vector<8x128xf32>
    %617 = arith.negf %616 : vector<8x128xf32>
    %618 = math.exp %617 : vector<8x128xf32>
    %cst_177 = arith.constant 1.000000e+00 : f32
    %619 = vector.broadcast %cst_177 : f32 to vector<8x128xf32>
    %620 = arith.addf %619, %618 : vector<8x128xf32>
    %621 = arith.divf %619, %620 : vector<8x128xf32>
    %622 = vector.extract_strided_slice %584 {offsets = [0, 256], sizes = [8, 128], strides = [1, 1]} : vector<8x512xf32> to vector<8x128xf32>
    %623 = math.tanh %622 : vector<8x128xf32>
    %624 = vector.extract_strided_slice %584 {offsets = [0, 384], sizes = [8, 128], strides = [1, 1]} : vector<8x512xf32> to vector<8x128xf32>
    %625 = arith.negf %624 : vector<8x128xf32>
    %626 = math.exp %625 : vector<8x128xf32>
    %cst_178 = arith.constant 1.000000e+00 : f32
    %627 = vector.broadcast %cst_178 : f32 to vector<8x128xf32>
    %628 = arith.addf %627, %626 : vector<8x128xf32>
    %629 = arith.divf %627, %628 : vector<8x128xf32>
    %630 = arith.mulf %621, %567 : vector<8x128xf32>
    %631 = arith.mulf %615, %623 : vector<8x128xf32>
    %632 = arith.addf %630, %631 : vector<8x128xf32>
    %633 = math.tanh %632 : vector<8x128xf32>
    %634 = arith.mulf %629, %633 : vector<8x128xf32>
    %635 = arith.index_cast %c6_i32 : i32 to index
    %c0_179 = arith.constant 0 : index
    %c0_180 = arith.constant 0 : index
    %636 = vector.load %arg1[%635, %c0_179, %c0_180] : memref<8x8x128xf32, #tpu.memory_space<vmem>>, vector<1x8x128xf32>
    %637 = vector.shape_cast %636 : vector<1x8x128xf32> to vector<8x128xf32>
    %cst_181 = arith.constant 0.000000e+00 : f32
    %638 = vector.broadcast %cst_181 : f32 to vector<8x128xf32>
    %639 = arith.cmpf ogt, %637, %638 : vector<8x128xf32>
    %640 = arith.index_cast %568 : i32 to index
    %c0_182 = arith.constant 0 : index
    %c0_183 = arith.constant 0 : index
    %641 = vector.load %arg1[%640, %c0_182, %c0_183] : memref<8x8x128xf32, #tpu.memory_space<vmem>>, vector<1x8x128xf32>
    %642 = vector.shape_cast %641 : vector<1x8x128xf32> to vector<8x128xf32>
    %cst_184 = arith.constant 0.000000e+00 : f32
    %643 = vector.broadcast %cst_184 : f32 to vector<8x128xf32>
    %644 = arith.cmpf ogt, %642, %643 : vector<8x128xf32>
    %cst_185 = arith.constant 0.000000e+00 : f32
    %645 = vector.broadcast %cst_185 : f32 to vector<8x128xf32>
    %646 = arith.select %639, %609, %645 : vector<8x128xi1>, vector<8x128xf32>
    %647 = arith.index_cast %c6_i32 : i32 to index
    %c0_186 = arith.constant 0 : index
    %c0_187 = arith.constant 0 : index
    %648 = vector.load %arg13[%647, %c0_186, %c0_187] : memref<8x8x128xf32, #tpu.memory_space<vmem>>, vector<1x8x128xf32>
    %649 = vector.shape_cast %648 : vector<1x8x128xf32> to vector<8x128xf32>
    %650 = vector.shape_cast %646 : vector<8x128xf32> to vector<1x8x128xf32>
    tpu.vector_store %arg13[%647, %c0_186, %c0_187], %650 {strides = array<i32>} : memref<8x8x128xf32, #tpu.memory_space<vmem>>, vector<1x8x128xf32>,
    %cst_188 = arith.constant 0.000000e+00 : f32
    %651 = vector.broadcast %cst_188 : f32 to vector<8x128xf32>
    %652 = arith.select %644, %634, %651 : vector<8x128xi1>, vector<8x128xf32>
    %653 = arith.index_cast %568 : i32 to index
    %c0_189 = arith.constant 0 : index
    %c0_190 = arith.constant 0 : index
    %654 = vector.load %arg14[%653, %c0_189, %c0_190] : memref<8x8x128xf32, #tpu.memory_space<vmem>>, vector<1x8x128xf32>
    %655 = vector.shape_cast %654 : vector<1x8x128xf32> to vector<8x128xf32>
    %656 = vector.shape_cast %652 : vector<8x128xf32> to vector<1x8x128xf32>
    tpu.vector_store %arg14[%653, %c0_189, %c0_190], %656 {strides = array<i32>} : memref<8x8x128xf32, #tpu.memory_space<vmem>>, vector<1x8x128xf32>,
    %657 = arith.select %639, %609, %564 : vector<8x128xi1>, vector<8x128xf32>
    %658 = arith.select %644, %634, %565 : vector<8x128xi1>, vector<8x128xf32>
    %659 = arith.select %639, %607, %566 : vector<8x128xi1>, vector<8x128xf32>
    %660 = arith.select %644, %632, %567 : vector<8x128xi1>, vector<8x128xf32>
    %c7_i32_191 = arith.constant 7 : i32
    %c7_i32_192 = arith.constant 7 : i32
    %661 = arith.subi %c7_i32_192, %c7_i32_191 : i32
    %662 = tpu.concatenate %657, %658 in 1 : vector<8x128xf32>, vector<8x128xf32> -> vector<8x256xf32>
    %663 = arith.truncf %662 : vector<8x256xf32> to vector<8x256xbf16>
    %c0_193 = arith.constant 0 : index
    %c0_194 = arith.constant 0 : index
    %664 = vector.load %arg3[%c0_193, %c0_194] : memref<256x1024xbf16, #tpu.memory_space<vmem>>, vector<256x1024xbf16>
    %cst_195 = arith.constant dense<0.000000e+00> : vector<8x1024xf32>
    %665 = tpu.matmul %663, %664, %cst_195 {dimension_numbers = #tpu.dot_dimension_numbers<[1], [0], [0], [1], [0, 0, 1, 1], [], []>} : vector<8x256xbf16>, vector<256x1024xbf16>, vector<8x1024xf32> -> vector<8x1024xf32>
    %666 = arith.index_cast %c7_i32_191 : i32 to index
    %c0_196 = arith.constant 0 : index
    %c0_197 = arith.constant 0 : index
    %667 = vector.load %arg12[%666, %c0_196, %c0_197] : memref<8x8x1024xf32, #tpu.memory_space<vmem>>, vector<1x8x1024xf32>
    %668 = vector.shape_cast %667 : vector<1x8x1024xf32> to vector<8x1024xf32>
    %669 = vector.extract_strided_slice %668 {offsets = [0, 0], sizes = [8, 512], strides = [1, 1]} : vector<8x1024xf32> to vector<8x512xf32>
    %670 = vector.extract_strided_slice %665 {offsets = [0, 0], sizes = [8, 512], strides = [1, 1]} : vector<8x1024xf32> to vector<8x512xf32>
    %671 = arith.addf %669, %670 : vector<8x512xf32>
    %672 = arith.index_cast %661 : i32 to index
    %c0_198 = arith.constant 0 : index
    %c0_199 = arith.constant 0 : index
    %673 = vector.load %arg12[%672, %c0_198, %c0_199] : memref<8x8x1024xf32, #tpu.memory_space<vmem>>, vector<1x8x1024xf32>
    %674 = vector.shape_cast %673 : vector<1x8x1024xf32> to vector<8x1024xf32>
    %675 = vector.extract_strided_slice %674 {offsets = [0, 512], sizes = [8, 512], strides = [1, 1]} : vector<8x1024xf32> to vector<8x512xf32>
    %676 = vector.extract_strided_slice %665 {offsets = [0, 512], sizes = [8, 512], strides = [1, 1]} : vector<8x1024xf32> to vector<8x512xf32>
    %677 = arith.addf %675, %676 : vector<8x512xf32>
    %678 = vector.extract_strided_slice %671 {offsets = [0, 0], sizes = [8, 128], strides = [1, 1]} : vector<8x512xf32> to vector<8x128xf32>
    %679 = arith.negf %678 : vector<8x128xf32>
    %680 = math.exp %679 : vector<8x128xf32>
    %cst_200 = arith.constant 1.000000e+00 : f32
    %681 = vector.broadcast %cst_200 : f32 to vector<8x128xf32>
    %682 = arith.addf %681, %680 : vector<8x128xf32>
    %683 = arith.divf %681, %682 : vector<8x128xf32>
    %684 = vector.extract_strided_slice %671 {offsets = [0, 128], sizes = [8, 128], strides = [1, 1]} : vector<8x512xf32> to vector<8x128xf32>
    %685 = arith.negf %684 : vector<8x128xf32>
    %686 = math.exp %685 : vector<8x128xf32>
    %cst_201 = arith.constant 1.000000e+00 : f32
    %687 = vector.broadcast %cst_201 : f32 to vector<8x128xf32>
    %688 = arith.addf %687, %686 : vector<8x128xf32>
    %689 = arith.divf %687, %688 : vector<8x128xf32>
    %690 = vector.extract_strided_slice %671 {offsets = [0, 256], sizes = [8, 128], strides = [1, 1]} : vector<8x512xf32> to vector<8x128xf32>
    %691 = math.tanh %690 : vector<8x128xf32>
    %692 = vector.extract_strided_slice %671 {offsets = [0, 384], sizes = [8, 128], strides = [1, 1]} : vector<8x512xf32> to vector<8x128xf32>
    %693 = arith.negf %692 : vector<8x128xf32>
    %694 = math.exp %693 : vector<8x128xf32>
    %cst_202 = arith.constant 1.000000e+00 : f32
    %695 = vector.broadcast %cst_202 : f32 to vector<8x128xf32>
    %696 = arith.addf %695, %694 : vector<8x128xf32>
    %697 = arith.divf %695, %696 : vector<8x128xf32>
    %698 = arith.mulf %689, %659 : vector<8x128xf32>
    %699 = arith.mulf %683, %691 : vector<8x128xf32>
    %700 = arith.addf %698, %699 : vector<8x128xf32>
    %701 = math.tanh %700 : vector<8x128xf32>
    %702 = arith.mulf %697, %701 : vector<8x128xf32>
    %703 = vector.extract_strided_slice %677 {offsets = [0, 0], sizes = [8, 128], strides = [1, 1]} : vector<8x512xf32> to vector<8x128xf32>
    %704 = arith.negf %703 : vector<8x128xf32>
    %705 = math.exp %704 : vector<8x128xf32>
    %cst_203 = arith.constant 1.000000e+00 : f32
    %706 = vector.broadcast %cst_203 : f32 to vector<8x128xf32>
    %707 = arith.addf %706, %705 : vector<8x128xf32>
    %708 = arith.divf %706, %707 : vector<8x128xf32>
    %709 = vector.extract_strided_slice %677 {offsets = [0, 128], sizes = [8, 128], strides = [1, 1]} : vector<8x512xf32> to vector<8x128xf32>
    %710 = arith.negf %709 : vector<8x128xf32>
    %711 = math.exp %710 : vector<8x128xf32>
    %cst_204 = arith.constant 1.000000e+00 : f32
    %712 = vector.broadcast %cst_204 : f32 to vector<8x128xf32>
    %713 = arith.addf %712, %711 : vector<8x128xf32>
    %714 = arith.divf %712, %713 : vector<8x128xf32>
    %715 = vector.extract_strided_slice %677 {offsets = [0, 256], sizes = [8, 128], strides = [1, 1]} : vector<8x512xf32> to vector<8x128xf32>
    %716 = math.tanh %715 : vector<8x128xf32>
    %717 = vector.extract_strided_slice %677 {offsets = [0, 384], sizes = [8, 128], strides = [1, 1]} : vector<8x512xf32> to vector<8x128xf32>
    %718 = arith.negf %717 : vector<8x128xf32>
    %719 = math.exp %718 : vector<8x128xf32>
    %cst_205 = arith.constant 1.000000e+00 : f32
    %720 = vector.broadcast %cst_205 : f32 to vector<8x128xf32>
    %721 = arith.addf %720, %719 : vector<8x128xf32>
    %722 = arith.divf %720, %721 : vector<8x128xf32>
    %723 = arith.mulf %714, %660 : vector<8x128xf32>
    %724 = arith.mulf %708, %716 : vector<8x128xf32>
    %725 = arith.addf %723, %724 : vector<8x128xf32>
    %726 = math.tanh %725 : vector<8x128xf32>
    %727 = arith.mulf %722, %726 : vector<8x128xf32>
    %728 = arith.index_cast %c7_i32_191 : i32 to index
    %c0_206 = arith.constant 0 : index
    %c0_207 = arith.constant 0 : index
    %729 = vector.load %arg1[%728, %c0_206, %c0_207] : memref<8x8x128xf32, #tpu.memory_space<vmem>>, vector<1x8x128xf32>
    %730 = vector.shape_cast %729 : vector<1x8x128xf32> to vector<8x128xf32>
    %cst_208 = arith.constant 0.000000e+00 : f32
    %731 = vector.broadcast %cst_208 : f32 to vector<8x128xf32>
    %732 = arith.cmpf ogt, %730, %731 : vector<8x128xf32>
    %733 = arith.index_cast %661 : i32 to index
    %c0_209 = arith.constant 0 : index
    %c0_210 = arith.constant 0 : index
    %734 = vector.load %arg1[%733, %c0_209, %c0_210] : memref<8x8x128xf32, #tpu.memory_space<vmem>>, vector<1x8x128xf32>
    %735 = vector.shape_cast %734 : vector<1x8x128xf32> to vector<8x128xf32>
    %cst_211 = arith.constant 0.000000e+00 : f32
    %736 = vector.broadcast %cst_211 : f32 to vector<8x128xf32>
    %737 = arith.cmpf ogt, %735, %736 : vector<8x128xf32>
    %cst_212 = arith.constant 0.000000e+00 : f32
    %738 = vector.broadcast %cst_212 : f32 to vector<8x128xf32>
    %739 = arith.select %732, %702, %738 : vector<8x128xi1>, vector<8x128xf32>
    %740 = arith.index_cast %c7_i32_191 : i32 to index
    %c0_213 = arith.constant 0 : index
    %c0_214 = arith.constant 0 : index
    %741 = vector.load %arg13[%740, %c0_213, %c0_214] : memref<8x8x128xf32, #tpu.memory_space<vmem>>, vector<1x8x128xf32>
    %742 = vector.shape_cast %741 : vector<1x8x128xf32> to vector<8x128xf32>
    %743 = vector.shape_cast %739 : vector<8x128xf32> to vector<1x8x128xf32>
    tpu.vector_store %arg13[%740, %c0_213, %c0_214], %743 {strides = array<i32>} : memref<8x8x128xf32, #tpu.memory_space<vmem>>, vector<1x8x128xf32>,
    %cst_215 = arith.constant 0.000000e+00 : f32
    %744 = vector.broadcast %cst_215 : f32 to vector<8x128xf32>
    %745 = arith.select %737, %727, %744 : vector<8x128xi1>, vector<8x128xf32>
    %746 = arith.index_cast %661 : i32 to index
    %c0_216 = arith.constant 0 : index
    %c0_217 = arith.constant 0 : index
    %747 = vector.load %arg14[%746, %c0_216, %c0_217] : memref<8x8x128xf32, #tpu.memory_space<vmem>>, vector<1x8x128xf32>
    %748 = vector.shape_cast %747 : vector<1x8x128xf32> to vector<8x128xf32>
    %749 = vector.shape_cast %745 : vector<8x128xf32> to vector<1x8x128xf32>
    tpu.vector_store %arg14[%746, %c0_216, %c0_217], %749 {strides = array<i32>} : memref<8x8x128xf32, #tpu.memory_space<vmem>>, vector<1x8x128xf32>,
    %750 = arith.select %732, %702, %657 : vector<8x128xi1>, vector<8x128xf32>
    %751 = arith.select %737, %727, %658 : vector<8x128xi1>, vector<8x128xf32>
    %752 = arith.select %732, %700, %659 : vector<8x128xi1>, vector<8x128xf32>
    %753 = arith.select %737, %725, %660 : vector<8x128xi1>, vector<8x128xf32>
    %c8_i32 = arith.constant 8 : i32
    %c0_218 = arith.constant 0 : index
    %c0_219 = arith.constant 0 : index
    %c0_220 = arith.constant 0 : index
    %754 = vector.load %arg13[%c0_218, %c0_219, %c0_220] : memref<8x8x128xf32, #tpu.memory_space<vmem>>, vector<8x8x128xf32>
    %755 = vector.shape_cast %754 : vector<8x8x128xf32> to vector<64x128xf32>
    %c0_221 = arith.constant 0 : index
    %c0_222 = arith.constant 0 : index
    %c0_223 = arith.constant 0 : index
    %756 = vector.load %arg14[%c0_221, %c0_222, %c0_223] : memref<8x8x128xf32, #tpu.memory_space<vmem>>, vector<8x8x128xf32>
    %757 = vector.shape_cast %756 : vector<8x8x128xf32> to vector<64x128xf32>
    %758 = tpu.concatenate %755, %757 in 1 : vector<64x128xf32>, vector<64x128xf32> -> vector<64x256xf32>
    %759 = arith.truncf %758 : vector<64x256xf32> to vector<64x256xbf16>
    %c0_224 = arith.constant 0 : index
    %c0_225 = arith.constant 0 : index
    %760 = vector.load %arg5[%c0_224, %c0_225] : memref<256x512xbf16, #tpu.memory_space<vmem>>, vector<256x512xbf16>
    %cst_226 = arith.constant dense<0.000000e+00> : vector<64x512xf32>
    %761 = tpu.matmul %759, %760, %cst_226 {dimension_numbers = #tpu.dot_dimension_numbers<[1], [0], [0], [1], [0, 0, 1, 1], [], []>} : vector<64x256xbf16>, vector<256x512xbf16>, vector<64x512xf32> -> vector<64x512xf32>
    %c0_227 = arith.constant 0 : index
    %c0_228 = arith.constant 0 : index
    %762 = vector.load %arg6[%c0_227, %c0_228] : memref<1x512xf32, #tpu.memory_space<vmem>>, vector<1x512xf32>
    %763 = vector.broadcast %762 : vector<1x512xf32> to vector<64x512xf32>
    %764 = arith.addf %761, %763 : vector<64x512xf32>
    %cst_229 = arith.constant 0.000000e+00 : f32
    %765 = vector.broadcast %cst_229 : f32 to vector<64x512xf32>
    %766 = arith.maximumf %764, %765 : vector<64x512xf32>
    %767 = arith.truncf %766 : vector<64x512xf32> to vector<64x512xbf16>
    %c0_230 = arith.constant 0 : index
    %c0_231 = arith.constant 0 : index
    %768 = vector.load %arg7[%c0_230, %c0_231] : memref<512x256xbf16, #tpu.memory_space<vmem>>, vector<512x256xbf16>
    %cst_232 = arith.constant dense<0.000000e+00> : vector<64x256xf32>
    %769 = tpu.matmul %767, %768, %cst_232 {dimension_numbers = #tpu.dot_dimension_numbers<[1], [0], [0], [1], [0, 0, 1, 1], [], []>} : vector<64x512xbf16>, vector<512x256xbf16>, vector<64x256xf32> -> vector<64x256xf32>
    %c0_233 = arith.constant 0 : index
    %c0_234 = arith.constant 0 : index
    %770 = vector.load %arg8[%c0_233, %c0_234] : memref<1x256xf32, #tpu.memory_space<vmem>>, vector<1x256xf32>
    %771 = vector.broadcast %770 : vector<1x256xf32> to vector<64x256xf32>
    %772 = arith.addf %769, %771 : vector<64x256xf32>
    %cst_235 = arith.constant 0.000000e+00 : f32
    %773 = vector.broadcast %cst_235 : f32 to vector<64x256xf32>
    %774 = arith.maximumf %772, %773 : vector<64x256xf32>
    %775 = arith.truncf %774 : vector<64x256xf32> to vector<64x256xbf16>
    %c0_236 = arith.constant 0 : index
    %c0_237 = arith.constant 0 : index
    %776 = vector.load %arg9[%c0_236, %c0_237] : memref<256x128xbf16, #tpu.memory_space<vmem>>, vector<256x128xbf16>
    %cst_238 = arith.constant dense<0.000000e+00> : vector<64x128xf32>
    %777 = tpu.matmul %775, %776, %cst_238 {dimension_numbers = #tpu.dot_dimension_numbers<[1], [0], [0], [1], [0, 0, 1, 1], [], []>} : vector<64x256xbf16>, vector<256x128xbf16>, vector<64x128xf32> -> vector<64x128xf32>
    %c0_239 = arith.constant 0 : index
    %c0_240 = arith.constant 0 : index
    %778 = vector.load %arg10[%c0_239, %c0_240] : memref<1x128xf32, #tpu.memory_space<vmem>>, vector<1x128xf32>
    %779 = vector.broadcast %778 : vector<1x128xf32> to vector<64x128xf32>
    %780 = arith.addf %777, %779 : vector<64x128xf32>
    %cst_241 = arith.constant 0.000000e+00 : f32
    %781 = vector.broadcast %cst_241 : f32 to vector<64x128xf32>
    %782 = arith.maximumf %780, %781 : vector<64x128xf32>
    %783 = vector.shape_cast %782 : vector<64x128xf32> to vector<8x8x128xf32>
    %c0_242 = arith.constant 0 : index
    %c0_243 = arith.constant 0 : index
    %c0_244 = arith.constant 0 : index
    %784 = vector.load %arg11[%c0_242, %c0_243, %c0_244] : memref<8x8x128xf32, #tpu.memory_space<vmem>>, vector<8x8x128xf32>
    tpu.vector_store %arg11[%c0_242, %c0_243, %c0_244], %783 {strides = array<i32>} : memref<8x8x128xf32, #tpu.memory_space<vmem>>, vector<8x8x128xf32>,
    return
  }
}

</mosaic_0001>

<llo_original>
// kernel: lstm_model_forward.1
$region0: #{lstm_model_forward.1}
  #allocation0 [shape = 'u32[]', space=smem, size = 0x4, offset = 0x4, fixed_abs, tag = 'smem constant byte address 0x4 - core index']
  #allocation1 [shape = 'u32[72,128]{1,0:T(1,128)}', space=vmem, size = 0x9000, scoped, tag = 'internal scratch']
  #allocation2 [shape = 'f32[8,8,1024]{2,1,0:T(8,128)}', space=vmem, size = 0x40000, scoped, tag = 'scratch operand']
  #allocation3 [shape = 'f32[8,8,128]{2,1,0:T(8,128)}', space=vmem, size = 0x8000, scoped, tag = 'scratch operand']
  #allocation4 [shape = 'f32[8,8,128]{2,1,0:T(8,128)}', space=vmem, size = 0x8000, scoped, tag = 'scratch operand']
  %s0 = inlined_call_operand.vmem [shape: bf16[8,8,128], index: 0, kind: input, shape index: {}]
  %s1 = inlined_call_operand.vmem [shape: f32[8,8,128], index: 1, kind: input, shape index: {}]
  %s2 = inlined_call_operand.hbm [shape: bf16[128,1024], index: 2, kind: input, shape index: {}]
  %s3 = inlined_call_operand.hbm [shape: bf16[256,1024], index: 3, kind: input, shape index: {}]
  %s4 = inlined_call_operand.vmem [shape: f32[1,1024], index: 4, kind: input, shape index: {}]
  %s5 = inlined_call_operand.hbm [shape: bf16[256,512], index: 5, kind: input, shape index: {}]
  %s6 = inlined_call_operand.vmem [shape: f32[1,512], index: 6, kind: input, shape index: {}]
  %s7 = inlined_call_operand.hbm [shape: bf16[512,256], index: 7, kind: input, shape index: {}]
  %s8 = inlined_call_operand.vmem [shape: f32[1,256], index: 8, kind: input, shape index: {}]
  %s9 = inlined_call_operand.vmem [shape: bf16[256,128], index: 9, kind: input, shape index: {}]
  %s10 = inlined_call_operand.vmem [shape: f32[1,128], index: 10, kind: input, shape index: {}]
  %s11 = inlined_call_operand.vmem [shape: f32[8,8,128], index: 11, kind: output, shape index: {}]
  %s12 = sld [smem:[#allocation0]]
  $region70: #{lstm_model_forward.1} parent=0
    _
  %s14 = ssub.s32 1, %s12
  %s15 = scalar_select 0, %s14, %s12
  $region1: #{lstm_model_forward.1} parent=0
    #allocation5 [shape = 'u8[262144]{0}', space=vmem, size = 0x40000, scoped, tag = 'input window, operand 2, single buffered']
    #allocation6 [shape = 's32[1]{0}', space=sflag, size = 0x4, scoped, tag = 'scoped memory for lstm_model_forward.1']
    #allocation7 [shape = 'u8[524288]{0}', space=vmem, size = 0x80000, scoped, tag = 'input window, operand 3, single buffered']
    #allocation8 [shape = 's32[1]{0}', space=sflag, size = 0x4, scoped, tag = 'scoped memory for lstm_model_forward.1']
    #allocation9 [shape = 'u8[262144]{0}', space=vmem, size = 0x40000, scoped, tag = 'input window, operand 5, single buffered']
    #allocation10 [shape = 'u8[262144]{0}', space=vmem, size = 0x40000, scoped, tag = 'input window, operand 7, single buffered']
    #allocation11 [shape = 's32[1]{0}', space=sflag, size = 0x4, scoped, tag = 'scoped memory for lstm_model_forward.1']
    %16 = vsyncpa [#allocation6], 0
    %17 = vsyncpa [#allocation8], 0
    %18 = vsyncpa [#allocation11], 0
    // Predicated region
    $region2: #{lstm_model_forward.1} parent=1 // pred_check
      _
    $region3: #{lstm_model_forward.1} parent=1 // pred_check_branch
      %20 = sbr.rel (0) target = $region5
    $region4: #{lstm_model_forward.1} parent=1 // pred_region
      _
    $region5: #{lstm_model_forward.1} parent=1 // pred_fallthru
      _
    // Predicated region
    $region6: #{lstm_model_forward.1} parent=1 // pred_check
      _
    $region7: #{lstm_model_forward.1} parent=1 // pred_check_branch
      %22 = sbr.rel (0) target = $region9
    $region8: #{lstm_model_forward.1} parent=1 // pred_region
      _
    $region9: #{lstm_model_forward.1} parent=1 // pred_fallthru
      _
    // Predicated region
    $region10: #{lstm_model_forward.1} parent=1 // pred_check
      _
    $region11: #{lstm_model_forward.1} parent=1 // pred_check_branch
      %24 = sbr.rel (0) target = $region13
    $region12: #{lstm_model_forward.1} parent=1 // pred_region
      %26 = vsyncadd [#allocation6], 0
      %s27 = sshll.u32 %s2, 4
      %s28 = int_to_ptr.hbm [resolvable:$true] %s27
      %s29 = sshll.u32 [#allocation5], 4
      %s30 = int_to_ptr.vmem [resolvable:$true] %s29
      %35 = dma.hbm_to_vmem [thread:$0]  %s28, 8192, %s30, [#allocation6], 512, 512, 32
    $region13: #{lstm_model_forward.1} parent=1 // pred_fallthru
      _
    // Predicated region
    $region14: #{lstm_model_forward.1} parent=1 // pred_check
      _
    $region15: #{lstm_model_forward.1} parent=1 // pred_check_branch
      %37 = sbr.rel (0) target = $region17
    $region16: #{lstm_model_forward.1} parent=1 // pred_region
      %39 = vsyncadd [#allocation8], 0
      %s40 = sshll.u32 %s3, 4
      %s41 = int_to_ptr.hbm [resolvable:$true] %s40
      %s42 = sshll.u32 [#allocation7], 4
      %s43 = int_to_ptr.vmem [resolvable:$true] %s42
      %48 = dma.hbm_to_vmem [thread:$0]  %s41, 16384, %s43, [#allocation8], 512, 512, 32
    $region17: #{lstm_model_forward.1} parent=1 // pred_fallthru
      _
    // Predicated region
    $region18: #{lstm_model_forward.1} parent=1 // pred_check
      _
    $region19: #{lstm_model_forward.1} parent=1 // pred_check_branch
      %50 = sbr.rel (0) target = $region21
    $region20: #{lstm_model_forward.1} parent=1 // pred_region
      _
    $region21: #{lstm_model_forward.1} parent=1 // pred_fallthru
      _
    // Predicated region
    $region22: #{lstm_model_forward.1} parent=1 // pred_check
      _
    $region23: #{lstm_model_forward.1} parent=1 // pred_check_branch
      %52 = sbr.rel (0) target = $region25
    $region24: #{lstm_model_forward.1} parent=1 // pred_region
      %54 = vsyncadd [#allocation8], 0
      %s55 = sshll.u32 %s5, 4
      %s56 = int_to_ptr.hbm [resolvable:$true] %s55
      %s57 = sshll.u32 [#allocation9], 4
      %s58 = int_to_ptr.vmem [resolvable:$true] %s57
      %63 = dma.hbm_to_vmem [thread:$0]  %s56, 8192, %s58, [#allocation8], 256, 256, 16
    $region25: #{lstm_model_forward.1} parent=1 // pred_fallthru
      _
    // Predicated region
    $region26: #{lstm_model_forward.1} parent=1 // pred_check
      _
    $region27: #{lstm_model_forward.1} parent=1 // pred_check_branch
      %65 = sbr.rel (0) target = $region29
    $region28: #{lstm_model_forward.1} parent=1 // pred_region
      _
    $region29: #{lstm_model_forward.1} parent=1 // pred_fallthru
      _
    // Predicated region
    $region30: #{lstm_model_forward.1} parent=1 // pred_check
      _
    $region31: #{lstm_model_forward.1} parent=1 // pred_check_branch
      %67 = sbr.rel (0) target = $region33
    $region32: #{lstm_model_forward.1} parent=1 // pred_region
      %69 = vsyncadd [#allocation11], 0
      %s70 = sshll.u32 %s7, 4
      %s71 = int_to_ptr.hbm [resolvable:$true] %s70
      %s72 = sshll.u32 [#allocation10], 4
      %s73 = int_to_ptr.vmem [resolvable:$true] %s72
      %78 = dma.hbm_to_vmem [thread:$0]  %s71, 8192, %s73, [#allocation11], 128, 128, 8
    $region33: #{lstm_model_forward.1} parent=1 // pred_fallthru
      _
    // Predicated region
    $region34: #{lstm_model_forward.1} parent=1 // pred_check
      _
    $region35: #{lstm_model_forward.1} parent=1 // pred_check_branch
      %80 = sbr.rel (0) target = $region37
    $region36: #{lstm_model_forward.1} parent=1 // pred_region
      _
    $region37: #{lstm_model_forward.1} parent=1 // pred_fallthru
      _
    // Predicated region
    $region38: #{lstm_model_forward.1} parent=1 // pred_check
      _
    $region39: #{lstm_model_forward.1} parent=1 // pred_check_branch
      %82 = sbr.rel (0) target = $region41
    $region40: #{lstm_model_forward.1} parent=1 // pred_region
      _
    $region41: #{lstm_model_forward.1} parent=1 // pred_fallthru
      _
    // Predicated region
    $region42: #{lstm_model_forward.1} parent=1 // pred_check
      _
    $region43: #{lstm_model_forward.1} parent=1 // pred_check_branch
      %84 = sbr.rel (0) target = $region45
    $region44: #{lstm_model_forward.1} parent=1 // pred_region
      _
    $region45: #{lstm_model_forward.1} parent=1 // pred_fallthru
      _
    // Predicated region
    $region46: #{lstm_model_forward.1} parent=1 // pred_check
      _
    $region47: #{lstm_model_forward.1} parent=1 // pred_check_branch
      %86 = sbr.rel (0) target = $region49
    $region48: #{lstm_model_forward.1} parent=1 // pred_region
      %88 = dma.done [#allocation6], 8192
    $region49: #{lstm_model_forward.1} parent=1 // pred_fallthru
      _
    // Predicated region
    $region50: #{lstm_model_forward.1} parent=1 // pred_check
      _
    $region51: #{lstm_model_forward.1} parent=1 // pred_check_branch
      %90 = sbr.rel (0) target = $region53
    $region52: #{lstm_model_forward.1} parent=1 // pred_region
      %92 = dma.done [#allocation8], 16384
    $region53: #{lstm_model_forward.1} parent=1 // pred_fallthru
      _
    // Predicated region
    $region54: #{lstm_model_forward.1} parent=1 // pred_check
      _
    $region55: #{lstm_model_forward.1} parent=1 // pred_check_branch
      %94 = sbr.rel (0) target = $region57
    $region56: #{lstm_model_forward.1} parent=1 // pred_region
      %96 = dma.done [#allocation8], 8192
    $region57: #{lstm_model_forward.1} parent=1 // pred_fallthru
      _
    // Predicated region
    $region58: #{lstm_model_forward.1} parent=1 // pred_check
      _
    $region59: #{lstm_model_forward.1} parent=1 // pred_check_branch
      %98 = sbr.rel (0) target = $region61
    $region60: #{lstm_model_forward.1} parent=1 // pred_region
      %100 = dma.done [#allocation11], 8192
    $region61: #{lstm_model_forward.1} parent=1 // pred_fallthru
      _
    %v101 = vld [vmem:[%s0] sm:$0xf]
    %v102 = vld [vmem:[%s0 + $0x4] sm:$0xf]
    %v103 = vld [vmem:[%s0 + $0x8] sm:$0xf]
    %v104 = vld [vmem:[%s0 + $0xc] sm:$0xf]
    %v105 = vld [vmem:[%s0 + $0x10] sm:$0xf]
    %v106 = vld [vmem:[%s0 + $0x14] sm:$0xf]
    %v107 = vld [vmem:[%s0 + $0x18] sm:$0xf]
    %v108 = vld [vmem:[%s0 + $0x1c] sm:$0xf]
    %v109 = vld [vmem:[#allocation5] sm:$0xff]
    %v110 = vld [vmem:[#allocation5 + $0x8] sm:$0xff]
    %v111 = vld [vmem:[#allocation5 + $0x10] sm:$0xff]
    %v112 = vld [vmem:[#allocation5 + $0x18] sm:$0xff]
    %v113 = vld [vmem:[#allocation5 + $0x20] sm:$0xff]
    %v114 = vld [vmem:[#allocation5 + $0x28] sm:$0xff]
    %v115 = vld [vmem:[#allocation5 + $0x30] sm:$0xff]
    %v116 = vld [vmem:[#allocation5 + $0x38] sm:$0xff]
    %v117 = vld [vmem:[#allocation5 + $0x40] sm:$0xff]
    %v118 = vld [vmem:[#allocation5 + $0x48] sm:$0xff]
    %v119 = vld [vmem:[#allocation5 + $0x50] sm:$0xff]
    %v120 = vld [vmem:[#allocation5 + $0x58] sm:$0xff]
    %v121 = vld [vmem:[#allocation5 + $0x60] sm:$0xff]
    %v122 = vld [vmem:[#allocation5 + $0x68] sm:$0xff]
    %v123 = vld [vmem:[#allocation5 + $0x70] sm:$0xff]
    %v124 = vld [vmem:[#allocation5 + $0x78] sm:$0xff]
    %v125 = vld [vmem:[#allocation5 + $0x80] sm:$0xff]
    %v126 = vld [vmem:[#allocation5 + $0x88] sm:$0xff]
    %v127 = vld [vmem:[#allocation5 + $0x90] sm:$0xff]
    %v128 = vld [vmem:[#allocation5 + $0x98] sm:$0xff]
    %v129 = vld [vmem:[#allocation5 + $0xa0] sm:$0xff]
    %v130 = vld [vmem:[#allocation5 + $0xa8] sm:$0xff]
    %v131 = vld [vmem:[#allocation5 + $0xb0] sm:$0xff]
    %v132 = vld [vmem:[#allocation5 + $0xb8] sm:$0xff]
    %v133 = vld [vmem:[#allocation5 + $0xc0] sm:$0xff]
    %v134 = vld [vmem:[#allocation5 + $0xc8] sm:$0xff]
    %v135 = vld [vmem:[#allocation5 + $0xd0] sm:$0xff]
    %v136 = vld [vmem:[#allocation5 + $0xd8] sm:$0xff]
    %v137 = vld [vmem:[#allocation5 + $0xe0] sm:$0xff]
    %v138 = vld [vmem:[#allocation5 + $0xe8] sm:$0xff]
    %v139 = vld [vmem:[#allocation5 + $0xf0] sm:$0xff]
    %v140 = vld [vmem:[#allocation5 + $0xf8] sm:$0xff]
    %v141 = vld [vmem:[#allocation5 + $0x100] sm:$0xff]
    %v142 = vld [vmem:[#allocation5 + $0x108] sm:$0xff]
    %v143 = vld [vmem:[#allocation5 + $0x110] sm:$0xff]
    %v144 = vld [vmem:[#allocation5 + $0x118] sm:$0xff]
    %v145 = vld [vmem:[#allocation5 + $0x120] sm:$0xff]
    %v146 = vld [vmem:[#allocation5 + $0x128] sm:$0xff]
    %v147 = vld [vmem:[#allocation5 + $0x130] sm:$0xff]
    %v148 = vld [vmem:[#allocation5 + $0x138] sm:$0xff]
    %v149 = vld [vmem:[#allocation5 + $0x140] sm:$0xff]
    %v150 = vld [vmem:[#allocation5 + $0x148] sm:$0xff]
    %v151 = vld [vmem:[#allocation5 + $0x150] sm:$0xff]
    %v152 = vld [vmem:[#allocation5 + $0x158] sm:$0xff]
    %v153 = vld [vmem:[#allocation5 + $0x160] sm:$0xff]
    %v154 = vld [vmem:[#allocation5 + $0x168] sm:$0xff]
    %v155 = vld [vmem:[#allocation5 + $0x170] sm:$0xff]
    %v156 = vld [vmem:[#allocation5 + $0x178] sm:$0xff]
    %v157 = vld [vmem:[#allocation5 + $0x180] sm:$0xff]
    %v158 = vld [vmem:[#allocation5 + $0x188] sm:$0xff]
    %v159 = vld [vmem:[#allocation5 + $0x190] sm:$0xff]
    %v160 = vld [vmem:[#allocation5 + $0x198] sm:$0xff]
    %v161 = vld [vmem:[#allocation5 + $0x1a0] sm:$0xff]
    %v162 = vld [vmem:[#allocation5 + $0x1a8] sm:$0xff]
    %v163 = vld [vmem:[#allocation5 + $0x1b0] sm:$0xff]
    %v164 = vld [vmem:[#allocation5 + $0x1b8] sm:$0xff]
    %v165 = vld [vmem:[#allocation5 + $0x1c0] sm:$0xff]
    %v166 = vld [vmem:[#allocation5 + $0x1c8] sm:$0xff]
    %v167 = vld [vmem:[#allocation5 + $0x1d0] sm:$0xff]
    %v168 = vld [vmem:[#allocation5 + $0x1d8] sm:$0xff]
    %v169 = vld [vmem:[#allocation5 + $0x1e0] sm:$0xff]
    %v170 = vld [vmem:[#allocation5 + $0x1e8] sm:$0xff]
    %v171 = vld [vmem:[#allocation5 + $0x1f0] sm:$0xff]
    %v172 = vld [vmem:[#allocation5 + $0x1f8] sm:$0xff]
    %v173 = vld [vmem:[%s4] sm:$0xff]
    %v175 = vperm.slane %v173, 0
    %v176 = vperm.slane %v173, 1
    %v177 = vperm.slane %v173, 2
    %v178 = vperm.slane %v173, 3
    %v179 = vperm.slane %v173, 4
    %v180 = vperm.slane %v173, 5
    %v181 = vperm.slane %v173, 6
    %v182 = vperm.slane %v173, 7
    %v199 = vunpack.c.l.b16 %v101
    %v200 = vunpack.c.l.b16 %v102
    %v201 = vunpack.c.l.b16 %v103
    %v202 = vunpack.c.l.b16 %v104
    %v203 = vunpack.c.l.b16 %v105
    %v204 = vunpack.c.l.b16 %v106
    %v205 = vunpack.c.l.b16 %v107
    %v206 = vunpack.c.l.b16 %v108
    %v207 = vpack.c.b16 %v200, %v199
    %v208 = vpack.c.b16 %v202, %v201
    %v209 = vpack.c.b16 %v204, %v203
    %v210 = vpack.c.b16 %v206, %v205
    %v279 = vunpack.c.l.b16 %v109
    %v280 = vunpack.c.h.b16 %v109
    %v281 = vunpack.c.l.b16 %v110
    %v282 = vunpack.c.h.b16 %v110
    %v283 = vunpack.c.l.b16 %v111
    %v284 = vunpack.c.h.b16 %v111
    %v285 = vunpack.c.l.b16 %v112
    %v286 = vunpack.c.h.b16 %v112
    %v287 = vunpack.c.l.b16 %v113
    %v288 = vunpack.c.h.b16 %v113
    %v289 = vunpack.c.l.b16 %v114
    %v290 = vunpack.c.h.b16 %v114
    %v291 = vunpack.c.l.b16 %v115
    %v292 = vunpack.c.h.b16 %v115
    %v293 = vunpack.c.l.b16 %v116
    %v294 = vunpack.c.h.b16 %v116
    %v295 = vunpack.c.l.b16 %v117
    %v296 = vunpack.c.h.b16 %v117
    %v297 = vunpack.c.l.b16 %v118
    %v298 = vunpack.c.h.b16 %v118
    %v299 = vunpack.c.l.b16 %v119
    %v300 = vunpack.c.h.b16 %v119
    %v301 = vunpack.c.l.b16 %v120
    %v302 = vunpack.c.h.b16 %v120
    %v303 = vunpack.c.l.b16 %v121
    %v304 = vunpack.c.h.b16 %v121
    %v305 = vunpack.c.l.b16 %v122
    %v306 = vunpack.c.h.b16 %v122
    %v307 = vunpack.c.l.b16 %v123
    %v308 = vunpack.c.h.b16 %v123
    %v309 = vunpack.c.l.b16 %v124
    %v310 = vunpack.c.h.b16 %v124
    %v311 = vunpack.c.l.b16 %v125
    %v312 = vunpack.c.h.b16 %v125
    %v313 = vunpack.c.l.b16 %v126
    %v314 = vunpack.c.h.b16 %v126
    %v315 = vunpack.c.l.b16 %v127
    %v316 = vunpack.c.h.b16 %v127
    %v317 = vunpack.c.l.b16 %v128
    %v318 = vunpack.c.h.b16 %v128
    %v319 = vunpack.c.l.b16 %v129
    %v320 = vunpack.c.h.b16 %v129
    %v321 = vunpack.c.l.b16 %v130
    %v322 = vunpack.c.h.b16 %v130
    %v323 = vunpack.c.l.b16 %v131
    %v324 = vunpack.c.h.b16 %v131
    %v325 = vunpack.c.l.b16 %v132
    %v326 = vunpack.c.h.b16 %v132
    %v327 = vunpack.c.l.b16 %v133
    %v328 = vunpack.c.h.b16 %v133
    %v329 = vunpack.c.l.b16 %v134
    %v330 = vunpack.c.h.b16 %v134
    %v331 = vunpack.c.l.b16 %v135
    %v332 = vunpack.c.h.b16 %v135
    %v333 = vunpack.c.l.b16 %v136
    %v334 = vunpack.c.h.b16 %v136
    %v335 = vunpack.c.l.b16 %v137
    %v336 = vunpack.c.h.b16 %v137
    %v337 = vunpack.c.l.b16 %v138
    %v338 = vunpack.c.h.b16 %v138
    %v339 = vunpack.c.l.b16 %v139
    %v340 = vunpack.c.h.b16 %v139
    %v341 = vunpack.c.l.b16 %v140
    %v342 = vunpack.c.h.b16 %v140
    %v343 = vunpack.c.l.b16 %v141
    %v344 = vunpack.c.h.b16 %v141
    %v345 = vunpack.c.l.b16 %v142
    %v346 = vunpack.c.h.b16 %v142
    %v347 = vunpack.c.l.b16 %v143
    %v348 = vunpack.c.h.b16 %v143
    %v349 = vunpack.c.l.b16 %v144
    %v350 = vunpack.c.h.b16 %v144
    %v351 = vunpack.c.l.b16 %v145
    %v352 = vunpack.c.h.b16 %v145
    %v353 = vunpack.c.l.b16 %v146
    %v354 = vunpack.c.h.b16 %v146
    %v355 = vunpack.c.l.b16 %v147
    %v356 = vunpack.c.h.b16 %v147
    %v357 = vunpack.c.l.b16 %v148
    %v358 = vunpack.c.h.b16 %v148
    %v359 = vunpack.c.l.b16 %v149
    %v360 = vunpack.c.h.b16 %v149
    %v361 = vunpack.c.l.b16 %v150
    %v362 = vunpack.c.h.b16 %v150
    %v363 = vunpack.c.l.b16 %v151
    %v364 = vunpack.c.h.b16 %v151
    %v365 = vunpack.c.l.b16 %v152
    %v366 = vunpack.c.h.b16 %v152
    %v367 = vunpack.c.l.b16 %v153
    %v368 = vunpack.c.h.b16 %v153
    %v369 = vunpack.c.l.b16 %v154
    %v370 = vunpack.c.h.b16 %v154
    %v371 = vunpack.c.l.b16 %v155
    %v372 = vunpack.c.h.b16 %v155
    %v373 = vunpack.c.l.b16 %v156
    %v374 = vunpack.c.h.b16 %v156
    %v375 = vunpack.c.l.b16 %v157
    %v376 = vunpack.c.h.b16 %v157
    %v377 = vunpack.c.l.b16 %v158
    %v378 = vunpack.c.h.b16 %v158
    %v379 = vunpack.c.l.b16 %v159
    %v380 = vunpack.c.h.b16 %v159
    %v381 = vunpack.c.l.b16 %v160
    %v382 = vunpack.c.h.b16 %v160
    %v383 = vunpack.c.l.b16 %v161
    %v384 = vunpack.c.h.b16 %v161
    %v385 = vunpack.c.l.b16 %v162
    %v386 = vunpack.c.h.b16 %v162
    %v387 = vunpack.c.l.b16 %v163
    %v388 = vunpack.c.h.b16 %v163
    %v389 = vunpack.c.l.b16 %v164
    %v390 = vunpack.c.h.b16 %v164
    %v391 = vunpack.c.l.b16 %v165
    %v392 = vunpack.c.h.b16 %v165
    %v393 = vunpack.c.l.b16 %v166
    %v394 = vunpack.c.h.b16 %v166
    %v395 = vunpack.c.l.b16 %v167
    %v396 = vunpack.c.h.b16 %v167
    %v397 = vunpack.c.l.b16 %v168
    %v398 = vunpack.c.h.b16 %v168
    %v399 = vunpack.c.l.b16 %v169
    %v400 = vunpack.c.h.b16 %v169
    %v401 = vunpack.c.l.b16 %v170
    %v402 = vunpack.c.h.b16 %v170
    %v403 = vunpack.c.l.b16 %v171
    %v404 = vunpack.c.h.b16 %v171
    %v405 = vunpack.c.l.b16 %v172
    %v406 = vunpack.c.h.b16 %v172
    %v407 = vpack.c.b16 %v287, %v279
    %v408 = vpack.c.b16 %v288, %v280
    %v409 = vpack.c.b16 %v289, %v281
    %v410 = vpack.c.b16 %v290, %v282
    %v411 = vpack.c.b16 %v291, %v283
    %v412 = vpack.c.b16 %v292, %v284
    %v413 = vpack.c.b16 %v293, %v285
    %v414 = vpack.c.b16 %v294, %v286
    %v415 = vpack.c.b16 %v303, %v295
    %v416 = vpack.c.b16 %v304, %v296
    %v417 = vpack.c.b16 %v305, %v297
    %v418 = vpack.c.b16 %v306, %v298
    %v419 = vpack.c.b16 %v307, %v299
    %v420 = vpack.c.b16 %v308, %v300
    %v421 = vpack.c.b16 %v309, %v301
    %v422 = vpack.c.b16 %v310, %v302
    %v423 = vpack.c.b16 %v319, %v311
    %v424 = vpack.c.b16 %v320, %v312
    %v425 = vpack.c.b16 %v321, %v313
    %v426 = vpack.c.b16 %v322, %v314
    %v427 = vpack.c.b16 %v323, %v315
    %v428 = vpack.c.b16 %v324, %v316
    %v429 = vpack.c.b16 %v325, %v317
    %v430 = vpack.c.b16 %v326, %v318
    %v431 = vpack.c.b16 %v335, %v327
    %v432 = vpack.c.b16 %v336, %v328
    %v433 = vpack.c.b16 %v337, %v329
    %v434 = vpack.c.b16 %v338, %v330
    %v435 = vpack.c.b16 %v339, %v331
    %v436 = vpack.c.b16 %v340, %v332
    %v437 = vpack.c.b16 %v341, %v333
    %v438 = vpack.c.b16 %v342, %v334
    %v439 = vpack.c.b16 %v351, %v343
    %v440 = vpack.c.b16 %v352, %v344
    %v441 = vpack.c.b16 %v353, %v345
    %v442 = vpack.c.b16 %v354, %v346
    %v443 = vpack.c.b16 %v355, %v347
    %v444 = vpack.c.b16 %v356, %v348
    %v445 = vpack.c.b16 %v357, %v349
    %v446 = vpack.c.b16 %v358, %v350
    %v447 = vpack.c.b16 %v367, %v359
    %v448 = vpack.c.b16 %v368, %v360
    %v449 = vpack.c.b16 %v369, %v361
    %v450 = vpack.c.b16 %v370, %v362
    %v451 = vpack.c.b16 %v371, %v363
    %v452 = vpack.c.b16 %v372, %v364
    %v453 = vpack.c.b16 %v373, %v365
    %v454 = vpack.c.b16 %v374, %v366
    %v455 = vpack.c.b16 %v383, %v375
    %v456 = vpack.c.b16 %v384, %v376
    %v457 = vpack.c.b16 %v385, %v377
    %v458 = vpack.c.b16 %v386, %v378
    %v459 = vpack.c.b16 %v387, %v379
    %v460 = vpack.c.b16 %v388, %v380
    %v461 = vpack.c.b16 %v389, %v381
    %v462 = vpack.c.b16 %v390, %v382
    %v463 = vpack.c.b16 %v399, %v391
    %v464 = vpack.c.b16 %v400, %v392
    %v465 = vpack.c.b16 %v401, %v393
    %v466 = vpack.c.b16 %v402, %v394
    %v467 = vpack.c.b16 %v403, %v395
    %v468 = vpack.c.b16 %v404, %v396
    %v469 = vpack.c.b16 %v405, %v397
    %v470 = vpack.c.b16 %v406, %v398
    %535 = vmatpush.bf16.msra.mxu0 %v463
    %536 = vmatpush.bf16.msra.mxu0 %v455
    %537 = vmatpush.bf16.msra.mxu0 %v447
    %538 = vmatpush.bf16.msra.mxu0 %v439
    %539 = vmatpush.bf16.msra.mxu0 %v431
    %540 = vmatpush.bf16.msra.mxu0 %v423
    %541 = vmatpush.bf16.msra.mxu0 %v415
    %542 = vmatpush.bf16.msra.mxu0 %v407
    %543 = vmatmul.bf16.gmra.mxu0 %v207
    %v544 = vpop.f32.mrf.mxu0
    %v545 = vadd.f32 %v175, %v544
    %v546 = vpop.f32.mrf.mxu0
    %v547 = vadd.f32 %v175, %v546
    %548 = vmatmul.bf16.gmra.mxu0 %v208
    %v549 = vpop.f32.mrf.mxu0
    %v550 = vadd.f32 %v175, %v549
    %v551 = vpop.f32.mrf.mxu0
    %v552 = vadd.f32 %v175, %v551
    %553 = vmatmul.bf16.gmra.mxu0 %v209
    %v554 = vpop.f32.mrf.mxu0
    %v555 = vadd.f32 %v175, %v554
    %v556 = vpop.f32.mrf.mxu0
    %v557 = vadd.f32 %v175, %v556
    %558 = vmatmul.bf16.gmra.mxu0 %v210
    %v559 = vpop.f32.mrf.mxu0
    %v560 = vadd.f32 %v175, %v559
    %v561 = vpop.f32.mrf.mxu0
    %v562 = vadd.f32 %v175, %v561
    %563 = vdwg.mxu0
    %564 = vmatpush.bf16.msra.mxu0 %v464
    %565 = vmatpush.bf16.msra.mxu0 %v456
    %566 = vmatpush.bf16.msra.mxu0 %v448
    %567 = vmatpush.bf16.msra.mxu0 %v440
    %568 = vmatpush.bf16.msra.mxu0 %v432
    %569 = vmatpush.bf16.msra.mxu0 %v424
    %570 = vmatpush.bf16.msra.mxu0 %v416
    %571 = vmatpush.bf16.msra.mxu0 %v408
    %572 = vmatmul.bf16.gmra.mxu0 %v207
    %v573 = vpop.f32.mrf.mxu0
    %v574 = vadd.f32 %v176, %v573
    %v575 = vpop.f32.mrf.mxu0
    %v576 = vadd.f32 %v176, %v575
    %577 = vmatmul.bf16.gmra.mxu0 %v208
    %v578 = vpop.f32.mrf.mxu0
    %v579 = vadd.f32 %v176, %v578
    %v580 = vpop.f32.mrf.mxu0
    %v581 = vadd.f32 %v176, %v580
    %582 = vmatmul.bf16.gmra.mxu0 %v209
    %v583 = vpop.f32.mrf.mxu0
    %v584 = vadd.f32 %v176, %v583
    %v585 = vpop.f32.mrf.mxu0
    %v586 = vadd.f32 %v176, %v585
    %587 = vmatmul.bf16.gmra.mxu0 %v210
    %v588 = vpop.f32.mrf.mxu0
    %v589 = vadd.f32 %v176, %v588
    %v590 = vpop.f32.mrf.mxu0
    %v591 = vadd.f32 %v176, %v590
    %592 = vdwg.mxu0
    %593 = vmatpush.bf16.msra.mxu0 %v465
    %594 = vmatpush.bf16.msra.mxu0 %v457
    %595 = vmatpush.bf16.msra.mxu0 %v449
    %596 = vmatpush.bf16.msra.mxu0 %v441
    %597 = vmatpush.bf16.msra.mxu0 %v433
    %598 = vmatpush.bf16.msra.mxu0 %v425
    %599 = vmatpush.bf16.msra.mxu0 %v417
    %600 = vmatpush.bf16.msra.mxu0 %v409
    %601 = vmatmul.bf16.gmra.mxu0 %v207
    %v602 = vpop.f32.mrf.mxu0
    %v603 = vadd.f32 %v177, %v602
    %v604 = vpop.f32.mrf.mxu0
    %v605 = vadd.f32 %v177, %v604
    %606 = vmatmul.bf16.gmra.mxu0 %v208
    %v607 = vpop.f32.mrf.mxu0
    %v608 = vadd.f32 %v177, %v607
    %v609 = vpop.f32.mrf.mxu0
    %v610 = vadd.f32 %v177, %v609
    %611 = vmatmul.bf16.gmra.mxu0 %v209
    %v612 = vpop.f32.mrf.mxu0
    %v613 = vadd.f32 %v177, %v612
    %v614 = vpop.f32.mrf.mxu0
    %v615 = vadd.f32 %v177, %v614
    %616 = vmatmul.bf16.gmra.mxu0 %v210
    %v617 = vpop.f32.mrf.mxu0
    %v618 = vadd.f32 %v177, %v617
    %v619 = vpop.f32.mrf.mxu0
    %v620 = vadd.f32 %v177, %v619
    %621 = vdwg.mxu0
    %622 = vmatpush.bf16.msra.mxu0 %v466
    %623 = vmatpush.bf16.msra.mxu0 %v458
    %624 = vmatpush.bf16.msra.mxu0 %v450
    %625 = vmatpush.bf16.msra.mxu0 %v442
    %626 = vmatpush.bf16.msra.mxu0 %v434
    %627 = vmatpush.bf16.msra.mxu0 %v426
    %628 = vmatpush.bf16.msra.mxu0 %v418
    %629 = vmatpush.bf16.msra.mxu0 %v410
    %630 = vmatmul.bf16.gmra.mxu0 %v207
    %v631 = vpop.f32.mrf.mxu0
    %v632 = vadd.f32 %v178, %v631
    %v633 = vpop.f32.mrf.mxu0
    %v634 = vadd.f32 %v178, %v633
    %635 = vmatmul.bf16.gmra.mxu0 %v208
    %v636 = vpop.f32.mrf.mxu0
    %v637 = vadd.f32 %v178, %v636
    %v638 = vpop.f32.mrf.mxu0
    %v639 = vadd.f32 %v178, %v638
    %640 = vmatmul.bf16.gmra.mxu0 %v209
    %v641 = vpop.f32.mrf.mxu0
    %v642 = vadd.f32 %v178, %v641
    %v643 = vpop.f32.mrf.mxu0
    %v644 = vadd.f32 %v178, %v643
    %645 = vmatmul.bf16.gmra.mxu0 %v210
    %v646 = vpop.f32.mrf.mxu0
    %v647 = vadd.f32 %v178, %v646
    %v648 = vpop.f32.mrf.mxu0
    %v649 = vadd.f32 %v178, %v648
    %650 = vdwg.mxu0
    %651 = vmatpush.bf16.msra.mxu0 %v467
    %652 = vmatpush.bf16.msra.mxu0 %v459
    %653 = vmatpush.bf16.msra.mxu0 %v451
    %654 = vmatpush.bf16.msra.mxu0 %v443
    %655 = vmatpush.bf16.msra.mxu0 %v435
    %656 = vmatpush.bf16.msra.mxu0 %v427
    %657 = vmatpush.bf16.msra.mxu0 %v419
    %658 = vmatpush.bf16.msra.mxu0 %v411
    %659 = vmatmul.bf16.gmra.mxu0 %v207
    %v660 = vpop.f32.mrf.mxu0
    %v661 = vadd.f32 %v179, %v660
    %v662 = vpop.f32.mrf.mxu0
    %v663 = vadd.f32 %v179, %v662
    %664 = vmatmul.bf16.gmra.mxu0 %v208
    %v665 = vpop.f32.mrf.mxu0
    %v666 = vadd.f32 %v179, %v665
    %v667 = vpop.f32.mrf.mxu0
    %v668 = vadd.f32 %v179, %v667
    %669 = vmatmul.bf16.gmra.mxu0 %v209
    %v670 = vpop.f32.mrf.mxu0
    %v671 = vadd.f32 %v179, %v670
    %v672 = vpop.f32.mrf.mxu0
    %v673 = vadd.f32 %v179, %v672
    %674 = vmatmul.bf16.gmra.mxu0 %v210
    %v675 = vpop.f32.mrf.mxu0
    %v676 = vadd.f32 %v179, %v675
    %v677 = vpop.f32.mrf.mxu0
    %v678 = vadd.f32 %v179, %v677
    %679 = vdwg.mxu0
    %680 = vmatpush.bf16.msra.mxu0 %v468
    %681 = vmatpush.bf16.msra.mxu0 %v460
    %682 = vmatpush.bf16.msra.mxu0 %v452
    %683 = vmatpush.bf16.msra.mxu0 %v444
    %684 = vmatpush.bf16.msra.mxu0 %v436
    %685 = vmatpush.bf16.msra.mxu0 %v428
    %686 = vmatpush.bf16.msra.mxu0 %v420
    %687 = vmatpush.bf16.msra.mxu0 %v412
    %688 = vmatmul.bf16.gmra.mxu0 %v207
    %v689 = vpop.f32.mrf.mxu0
    %v690 = vadd.f32 %v180, %v689
    %v691 = vpop.f32.mrf.mxu0
    %v692 = vadd.f32 %v180, %v691
    %693 = vmatmul.bf16.gmra.mxu0 %v208
    %v694 = vpop.f32.mrf.mxu0
    %v695 = vadd.f32 %v180, %v694
    %v696 = vpop.f32.mrf.mxu0
    %v697 = vadd.f32 %v180, %v696
    %698 = vmatmul.bf16.gmra.mxu0 %v209
    %v699 = vpop.f32.mrf.mxu0
    %v700 = vadd.f32 %v180, %v699
    %v701 = vpop.f32.mrf.mxu0
    %v702 = vadd.f32 %v180, %v701
    %703 = vmatmul.bf16.gmra.mxu0 %v210
    %v704 = vpop.f32.mrf.mxu0
    %v705 = vadd.f32 %v180, %v704
    %v706 = vpop.f32.mrf.mxu0
    %v707 = vadd.f32 %v180, %v706
    %708 = vdwg.mxu0
    %709 = vmatpush.bf16.msra.mxu0 %v469
    %710 = vmatpush.bf16.msra.mxu0 %v461
    %711 = vmatpush.bf16.msra.mxu0 %v453
    %712 = vmatpush.bf16.msra.mxu0 %v445
    %713 = vmatpush.bf16.msra.mxu0 %v437
    %714 = vmatpush.bf16.msra.mxu0 %v429
    %715 = vmatpush.bf16.msra.mxu0 %v421
    %716 = vmatpush.bf16.msra.mxu0 %v413
    %717 = vmatmul.bf16.gmra.mxu0 %v207
    %v718 = vpop.f32.mrf.mxu0
    %v719 = vadd.f32 %v181, %v718
    %v720 = vpop.f32.mrf.mxu0
    %v721 = vadd.f32 %v181, %v720
    %722 = vmatmul.bf16.gmra.mxu0 %v208
    %v723 = vpop.f32.mrf.mxu0
    %v724 = vadd.f32 %v181, %v723
    %v725 = vpop.f32.mrf.mxu0
    %v726 = vadd.f32 %v181, %v725
    %727 = vmatmul.bf16.gmra.mxu0 %v209
    %v728 = vpop.f32.mrf.mxu0
    %v729 = vadd.f32 %v181, %v728
    %v730 = vpop.f32.mrf.mxu0
    %v731 = vadd.f32 %v181, %v730
    %732 = vmatmul.bf16.gmra.mxu0 %v210
    %v733 = vpop.f32.mrf.mxu0
    %v734 = vadd.f32 %v181, %v733
    %v735 = vpop.f32.mrf.mxu0
    %v736 = vadd.f32 %v181, %v735
    %737 = vdwg.mxu0
    %738 = vmatpush.bf16.msra.mxu0 %v470
    %739 = vmatpush.bf16.msra.mxu0 %v462
    %740 = vmatpush.bf16.msra.mxu0 %v454
    %741 = vmatpush.bf16.msra.mxu0 %v446
    %742 = vmatpush.bf16.msra.mxu0 %v438
    %743 = vmatpush.bf16.msra.mxu0 %v430
    %744 = vmatpush.bf16.msra.mxu0 %v422
    %745 = vmatpush.bf16.msra.mxu0 %v414
    %746 = vmatmul.bf16.gmra.mxu0 %v207
    %v747 = vpop.f32.mrf.mxu0
    %v748 = vadd.f32 %v182, %v747
    %v749 = vpop.f32.mrf.mxu0
    %v750 = vadd.f32 %v182, %v749
    %751 = vmatmul.bf16.gmra.mxu0 %v208
    %v752 = vpop.f32.mrf.mxu0
    %v753 = vadd.f32 %v182, %v752
    %v754 = vpop.f32.mrf.mxu0
    %v755 = vadd.f32 %v182, %v754
    %756 = vmatmul.bf16.gmra.mxu0 %v209
    %v757 = vpop.f32.mrf.mxu0
    %v758 = vadd.f32 %v182, %v757
    %v759 = vpop.f32.mrf.mxu0
    %v760 = vadd.f32 %v182, %v759
    %761 = vmatmul.bf16.gmra.mxu0 %v210
    %v762 = vpop.f32.mrf.mxu0
    %v763 = vadd.f32 %v182, %v762
    %v764 = vpop.f32.mrf.mxu0
    %v765 = vadd.f32 %v182, %v764
    %766 = vdwg.mxu0
    %767 = vst [vmem:[#allocation2] sm:$0xff] %v545
    %768 = vst [vmem:[#allocation2 + $0x8] sm:$0xff] %v574
    %769 = vst [vmem:[#allocation2 + $0x10] sm:$0xff] %v603
    %770 = vst [vmem:[#allocation2 + $0x18] sm:$0xff] %v632
    %771 = vst [vmem:[#allocation2 + $0x20] sm:$0xff] %v661
    %772 = vst [vmem:[#allocation2 + $0x28] sm:$0xff] %v690
    %773 = vst [vmem:[#allocation2 + $0x30] sm:$0xff] %v719
    %774 = vst [vmem:[#allocation2 + $0x38] sm:$0xff] %v748
    %775 = vst [vmem:[#allocation2 + $0x40] sm:$0xff] %v547
    %776 = vst [vmem:[#allocation2 + $0x48] sm:$0xff] %v576
    %777 = vst [vmem:[#allocation2 + $0x50] sm:$0xff] %v605
    %778 = vst [vmem:[#allocation2 + $0x58] sm:$0xff] %v634
    %779 = vst [vmem:[#allocation2 + $0x60] sm:$0xff] %v663
    %780 = vst [vmem:[#allocation2 + $0x68] sm:$0xff] %v692
    %781 = vst [vmem:[#allocation2 + $0x70] sm:$0xff] %v721
    %782 = vst [vmem:[#allocation2 + $0x78] sm:$0xff] %v750
    %783 = vst [vmem:[#allocation2 + $0x80] sm:$0xff] %v550
    %784 = vst [vmem:[#allocation2 + $0x88] sm:$0xff] %v579
    %785 = vst [vmem:[#allocation2 + $0x90] sm:$0xff] %v608
    %786 = vst [vmem:[#allocation2 + $0x98] sm:$0xff] %v637
    %787 = vst [vmem:[#allocation2 + $0xa0] sm:$0xff] %v666
    %788 = vst [vmem:[#allocation2 + $0xa8] sm:$0xff] %v695
    %789 = vst [vmem:[#allocation2 + $0xb0] sm:$0xff] %v724
    %790 = vst [vmem:[#allocation2 + $0xb8] sm:$0xff] %v753
    %791 = vst [vmem:[#allocation2 + $0xc0] sm:$0xff] %v552
    %792 = vst [vmem:[#allocation2 + $0xc8] sm:$0xff] %v581
    %793 = vst [vmem:[#allocation2 + $0xd0] sm:$0xff] %v610
    %794 = vst [vmem:[#allocation2 + $0xd8] sm:$0xff] %v639
    %795 = vst [vmem:[#allocation2 + $0xe0] sm:$0xff] %v668
    %796 = vst [vmem:[#allocation2 + $0xe8] sm:$0xff] %v697
    %797 = vst [vmem:[#allocation2 + $0xf0] sm:$0xff] %v726
    %798 = vst [vmem:[#allocation2 + $0xf8] sm:$0xff] %v755
    %799 = vst [vmem:[#allocation2 + $0x100] sm:$0xff] %v555
    %800 = vst [vmem:[#allocation2 + $0x108] sm:$0xff] %v584
    %801 = vst [vmem:[#allocation2 + $0x110] sm:$0xff] %v613
    %802 = vst [vmem:[#allocation2 + $0x118] sm:$0xff] %v642
    %803 = vst [vmem:[#allocation2 + $0x120] sm:$0xff] %v671
    %804 = vst [vmem:[#allocation2 + $0x128] sm:$0xff] %v700
    %805 = vst [vmem:[#allocation2 + $0x130] sm:$0xff] %v729
    %806 = vst [vmem:[#allocation2 + $0x138] sm:$0xff] %v758
    %807 = vst [vmem:[#allocation2 + $0x140] sm:$0xff] %v557
    %808 = vst [vmem:[#allocation2 + $0x148] sm:$0xff] %v586
    %809 = vst [vmem:[#allocation2 + $0x150] sm:$0xff] %v615
    %810 = vst [vmem:[#allocation2 + $0x158] sm:$0xff] %v644
    %811 = vst [vmem:[#allocation2 + $0x160] sm:$0xff] %v673
    %812 = vst [vmem:[#allocation2 + $0x168] sm:$0xff] %v702
    %813 = vst [vmem:[#allocation2 + $0x170] sm:$0xff] %v731
    %814 = vst [vmem:[#allocation2 + $0x178] sm:$0xff] %v760
    %815 = vst [vmem:[#allocation2 + $0x180] sm:$0xff] %v560
    %816 = vst [vmem:[#allocation2 + $0x188] sm:$0xff] %v589
    %817 = vst [vmem:[#allocation2 + $0x190] sm:$0xff] %v618
    %818 = vst [vmem:[#allocation2 + $0x198] sm:$0xff] %v647
    %819 = vst [vmem:[#allocation2 + $0x1a0] sm:$0xff] %v676
    %820 = vst [vmem:[#allocation2 + $0x1a8] sm:$0xff] %v705
    %821 = vst [vmem:[#allocation2 + $0x1b0] sm:$0xff] %v734
    %822 = vst [vmem:[#allocation2 + $0x1b8] sm:$0xff] %v763
    %823 = vst [vmem:[#allocation2 + $0x1c0] sm:$0xff] %v562
    %824 = vst [vmem:[#allocation2 + $0x1c8] sm:$0xff] %v591
    %825 = vst [vmem:[#allocation2 + $0x1d0] sm:$0xff] %v620
    %826 = vst [vmem:[#allocation2 + $0x1d8] sm:$0xff] %v649
    %827 = vst [vmem:[#allocation2 + $0x1e0] sm:$0xff] %v678
    %828 = vst [vmem:[#allocation2 + $0x1e8] sm:$0xff] %v707
    %829 = vst [vmem:[#allocation2 + $0x1f0] sm:$0xff] %v736
    %830 = vst [vmem:[#allocation2 + $0x1f8] sm:$0xff] %v765
    %v831 = vpack.c.bf16 0.0, 0.0
    %v832 = vld [vmem:[#allocation7] sm:$0xff]
    %v833 = vld [vmem:[#allocation7 + $0x8] sm:$0xff]
    %v834 = vld [vmem:[#allocation7 + $0x10] sm:$0xff]
    %v835 = vld [vmem:[#allocation7 + $0x18] sm:$0xff]
    %v836 = vld [vmem:[#allocation7 + $0x20] sm:$0xff]
    %v837 = vld [vmem:[#allocation7 + $0x28] sm:$0xff]
    %v838 = vld [vmem:[#allocation7 + $0x30] sm:$0xff]
    %v839 = vld [vmem:[#allocation7 + $0x38] sm:$0xff]
    %v840 = vld [vmem:[#allocation7 + $0x40] sm:$0xff]
    %v841 = vld [vmem:[#allocation7 + $0x48] sm:$0xff]
    %v842 = vld [vmem:[#allocation7 + $0x50] sm:$0xff]
    %v843 = vld [vmem:[#allocation7 + $0x58] sm:$0xff]
    %v844 = vld [vmem:[#allocation7 + $0x60] sm:$0xff]
    %v845 = vld [vmem:[#allocation7 + $0x68] sm:$0xff]
    %v846 = vld [vmem:[#allocation7 + $0x70] sm:$0xff]
    %v847 = vld [vmem:[#allocation7 + $0x78] sm:$0xff]
    %v848 = vld [vmem:[#allocation7 + $0x80] sm:$0xff]
    %v849 = vld [vmem:[#allocation7 + $0x88] sm:$0xff]
    %v850 = vld [vmem:[#allocation7 + $0x90] sm:$0xff]
    %v851 = vld [vmem:[#allocation7 + $0x98] sm:$0xff]
    %v852 = vld [vmem:[#allocation7 + $0xa0] sm:$0xff]
    %v853 = vld [vmem:[#allocation7 + $0xa8] sm:$0xff]
    %v854 = vld [vmem:[#allocation7 + $0xb0] sm:$0xff]
    %v855 = vld [vmem:[#allocation7 + $0xb8] sm:$0xff]
    %v856 = vld [vmem:[#allocation7 + $0xc0] sm:$0xff]
    %v857 = vld [vmem:[#allocation7 + $0xc8] sm:$0xff]
    %v858 = vld [vmem:[#allocation7 + $0xd0] sm:$0xff]
    %v859 = vld [vmem:[#allocation7 + $0xd8] sm:$0xff]
    %v860 = vld [vmem:[#allocation7 + $0xe0] sm:$0xff]
    %v861 = vld [vmem:[#allocation7 + $0xe8] sm:$0xff]
    %v862 = vld [vmem:[#allocation7 + $0xf0] sm:$0xff]
    %v863 = vld [vmem:[#allocation7 + $0xf8] sm:$0xff]
    %v864 = vld [vmem:[#allocation7 + $0x100] sm:$0xff]
    %v865 = vld [vmem:[#allocation7 + $0x108] sm:$0xff]
    %v866 = vld [vmem:[#allocation7 + $0x110] sm:$0xff]
    %v867 = vld [vmem:[#allocation7 + $0x118] sm:$0xff]
    %v868 = vld [vmem:[#allocation7 + $0x120] sm:$0xff]
    %v869 = vld [vmem:[#allocation7 + $0x128] sm:$0xff]
    %v870 = vld [vmem:[#allocation7 + $0x130] sm:$0xff]
    %v871 = vld [vmem:[#allocation7 + $0x138] sm:$0xff]
    %v872 = vld [vmem:[#allocation7 + $0x140] sm:$0xff]
    %v873 = vld [vmem:[#allocation7 + $0x148] sm:$0xff]
    %v874 = vld [vmem:[#allocation7 + $0x150] sm:$0xff]
    %v875 = vld [vmem:[#allocation7 + $0x158] sm:$0xff]
    %v876 = vld [vmem:[#allocation7 + $0x160] sm:$0xff]
    %v877 = vld [vmem:[#allocation7 + $0x168] sm:$0xff]
    %v878 = vld [vmem:[#allocation7 + $0x170] sm:$0xff]
    %v879 = vld [vmem:[#allocation7 + $0x178] sm:$0xff]
    %v880 = vld [vmem:[#allocation7 + $0x180] sm:$0xff]
    %v881 = vld [vmem:[#allocation7 + $0x188] sm:$0xff]
    %v882 = vld [vmem:[#allocation7 + $0x190] sm:$0xff]
    %v883 = vld [vmem:[#allocation7 + $0x198] sm:$0xff]
    %v884 = vld [vmem:[#allocation7 + $0x1a0] sm:$0xff]
    %v885 = vld [vmem:[#allocation7 + $0x1a8] sm:$0xff]
    %v886 = vld [vmem:[#allocation7 + $0x1b0] sm:$0xff]
    %v887 = vld [vmem:[#allocation7 + $0x1b8] sm:$0xff]
    %v888 = vld [vmem:[#allocation7 + $0x1c0] sm:$0xff]
    %v889 = vld [vmem:[#allocation7 + $0x1c8] sm:$0xff]
    %v890 = vld [vmem:[#allocation7 + $0x1d0] sm:$0xff]
    %v891 = vld [vmem:[#allocation7 + $0x1d8] sm:$0xff]
    %v892 = vld [vmem:[#allocation7 + $0x1e0] sm:$0xff]
    %v893 = vld [vmem:[#allocation7 + $0x1e8] sm:$0xff]
    %v894 = vld [vmem:[#allocation7 + $0x1f0] sm:$0xff]
    %v895 = vld [vmem:[#allocation7 + $0x1f8] sm:$0xff]
    %v896 = vld [vmem:[#allocation7 + $0x200] sm:$0xff]
    %v897 = vld [vmem:[#allocation7 + $0x208] sm:$0xff]
    %v898 = vld [vmem:[#allocation7 + $0x210] sm:$0xff]
    %v899 = vld [vmem:[#allocation7 + $0x218] sm:$0xff]
    %v900 = vld [vmem:[#allocation7 + $0x220] sm:$0xff]
    %v901 = vld [vmem:[#allocation7 + $0x228] sm:$0xff]
    %v902 = vld [vmem:[#allocation7 + $0x230] sm:$0xff]
    %v903 = vld [vmem:[#allocation7 + $0x238] sm:$0xff]
    %v904 = vld [vmem:[#allocation7 + $0x240] sm:$0xff]
    %v905 = vld [vmem:[#allocation7 + $0x248] sm:$0xff]
    %v906 = vld [vmem:[#allocation7 + $0x250] sm:$0xff]
    %v907 = vld [vmem:[#allocation7 + $0x258] sm:$0xff]
    %v908 = vld [vmem:[#allocation7 + $0x260] sm:$0xff]
    %v909 = vld [vmem:[#allocation7 + $0x268] sm:$0xff]
    %v910 = vld [vmem:[#allocation7 + $0x270] sm:$0xff]
    %v911 = vld [vmem:[#allocation7 + $0x278] sm:$0xff]
    %v912 = vld [vmem:[#allocation7 + $0x280] sm:$0xff]
    %v913 = vld [vmem:[#allocation7 + $0x288] sm:$0xff]
    %v914 = vld [vmem:[#allocation7 + $0x290] sm:$0xff]
    %v915 = vld [vmem:[#allocation7 + $0x298] sm:$0xff]
    %v916 = vld [vmem:[#allocation7 + $0x2a0] sm:$0xff]
    %v917 = vld [vmem:[#allocation7 + $0x2a8] sm:$0xff]
    %v918 = vld [vmem:[#allocation7 + $0x2b0] sm:$0xff]
    %v919 = vld [vmem:[#allocation7 + $0x2b8] sm:$0xff]
    %v920 = vld [vmem:[#allocation7 + $0x2c0] sm:$0xff]
    %v921 = vld [vmem:[#allocation7 + $0x2c8] sm:$0xff]
    %v922 = vld [vmem:[#allocation7 + $0x2d0] sm:$0xff]
    %v923 = vld [vmem:[#allocation7 + $0x2d8] sm:$0xff]
    %v924 = vld [vmem:[#allocation7 + $0x2e0] sm:$0xff]
    %v925 = vld [vmem:[#allocation7 + $0x2e8] sm:$0xff]
    %v926 = vld [vmem:[#allocation7 + $0x2f0] sm:$0xff]
    %v927 = vld [vmem:[#allocation7 + $0x2f8] sm:$0xff]
    %v928 = vld [vmem:[#allocation7 + $0x300] sm:$0xff]
    %v929 = vld [vmem:[#allocation7 + $0x308] sm:$0xff]
    %v930 = vld [vmem:[#allocation7 + $0x310] sm:$0xff]
    %v931 = vld [vmem:[#allocation7 + $0x318] sm:$0xff]
    %v932 = vld [vmem:[#allocation7 + $0x320] sm:$0xff]
    %v933 = vld [vmem:[#allocation7 + $0x328] sm:$0xff]
    %v934 = vld [vmem:[#allocation7 + $0x330] sm:$0xff]
    %v935 = vld [vmem:[#allocation7 + $0x338] sm:$0xff]
    %v936 = vld [vmem:[#allocation7 + $0x340] sm:$0xff]
    %v937 = vld [vmem:[#allocation7 + $0x348] sm:$0xff]
    %v938 = vld [vmem:[#allocation7 + $0x350] sm:$0xff]
    %v939 = vld [vmem:[#allocation7 + $0x358] sm:$0xff]
    %v940 = vld [vmem:[#allocation7 + $0x360] sm:$0xff]
    %v941 = vld [vmem:[#allocation7 + $0x368] sm:$0xff]
    %v942 = vld [vmem:[#allocation7 + $0x370] sm:$0xff]
    %v943 = vld [vmem:[#allocation7 + $0x378] sm:$0xff]
    %v944 = vld [vmem:[#allocation7 + $0x380] sm:$0xff]
    %v945 = vld [vmem:[#allocation7 + $0x388] sm:$0xff]
    %v946 = vld [vmem:[#allocation7 + $0x390] sm:$0xff]
    %v947 = vld [vmem:[#allocation7 + $0x398] sm:$0xff]
    %v948 = vld [vmem:[#allocation7 + $0x3a0] sm:$0xff]
    %v949 = vld [vmem:[#allocation7 + $0x3a8] sm:$0xff]
    %v950 = vld [vmem:[#allocation7 + $0x3b0] sm:$0xff]
    %v951 = vld [vmem:[#allocation7 + $0x3b8] sm:$0xff]
    %v952 = vld [vmem:[#allocation7 + $0x3c0] sm:$0xff]
    %v953 = vld [vmem:[#allocation7 + $0x3c8] sm:$0xff]
    %v954 = vld [vmem:[#allocation7 + $0x3d0] sm:$0xff]
    %v955 = vld [vmem:[#allocation7 + $0x3d8] sm:$0xff]
    %v956 = vld [vmem:[#allocation7 + $0x3e0] sm:$0xff]
    %v957 = vld [vmem:[#allocation7 + $0x3e8] sm:$0xff]
    %v958 = vld [vmem:[#allocation7 + $0x3f0] sm:$0xff]
    %v959 = vld [vmem:[#allocation7 + $0x3f8] sm:$0xff]
    %v1088 = vunpack.c.l.b16 %v832
    %v1089 = vunpack.c.h.b16 %v832
    %v1090 = vunpack.c.l.b16 %v833
    %v1091 = vunpack.c.h.b16 %v833
    %v1092 = vunpack.c.l.b16 %v834
    %v1093 = vunpack.c.h.b16 %v834
    %v1094 = vunpack.c.l.b16 %v835
    %v1095 = vunpack.c.h.b16 %v835
    %v1096 = vunpack.c.l.b16 %v836
    %v1097 = vunpack.c.h.b16 %v836
    %v1098 = vunpack.c.l.b16 %v837
    %v1099 = vunpack.c.h.b16 %v837
    %v1100 = vunpack.c.l.b16 %v838
    %v1101 = vunpack.c.h.b16 %v838
    %v1102 = vunpack.c.l.b16 %v839
    %v1103 = vunpack.c.h.b16 %v839
    %v1104 = vunpack.c.l.b16 %v840
    %v1105 = vunpack.c.h.b16 %v840
    %v1106 = vunpack.c.l.b16 %v841
    %v1107 = vunpack.c.h.b16 %v841
    %v1108 = vunpack.c.l.b16 %v842
    %v1109 = vunpack.c.h.b16 %v842
    %v1110 = vunpack.c.l.b16 %v843
    %v1111 = vunpack.c.h.b16 %v843
    %v1112 = vunpack.c.l.b16 %v844
    %v1113 = vunpack.c.h.b16 %v844
    %v1114 = vunpack.c.l.b16 %v845
    %v1115 = vunpack.c.h.b16 %v845
    %v1116 = vunpack.c.l.b16 %v846
    %v1117 = vunpack.c.h.b16 %v846
    %v1118 = vunpack.c.l.b16 %v847
    %v1119 = vunpack.c.h.b16 %v847
    %v1120 = vunpack.c.l.b16 %v848
    %v1121 = vunpack.c.h.b16 %v848
    %v1122 = vunpack.c.l.b16 %v849
    %v1123 = vunpack.c.h.b16 %v849
    %v1124 = vunpack.c.l.b16 %v850
    %v1125 = vunpack.c.h.b16 %v850
    %v1126 = vunpack.c.l.b16 %v851
    %v1127 = vunpack.c.h.b16 %v851
    %v1128 = vunpack.c.l.b16 %v852
    %v1129 = vunpack.c.h.b16 %v852
    %v1130 = vunpack.c.l.b16 %v853
    %v1131 = vunpack.c.h.b16 %v853
    %v1132 = vunpack.c.l.b16 %v854
    %v1133 = vunpack.c.h.b16 %v854
    %v1134 = vunpack.c.l.b16 %v855
    %v1135 = vunpack.c.h.b16 %v855
    %v1136 = vunpack.c.l.b16 %v856
    %v1137 = vunpack.c.h.b16 %v856
    %v1138 = vunpack.c.l.b16 %v857
    %v1139 = vunpack.c.h.b16 %v857
    %v1140 = vunpack.c.l.b16 %v858
    %v1141 = vunpack.c.h.b16 %v858
    %v1142 = vunpack.c.l.b16 %v859
    %v1143 = vunpack.c.h.b16 %v859
    %v1144 = vunpack.c.l.b16 %v860
    %v1145 = vunpack.c.h.b16 %v860
    %v1146 = vunpack.c.l.b16 %v861
    %v1147 = vunpack.c.h.b16 %v861
    %v1148 = vunpack.c.l.b16 %v862
    %v1149 = vunpack.c.h.b16 %v862
    %v1150 = vunpack.c.l.b16 %v863
    %v1151 = vunpack.c.h.b16 %v863
    %v1152 = vunpack.c.l.b16 %v864
    %v1153 = vunpack.c.h.b16 %v864
    %v1154 = vunpack.c.l.b16 %v865
    %v1155 = vunpack.c.h.b16 %v865
    %v1156 = vunpack.c.l.b16 %v866
    %v1157 = vunpack.c.h.b16 %v866
    %v1158 = vunpack.c.l.b16 %v867
    %v1159 = vunpack.c.h.b16 %v867
    %v1160 = vunpack.c.l.b16 %v868
    %v1161 = vunpack.c.h.b16 %v868
    %v1162 = vunpack.c.l.b16 %v869
    %v1163 = vunpack.c.h.b16 %v869
    %v1164 = vunpack.c.l.b16 %v870
    %v1165 = vunpack.c.h.b16 %v870
    %v1166 = vunpack.c.l.b16 %v871
    %v1167 = vunpack.c.h.b16 %v871
    %v1168 = vunpack.c.l.b16 %v872
    %v1169 = vunpack.c.h.b16 %v872
    %v1170 = vunpack.c.l.b16 %v873
    %v1171 = vunpack.c.h.b16 %v873
    %v1172 = vunpack.c.l.b16 %v874
    %v1173 = vunpack.c.h.b16 %v874
    %v1174 = vunpack.c.l.b16 %v875
    %v1175 = vunpack.c.h.b16 %v875
    %v1176 = vunpack.c.l.b16 %v876
    %v1177 = vunpack.c.h.b16 %v876
    %v1178 = vunpack.c.l.b16 %v877
    %v1179 = vunpack.c.h.b16 %v877
    %v1180 = vunpack.c.l.b16 %v878
    %v1181 = vunpack.c.h.b16 %v878
    %v1182 = vunpack.c.l.b16 %v879
    %v1183 = vunpack.c.h.b16 %v879
    %v1184 = vunpack.c.l.b16 %v880
    %v1185 = vunpack.c.h.b16 %v880
    %v1186 = vunpack.c.l.b16 %v881
    %v1187 = vunpack.c.h.b16 %v881
    %v1188 = vunpack.c.l.b16 %v882
    %v1189 = vunpack.c.h.b16 %v882
    %v1190 = vunpack.c.l.b16 %v883
    %v1191 = vunpack.c.h.b16 %v883
    %v1192 = vunpack.c.l.b16 %v884
    %v1193 = vunpack.c.h.b16 %v884
    %v1194 = vunpack.c.l.b16 %v885
    %v1195 = vunpack.c.h.b16 %v885
    %v1196 = vunpack.c.l.b16 %v886
    %v1197 = vunpack.c.h.b16 %v886
    %v1198 = vunpack.c.l.b16 %v887
    %v1199 = vunpack.c.h.b16 %v887
    %v1200 = vunpack.c.l.b16 %v888
    %v1201 = vunpack.c.h.b16 %v888
    %v1202 = vunpack.c.l.b16 %v889
    %v1203 = vunpack.c.h.b16 %v889
    %v1204 = vunpack.c.l.b16 %v890
    %v1205 = vunpack.c.h.b16 %v890
    %v1206 = vunpack.c.l.b16 %v891
    %v1207 = vunpack.c.h.b16 %v891
    %v1208 = vunpack.c.l.b16 %v892
    %v1209 = vunpack.c.h.b16 %v892
    %v1210 = vunpack.c.l.b16 %v893
    %v1211 = vunpack.c.h.b16 %v893
    %v1212 = vunpack.c.l.b16 %v894
    %v1213 = vunpack.c.h.b16 %v894
    %v1214 = vunpack.c.l.b16 %v895
    %v1215 = vunpack.c.h.b16 %v895
    %v1216 = vunpack.c.l.b16 %v896
    %v1217 = vunpack.c.h.b16 %v896
    %v1218 = vunpack.c.l.b16 %v897
    %v1219 = vunpack.c.h.b16 %v897
    %v1220 = vunpack.c.l.b16 %v898
    %v1221 = vunpack.c.h.b16 %v898
    %v1222 = vunpack.c.l.b16 %v899
    %v1223 = vunpack.c.h.b16 %v899
    %v1224 = vunpack.c.l.b16 %v900
    %v1225 = vunpack.c.h.b16 %v900
    %v1226 = vunpack.c.l.b16 %v901
    %v1227 = vunpack.c.h.b16 %v901
    %v1228 = vunpack.c.l.b16 %v902
    %v1229 = vunpack.c.h.b16 %v902
    %v1230 = vunpack.c.l.b16 %v903
    %v1231 = vunpack.c.h.b16 %v903
    %v1232 = vunpack.c.l.b16 %v904
    %v1233 = vunpack.c.h.b16 %v904
    %v1234 = vunpack.c.l.b16 %v905
    %v1235 = vunpack.c.h.b16 %v905
    %v1236 = vunpack.c.l.b16 %v906
    %v1237 = vunpack.c.h.b16 %v906
    %v1238 = vunpack.c.l.b16 %v907
    %v1239 = vunpack.c.h.b16 %v907
    %v1240 = vunpack.c.l.b16 %v908
    %v1241 = vunpack.c.h.b16 %v908
    %v1242 = vunpack.c.l.b16 %v909
    %v1243 = vunpack.c.h.b16 %v909
    %v1244 = vunpack.c.l.b16 %v910
    %v1245 = vunpack.c.h.b16 %v910
    %v1246 = vunpack.c.l.b16 %v911
    %v1247 = vunpack.c.h.b16 %v911
    %v1248 = vunpack.c.l.b16 %v912
    %v1249 = vunpack.c.h.b16 %v912
    %v1250 = vunpack.c.l.b16 %v913
    %v1251 = vunpack.c.h.b16 %v913
    %v1252 = vunpack.c.l.b16 %v914
    %v1253 = vunpack.c.h.b16 %v914
    %v1254 = vunpack.c.l.b16 %v915
    %v1255 = vunpack.c.h.b16 %v915
    %v1256 = vunpack.c.l.b16 %v916
    %v1257 = vunpack.c.h.b16 %v916
    %v1258 = vunpack.c.l.b16 %v917
    %v1259 = vunpack.c.h.b16 %v917
    %v1260 = vunpack.c.l.b16 %v918
    %v1261 = vunpack.c.h.b16 %v918
    %v1262 = vunpack.c.l.b16 %v919
    %v1263 = vunpack.c.h.b16 %v919
    %v1264 = vunpack.c.l.b16 %v920
    %v1265 = vunpack.c.h.b16 %v920
    %v1266 = vunpack.c.l.b16 %v921
    %v1267 = vunpack.c.h.b16 %v921
    %v1268 = vunpack.c.l.b16 %v922
    %v1269 = vunpack.c.h.b16 %v922
    %v1270 = vunpack.c.l.b16 %v923
    %v1271 = vunpack.c.h.b16 %v923
    %v1272 = vunpack.c.l.b16 %v924
    %v1273 = vunpack.c.h.b16 %v924
    %v1274 = vunpack.c.l.b16 %v925
    %v1275 = vunpack.c.h.b16 %v925
    %v1276 = vunpack.c.l.b16 %v926
    %v1277 = vunpack.c.h.b16 %v926
    %v1278 = vunpack.c.l.b16 %v927
    %v1279 = vunpack.c.h.b16 %v927
    %v1280 = vunpack.c.l.b16 %v928
    %v1281 = vunpack.c.h.b16 %v928
    %v1282 = vunpack.c.l.b16 %v929
    %v1283 = vunpack.c.h.b16 %v929
    %v1284 = vunpack.c.l.b16 %v930
    %v1285 = vunpack.c.h.b16 %v930
    %v1286 = vunpack.c.l.b16 %v931
    %v1287 = vunpack.c.h.b16 %v931
    %v1288 = vunpack.c.l.b16 %v932
    %v1289 = vunpack.c.h.b16 %v932
    %v1290 = vunpack.c.l.b16 %v933
    %v1291 = vunpack.c.h.b16 %v933
    %v1292 = vunpack.c.l.b16 %v934
    %v1293 = vunpack.c.h.b16 %v934
    %v1294 = vunpack.c.l.b16 %v935
    %v1295 = vunpack.c.h.b16 %v935
    %v1296 = vunpack.c.l.b16 %v936
    %v1297 = vunpack.c.h.b16 %v936
    %v1298 = vunpack.c.l.b16 %v937
    %v1299 = vunpack.c.h.b16 %v937
    %v1300 = vunpack.c.l.b16 %v938
    %v1301 = vunpack.c.h.b16 %v938
    %v1302 = vunpack.c.l.b16 %v939
    %v1303 = vunpack.c.h.b16 %v939
    %v1304 = vunpack.c.l.b16 %v940
    %v1305 = vunpack.c.h.b16 %v940
    %v1306 = vunpack.c.l.b16 %v941
    %v1307 = vunpack.c.h.b16 %v941
    %v1308 = vunpack.c.l.b16 %v942
    %v1309 = vunpack.c.h.b16 %v942
    %v1310 = vunpack.c.l.b16 %v943
    %v1311 = vunpack.c.h.b16 %v943
    %v1312 = vunpack.c.l.b16 %v944
    %v1313 = vunpack.c.h.b16 %v944
    %v1314 = vunpack.c.l.b16 %v945
    %v1315 = vunpack.c.h.b16 %v945
    %v1316 = vunpack.c.l.b16 %v946
    %v1317 = vunpack.c.h.b16 %v946
    %v1318 = vunpack.c.l.b16 %v947
    %v1319 = vunpack.c.h.b16 %v947
    %v1320 = vunpack.c.l.b16 %v948
    %v1321 = vunpack.c.h.b16 %v948
    %v1322 = vunpack.c.l.b16 %v949
    %v1323 = vunpack.c.h.b16 %v949
    %v1324 = vunpack.c.l.b16 %v950
    %v1325 = vunpack.c.h.b16 %v950
    %v1326 = vunpack.c.l.b16 %v951
    %v1327 = vunpack.c.h.b16 %v951
    %v1328 = vunpack.c.l.b16 %v952
    %v1329 = vunpack.c.h.b16 %v952
    %v1330 = vunpack.c.l.b16 %v953
    %v1331 = vunpack.c.h.b16 %v953
    %v1332 = vunpack.c.l.b16 %v954
    %v1333 = vunpack.c.h.b16 %v954
    %v1334 = vunpack.c.l.b16 %v955
    %v1335 = vunpack.c.h.b16 %v955
    %v1336 = vunpack.c.l.b16 %v956
    %v1337 = vunpack.c.h.b16 %v956
    %v1338 = vunpack.c.l.b16 %v957
    %v1339 = vunpack.c.h.b16 %v957
    %v1340 = vunpack.c.l.b16 %v958
    %v1341 = vunpack.c.h.b16 %v958
    %v1342 = vunpack.c.l.b16 %v959
    %v1343 = vunpack.c.h.b16 %v959
    %v1344 = vpack.c.b16 %v1096, %v1088
    %v1345 = vpack.c.b16 %v1097, %v1089
    %v1346 = vpack.c.b16 %v1098, %v1090
    %v1347 = vpack.c.b16 %v1099, %v1091
    %v1348 = vpack.c.b16 %v1100, %v1092
    %v1349 = vpack.c.b16 %v1101, %v1093
    %v1350 = vpack.c.b16 %v1102, %v1094
    %v1351 = vpack.c.b16 %v1103, %v1095
    %v1352 = vpack.c.b16 %v1112, %v1104
    %v1353 = vpack.c.b16 %v1113, %v1105
    %v1354 = vpack.c.b16 %v1114, %v1106
    %v1355 = vpack.c.b16 %v1115, %v1107
    %v1356 = vpack.c.b16 %v1116, %v1108
    %v1357 = vpack.c.b16 %v1117, %v1109
    %v1358 = vpack.c.b16 %v1118, %v1110
    %v1359 = vpack.c.b16 %v1119, %v1111
    %v1360 = vpack.c.b16 %v1128, %v1120
    %v1361 = vpack.c.b16 %v1129, %v1121
    %v1362 = vpack.c.b16 %v1130, %v1122
    %v1363 = vpack.c.b16 %v1131, %v1123
    %v1364 = vpack.c.b16 %v1132, %v1124
    %v1365 = vpack.c.b16 %v1133, %v1125
    %v1366 = vpack.c.b16 %v1134, %v1126
    %v1367 = vpack.c.b16 %v1135, %v1127
    %v1368 = vpack.c.b16 %v1144, %v1136
    %v1369 = vpack.c.b16 %v1145, %v1137
    %v1370 = vpack.c.b16 %v1146, %v1138
    %v1371 = vpack.c.b16 %v1147, %v1139
    %v1372 = vpack.c.b16 %v1148, %v1140
    %v1373 = vpack.c.b16 %v1149, %v1141
    %v1374 = vpack.c.b16 %v1150, %v1142
    %v1375 = vpack.c.b16 %v1151, %v1143
    %v1376 = vpack.c.b16 %v1160, %v1152
    %v1377 = vpack.c.b16 %v1161, %v1153
    %v1378 = vpack.c.b16 %v1162, %v1154
    %v1379 = vpack.c.b16 %v1163, %v1155
    %v1380 = vpack.c.b16 %v1164, %v1156
    %v1381 = vpack.c.b16 %v1165, %v1157
    %v1382 = vpack.c.b16 %v1166, %v1158
    %v1383 = vpack.c.b16 %v1167, %v1159
    %v1384 = vpack.c.b16 %v1176, %v1168
    %v1385 = vpack.c.b16 %v1177, %v1169
    %v1386 = vpack.c.b16 %v1178, %v1170
    %v1387 = vpack.c.b16 %v1179, %v1171
    %v1388 = vpack.c.b16 %v1180, %v1172
    %v1389 = vpack.c.b16 %v1181, %v1173
    %v1390 = vpack.c.b16 %v1182, %v1174
    %v1391 = vpack.c.b16 %v1183, %v1175
    %v1392 = vpack.c.b16 %v1192, %v1184
    %v1393 = vpack.c.b16 %v1193, %v1185
    %v1394 = vpack.c.b16 %v1194, %v1186
    %v1395 = vpack.c.b16 %v1195, %v1187
    %v1396 = vpack.c.b16 %v1196, %v1188
    %v1397 = vpack.c.b16 %v1197, %v1189
    %v1398 = vpack.c.b16 %v1198, %v1190
    %v1399 = vpack.c.b16 %v1199, %v1191
    %v1400 = vpack.c.b16 %v1208, %v1200
    %v1401 = vpack.c.b16 %v1209, %v1201
    %v1402 = vpack.c.b16 %v1210, %v1202
    %v1403 = vpack.c.b16 %v1211, %v1203
    %v1404 = vpack.c.b16 %v1212, %v1204
    %v1405 = vpack.c.b16 %v1213, %v1205
    %v1406 = vpack.c.b16 %v1214, %v1206
    %v1407 = vpack.c.b16 %v1215, %v1207
    %v1408 = vpack.c.b16 %v1224, %v1216
    %v1409 = vpack.c.b16 %v1225, %v1217
    %v1410 = vpack.c.b16 %v1226, %v1218
    %v1411 = vpack.c.b16 %v1227, %v1219
    %v1412 = vpack.c.b16 %v1228, %v1220
    %v1413 = vpack.c.b16 %v1229, %v1221
    %v1414 = vpack.c.b16 %v1230, %v1222
    %v1415 = vpack.c.b16 %v1231, %v1223
    %v1416 = vpack.c.b16 %v1240, %v1232
    %v1417 = vpack.c.b16 %v1241, %v1233
    %v1418 = vpack.c.b16 %v1242, %v1234
    %v1419 = vpack.c.b16 %v1243, %v1235
    %v1420 = vpack.c.b16 %v1244, %v1236
    %v1421 = vpack.c.b16 %v1245, %v1237
    %v1422 = vpack.c.b16 %v1246, %v1238
    %v1423 = vpack.c.b16 %v1247, %v1239
    %v1424 = vpack.c.b16 %v1256, %v1248
    %v1425 = vpack.c.b16 %v1257, %v1249
    %v1426 = vpack.c.b16 %v1258, %v1250
    %v1427 = vpack.c.b16 %v1259, %v1251
    %v1428 = vpack.c.b16 %v1260, %v1252
    %v1429 = vpack.c.b16 %v1261, %v1253
    %v1430 = vpack.c.b16 %v1262, %v1254
    %v1431 = vpack.c.b16 %v1263, %v1255
    %v1432 = vpack.c.b16 %v1272, %v1264
    %v1433 = vpack.c.b16 %v1273, %v1265
    %v1434 = vpack.c.b16 %v1274, %v1266
    %v1435 = vpack.c.b16 %v1275, %v1267
    %v1436 = vpack.c.b16 %v1276, %v1268
    %v1437 = vpack.c.b16 %v1277, %v1269
    %v1438 = vpack.c.b16 %v1278, %v1270
    %v1439 = vpack.c.b16 %v1279, %v1271
    %v1440 = vpack.c.b16 %v1288, %v1280
    %v1441 = vpack.c.b16 %v1289, %v1281
    %v1442 = vpack.c.b16 %v1290, %v1282
    %v1443 = vpack.c.b16 %v1291, %v1283
    %v1444 = vpack.c.b16 %v1292, %v1284
    %v1445 = vpack.c.b16 %v1293, %v1285
    %v1446 = vpack.c.b16 %v1294, %v1286
    %v1447 = vpack.c.b16 %v1295, %v1287
    %v1448 = vpack.c.b16 %v1304, %v1296
    %v1449 = vpack.c.b16 %v1305, %v1297
    %v1450 = vpack.c.b16 %v1306, %v1298
    %v1451 = vpack.c.b16 %v1307, %v1299
    %v1452 = vpack.c.b16 %v1308, %v1300
    %v1453 = vpack.c.b16 %v1309, %v1301
    %v1454 = vpack.c.b16 %v1310, %v1302
    %v1455 = vpack.c.b16 %v1311, %v1303
    %v1456 = vpack.c.b16 %v1320, %v1312
    %v1457 = vpack.c.b16 %v1321, %v1313
    %v1458 = vpack.c.b16 %v1322, %v1314
    %v1459 = vpack.c.b16 %v1323, %v1315
    %v1460 = vpack.c.b16 %v1324, %v1316
    %v1461 = vpack.c.b16 %v1325, %v1317
    %v1462 = vpack.c.b16 %v1326, %v1318
    %v1463 = vpack.c.b16 %v1327, %v1319
    %v1464 = vpack.c.b16 %v1336, %v1328
    %v1465 = vpack.c.b16 %v1337, %v1329
    %v1466 = vpack.c.b16 %v1338, %v1330
    %v1467 = vpack.c.b16 %v1339, %v1331
    %v1468 = vpack.c.b16 %v1340, %v1332
    %v1469 = vpack.c.b16 %v1341, %v1333
    %v1470 = vpack.c.b16 %v1342, %v1334
    %v1471 = vpack.c.b16 %v1343, %v1335
    %1600 = vmatpush.bf16.msra.mxu0 %v1400
    %1601 = vmatpush.bf16.msra.mxu0 %v1392
    %1602 = vmatpush.bf16.msra.mxu0 %v1384
    %1603 = vmatpush.bf16.msra.mxu0 %v1376
    %1604 = vmatpush.bf16.msra.mxu0 %v1368
    %1605 = vmatpush.bf16.msra.mxu0 %v1360
    %1606 = vmatpush.bf16.msra.mxu0 %v1352
    %1607 = vmatpush.bf16.msra.mxu0 %v1344
    %1608 = vmatmul.bf16.gmra.mxu0 %v831
    %v1609 = vpop.f32.mrf.mxu0
    %v1610 = vadd.f32 0.0, %v1609
    %v1611 = vpop.f32.mrf.mxu0
    %1612 = vdwg.mxu0
    %1613 = vmatpush.bf16.msra.mxu0 %v1464
    %1614 = vmatpush.bf16.msra.mxu0 %v1456
    %1615 = vmatpush.bf16.msra.mxu0 %v1448
    %1616 = vmatpush.bf16.msra.mxu0 %v1440
    %1617 = vmatpush.bf16.msra.mxu0 %v1432
    %1618 = vmatpush.bf16.msra.mxu0 %v1424
    %1619 = vmatpush.bf16.msra.mxu0 %v1416
    %1620 = vmatpush.bf16.msra.mxu0 %v1408
    %1621 = vmatmul.bf16.gmra.mxu0 %v831
    %v1622 = vpop.f32.mrf.mxu0
    %v1623 = vadd.f32 %v1610, %v1622
    %v1624 = vpop.f32.mrf.mxu0
    %1625 = vdwg.mxu0
    %1626 = vmatpush.bf16.msra.mxu0 %v1401
    %1627 = vmatpush.bf16.msra.mxu0 %v1393
    %1628 = vmatpush.bf16.msra.mxu0 %v1385
    %1629 = vmatpush.bf16.msra.mxu0 %v1377
    %1630 = vmatpush.bf16.msra.mxu0 %v1369
    %1631 = vmatpush.bf16.msra.mxu0 %v1361
    %1632 = vmatpush.bf16.msra.mxu0 %v1353
    %1633 = vmatpush.bf16.msra.mxu0 %v1345
    %1634 = vmatmul.bf16.gmra.mxu0 %v831
    %v1635 = vpop.f32.mrf.mxu0
    %v1636 = vadd.f32 0.0, %v1635
    %v1637 = vpop.f32.mrf.mxu0
    %1638 = vdwg.mxu0
    %1639 = vmatpush.bf16.msra.mxu0 %v1465
    %1640 = vmatpush.bf16.msra.mxu0 %v1457
    %1641 = vmatpush.bf16.msra.mxu0 %v1449
    %1642 = vmatpush.bf16.msra.mxu0 %v1441
    %1643 = vmatpush.bf16.msra.mxu0 %v1433
    %1644 = vmatpush.bf16.msra.mxu0 %v1425
    %1645 = vmatpush.bf16.msra.mxu0 %v1417
    %1646 = vmatpush.bf16.msra.mxu0 %v1409
    %1647 = vmatmul.bf16.gmra.mxu0 %v831
    %v1648 = vpop.f32.mrf.mxu0
    %v1649 = vadd.f32 %v1636, %v1648
    %v1650 = vpop.f32.mrf.mxu0
    %1651 = vdwg.mxu0
    %1652 = vmatpush.bf16.msra.mxu0 %v1402
    %1653 = vmatpush.bf16.msra.mxu0 %v1394
    %1654 = vmatpush.bf16.msra.mxu0 %v1386
    %1655 = vmatpush.bf16.msra.mxu0 %v1378
    %1656 = vmatpush.bf16.msra.mxu0 %v1370
    %1657 = vmatpush.bf16.msra.mxu0 %v1362
    %1658 = vmatpush.bf16.msra.mxu0 %v1354
    %1659 = vmatpush.bf16.msra.mxu0 %v1346
    %1660 = vmatmul.bf16.gmra.mxu0 %v831
    %v1661 = vpop.f32.mrf.mxu0
    %v1662 = vadd.f32 0.0, %v1661
    %v1663 = vpop.f32.mrf.mxu0
    %1664 = vdwg.mxu0
    %1665 = vmatpush.bf16.msra.mxu0 %v1466
    %1666 = vmatpush.bf16.msra.mxu0 %v1458
    %1667 = vmatpush.bf16.msra.mxu0 %v1450
    %1668 = vmatpush.bf16.msra.mxu0 %v1442
    %1669 = vmatpush.bf16.msra.mxu0 %v1434
    %1670 = vmatpush.bf16.msra.mxu0 %v1426
    %1671 = vmatpush.bf16.msra.mxu0 %v1418
    %1672 = vmatpush.bf16.msra.mxu0 %v1410
    %1673 = vmatmul.bf16.gmra.mxu0 %v831
    %v1674 = vpop.f32.mrf.mxu0
    %v1675 = vadd.f32 %v1662, %v1674
    %v1676 = vpop.f32.mrf.mxu0
    %1677 = vdwg.mxu0
    %1678 = vmatpush.bf16.msra.mxu0 %v1403
    %1679 = vmatpush.bf16.msra.mxu0 %v1395
    %1680 = vmatpush.bf16.msra.mxu0 %v1387
    %1681 = vmatpush.bf16.msra.mxu0 %v1379
    %1682 = vmatpush.bf16.msra.mxu0 %v1371
    %1683 = vmatpush.bf16.msra.mxu0 %v1363
    %1684 = vmatpush.bf16.msra.mxu0 %v1355
    %1685 = vmatpush.bf16.msra.mxu0 %v1347
    %1686 = vmatmul.bf16.gmra.mxu0 %v831
    %v1687 = vpop.f32.mrf.mxu0
    %v1688 = vadd.f32 0.0, %v1687
    %v1689 = vpop.f32.mrf.mxu0
    %1690 = vdwg.mxu0
    %1691 = vmatpush.bf16.msra.mxu0 %v1467
    %1692 = vmatpush.bf16.msra.mxu0 %v1459
    %1693 = vmatpush.bf16.msra.mxu0 %v1451
    %1694 = vmatpush.bf16.msra.mxu0 %v1443
    %1695 = vmatpush.bf16.msra.mxu0 %v1435
    %1696 = vmatpush.bf16.msra.mxu0 %v1427
    %1697 = vmatpush.bf16.msra.mxu0 %v1419
    %1698 = vmatpush.bf16.msra.mxu0 %v1411
    %1699 = vmatmul.bf16.gmra.mxu0 %v831
    %v1700 = vpop.f32.mrf.mxu0
    %v1701 = vadd.f32 %v1688, %v1700
    %v1702 = vpop.f32.mrf.mxu0
    %1703 = vdwg.mxu0
    %1704 = vmatpush.bf16.msra.mxu0 %v1404
    %1705 = vmatpush.bf16.msra.mxu0 %v1396
    %1706 = vmatpush.bf16.msra.mxu0 %v1388
    %1707 = vmatpush.bf16.msra.mxu0 %v1380
    %1708 = vmatpush.bf16.msra.mxu0 %v1372
    %1709 = vmatpush.bf16.msra.mxu0 %v1364
    %1710 = vmatpush.bf16.msra.mxu0 %v1356
    %1711 = vmatpush.bf16.msra.mxu0 %v1348
    %1712 = vmatmul.bf16.gmra.mxu0 %v831
    %v1713 = vpop.f32.mrf.mxu0
    %v1714 = vadd.f32 0.0, %v1713
    %v1715 = vpop.f32.mrf.mxu0
    %1716 = vdwg.mxu0
    %1717 = vmatpush.bf16.msra.mxu0 %v1468
    %1718 = vmatpush.bf16.msra.mxu0 %v1460
    %1719 = vmatpush.bf16.msra.mxu0 %v1452
    %1720 = vmatpush.bf16.msra.mxu0 %v1444
    %1721 = vmatpush.bf16.msra.mxu0 %v1436
    %1722 = vmatpush.bf16.msra.mxu0 %v1428
    %1723 = vmatpush.bf16.msra.mxu0 %v1420
    %1724 = vmatpush.bf16.msra.mxu0 %v1412
    %1725 = vmatmul.bf16.gmra.mxu0 %v831
    %v1726 = vpop.f32.mrf.mxu0
    %v1727 = vadd.f32 %v1714, %v1726
    %v1728 = vpop.f32.mrf.mxu0
    %1729 = vdwg.mxu0
    %1730 = vmatpush.bf16.msra.mxu0 %v1405
    %1731 = vmatpush.bf16.msra.mxu0 %v1397
    %1732 = vmatpush.bf16.msra.mxu0 %v1389
    %1733 = vmatpush.bf16.msra.mxu0 %v1381
    %1734 = vmatpush.bf16.msra.mxu0 %v1373
    %1735 = vmatpush.bf16.msra.mxu0 %v1365
    %1736 = vmatpush.bf16.msra.mxu0 %v1357
    %1737 = vmatpush.bf16.msra.mxu0 %v1349
    %1738 = vmatmul.bf16.gmra.mxu0 %v831
    %v1739 = vpop.f32.mrf.mxu0
    %v1740 = vadd.f32 0.0, %v1739
    %v1741 = vpop.f32.mrf.mxu0
    %1742 = vdwg.mxu0
    %1743 = vmatpush.bf16.msra.mxu0 %v1469
    %1744 = vmatpush.bf16.msra.mxu0 %v1461
    %1745 = vmatpush.bf16.msra.mxu0 %v1453
    %1746 = vmatpush.bf16.msra.mxu0 %v1445
    %1747 = vmatpush.bf16.msra.mxu0 %v1437
    %1748 = vmatpush.bf16.msra.mxu0 %v1429
    %1749 = vmatpush.bf16.msra.mxu0 %v1421
    %1750 = vmatpush.bf16.msra.mxu0 %v1413
    %1751 = vmatmul.bf16.gmra.mxu0 %v831
    %v1752 = vpop.f32.mrf.mxu0
    %v1753 = vadd.f32 %v1740, %v1752
    %v1754 = vpop.f32.mrf.mxu0
    %1755 = vdwg.mxu0
    %1756 = vmatpush.bf16.msra.mxu0 %v1406
    %1757 = vmatpush.bf16.msra.mxu0 %v1398
    %1758 = vmatpush.bf16.msra.mxu0 %v1390
    %1759 = vmatpush.bf16.msra.mxu0 %v1382
    %1760 = vmatpush.bf16.msra.mxu0 %v1374
    %1761 = vmatpush.bf16.msra.mxu0 %v1366
    %1762 = vmatpush.bf16.msra.mxu0 %v1358
    %1763 = vmatpush.bf16.msra.mxu0 %v1350
    %1764 = vmatmul.bf16.gmra.mxu0 %v831
    %v1765 = vpop.f32.mrf.mxu0
    %v1766 = vadd.f32 0.0, %v1765
    %v1767 = vpop.f32.mrf.mxu0
    %1768 = vdwg.mxu0
    %1769 = vmatpush.bf16.msra.mxu0 %v1470
    %1770 = vmatpush.bf16.msra.mxu0 %v1462
    %1771 = vmatpush.bf16.msra.mxu0 %v1454
    %1772 = vmatpush.bf16.msra.mxu0 %v1446
    %1773 = vmatpush.bf16.msra.mxu0 %v1438
    %1774 = vmatpush.bf16.msra.mxu0 %v1430
    %1775 = vmatpush.bf16.msra.mxu0 %v1422
    %1776 = vmatpush.bf16.msra.mxu0 %v1414
    %1777 = vmatmul.bf16.gmra.mxu0 %v831
    %v1778 = vpop.f32.mrf.mxu0
    %v1779 = vadd.f32 %v1766, %v1778
    %v1780 = vpop.f32.mrf.mxu0
    %1781 = vdwg.mxu0
    %1782 = vmatpush.bf16.msra.mxu0 %v1407
    %1783 = vmatpush.bf16.msra.mxu0 %v1399
    %1784 = vmatpush.bf16.msra.mxu0 %v1391
    %1785 = vmatpush.bf16.msra.mxu0 %v1383
    %1786 = vmatpush.bf16.msra.mxu0 %v1375
    %1787 = vmatpush.bf16.msra.mxu0 %v1367
    %1788 = vmatpush.bf16.msra.mxu0 %v1359
    %1789 = vmatpush.bf16.msra.mxu0 %v1351
    %1790 = vmatmul.bf16.gmra.mxu0 %v831
    %v1791 = vpop.f32.mrf.mxu0
    %v1792 = vadd.f32 0.0, %v1791
    %v1793 = vpop.f32.mrf.mxu0
    %1794 = vdwg.mxu0
    %1795 = vmatpush.bf16.msra.mxu0 %v1471
    %1796 = vmatpush.bf16.msra.mxu0 %v1463
    %1797 = vmatpush.bf16.msra.mxu0 %v1455
    %1798 = vmatpush.bf16.msra.mxu0 %v1447
    %1799 = vmatpush.bf16.msra.mxu0 %v1439
    %1800 = vmatpush.bf16.msra.mxu0 %v1431
    %1801 = vmatpush.bf16.msra.mxu0 %v1423
    %1802 = vmatpush.bf16.msra.mxu0 %v1415
    %1803 = vmatmul.bf16.gmra.mxu0 %v831
    %v1804 = vpop.f32.mrf.mxu0
    %v1805 = vadd.f32 %v1792, %v1804
    %v1806 = vpop.f32.mrf.mxu0
    %1807 = vdwg.mxu0
    %v1808 = vld [vmem:[#allocation2] sm:$0xff]
    %v1809 = vld [vmem:[#allocation2 + $0x8] sm:$0xff]
    %v1810 = vld [vmem:[#allocation2 + $0x10] sm:$0xff]
    %v1811 = vld [vmem:[#allocation2 + $0x18] sm:$0xff]
    %v1812 = vadd.f32 %v1808, %v1623
    %v1813 = vadd.f32 %v1809, %v1649
    %v1814 = vadd.f32 %v1810, %v1675
    %v1815 = vadd.f32 %v1811, %v1701
    %s1816 = scalar_lea.vmem [#allocation2], 448
    %v1817 = vld [vmem:[%s1816 + $0x20] sm:$0xff]
    %v1818 = vld [vmem:[%s1816 + $0x28] sm:$0xff]
    %v1819 = vld [vmem:[%s1816 + $0x30] sm:$0xff]
    %v1820 = vld [vmem:[%s1816 + $0x38] sm:$0xff]
    %v1821 = vadd.f32 %v1817, %v1727
    %v1822 = vadd.f32 %v1818, %v1753
    %v1823 = vadd.f32 %v1819, %v1779
    %v1824 = vadd.f32 %v1820, %v1805
    %v1825 = vxor.u32 %v1812, 2147483648
    %v1826 = vmul.f32 %v1825, 1.442695
    %v1827 = vpow.pop %v1826
    %v1828 = vadd.f32 %v1827, 1.0
    %v1829 = vrcp.pop %v1828
    %v1830 = vmul.f32 %v1828, %v1829
    %v1831 = vsub.f32 1.0, %v1830
    %v1832 = vmul.f32 %v1829, %v1831
    %v1833 = vadd.f32 %v1829, %v1832
    %vm1834 = vweird.f32 %v1828
    %vm1835 = vweird.f32 %v1829
    %vm1836 = vmor %vm1834, %vm1835
    %v1837 = vsel %vm1836, %v1829, %v1833
    %v1838 = vand.u32 2147483647, %v1828
    %vm1839 = vcmp.eq.f32.partialorder %v1838, 8.507059e+37
    %v1840 = vand.u32 %v1828, 2147483648
    %v1841 = vor.u32 1.1754944e-38, %v1840
    %v1842 = vsel %vm1839, %v1841, %v1837
    %v1843 = vmul.f32 1.0, %v1842
    %v1844 = vxor.u32 %v1813, 2147483648
    %v1845 = vmul.f32 %v1844, 1.442695
    %v1846 = vpow.pop %v1845
    %v1847 = vadd.f32 %v1846, 1.0
    %v1848 = vrcp.pop %v1847
    %v1849 = vmul.f32 %v1847, %v1848
    %v1850 = vsub.f32 1.0, %v1849
    %v1851 = vmul.f32 %v1848, %v1850
    %v1852 = vadd.f32 %v1848, %v1851
    %vm1853 = vweird.f32 %v1847
    %vm1854 = vweird.f32 %v1848
    %vm1855 = vmor %vm1853, %vm1854
    %v1856 = vsel %vm1855, %v1848, %v1852
    %v1857 = vand.u32 2147483647, %v1847
    %vm1858 = vcmp.eq.f32.partialorder %v1857, 8.507059e+37
    %v1859 = vand.u32 %v1847, 2147483648
    %v1860 = vor.u32 1.1754944e-38, %v1859
    %v1861 = vsel %vm1858, %v1860, %v1856
    %v1862 = vmul.f32 1.0, %v1861
    %v1863 = vtanh.pop %v1814
    %v1864 = vxor.u32 %v1815, 2147483648
    %v1865 = vmul.f32 %v1864, 1.442695
    %v1866 = vpow.pop %v1865
    %v1867 = vadd.f32 %v1866, 1.0
    %v1868 = vrcp.pop %v1867
    %v1869 = vmul.f32 %v1867, %v1868
    %v1870 = vsub.f32 1.0, %v1869
    %v1871 = vmul.f32 %v1868, %v1870
    %v1872 = vadd.f32 %v1868, %v1871
    %vm1873 = vweird.f32 %v1867
    %vm1874 = vweird.f32 %v1868
    %vm1875 = vmor %vm1873, %vm1874
    %v1876 = vsel %vm1875, %v1868, %v1872
    %v1877 = vand.u32 2147483647, %v1867
    %vm1878 = vcmp.eq.f32.partialorder %v1877, 8.507059e+37
    %v1879 = vand.u32 %v1867, 2147483648
    %v1880 = vor.u32 1.1754944e-38, %v1879
    %v1881 = vsel %vm1878, %v1880, %v1876
    %v1882 = vmul.f32 1.0, %v1881
    %v1883 = vmul.f32 %v1862, 0.0
    %v1884 = vmul.f32 %v1843, %v1863
    %v1885 = vadd.f32 %v1883, %v1884
    %v1886 = vtanh.pop %v1885
    %v1887 = vmul.f32 %v1882, %v1886
    %v1888 = vxor.u32 %v1821, 2147483648
    %v1889 = vmul.f32 %v1888, 1.442695
    %v1890 = vpow.pop %v1889
    %v1891 = vadd.f32 %v1890, 1.0
    %v1892 = vrcp.pop %v1891
    %v1893 = vmul.f32 %v1891, %v1892
    %v1894 = vsub.f32 1.0, %v1893
    %v1895 = vmul.f32 %v1892, %v1894
    %v1896 = vadd.f32 %v1892, %v1895
    %vm1897 = vweird.f32 %v1891
    %vm1898 = vweird.f32 %v1892
    %vm1899 = vmor %vm1897, %vm1898
    %v1900 = vsel %vm1899, %v1892, %v1896
    %v1901 = vand.u32 2147483647, %v1891
    %vm1902 = vcmp.eq.f32.partialorder %v1901, 8.507059e+37
    %v1903 = vand.u32 %v1891, 2147483648
    %v1904 = vor.u32 1.1754944e-38, %v1903
    %v1905 = vsel %vm1902, %v1904, %v1900
    %v1906 = vmul.f32 1.0, %v1905
    %v1907 = vxor.u32 %v1822, 2147483648
    %v1908 = vmul.f32 %v1907, 1.442695
    %v1909 = vpow.pop %v1908
    %v1910 = vadd.f32 %v1909, 1.0
    %v1911 = vrcp.pop %v1910
    %v1912 = vmul.f32 %v1910, %v1911
    %v1913 = vsub.f32 1.0, %v1912
    %v1914 = vmul.f32 %v1911, %v1913
    %v1915 = vadd.f32 %v1911, %v1914
    %vm1916 = vweird.f32 %v1910
    %vm1917 = vweird.f32 %v1911
    %vm1918 = vmor %vm1916, %vm1917
    %v1919 = vsel %vm1918, %v1911, %v1915
    %v1920 = vand.u32 2147483647, %v1910
    %vm1921 = vcmp.eq.f32.partialorder %v1920, 8.507059e+37
    %v1922 = vand.u32 %v1910, 2147483648
    %v1923 = vor.u32 1.1754944e-38, %v1922
    %v1924 = vsel %vm1921, %v1923, %v1919
    %v1925 = vmul.f32 1.0, %v1924
    %v1926 = vtanh.pop %v1823
    %v1927 = vxor.u32 %v1824, 2147483648
    %v1928 = vmul.f32 %v1927, 1.442695
    %v1929 = vpow.pop %v1928
    %v1930 = vadd.f32 %v1929, 1.0
    %v1931 = vrcp.pop %v1930
    %v1932 = vmul.f32 %v1930, %v1931
    %v1933 = vsub.f32 1.0, %v1932
    %v1934 = vmul.f32 %v1931, %v1933
    %v1935 = vadd.f32 %v1931, %v1934
    %vm1936 = vweird.f32 %v1930
    %vm1937 = vweird.f32 %v1931
    %vm1938 = vmor %vm1936, %vm1937
    %v1939 = vsel %vm1938, %v1931, %v1935
    %v1940 = vand.u32 2147483647, %v1930
    %vm1941 = vcmp.eq.f32.partialorder %v1940, 8.507059e+37
    %v1942 = vand.u32 %v1930, 2147483648
    %v1943 = vor.u32 1.1754944e-38, %v1942
    %v1944 = vsel %vm1941, %v1943, %v1939
    %v1945 = vmul.f32 1.0, %v1944
    %v1946 = vmul.f32 %v1925, 0.0
    %v1947 = vmul.f32 %v1906, %v1926
    %v1948 = vadd.f32 %v1946, %v1947
    %v1949 = vtanh.pop %v1948
    %v1950 = vmul.f32 %v1945, %v1949
    %v1951 = vld [vmem:[%s1] sm:$0xff]
    %vm1952 = vcmp.gt.f32.partialorder %v1951, 0.0
    %s1953 = scalar_lea.vmem %s1, 56
    %v1954 = vld [vmem:[%s1953] sm:$0xff]
    %vm1955 = vcmp.gt.f32.partialorder %v1954, 0.0
    %v1956 = vsel %vm1952, %v1887, 0.0
    %1957 = vst [vmem:[#allocation3] sm:$0xff] %v1956
    %v1958 = vsel %vm1955, %v1950, 0.0
    %s1959 = scalar_lea.vmem [#allocation4], 56
    %1960 = vst [vmem:[%s1959] sm:$0xff] %v1958
    %v1961 = vsel %vm1952, %v1885, 0.0
    %v1962 = vsel %vm1955, %v1948, 0.0
    %v1963 = vpack.c.bf16 %v1956, %v1956
    %v1964 = vpack.c.bf16 %v1958, %v1958
    %v1965 = vld [vmem:[#allocation7] sm:$0xff]
    %v1966 = vld [vmem:[#allocation7 + $0x8] sm:$0xff]
    %v1967 = vld [vmem:[#allocation7 + $0x10] sm:$0xff]
    %v1968 = vld [vmem:[#allocation7 + $0x18] sm:$0xff]
    %v1969 = vld [vmem:[#allocation7 + $0x20] sm:$0xff]
    %v1970 = vld [vmem:[#allocation7 + $0x28] sm:$0xff]
    %v1971 = vld [vmem:[#allocation7 + $0x30] sm:$0xff]
    %v1972 = vld [vmem:[#allocation7 + $0x38] sm:$0xff]
    %v1973 = vld [vmem:[#allocation7 + $0x40] sm:$0xff]
    %v1974 = vld [vmem:[#allocation7 + $0x48] sm:$0xff]
    %v1975 = vld [vmem:[#allocation7 + $0x50] sm:$0xff]
    %v1976 = vld [vmem:[#allocation7 + $0x58] sm:$0xff]
    %v1977 = vld [vmem:[#allocation7 + $0x60] sm:$0xff]
    %v1978 = vld [vmem:[#allocation7 + $0x68] sm:$0xff]
    %v1979 = vld [vmem:[#allocation7 + $0x70] sm:$0xff]
    %v1980 = vld [vmem:[#allocation7 + $0x78] sm:$0xff]
    %v1981 = vld [vmem:[#allocation7 + $0x80] sm:$0xff]
    %v1982 = vld [vmem:[#allocation7 + $0x88] sm:$0xff]
    %v1983 = vld [vmem:[#allocation7 + $0x90] sm:$0xff]
    %v1984 = vld [vmem:[#allocation7 + $0x98] sm:$0xff]
    %v1985 = vld [vmem:[#allocation7 + $0xa0] sm:$0xff]
    %v1986 = vld [vmem:[#allocation7 + $0xa8] sm:$0xff]
    %v1987 = vld [vmem:[#allocation7 + $0xb0] sm:$0xff]
    %v1988 = vld [vmem:[#allocation7 + $0xb8] sm:$0xff]
    %v1989 = vld [vmem:[#allocation7 + $0xc0] sm:$0xff]
    %v1990 = vld [vmem:[#allocation7 + $0xc8] sm:$0xff]
    %v1991 = vld [vmem:[#allocation7 + $0xd0] sm:$0xff]
    %v1992 = vld [vmem:[#allocation7 + $0xd8] sm:$0xff]
    %v1993 = vld [vmem:[#allocation7 + $0xe0] sm:$0xff]
    %v1994 = vld [vmem:[#allocation7 + $0xe8] sm:$0xff]
    %v1995 = vld [vmem:[#allocation7 + $0xf0] sm:$0xff]
    %v1996 = vld [vmem:[#allocation7 + $0xf8] sm:$0xff]
    %v1997 = vld [vmem:[#allocation7 + $0x100] sm:$0xff]
    %v1998 = vld [vmem:[#allocation7 + $0x108] sm:$0xff]
    %v1999 = vld [vmem:[#allocation7 + $0x110] sm:$0xff]
    %v2000 = vld [vmem:[#allocation7 + $0x118] sm:$0xff]
    %v2001 = vld [vmem:[#allocation7 + $0x120] sm:$0xff]
    %v2002 = vld [vmem:[#allocation7 + $0x128] sm:$0xff]
    %v2003 = vld [vmem:[#allocation7 + $0x130] sm:$0xff]
    %v2004 = vld [vmem:[#allocation7 + $0x138] sm:$0xff]
    %v2005 = vld [vmem:[#allocation7 + $0x140] sm:$0xff]
    %v2006 = vld [vmem:[#allocation7 + $0x148] sm:$0xff]
    %v2007 = vld [vmem:[#allocation7 + $0x150] sm:$0xff]
    %v2008 = vld [vmem:[#allocation7 + $0x158] sm:$0xff]
    %v2009 = vld [vmem:[#allocation7 + $0x160] sm:$0xff]
    %v2010 = vld [vmem:[#allocation7 + $0x168] sm:$0xff]
    %v2011 = vld [vmem:[#allocation7 + $0x170] sm:$0xff]
    %v2012 = vld [vmem:[#allocation7 + $0x178] sm:$0xff]
    %v2013 = vld [vmem:[#allocation7 + $0x180] sm:$0xff]
    %v2014 = vld [vmem:[#allocation7 + $0x188] sm:$0xff]
    %v2015 = vld [vmem:[#allocation7 + $0x190] sm:$0xff]
    %v2016 = vld [vmem:[#allocation7 + $0x198] sm:$0xff]
    %v2017 = vld [vmem:[#allocation7 + $0x1a0] sm:$0xff]
    %v2018 = vld [vmem:[#allocation7 + $0x1a8] sm:$0xff]
    %v2019 = vld [vmem:[#allocation7 + $0x1b0] sm:$0xff]
    %v2020 = vld [vmem:[#allocation7 + $0x1b8] sm:$0xff]
    %v2021 = vld [vmem:[#allocation7 + $0x1c0] sm:$0xff]
    %v2022 = vld [vmem:[#allocation7 + $0x1c8] sm:$0xff]
    %v2023 = vld [vmem:[#allocation7 + $0x1d0] sm:$0xff]
    %v2024 = vld [vmem:[#allocation7 + $0x1d8] sm:$0xff]
    %v2025 = vld [vmem:[#allocation7 + $0x1e0] sm:$0xff]
    %v2026 = vld [vmem:[#allocation7 + $0x1e8] sm:$0xff]
    %v2027 = vld [vmem:[#allocation7 + $0x1f0] sm:$0xff]
    %v2028 = vld [vmem:[#allocation7 + $0x1f8] sm:$0xff]
    %v2029 = vld [vmem:[#allocation7 + $0x200] sm:$0xff]
    %v2030 = vld [vmem:[#allocation7 + $0x208] sm:$0xff]
    %v2031 = vld [vmem:[#allocation7 + $0x210] sm:$0xff]
    %v2032 = vld [vmem:[#allocation7 + $0x218] sm:$0xff]
    %v2033 = vld [vmem:[#allocation7 + $0x220] sm:$0xff]
    %v2034 = vld [vmem:[#allocation7 + $0x228] sm:$0xff]
    %v2035 = vld [vmem:[#allocation7 + $0x230] sm:$0xff]
    %v2036 = vld [vmem:[#allocation7 + $0x238] sm:$0xff]
    %v2037 = vld [vmem:[#allocation7 + $0x240] sm:$0xff]
    %v2038 = vld [vmem:[#allocation7 + $0x248] sm:$0xff]
    %v2039 = vld [vmem:[#allocation7 + $0x250] sm:$0xff]
    %v2040 = vld [vmem:[#allocation7 + $0x258] sm:$0xff]
    %v2041 = vld [vmem:[#allocation7 + $0x260] sm:$0xff]
    %v2042 = vld [vmem:[#allocation7 + $0x268] sm:$0xff]
    %v2043 = vld [vmem:[#allocation7 + $0x270] sm:$0xff]
    %v2044 = vld [vmem:[#allocation7 + $0x278] sm:$0xff]
    %v2045 = vld [vmem:[#allocation7 + $0x280] sm:$0xff]
    %v2046 = vld [vmem:[#allocation7 + $0x288] sm:$0xff]
    %v2047 = vld [vmem:[#allocation7 + $0x290] sm:$0xff]
    %v2048 = vld [vmem:[#allocation7 + $0x298] sm:$0xff]
    %v2049 = vld [vmem:[#allocation7 + $0x2a0] sm:$0xff]
    %v2050 = vld [vmem:[#allocation7 + $0x2a8] sm:$0xff]
    %v2051 = vld [vmem:[#allocation7 + $0x2b0] sm:$0xff]
    %v2052 = vld [vmem:[#allocation7 + $0x2b8] sm:$0xff]
    %v2053 = vld [vmem:[#allocation7 + $0x2c0] sm:$0xff]
    %v2054 = vld [vmem:[#allocation7 + $0x2c8] sm:$0xff]
    %v2055 = vld [vmem:[#allocation7 + $0x2d0] sm:$0xff]
    %v2056 = vld [vmem:[#allocation7 + $0x2d8] sm:$0xff]
    %v2057 = vld [vmem:[#allocation7 + $0x2e0] sm:$0xff]
    %v2058 = vld [vmem:[#allocation7 + $0x2e8] sm:$0xff]
    %v2059 = vld [vmem:[#allocation7 + $0x2f0] sm:$0xff]
    %v2060 = vld [vmem:[#allocation7 + $0x2f8] sm:$0xff]
    %v2061 = vld [vmem:[#allocation7 + $0x300] sm:$0xff]
    %v2062 = vld [vmem:[#allocation7 + $0x308] sm:$0xff]
    %v2063 = vld [vmem:[#allocation7 + $0x310] sm:$0xff]
    %v2064 = vld [vmem:[#allocation7 + $0x318] sm:$0xff]
    %v2065 = vld [vmem:[#allocation7 + $0x320] sm:$0xff]
    %v2066 = vld [vmem:[#allocation7 + $0x328] sm:$0xff]
    %v2067 = vld [vmem:[#allocation7 + $0x330] sm:$0xff]
    %v2068 = vld [vmem:[#allocation7 + $0x338] sm:$0xff]
    %v2069 = vld [vmem:[#allocation7 + $0x340] sm:$0xff]
    %v2070 = vld [vmem:[#allocation7 + $0x348] sm:$0xff]
    %v2071 = vld [vmem:[#allocation7 + $0x350] sm:$0xff]
    %v2072 = vld [vmem:[#allocation7 + $0x358] sm:$0xff]
    %v2073 = vld [vmem:[#allocation7 + $0x360] sm:$0xff]
    %v2074 = vld [vmem:[#allocation7 + $0x368] sm:$0xff]
    %v2075 = vld [vmem:[#allocation7 + $0x370] sm:$0xff]
    %v2076 = vld [vmem:[#allocation7 + $0x378] sm:$0xff]
    %v2077 = vld [vmem:[#allocation7 + $0x380] sm:$0xff]
    %v2078 = vld [vmem:[#allocation7 + $0x388] sm:$0xff]
    %v2079 = vld [vmem:[#allocation7 + $0x390] sm:$0xff]
    %v2080 = vld [vmem:[#allocation7 + $0x398] sm:$0xff]
    %v2081 = vld [vmem:[#allocation7 + $0x3a0] sm:$0xff]
    %v2082 = vld [vmem:[#allocation7 + $0x3a8] sm:$0xff]
    %v2083 = vld [vmem:[#allocation7 + $0x3b0] sm:$0xff]
    %v2084 = vld [vmem:[#allocation7 + $0x3b8] sm:$0xff]
    %v2085 = vld [vmem:[#allocation7 + $0x3c0] sm:$0xff]
    %v2086 = vld [vmem:[#allocation7 + $0x3c8] sm:$0xff]
    %v2087 = vld [vmem:[#allocation7 + $0x3d0] sm:$0xff]
    %v2088 = vld [vmem:[#allocation7 + $0x3d8] sm:$0xff]
    %v2089 = vld [vmem:[#allocation7 + $0x3e0] sm:$0xff]
    %v2090 = vld [vmem:[#allocation7 + $0x3e8] sm:$0xff]
    %v2091 = vld [vmem:[#allocation7 + $0x3f0] sm:$0xff]
    %v2092 = vld [vmem:[#allocation7 + $0x3f8] sm:$0xff]
    %v2221 = vunpack.c.l.b16 %v1965
    %v2222 = vunpack.c.h.b16 %v1965
    %v2223 = vunpack.c.l.b16 %v1966
    %v2224 = vunpack.c.h.b16 %v1966
    %v2225 = vunpack.c.l.b16 %v1967
    %v2226 = vunpack.c.h.b16 %v1967
    %v2227 = vunpack.c.l.b16 %v1968
    %v2228 = vunpack.c.h.b16 %v1968
    %v2229 = vunpack.c.l.b16 %v1969
    %v2230 = vunpack.c.h.b16 %v1969
    %v2231 = vunpack.c.l.b16 %v1970
    %v2232 = vunpack.c.h.b16 %v1970
    %v2233 = vunpack.c.l.b16 %v1971
    %v2234 = vunpack.c.h.b16 %v1971
    %v2235 = vunpack.c.l.b16 %v1972
    %v2236 = vunpack.c.h.b16 %v1972
    %v2237 = vunpack.c.l.b16 %v1973
    %v2238 = vunpack.c.h.b16 %v1973
    %v2239 = vunpack.c.l.b16 %v1974
    %v2240 = vunpack.c.h.b16 %v1974
    %v2241 = vunpack.c.l.b16 %v1975
    %v2242 = vunpack.c.h.b16 %v1975
    %v2243 = vunpack.c.l.b16 %v1976
    %v2244 = vunpack.c.h.b16 %v1976
    %v2245 = vunpack.c.l.b16 %v1977
    %v2246 = vunpack.c.h.b16 %v1977
    %v2247 = vunpack.c.l.b16 %v1978
    %v2248 = vunpack.c.h.b16 %v1978
    %v2249 = vunpack.c.l.b16 %v1979
    %v2250 = vunpack.c.h.b16 %v1979
    %v2251 = vunpack.c.l.b16 %v1980
    %v2252 = vunpack.c.h.b16 %v1980
    %v2253 = vunpack.c.l.b16 %v1981
    %v2254 = vunpack.c.h.b16 %v1981
    %v2255 = vunpack.c.l.b16 %v1982
    %v2256 = vunpack.c.h.b16 %v1982
    %v2257 = vunpack.c.l.b16 %v1983
    %v2258 = vunpack.c.h.b16 %v1983
    %v2259 = vunpack.c.l.b16 %v1984
    %v2260 = vunpack.c.h.b16 %v1984
    %v2261 = vunpack.c.l.b16 %v1985
    %v2262 = vunpack.c.h.b16 %v1985
    %v2263 = vunpack.c.l.b16 %v1986
    %v2264 = vunpack.c.h.b16 %v1986
    %v2265 = vunpack.c.l.b16 %v1987
    %v2266 = vunpack.c.h.b16 %v1987
    %v2267 = vunpack.c.l.b16 %v1988
    %v2268 = vunpack.c.h.b16 %v1988
    %v2269 = vunpack.c.l.b16 %v1989
    %v2270 = vunpack.c.h.b16 %v1989
    %v2271 = vunpack.c.l.b16 %v1990
    %v2272 = vunpack.c.h.b16 %v1990
    %v2273 = vunpack.c.l.b16 %v1991
    %v2274 = vunpack.c.h.b16 %v1991
    %v2275 = vunpack.c.l.b16 %v1992
    %v2276 = vunpack.c.h.b16 %v1992
    %v2277 = vunpack.c.l.b16 %v1993
    %v2278 = vunpack.c.h.b16 %v1993
    %v2279 = vunpack.c.l.b16 %v1994
    %v2280 = vunpack.c.h.b16 %v1994
    %v2281 = vunpack.c.l.b16 %v1995
    %v2282 = vunpack.c.h.b16 %v1995
    %v2283 = vunpack.c.l.b16 %v1996
    %v2284 = vunpack.c.h.b16 %v1996
    %v2285 = vunpack.c.l.b16 %v1997
    %v2286 = vunpack.c.h.b16 %v1997
    %v2287 = vunpack.c.l.b16 %v1998
    %v2288 = vunpack.c.h.b16 %v1998
    %v2289 = vunpack.c.l.b16 %v1999
    %v2290 = vunpack.c.h.b16 %v1999
    %v2291 = vunpack.c.l.b16 %v2000
    %v2292 = vunpack.c.h.b16 %v2000
    %v2293 = vunpack.c.l.b16 %v2001
    %v2294 = vunpack.c.h.b16 %v2001
    %v2295 = vunpack.c.l.b16 %v2002
    %v2296 = vunpack.c.h.b16 %v2002
    %v2297 = vunpack.c.l.b16 %v2003
    %v2298 = vunpack.c.h.b16 %v2003
    %v2299 = vunpack.c.l.b16 %v2004
    %v2300 = vunpack.c.h.b16 %v2004
    %v2301 = vunpack.c.l.b16 %v2005
    %v2302 = vunpack.c.h.b16 %v2005
    %v2303 = vunpack.c.l.b16 %v2006
    %v2304 = vunpack.c.h.b16 %v2006
    %v2305 = vunpack.c.l.b16 %v2007
    %v2306 = vunpack.c.h.b16 %v2007
    %v2307 = vunpack.c.l.b16 %v2008
    %v2308 = vunpack.c.h.b16 %v2008
    %v2309 = vunpack.c.l.b16 %v2009
    %v2310 = vunpack.c.h.b16 %v2009
    %v2311 = vunpack.c.l.b16 %v2010
    %v2312 = vunpack.c.h.b16 %v2010
    %v2313 = vunpack.c.l.b16 %v2011
    %v2314 = vunpack.c.h.b16 %v2011
    %v2315 = vunpack.c.l.b16 %v2012
    %v2316 = vunpack.c.h.b16 %v2012
    %v2317 = vunpack.c.l.b16 %v2013
    %v2318 = vunpack.c.h.b16 %v2013
    %v2319 = vunpack.c.l.b16 %v2014
    %v2320 = vunpack.c.h.b16 %v2014
    %v2321 = vunpack.c.l.b16 %v2015
    %v2322 = vunpack.c.h.b16 %v2015
    %v2323 = vunpack.c.l.b16 %v2016
    %v2324 = vunpack.c.h.b16 %v2016
    %v2325 = vunpack.c.l.b16 %v2017
    %v2326 = vunpack.c.h.b16 %v2017
    %v2327 = vunpack.c.l.b16 %v2018
    %v2328 = vunpack.c.h.b16 %v2018
    %v2329 = vunpack.c.l.b16 %v2019
    %v2330 = vunpack.c.h.b16 %v2019
    %v2331 = vunpack.c.l.b16 %v2020
    %v2332 = vunpack.c.h.b16 %v2020
    %v2333 = vunpack.c.l.b16 %v2021
    %v2334 = vunpack.c.h.b16 %v2021
    %v2335 = vunpack.c.l.b16 %v2022
    %v2336 = vunpack.c.h.b16 %v2022
    %v2337 = vunpack.c.l.b16 %v2023
    %v2338 = vunpack.c.h.b16 %v2023
    %v2339 = vunpack.c.l.b16 %v2024
    %v2340 = vunpack.c.h.b16 %v2024
    %v2341 = vunpack.c.l.b16 %v2025
    %v2342 = vunpack.c.h.b16 %v2025
    %v2343 = vunpack.c.l.b16 %v2026
    %v2344 = vunpack.c.h.b16 %v2026
    %v2345 = vunpack.c.l.b16 %v2027
    %v2346 = vunpack.c.h.b16 %v2027
    %v2347 = vunpack.c.l.b16 %v2028
    %v2348 = vunpack.c.h.b16 %v2028
    %v2349 = vunpack.c.l.b16 %v2029
    %v2350 = vunpack.c.h.b16 %v2029
    %v2351 = vunpack.c.l.b16 %v2030
    %v2352 = vunpack.c.h.b16 %v2030
    %v2353 = vunpack.c.l.b16 %v2031
    %v2354 = vunpack.c.h.b16 %v2031
    %v2355 = vunpack.c.l.b16 %v2032
    %v2356 = vunpack.c.h.b16 %v2032
    %v2357 = vunpack.c.l.b16 %v2033
    %v2358 = vunpack.c.h.b16 %v2033
    %v2359 = vunpack.c.l.b16 %v2034
    %v2360 = vunpack.c.h.b16 %v2034
    %v2361 = vunpack.c.l.b16 %v2035
    %v2362 = vunpack.c.h.b16 %v2035
    %v2363 = vunpack.c.l.b16 %v2036
    %v2364 = vunpack.c.h.b16 %v2036
    %v2365 = vunpack.c.l.b16 %v2037
    %v2366 = vunpack.c.h.b16 %v2037
    %v2367 = vunpack.c.l.b16 %v2038
    %v2368 = vunpack.c.h.b16 %v2038
    %v2369 = vunpack.c.l.b16 %v2039
    %v2370 = vunpack.c.h.b16 %v2039
    %v2371 = vunpack.c.l.b16 %v2040
    %v2372 = vunpack.c.h.b16 %v2040
    %v2373 = vunpack.c.l.b16 %v2041
    %v2374 = vunpack.c.h.b16 %v2041
    %v2375 = vunpack.c.l.b16 %v2042
    %v2376 = vunpack.c.h.b16 %v2042
    %v2377 = vunpack.c.l.b16 %v2043
    %v2378 = vunpack.c.h.b16 %v2043
    %v2379 = vunpack.c.l.b16 %v2044
    %v2380 = vunpack.c.h.b16 %v2044
    %v2381 = vunpack.c.l.b16 %v2045
    %v2382 = vunpack.c.h.b16 %v2045
    %v2383 = vunpack.c.l.b16 %v2046
    %v2384 = vunpack.c.h.b16 %v2046
    %v2385 = vunpack.c.l.b16 %v2047
    %v2386 = vunpack.c.h.b16 %v2047
    %v2387 = vunpack.c.l.b16 %v2048
    %v2388 = vunpack.c.h.b16 %v2048
    %v2389 = vunpack.c.l.b16 %v2049
    %v2390 = vunpack.c.h.b16 %v2049
    %v2391 = vunpack.c.l.b16 %v2050
    %v2392 = vunpack.c.h.b16 %v2050
    %v2393 = vunpack.c.l.b16 %v2051
    %v2394 = vunpack.c.h.b16 %v2051
    %v2395 = vunpack.c.l.b16 %v2052
    %v2396 = vunpack.c.h.b16 %v2052
    %v2397 = vunpack.c.l.b16 %v2053
    %v2398 = vunpack.c.h.b16 %v2053
    %v2399 = vunpack.c.l.b16 %v2054
    %v2400 = vunpack.c.h.b16 %v2054
    %v2401 = vunpack.c.l.b16 %v2055
    %v2402 = vunpack.c.h.b16 %v2055
    %v2403 = vunpack.c.l.b16 %v2056
    %v2404 = vunpack.c.h.b16 %v2056
    %v2405 = vunpack.c.l.b16 %v2057
    %v2406 = vunpack.c.h.b16 %v2057
    %v2407 = vunpack.c.l.b16 %v2058
    %v2408 = vunpack.c.h.b16 %v2058
    %v2409 = vunpack.c.l.b16 %v2059
    %v2410 = vunpack.c.h.b16 %v2059
    %v2411 = vunpack.c.l.b16 %v2060
    %v2412 = vunpack.c.h.b16 %v2060
    %v2413 = vunpack.c.l.b16 %v2061
    %v2414 = vunpack.c.h.b16 %v2061
    %v2415 = vunpack.c.l.b16 %v2062
    %v2416 = vunpack.c.h.b16 %v2062
    %v2417 = vunpack.c.l.b16 %v2063
    %v2418 = vunpack.c.h.b16 %v2063
    %v2419 = vunpack.c.l.b16 %v2064
    %v2420 = vunpack.c.h.b16 %v2064
    %v2421 = vunpack.c.l.b16 %v2065
    %v2422 = vunpack.c.h.b16 %v2065
    %v2423 = vunpack.c.l.b16 %v2066
    %v2424 = vunpack.c.h.b16 %v2066
    %v2425 = vunpack.c.l.b16 %v2067
    %v2426 = vunpack.c.h.b16 %v2067
    %v2427 = vunpack.c.l.b16 %v2068
    %v2428 = vunpack.c.h.b16 %v2068
    %v2429 = vunpack.c.l.b16 %v2069
    %v2430 = vunpack.c.h.b16 %v2069
    %v2431 = vunpack.c.l.b16 %v2070
    %v2432 = vunpack.c.h.b16 %v2070
    %v2433 = vunpack.c.l.b16 %v2071
    %v2434 = vunpack.c.h.b16 %v2071
    %v2435 = vunpack.c.l.b16 %v2072
    %v2436 = vunpack.c.h.b16 %v2072
    %v2437 = vunpack.c.l.b16 %v2073
    %v2438 = vunpack.c.h.b16 %v2073
    %v2439 = vunpack.c.l.b16 %v2074
    %v2440 = vunpack.c.h.b16 %v2074
    %v2441 = vunpack.c.l.b16 %v2075
    %v2442 = vunpack.c.h.b16 %v2075
    %v2443 = vunpack.c.l.b16 %v2076
    %v2444 = vunpack.c.h.b16 %v2076
    %v2445 = vunpack.c.l.b16 %v2077
    %v2446 = vunpack.c.h.b16 %v2077
    %v2447 = vunpack.c.l.b16 %v2078
    %v2448 = vunpack.c.h.b16 %v2078
    %v2449 = vunpack.c.l.b16 %v2079
    %v2450 = vunpack.c.h.b16 %v2079
    %v2451 = vunpack.c.l.b16 %v2080
    %v2452 = vunpack.c.h.b16 %v2080
    %v2453 = vunpack.c.l.b16 %v2081
    %v2454 = vunpack.c.h.b16 %v2081
    %v2455 = vunpack.c.l.b16 %v2082
    %v2456 = vunpack.c.h.b16 %v2082
    %v2457 = vunpack.c.l.b16 %v2083
    %v2458 = vunpack.c.h.b16 %v2083
    %v2459 = vunpack.c.l.b16 %v2084
    %v2460 = vunpack.c.h.b16 %v2084
    %v2461 = vunpack.c.l.b16 %v2085
    %v2462 = vunpack.c.h.b16 %v2085
    %v2463 = vunpack.c.l.b16 %v2086
    %v2464 = vunpack.c.h.b16 %v2086
    %v2465 = vunpack.c.l.b16 %v2087
    %v2466 = vunpack.c.h.b16 %v2087
    %v2467 = vunpack.c.l.b16 %v2088
    %v2468 = vunpack.c.h.b16 %v2088
    %v2469 = vunpack.c.l.b16 %v2089
    %v2470 = vunpack.c.h.b16 %v2089
    %v2471 = vunpack.c.l.b16 %v2090
    %v2472 = vunpack.c.h.b16 %v2090
    %v2473 = vunpack.c.l.b16 %v2091
    %v2474 = vunpack.c.h.b16 %v2091
    %v2475 = vunpack.c.l.b16 %v2092
    %v2476 = vunpack.c.h.b16 %v2092
    %v2477 = vpack.c.b16 %v2229, %v2221
    %v2478 = vpack.c.b16 %v2230, %v2222
    %v2479 = vpack.c.b16 %v2231, %v2223
    %v2480 = vpack.c.b16 %v2232, %v2224
    %v2481 = vpack.c.b16 %v2233, %v2225
    %v2482 = vpack.c.b16 %v2234, %v2226
    %v2483 = vpack.c.b16 %v2235, %v2227
    %v2484 = vpack.c.b16 %v2236, %v2228
    %v2485 = vpack.c.b16 %v2245, %v2237
    %v2486 = vpack.c.b16 %v2246, %v2238
    %v2487 = vpack.c.b16 %v2247, %v2239
    %v2488 = vpack.c.b16 %v2248, %v2240
    %v2489 = vpack.c.b16 %v2249, %v2241
    %v2490 = vpack.c.b16 %v2250, %v2242
    %v2491 = vpack.c.b16 %v2251, %v2243
    %v2492 = vpack.c.b16 %v2252, %v2244
    %v2493 = vpack.c.b16 %v2261, %v2253
    %v2494 = vpack.c.b16 %v2262, %v2254
    %v2495 = vpack.c.b16 %v2263, %v2255
    %v2496 = vpack.c.b16 %v2264, %v2256
    %v2497 = vpack.c.b16 %v2265, %v2257
    %v2498 = vpack.c.b16 %v2266, %v2258
    %v2499 = vpack.c.b16 %v2267, %v2259
    %v2500 = vpack.c.b16 %v2268, %v2260
    %v2501 = vpack.c.b16 %v2277, %v2269
    %v2502 = vpack.c.b16 %v2278, %v2270
    %v2503 = vpack.c.b16 %v2279, %v2271
    %v2504 = vpack.c.b16 %v2280, %v2272
    %v2505 = vpack.c.b16 %v2281, %v2273
    %v2506 = vpack.c.b16 %v2282, %v2274
    %v2507 = vpack.c.b16 %v2283, %v2275
    %v2508 = vpack.c.b16 %v2284, %v2276
    %v2509 = vpack.c.b16 %v2293, %v2285
    %v2510 = vpack.c.b16 %v2294, %v2286
    %v2511 = vpack.c.b16 %v2295, %v2287
    %v2512 = vpack.c.b16 %v2296, %v2288
    %v2513 = vpack.c.b16 %v2297, %v2289
    %v2514 = vpack.c.b16 %v2298, %v2290
    %v2515 = vpack.c.b16 %v2299, %v2291
    %v2516 = vpack.c.b16 %v2300, %v2292
    %v2517 = vpack.c.b16 %v2309, %v2301
    %v2518 = vpack.c.b16 %v2310, %v2302
    %v2519 = vpack.c.b16 %v2311, %v2303
    %v2520 = vpack.c.b16 %v2312, %v2304
    %v2521 = vpack.c.b16 %v2313, %v2305
    %v2522 = vpack.c.b16 %v2314, %v2306
    %v2523 = vpack.c.b16 %v2315, %v2307
    %v2524 = vpack.c.b16 %v2316, %v2308
    %v2525 = vpack.c.b16 %v2325, %v2317
    %v2526 = vpack.c.b16 %v2326, %v2318
    %v2527 = vpack.c.b16 %v2327, %v2319
    %v2528 = vpack.c.b16 %v2328, %v2320
    %v2529 = vpack.c.b16 %v2329, %v2321
    %v2530 = vpack.c.b16 %v2330, %v2322
    %v2531 = vpack.c.b16 %v2331, %v2323
    %v2532 = vpack.c.b16 %v2332, %v2324
    %v2533 = vpack.c.b16 %v2341, %v2333
    %v2534 = vpack.c.b16 %v2342, %v2334
    %v2535 = vpack.c.b16 %v2343, %v2335
    %v2536 = vpack.c.b16 %v2344, %v2336
    %v2537 = vpack.c.b16 %v2345, %v2337
    %v2538 = vpack.c.b16 %v2346, %v2338
    %v2539 = vpack.c.b16 %v2347, %v2339
    %v2540 = vpack.c.b16 %v2348, %v2340
    %v2541 = vpack.c.b16 %v2357, %v2349
    %v2542 = vpack.c.b16 %v2358, %v2350
    %v2543 = vpack.c.b16 %v2359, %v2351
    %v2544 = vpack.c.b16 %v2360, %v2352
    %v2545 = vpack.c.b16 %v2361, %v2353
    %v2546 = vpack.c.b16 %v2362, %v2354
    %v2547 = vpack.c.b16 %v2363, %v2355
    %v2548 = vpack.c.b16 %v2364, %v2356
    %v2549 = vpack.c.b16 %v2373, %v2365
    %v2550 = vpack.c.b16 %v2374, %v2366
    %v2551 = vpack.c.b16 %v2375, %v2367
    %v2552 = vpack.c.b16 %v2376, %v2368
    %v2553 = vpack.c.b16 %v2377, %v2369
    %v2554 = vpack.c.b16 %v2378, %v2370
    %v2555 = vpack.c.b16 %v2379, %v2371
    %v2556 = vpack.c.b16 %v2380, %v2372
    %v2557 = vpack.c.b16 %v2389, %v2381
    %v2558 = vpack.c.b16 %v2390, %v2382
    %v2559 = vpack.c.b16 %v2391, %v2383
    %v2560 = vpack.c.b16 %v2392, %v2384
    %v2561 = vpack.c.b16 %v2393, %v2385
    %v2562 = vpack.c.b16 %v2394, %v2386
    %v2563 = vpack.c.b16 %v2395, %v2387
    %v2564 = vpack.c.b16 %v2396, %v2388
    %v2565 = vpack.c.b16 %v2405, %v2397
    %v2566 = vpack.c.b16 %v2406, %v2398
    %v2567 = vpack.c.b16 %v2407, %v2399
    %v2568 = vpack.c.b16 %v2408, %v2400
    %v2569 = vpack.c.b16 %v2409, %v2401
    %v2570 = vpack.c.b16 %v2410, %v2402
    %v2571 = vpack.c.b16 %v2411, %v2403
    %v2572 = vpack.c.b16 %v2412, %v2404
    %v2573 = vpack.c.b16 %v2421, %v2413
    %v2574 = vpack.c.b16 %v2422, %v2414
    %v2575 = vpack.c.b16 %v2423, %v2415
    %v2576 = vpack.c.b16 %v2424, %v2416
    %v2577 = vpack.c.b16 %v2425, %v2417
    %v2578 = vpack.c.b16 %v2426, %v2418
    %v2579 = vpack.c.b16 %v2427, %v2419
    %v2580 = vpack.c.b16 %v2428, %v2420
    %v2581 = vpack.c.b16 %v2437, %v2429
    %v2582 = vpack.c.b16 %v2438, %v2430
    %v2583 = vpack.c.b16 %v2439, %v2431
    %v2584 = vpack.c.b16 %v2440, %v2432
    %v2585 = vpack.c.b16 %v2441, %v2433
    %v2586 = vpack.c.b16 %v2442, %v2434
    %v2587 = vpack.c.b16 %v2443, %v2435
    %v2588 = vpack.c.b16 %v2444, %v2436
    %v2589 = vpack.c.b16 %v2453, %v2445
    %v2590 = vpack.c.b16 %v2454, %v2446
    %v2591 = vpack.c.b16 %v2455, %v2447
    %v2592 = vpack.c.b16 %v2456, %v2448
    %v2593 = vpack.c.b16 %v2457, %v2449
    %v2594 = vpack.c.b16 %v2458, %v2450
    %v2595 = vpack.c.b16 %v2459, %v2451
    %v2596 = vpack.c.b16 %v2460, %v2452
    %v2597 = vpack.c.b16 %v2469, %v2461
    %v2598 = vpack.c.b16 %v2470, %v2462
    %v2599 = vpack.c.b16 %v2471, %v2463
    %v2600 = vpack.c.b16 %v2472, %v2464
    %v2601 = vpack.c.b16 %v2473, %v2465
    %v2602 = vpack.c.b16 %v2474, %v2466
    %v2603 = vpack.c.b16 %v2475, %v2467
    %v2604 = vpack.c.b16 %v2476, %v2468
    %2733 = vmatpush.bf16.msra.mxu0 %v2533
    %2734 = vmatpush.bf16.msra.mxu0 %v2525
    %2735 = vmatpush.bf16.msra.mxu0 %v2517
    %2736 = vmatpush.bf16.msra.mxu0 %v2509
    %2737 = vmatpush.bf16.msra.mxu0 %v2501
    %2738 = vmatpush.bf16.msra.mxu0 %v2493
    %2739 = vmatpush.bf16.msra.mxu0 %v2485
    %2740 = vmatpush.bf16.msra.mxu0 %v2477
    %2741 = vmatmul.bf16.gmra.mxu0 %v1963
    %v2742 = vpop.f32.mrf.mxu0
    %v2743 = vadd.f32 0.0, %v2742
    %v2744 = vpop.f32.mrf.mxu0
    %2745 = vdwg.mxu0
    %2746 = vmatpush.bf16.msra.mxu0 %v2597
    %2747 = vmatpush.bf16.msra.mxu0 %v2589
    %2748 = vmatpush.bf16.msra.mxu0 %v2581
    %2749 = vmatpush.bf16.msra.mxu0 %v2573
    %2750 = vmatpush.bf16.msra.mxu0 %v2565
    %2751 = vmatpush.bf16.msra.mxu0 %v2557
    %2752 = vmatpush.bf16.msra.mxu0 %v2549
    %2753 = vmatpush.bf16.msra.mxu0 %v2541
    %2754 = vmatmul.bf16.gmra.mxu0 %v1964
    %v2755 = vpop.f32.mrf.mxu0
    %v2756 = vadd.f32 %v2743, %v2755
    %v2757 = vpop.f32.mrf.mxu0
    %2758 = vdwg.mxu0
    %2759 = vmatpush.bf16.msra.mxu0 %v2534
    %2760 = vmatpush.bf16.msra.mxu0 %v2526
    %2761 = vmatpush.bf16.msra.mxu0 %v2518
    %2762 = vmatpush.bf16.msra.mxu0 %v2510
    %2763 = vmatpush.bf16.msra.mxu0 %v2502
    %2764 = vmatpush.bf16.msra.mxu0 %v2494
    %2765 = vmatpush.bf16.msra.mxu0 %v2486
    %2766 = vmatpush.bf16.msra.mxu0 %v2478
    %2767 = vmatmul.bf16.gmra.mxu0 %v1963
    %v2768 = vpop.f32.mrf.mxu0
    %v2769 = vadd.f32 0.0, %v2768
    %v2770 = vpop.f32.mrf.mxu0
    %2771 = vdwg.mxu0
    %2772 = vmatpush.bf16.msra.mxu0 %v2598
    %2773 = vmatpush.bf16.msra.mxu0 %v2590
    %2774 = vmatpush.bf16.msra.mxu0 %v2582
    %2775 = vmatpush.bf16.msra.mxu0 %v2574
    %2776 = vmatpush.bf16.msra.mxu0 %v2566
    %2777 = vmatpush.bf16.msra.mxu0 %v2558
    %2778 = vmatpush.bf16.msra.mxu0 %v2550
    %2779 = vmatpush.bf16.msra.mxu0 %v2542
    %2780 = vmatmul.bf16.gmra.mxu0 %v1964
    %v2781 = vpop.f32.mrf.mxu0
    %v2782 = vadd.f32 %v2769, %v2781
    %v2783 = vpop.f32.mrf.mxu0
    %2784 = vdwg.mxu0
    %2785 = vmatpush.bf16.msra.mxu0 %v2535
    %2786 = vmatpush.bf16.msra.mxu0 %v2527
    %2787 = vmatpush.bf16.msra.mxu0 %v2519
    %2788 = vmatpush.bf16.msra.mxu0 %v2511
    %2789 = vmatpush.bf16.msra.mxu0 %v2503
    %2790 = vmatpush.bf16.msra.mxu0 %v2495
    %2791 = vmatpush.bf16.msra.mxu0 %v2487
    %2792 = vmatpush.bf16.msra.mxu0 %v2479
    %2793 = vmatmul.bf16.gmra.mxu0 %v1963
    %v2794 = vpop.f32.mrf.mxu0
    %v2795 = vadd.f32 0.0, %v2794
    %v2796 = vpop.f32.mrf.mxu0
    %2797 = vdwg.mxu0
    %2798 = vmatpush.bf16.msra.mxu0 %v2599
    %2799 = vmatpush.bf16.msra.mxu0 %v2591
    %2800 = vmatpush.bf16.msra.mxu0 %v2583
    %2801 = vmatpush.bf16.msra.mxu0 %v2575
    %2802 = vmatpush.bf16.msra.mxu0 %v2567
    %2803 = vmatpush.bf16.msra.mxu0 %v2559
    %2804 = vmatpush.bf16.msra.mxu0 %v2551
    %2805 = vmatpush.bf16.msra.mxu0 %v2543
    %2806 = vmatmul.bf16.gmra.mxu0 %v1964
    %v2807 = vpop.f32.mrf.mxu0
    %v2808 = vadd.f32 %v2795, %v2807
    %v2809 = vpop.f32.mrf.mxu0
    %2810 = vdwg.mxu0
    %2811 = vmatpush.bf16.msra.mxu0 %v2536
    %2812 = vmatpush.bf16.msra.mxu0 %v2528
    %2813 = vmatpush.bf16.msra.mxu0 %v2520
    %2814 = vmatpush.bf16.msra.mxu0 %v2512
    %2815 = vmatpush.bf16.msra.mxu0 %v2504
    %2816 = vmatpush.bf16.msra.mxu0 %v2496
    %2817 = vmatpush.bf16.msra.mxu0 %v2488
    %2818 = vmatpush.bf16.msra.mxu0 %v2480
    %2819 = vmatmul.bf16.gmra.mxu0 %v1963
    %v2820 = vpop.f32.mrf.mxu0
    %v2821 = vadd.f32 0.0, %v2820
    %v2822 = vpop.f32.mrf.mxu0
    %2823 = vdwg.mxu0
    %2824 = vmatpush.bf16.msra.mxu0 %v2600
    %2825 = vmatpush.bf16.msra.mxu0 %v2592
    %2826 = vmatpush.bf16.msra.mxu0 %v2584
    %2827 = vmatpush.bf16.msra.mxu0 %v2576
    %2828 = vmatpush.bf16.msra.mxu0 %v2568
    %2829 = vmatpush.bf16.msra.mxu0 %v2560
    %2830 = vmatpush.bf16.msra.mxu0 %v2552
    %2831 = vmatpush.bf16.msra.mxu0 %v2544
    %2832 = vmatmul.bf16.gmra.mxu0 %v1964
    %v2833 = vpop.f32.mrf.mxu0
    %v2834 = vadd.f32 %v2821, %v2833
    %v2835 = vpop.f32.mrf.mxu0
    %2836 = vdwg.mxu0
    %2837 = vmatpush.bf16.msra.mxu0 %v2537
    %2838 = vmatpush.bf16.msra.mxu0 %v2529
    %2839 = vmatpush.bf16.msra.mxu0 %v2521
    %2840 = vmatpush.bf16.msra.mxu0 %v2513
    %2841 = vmatpush.bf16.msra.mxu0 %v2505
    %2842 = vmatpush.bf16.msra.mxu0 %v2497
    %2843 = vmatpush.bf16.msra.mxu0 %v2489
    %2844 = vmatpush.bf16.msra.mxu0 %v2481
    %2845 = vmatmul.bf16.gmra.mxu0 %v1963
    %v2846 = vpop.f32.mrf.mxu0
    %v2847 = vadd.f32 0.0, %v2846
    %v2848 = vpop.f32.mrf.mxu0
    %2849 = vdwg.mxu0
    %2850 = vmatpush.bf16.msra.mxu0 %v2601
    %2851 = vmatpush.bf16.msra.mxu0 %v2593
    %2852 = vmatpush.bf16.msra.mxu0 %v2585
    %2853 = vmatpush.bf16.msra.mxu0 %v2577
    %2854 = vmatpush.bf16.msra.mxu0 %v2569
    %2855 = vmatpush.bf16.msra.mxu0 %v2561
    %2856 = vmatpush.bf16.msra.mxu0 %v2553
    %2857 = vmatpush.bf16.msra.mxu0 %v2545
    %2858 = vmatmul.bf16.gmra.mxu0 %v1964
    %v2859 = vpop.f32.mrf.mxu0
    %v2860 = vadd.f32 %v2847, %v2859
    %v2861 = vpop.f32.mrf.mxu0
    %2862 = vdwg.mxu0
    %2863 = vmatpush.bf16.msra.mxu0 %v2538
    %2864 = vmatpush.bf16.msra.mxu0 %v2530
    %2865 = vmatpush.bf16.msra.mxu0 %v2522
    %2866 = vmatpush.bf16.msra.mxu0 %v2514
    %2867 = vmatpush.bf16.msra.mxu0 %v2506
    %2868 = vmatpush.bf16.msra.mxu0 %v2498
    %2869 = vmatpush.bf16.msra.mxu0 %v2490
    %2870 = vmatpush.bf16.msra.mxu0 %v2482
    %2871 = vmatmul.bf16.gmra.mxu0 %v1963
    %v2872 = vpop.f32.mrf.mxu0
    %v2873 = vadd.f32 0.0, %v2872
    %v2874 = vpop.f32.mrf.mxu0
    %2875 = vdwg.mxu0
    %2876 = vmatpush.bf16.msra.mxu0 %v2602
    %2877 = vmatpush.bf16.msra.mxu0 %v2594
    %2878 = vmatpush.bf16.msra.mxu0 %v2586
    %2879 = vmatpush.bf16.msra.mxu0 %v2578
    %2880 = vmatpush.bf16.msra.mxu0 %v2570
    %2881 = vmatpush.bf16.msra.mxu0 %v2562
    %2882 = vmatpush.bf16.msra.mxu0 %v2554
    %2883 = vmatpush.bf16.msra.mxu0 %v2546
    %2884 = vmatmul.bf16.gmra.mxu0 %v1964
    %v2885 = vpop.f32.mrf.mxu0
    %v2886 = vadd.f32 %v2873, %v2885
    %v2887 = vpop.f32.mrf.mxu0
    %2888 = vdwg.mxu0
    %2889 = vmatpush.bf16.msra.mxu0 %v2539
    %2890 = vmatpush.bf16.msra.mxu0 %v2531
    %2891 = vmatpush.bf16.msra.mxu0 %v2523
    %2892 = vmatpush.bf16.msra.mxu0 %v2515
    %2893 = vmatpush.bf16.msra.mxu0 %v2507
    %2894 = vmatpush.bf16.msra.mxu0 %v2499
    %2895 = vmatpush.bf16.msra.mxu0 %v2491
    %2896 = vmatpush.bf16.msra.mxu0 %v2483
    %2897 = vmatmul.bf16.gmra.mxu0 %v1963
    %v2898 = vpop.f32.mrf.mxu0
    %v2899 = vadd.f32 0.0, %v2898
    %v2900 = vpop.f32.mrf.mxu0
    %2901 = vdwg.mxu0
    %2902 = vmatpush.bf16.msra.mxu0 %v2603
    %2903 = vmatpush.bf16.msra.mxu0 %v2595
    %2904 = vmatpush.bf16.msra.mxu0 %v2587
    %2905 = vmatpush.bf16.msra.mxu0 %v2579
    %2906 = vmatpush.bf16.msra.mxu0 %v2571
    %2907 = vmatpush.bf16.msra.mxu0 %v2563
    %2908 = vmatpush.bf16.msra.mxu0 %v2555
    %2909 = vmatpush.bf16.msra.mxu0 %v2547
    %2910 = vmatmul.bf16.gmra.mxu0 %v1964
    %v2911 = vpop.f32.mrf.mxu0
    %v2912 = vadd.f32 %v2899, %v2911
    %v2913 = vpop.f32.mrf.mxu0
    %2914 = vdwg.mxu0
    %2915 = vmatpush.bf16.msra.mxu0 %v2540
    %2916 = vmatpush.bf16.msra.mxu0 %v2532
    %2917 = vmatpush.bf16.msra.mxu0 %v2524
    %2918 = vmatpush.bf16.msra.mxu0 %v2516
    %2919 = vmatpush.bf16.msra.mxu0 %v2508
    %2920 = vmatpush.bf16.msra.mxu0 %v2500
    %2921 = vmatpush.bf16.msra.mxu0 %v2492
    %2922 = vmatpush.bf16.msra.mxu0 %v2484
    %2923 = vmatmul.bf16.gmra.mxu0 %v1963
    %v2924 = vpop.f32.mrf.mxu0
    %v2925 = vadd.f32 0.0, %v2924
    %v2926 = vpop.f32.mrf.mxu0
    %2927 = vdwg.mxu0
    %2928 = vmatpush.bf16.msra.mxu0 %v2604
    %2929 = vmatpush.bf16.msra.mxu0 %v2596
    %2930 = vmatpush.bf16.msra.mxu0 %v2588
    %2931 = vmatpush.bf16.msra.mxu0 %v2580
    %2932 = vmatpush.bf16.msra.mxu0 %v2572
    %2933 = vmatpush.bf16.msra.mxu0 %v2564
    %2934 = vmatpush.bf16.msra.mxu0 %v2556
    %2935 = vmatpush.bf16.msra.mxu0 %v2548
    %2936 = vmatmul.bf16.gmra.mxu0 %v1964
    %v2937 = vpop.f32.mrf.mxu0
    %v2938 = vadd.f32 %v2925, %v2937
    %v2939 = vpop.f32.mrf.mxu0
    %2940 = vdwg.mxu0
    %s2941 = scalar_lea.vmem [#allocation2], 64
    %v2942 = vld [vmem:[%s2941] sm:$0xff]
    %v2943 = vld [vmem:[%s2941 + $0x8] sm:$0xff]
    %v2944 = vld [vmem:[%s2941 + $0x10] sm:$0xff]
    %v2945 = vld [vmem:[%s2941 + $0x18] sm:$0xff]
    %v2946 = vadd.f32 %v2942, %v2756
    %v2947 = vadd.f32 %v2943, %v2782
    %v2948 = vadd.f32 %v2944, %v2808
    %v2949 = vadd.f32 %v2945, %v2834
    %s2950 = scalar_lea.vmem [#allocation2], 384
    %v2951 = vld [vmem:[%s2950 + $0x20] sm:$0xff]
    %v2952 = vld [vmem:[%s2950 + $0x28] sm:$0xff]
    %v2953 = vld [vmem:[%s2950 + $0x30] sm:$0xff]
    %v2954 = vld [vmem:[%s2950 + $0x38] sm:$0xff]
    %v2955 = vadd.f32 %v2951, %v2860
    %v2956 = vadd.f32 %v2952, %v2886
    %v2957 = vadd.f32 %v2953, %v2912
    %v2958 = vadd.f32 %v2954, %v2938
    %v2959 = vxor.u32 %v2946, 2147483648
    %v2960 = vmul.f32 %v2959, 1.442695
    %v2961 = vpow.pop %v2960
    %v2962 = vadd.f32 %v2961, 1.0
    %v2963 = vrcp.pop %v2962
    %v2964 = vmul.f32 %v2962, %v2963
    %v2965 = vsub.f32 1.0, %v2964
    %v2966 = vmul.f32 %v2963, %v2965
    %v2967 = vadd.f32 %v2963, %v2966
    %vm2968 = vweird.f32 %v2962
    %vm2969 = vweird.f32 %v2963
    %vm2970 = vmor %vm2968, %vm2969
    %v2971 = vsel %vm2970, %v2963, %v2967
    %v2972 = vand.u32 2147483647, %v2962
    %vm2973 = vcmp.eq.f32.partialorder %v2972, 8.507059e+37
    %v2974 = vand.u32 %v2962, 2147483648
    %v2975 = vor.u32 1.1754944e-38, %v2974
    %v2976 = vsel %vm2973, %v2975, %v2971
    %v2977 = vmul.f32 1.0, %v2976
    %v2978 = vxor.u32 %v2947, 2147483648
    %v2979 = vmul.f32 %v2978, 1.442695
    %v2980 = vpow.pop %v2979
    %v2981 = vadd.f32 %v2980, 1.0
    %v2982 = vrcp.pop %v2981
    %v2983 = vmul.f32 %v2981, %v2982
    %v2984 = vsub.f32 1.0, %v2983
    %v2985 = vmul.f32 %v2982, %v2984
    %v2986 = vadd.f32 %v2982, %v2985
    %vm2987 = vweird.f32 %v2981
    %vm2988 = vweird.f32 %v2982
    %vm2989 = vmor %vm2987, %vm2988
    %v2990 = vsel %vm2989, %v2982, %v2986
    %v2991 = vand.u32 2147483647, %v2981
    %vm2992 = vcmp.eq.f32.partialorder %v2991, 8.507059e+37
    %v2993 = vand.u32 %v2981, 2147483648
    %v2994 = vor.u32 1.1754944e-38, %v2993
    %v2995 = vsel %vm2992, %v2994, %v2990
    %v2996 = vmul.f32 1.0, %v2995
    %v2997 = vtanh.pop %v2948
    %v2998 = vxor.u32 %v2949, 2147483648
    %v2999 = vmul.f32 %v2998, 1.442695
    %v3000 = vpow.pop %v2999
    %v3001 = vadd.f32 %v3000, 1.0
    %v3002 = vrcp.pop %v3001
    %v3003 = vmul.f32 %v3001, %v3002
    %v3004 = vsub.f32 1.0, %v3003
    %v3005 = vmul.f32 %v3002, %v3004
    %v3006 = vadd.f32 %v3002, %v3005
    %vm3007 = vweird.f32 %v3001
    %vm3008 = vweird.f32 %v3002
    %vm3009 = vmor %vm3007, %vm3008
    %v3010 = vsel %vm3009, %v3002, %v3006
    %v3011 = vand.u32 2147483647, %v3001
    %vm3012 = vcmp.eq.f32.partialorder %v3011, 8.507059e+37
    %v3013 = vand.u32 %v3001, 2147483648
    %v3014 = vor.u32 1.1754944e-38, %v3013
    %v3015 = vsel %vm3012, %v3014, %v3010
    %v3016 = vmul.f32 1.0, %v3015
    %v3017 = vmul.f32 %v2996, %v1961
    %v3018 = vmul.f32 %v2977, %v2997
    %v3019 = vadd.f32 %v3017, %v3018
    %v3020 = vtanh.pop %v3019
    %v3021 = vmul.f32 %v3016, %v3020
    %v3022 = vxor.u32 %v2955, 2147483648
    %v3023 = vmul.f32 %v3022, 1.442695
    %v3024 = vpow.pop %v3023
    %v3025 = vadd.f32 %v3024, 1.0
    %v3026 = vrcp.pop %v3025
    %v3027 = vmul.f32 %v3025, %v3026
    %v3028 = vsub.f32 1.0, %v3027
    %v3029 = vmul.f32 %v3026, %v3028
    %v3030 = vadd.f32 %v3026, %v3029
    %vm3031 = vweird.f32 %v3025
    %vm3032 = vweird.f32 %v3026
    %vm3033 = vmor %vm3031, %vm3032
    %v3034 = vsel %vm3033, %v3026, %v3030
    %v3035 = vand.u32 2147483647, %v3025
    %vm3036 = vcmp.eq.f32.partialorder %v3035, 8.507059e+37
    %v3037 = vand.u32 %v3025, 2147483648
    %v3038 = vor.u32 1.1754944e-38, %v3037
    %v3039 = vsel %vm3036, %v3038, %v3034
    %v3040 = vmul.f32 1.0, %v3039
    %v3041 = vxor.u32 %v2956, 2147483648
    %v3042 = vmul.f32 %v3041, 1.442695
    %v3043 = vpow.pop %v3042
    %v3044 = vadd.f32 %v3043, 1.0
    %v3045 = vrcp.pop %v3044
    %v3046 = vmul.f32 %v3044, %v3045
    %v3047 = vsub.f32 1.0, %v3046
    %v3048 = vmul.f32 %v3045, %v3047
    %v3049 = vadd.f32 %v3045, %v3048
    %vm3050 = vweird.f32 %v3044
    %vm3051 = vweird.f32 %v3045
    %vm3052 = vmor %vm3050, %vm3051
    %v3053 = vsel %vm3052, %v3045, %v3049
    %v3054 = vand.u32 2147483647, %v3044
    %vm3055 = vcmp.eq.f32.partialorder %v3054, 8.507059e+37
    %v3056 = vand.u32 %v3044, 2147483648
    %v3057 = vor.u32 1.1754944e-38, %v3056
    %v3058 = vsel %vm3055, %v3057, %v3053
    %v3059 = vmul.f32 1.0, %v3058
    %v3060 = vtanh.pop %v2957
    %v3061 = vxor.u32 %v2958, 2147483648
    %v3062 = vmul.f32 %v3061, 1.442695
    %v3063 = vpow.pop %v3062
    %v3064 = vadd.f32 %v3063, 1.0
    %v3065 = vrcp.pop %v3064
    %v3066 = vmul.f32 %v3064, %v3065
    %v3067 = vsub.f32 1.0, %v3066
    %v3068 = vmul.f32 %v3065, %v3067
    %v3069 = vadd.f32 %v3065, %v3068
    %vm3070 = vweird.f32 %v3064
    %vm3071 = vweird.f32 %v3065
    %vm3072 = vmor %vm3070, %vm3071
    %v3073 = vsel %vm3072, %v3065, %v3069
    %v3074 = vand.u32 2147483647, %v3064
    %vm3075 = vcmp.eq.f32.partialorder %v3074, 8.507059e+37
    %v3076 = vand.u32 %v3064, 2147483648
    %v3077 = vor.u32 1.1754944e-38, %v3076
    %v3078 = vsel %vm3075, %v3077, %v3073
    %v3079 = vmul.f32 1.0, %v3078
    %v3080 = vmul.f32 %v3059, %v1962
    %v3081 = vmul.f32 %v3040, %v3060
    %v3082 = vadd.f32 %v3080, %v3081
    %v3083 = vtanh.pop %v3082
    %v3084 = vmul.f32 %v3079, %v3083
    %s3085 = scalar_lea.vmem %s1, 8
    %v3086 = vld [vmem:[%s3085] sm:$0xff]
    %vm3087 = vcmp.gt.f32.partialorder %v3086, 0.0
    %s3088 = scalar_lea.vmem %s1, 48
    %v3089 = vld [vmem:[%s3088] sm:$0xff]
    %vm3090 = vcmp.gt.f32.partialorder %v3089, 0.0
    %v3091 = vsel %vm3087, %v3021, 0.0
    %s3092 = scalar_lea.vmem [#allocation3], 8
    %3093 = vst [vmem:[%s3092] sm:$0xff] %v3091
    %v3094 = vsel %vm3090, %v3084, 0.0
    %s3095 = scalar_lea.vmem [#allocation4], 48
    %3096 = vst [vmem:[%s3095] sm:$0xff] %v3094
    %v3097 = vsel %vm3087, %v3021, %v1956
    %v3098 = vsel %vm3090, %v3084, %v1958
    %v3099 = vsel %vm3087, %v3019, %v1961
    %v3100 = vsel %vm3090, %v3082, %v1962
    %v3101 = vpack.c.bf16 %v3097, %v3097
    %v3102 = vpack.c.bf16 %v3098, %v3098
    %v3103 = vld [vmem:[#allocation7] sm:$0xff]
    %v3104 = vld [vmem:[#allocation7 + $0x8] sm:$0xff]
    %v3105 = vld [vmem:[#allocation7 + $0x10] sm:$0xff]
    %v3106 = vld [vmem:[#allocation7 + $0x18] sm:$0xff]
    %v3107 = vld [vmem:[#allocation7 + $0x20] sm:$0xff]
    %v3108 = vld [vmem:[#allocation7 + $0x28] sm:$0xff]
    %v3109 = vld [vmem:[#allocation7 + $0x30] sm:$0xff]
    %v3110 = vld [vmem:[#allocation7 + $0x38] sm:$0xff]
    %v3111 = vld [vmem:[#allocation7 + $0x40] sm:$0xff]
    %v3112 = vld [vmem:[#allocation7 + $0x48] sm:$0xff]
    %v3113 = vld [vmem:[#allocation7 + $0x50] sm:$0xff]
    %v3114 = vld [vmem:[#allocation7 + $0x58] sm:$0xff]
    %v3115 = vld [vmem:[#allocation7 + $0x60] sm:$0xff]
    %v3116 = vld [vmem:[#allocation7 + $0x68] sm:$0xff]
    %v3117 = vld [vmem:[#allocation7 + $0x70] sm:$0xff]
    %v3118 = vld [vmem:[#allocation7 + $0x78] sm:$0xff]
    %v3119 = vld [vmem:[#allocation7 + $0x80] sm:$0xff]
    %v3120 = vld [vmem:[#allocation7 + $0x88] sm:$0xff]
    %v3121 = vld [vmem:[#allocation7 + $0x90] sm:$0xff]
    %v3122 = vld [vmem:[#allocation7 + $0x98] sm:$0xff]
    %v3123 = vld [vmem:[#allocation7 + $0xa0] sm:$0xff]
    %v3124 = vld [vmem:[#allocation7 + $0xa8] sm:$0xff]
    %v3125 = vld [vmem:[#allocation7 + $0xb0] sm:$0xff]
    %v3126 = vld [vmem:[#allocation7 + $0xb8] sm:$0xff]
    %v3127 = vld [vmem:[#allocation7 + $0xc0] sm:$0xff]
    %v3128 = vld [vmem:[#allocation7 + $0xc8] sm:$0xff]
    %v3129 = vld [vmem:[#allocation7 + $0xd0] sm:$0xff]
    %v3130 = vld [vmem:[#allocation7 + $0xd8] sm:$0xff]
    %v3131 = vld [vmem:[#allocation7 + $0xe0] sm:$0xff]
    %v3132 = vld [vmem:[#allocation7 + $0xe8] sm:$0xff]
    %v3133 = vld [vmem:[#allocation7 + $0xf0] sm:$0xff]
    %v3134 = vld [vmem:[#allocation7 + $0xf8] sm:$0xff]
    %v3135 = vld [vmem:[#allocation7 + $0x100] sm:$0xff]
    %v3136 = vld [vmem:[#allocation7 + $0x108] sm:$0xff]
    %v3137 = vld [vmem:[#allocation7 + $0x110] sm:$0xff]
    %v3138 = vld [vmem:[#allocation7 + $0x118] sm:$0xff]
    %v3139 = vld [vmem:[#allocation7 + $0x120] sm:$0xff]
    %v3140 = vld [vmem:[#allocation7 + $0x128] sm:$0xff]
    %v3141 = vld [vmem:[#allocation7 + $0x130] sm:$0xff]
    %v3142 = vld [vmem:[#allocation7 + $0x138] sm:$0xff]
    %v3143 = vld [vmem:[#allocation7 + $0x140] sm:$0xff]
    %v3144 = vld [vmem:[#allocation7 + $0x148] sm:$0xff]
    %v3145 = vld [vmem:[#allocation7 + $0x150] sm:$0xff]
    %v3146 = vld [vmem:[#allocation7 + $0x158] sm:$0xff]
    %v3147 = vld [vmem:[#allocation7 + $0x160] sm:$0xff]
    %v3148 = vld [vmem:[#allocation7 + $0x168] sm:$0xff]
    %v3149 = vld [vmem:[#allocation7 + $0x170] sm:$0xff]
    %v3150 = vld [vmem:[#allocation7 + $0x178] sm:$0xff]
    %v3151 = vld [vmem:[#allocation7 + $0x180] sm:$0xff]
    %v3152 = vld [vmem:[#allocation7 + $0x188] sm:$0xff]
    %v3153 = vld [vmem:[#allocation7 + $0x190] sm:$0xff]
    %v3154 = vld [vmem:[#allocation7 + $0x198] sm:$0xff]
    %v3155 = vld [vmem:[#allocation7 + $0x1a0] sm:$0xff]
    %v3156 = vld [vmem:[#allocation7 + $0x1a8] sm:$0xff]
    %v3157 = vld [vmem:[#allocation7 + $0x1b0] sm:$0xff]
    %v3158 = vld [vmem:[#allocation7 + $0x1b8] sm:$0xff]
    %v3159 = vld [vmem:[#allocation7 + $0x1c0] sm:$0xff]
    %v3160 = vld [vmem:[#allocation7 + $0x1c8] sm:$0xff]
    %v3161 = vld [vmem:[#allocation7 + $0x1d0] sm:$0xff]
    %v3162 = vld [vmem:[#allocation7 + $0x1d8] sm:$0xff]
    %v3163 = vld [vmem:[#allocation7 + $0x1e0] sm:$0xff]
    %v3164 = vld [vmem:[#allocation7 + $0x1e8] sm:$0xff]
    %v3165 = vld [vmem:[#allocation7 + $0x1f0] sm:$0xff]
    %v3166 = vld [vmem:[#allocation7 + $0x1f8] sm:$0xff]
    %v3167 = vld [vmem:[#allocation7 + $0x200] sm:$0xff]
    %v3168 = vld [vmem:[#allocation7 + $0x208] sm:$0xff]
    %v3169 = vld [vmem:[#allocation7 + $0x210] sm:$0xff]
    %v3170 = vld [vmem:[#allocation7 + $0x218] sm:$0xff]
    %v3171 = vld [vmem:[#allocation7 + $0x220] sm:$0xff]
    %v3172 = vld [vmem:[#allocation7 + $0x228] sm:$0xff]
    %v3173 = vld [vmem:[#allocation7 + $0x230] sm:$0xff]
    %v3174 = vld [vmem:[#allocation7 + $0x238] sm:$0xff]
    %v3175 = vld [vmem:[#allocation7 + $0x240] sm:$0xff]
    %v3176 = vld [vmem:[#allocation7 + $0x248] sm:$0xff]
    %v3177 = vld [vmem:[#allocation7 + $0x250] sm:$0xff]
    %v3178 = vld [vmem:[#allocation7 + $0x258] sm:$0xff]
    %v3179 = vld [vmem:[#allocation7 + $0x260] sm:$0xff]
    %v3180 = vld [vmem:[#allocation7 + $0x268] sm:$0xff]
    %v3181 = vld [vmem:[#allocation7 + $0x270] sm:$0xff]
    %v3182 = vld [vmem:[#allocation7 + $0x278] sm:$0xff]
    %v3183 = vld [vmem:[#allocation7 + $0x280] sm:$0xff]
    %v3184 = vld [vmem:[#allocation7 + $0x288] sm:$0xff]
    %v3185 = vld [vmem:[#allocation7 + $0x290] sm:$0xff]
    %v3186 = vld [vmem:[#allocation7 + $0x298] sm:$0xff]
    %v3187 = vld [vmem:[#allocation7 + $0x2a0] sm:$0xff]
    %v3188 = vld [vmem:[#allocation7 + $0x2a8] sm:$0xff]
    %v3189 = vld [vmem:[#allocation7 + $0x2b0] sm:$0xff]
    %v3190 = vld [vmem:[#allocation7 + $0x2b8] sm:$0xff]
    %v3191 = vld [vmem:[#allocation7 + $0x2c0] sm:$0xff]
    %v3192 = vld [vmem:[#allocation7 + $0x2c8] sm:$0xff]
    %v3193 = vld [vmem:[#allocation7 + $0x2d0] sm:$0xff]
    %v3194 = vld [vmem:[#allocation7 + $0x2d8] sm:$0xff]
    %v3195 = vld [vmem:[#allocation7 + $0x2e0] sm:$0xff]
    %v3196 = vld [vmem:[#allocation7 + $0x2e8] sm:$0xff]
    %v3197 = vld [vmem:[#allocation7 + $0x2f0] sm:$0xff]
    %v3198 = vld [vmem:[#allocation7 + $0x2f8] sm:$0xff]
    %v3199 = vld [vmem:[#allocation7 + $0x300] sm:$0xff]
    %v3200 = vld [vmem:[#allocation7 + $0x308] sm:$0xff]
    %v3201 = vld [vmem:[#allocation7 + $0x310] sm:$0xff]
    %v3202 = vld [vmem:[#allocation7 + $0x318] sm:$0xff]
    %v3203 = vld [vmem:[#allocation7 + $0x320] sm:$0xff]
    %v3204 = vld [vmem:[#allocation7 + $0x328] sm:$0xff]
    %v3205 = vld [vmem:[#allocation7 + $0x330] sm:$0xff]
    %v3206 = vld [vmem:[#allocation7 + $0x338] sm:$0xff]
    %v3207 = vld [vmem:[#allocation7 + $0x340] sm:$0xff]
    %v3208 = vld [vmem:[#allocation7 + $0x348] sm:$0xff]
    %v3209 = vld [vmem:[#allocation7 + $0x350] sm:$0xff]
    %v3210 = vld [vmem:[#allocation7 + $0x358] sm:$0xff]
    %v3211 = vld [vmem:[#allocation7 + $0x360] sm:$0xff]
    %v3212 = vld [vmem:[#allocation7 + $0x368] sm:$0xff]
    %v3213 = vld [vmem:[#allocation7 + $0x370] sm:$0xff]
    %v3214 = vld [vmem:[#allocation7 + $0x378] sm:$0xff]
    %v3215 = vld [vmem:[#allocation7 + $0x380] sm:$0xff]
    %v3216 = vld [vmem:[#allocation7 + $0x388] sm:$0xff]
    %v3217 = vld [vmem:[#allocation7 + $0x390] sm:$0xff]
    %v3218 = vld [vmem:[#allocation7 + $0x398] sm:$0xff]
    %v3219 = vld [vmem:[#allocation7 + $0x3a0] sm:$0xff]
    %v3220 = vld [vmem:[#allocation7 + $0x3a8] sm:$0xff]
    %v3221 = vld [vmem:[#allocation7 + $0x3b0] sm:$0xff]
    %v3222 = vld [vmem:[#allocation7 + $0x3b8] sm:$0xff]
    %v3223 = vld [vmem:[#allocation7 + $0x3c0] sm:$0xff]
    %v3224 = vld [vmem:[#allocation7 + $0x3c8] sm:$0xff]
    %v3225 = vld [vmem:[#allocation7 + $0x3d0] sm:$0xff]
    %v3226 = vld [vmem:[#allocation7 + $0x3d8] sm:$0xff]
    %v3227 = vld [vmem:[#allocation7 + $0x3e0] sm:$0xff]
    %v3228 = vld [vmem:[#allocation7 + $0x3e8] sm:$0xff]
    %v3229 = vld [vmem:[#allocation7 + $0x3f0] sm:$0xff]
    %v3230 = vld [vmem:[#allocation7 + $0x3f8] sm:$0xff]
    %v3359 = vunpack.c.l.b16 %v3103
    %v3360 = vunpack.c.h.b16 %v3103
    %v3361 = vunpack.c.l.b16 %v3104
    %v3362 = vunpack.c.h.b16 %v3104
    %v3363 = vunpack.c.l.b16 %v3105
    %v3364 = vunpack.c.h.b16 %v3105
    %v3365 = vunpack.c.l.b16 %v3106
    %v3366 = vunpack.c.h.b16 %v3106
    %v3367 = vunpack.c.l.b16 %v3107
    %v3368 = vunpack.c.h.b16 %v3107
    %v3369 = vunpack.c.l.b16 %v3108
    %v3370 = vunpack.c.h.b16 %v3108
    %v3371 = vunpack.c.l.b16 %v3109
    %v3372 = vunpack.c.h.b16 %v3109
    %v3373 = vunpack.c.l.b16 %v3110
    %v3374 = vunpack.c.h.b16 %v3110
    %v3375 = vunpack.c.l.b16 %v3111
    %v3376 = vunpack.c.h.b16 %v3111
    %v3377 = vunpack.c.l.b16 %v3112
    %v3378 = vunpack.c.h.b16 %v3112
    %v3379 = vunpack.c.l.b16 %v3113
    %v3380 = vunpack.c.h.b16 %v3113
    %v3381 = vunpack.c.l.b16 %v3114
    %v3382 = vunpack.c.h.b16 %v3114
    %v3383 = vunpack.c.l.b16 %v3115
    %v3384 = vunpack.c.h.b16 %v3115
    %v3385 = vunpack.c.l.b16 %v3116
    %v3386 = vunpack.c.h.b16 %v3116
    %v3387 = vunpack.c.l.b16 %v3117
    %v3388 = vunpack.c.h.b16 %v3117
    %v3389 = vunpack.c.l.b16 %v3118
    %v3390 = vunpack.c.h.b16 %v3118
    %v3391 = vunpack.c.l.b16 %v3119
    %v3392 = vunpack.c.h.b16 %v3119
    %v3393 = vunpack.c.l.b16 %v3120
    %v3394 = vunpack.c.h.b16 %v3120
    %v3395 = vunpack.c.l.b16 %v3121
    %v3396 = vunpack.c.h.b16 %v3121
    %v3397 = vunpack.c.l.b16 %v3122
    %v3398 = vunpack.c.h.b16 %v3122
    %v3399 = vunpack.c.l.b16 %v3123
    %v3400 = vunpack.c.h.b16 %v3123
    %v3401 = vunpack.c.l.b16 %v3124
    %v3402 = vunpack.c.h.b16 %v3124
    %v3403 = vunpack.c.l.b16 %v3125
    %v3404 = vunpack.c.h.b16 %v3125
    %v3405 = vunpack.c.l.b16 %v3126
    %v3406 = vunpack.c.h.b16 %v3126
    %v3407 = vunpack.c.l.b16 %v3127
    %v3408 = vunpack.c.h.b16 %v3127
    %v3409 = vunpack.c.l.b16 %v3128
    %v3410 = vunpack.c.h.b16 %v3128
    %v3411 = vunpack.c.l.b16 %v3129
    %v3412 = vunpack.c.h.b16 %v3129
    %v3413 = vunpack.c.l.b16 %v3130
    %v3414 = vunpack.c.h.b16 %v3130
    %v3415 = vunpack.c.l.b16 %v3131
    %v3416 = vunpack.c.h.b16 %v3131
    %v3417 = vunpack.c.l.b16 %v3132
    %v3418 = vunpack.c.h.b16 %v3132
    %v3419 = vunpack.c.l.b16 %v3133
    %v3420 = vunpack.c.h.b16 %v3133
    %v3421 = vunpack.c.l.b16 %v3134
    %v3422 = vunpack.c.h.b16 %v3134
    %v3423 = vunpack.c.l.b16 %v3135
    %v3424 = vunpack.c.h.b16 %v3135
    %v3425 = vunpack.c.l.b16 %v3136
    %v3426 = vunpack.c.h.b16 %v3136
    %v3427 = vunpack.c.l.b16 %v3137
    %v3428 = vunpack.c.h.b16 %v3137
    %v3429 = vunpack.c.l.b16 %v3138
    %v3430 = vunpack.c.h.b16 %v3138
    %v3431 = vunpack.c.l.b16 %v3139
    %v3432 = vunpack.c.h.b16 %v3139
    %v3433 = vunpack.c.l.b16 %v3140
    %v3434 = vunpack.c.h.b16 %v3140
    %v3435 = vunpack.c.l.b16 %v3141
    %v3436 = vunpack.c.h.b16 %v3141
    %v3437 = vunpack.c.l.b16 %v3142
    %v3438 = vunpack.c.h.b16 %v3142
    %v3439 = vunpack.c.l.b16 %v3143
    %v3440 = vunpack.c.h.b16 %v3143
    %v3441 = vunpack.c.l.b16 %v3144
    %v3442 = vunpack.c.h.b16 %v3144
    %v3443 = vunpack.c.l.b16 %v3145
    %v3444 = vunpack.c.h.b16 %v3145
    %v3445 = vunpack.c.l.b16 %v3146
    %v3446 = vunpack.c.h.b16 %v3146
    %v3447 = vunpack.c.l.b16 %v3147
    %v3448 = vunpack.c.h.b16 %v3147
    %v3449 = vunpack.c.l.b16 %v3148
    %v3450 = vunpack.c.h.b16 %v3148
    %v3451 = vunpack.c.l.b16 %v3149
    %v3452 = vunpack.c.h.b16 %v3149
    %v3453 = vunpack.c.l.b16 %v3150
    %v3454 = vunpack.c.h.b16 %v3150
    %v3455 = vunpack.c.l.b16 %v3151
    %v3456 = vunpack.c.h.b16 %v3151
    %v3457 = vunpack.c.l.b16 %v3152
    %v3458 = vunpack.c.h.b16 %v3152
    %v3459 = vunpack.c.l.b16 %v3153
    %v3460 = vunpack.c.h.b16 %v3153
    %v3461 = vunpack.c.l.b16 %v3154
    %v3462 = vunpack.c.h.b16 %v3154
    %v3463 = vunpack.c.l.b16 %v3155
    %v3464 = vunpack.c.h.b16 %v3155
    %v3465 = vunpack.c.l.b16 %v3156
    %v3466 = vunpack.c.h.b16 %v3156
    %v3467 = vunpack.c.l.b16 %v3157
    %v3468 = vunpack.c.h.b16 %v3157
    %v3469 = vunpack.c.l.b16 %v3158
    %v3470 = vunpack.c.h.b16 %v3158
    %v3471 = vunpack.c.l.b16 %v3159
    %v3472 = vunpack.c.h.b16 %v3159
    %v3473 = vunpack.c.l.b16 %v3160
    %v3474 = vunpack.c.h.b16 %v3160
    %v3475 = vunpack.c.l.b16 %v3161
    %v3476 = vunpack.c.h.b16 %v3161
    %v3477 = vunpack.c.l.b16 %v3162
    %v3478 = vunpack.c.h.b16 %v3162
    %v3479 = vunpack.c.l.b16 %v3163
    %v3480 = vunpack.c.h.b16 %v3163
    %v3481 = vunpack.c.l.b16 %v3164
    %v3482 = vunpack.c.h.b16 %v3164
    %v3483 = vunpack.c.l.b16 %v3165
    %v3484 = vunpack.c.h.b16 %v3165
    %v3485 = vunpack.c.l.b16 %v3166
    %v3486 = vunpack.c.h.b16 %v3166
    %v3487 = vunpack.c.l.b16 %v3167
    %v3488 = vunpack.c.h.b16 %v3167
    %v3489 = vunpack.c.l.b16 %v3168
    %v3490 = vunpack.c.h.b16 %v3168
    %v3491 = vunpack.c.l.b16 %v3169
    %v3492 = vunpack.c.h.b16 %v3169
    %v3493 = vunpack.c.l.b16 %v3170
    %v3494 = vunpack.c.h.b16 %v3170
    %v3495 = vunpack.c.l.b16 %v3171
    %v3496 = vunpack.c.h.b16 %v3171
    %v3497 = vunpack.c.l.b16 %v3172
    %v3498 = vunpack.c.h.b16 %v3172
    %v3499 = vunpack.c.l.b16 %v3173
    %v3500 = vunpack.c.h.b16 %v3173
    %v3501 = vunpack.c.l.b16 %v3174
    %v3502 = vunpack.c.h.b16 %v3174
    %v3503 = vunpack.c.l.b16 %v3175
    %v3504 = vunpack.c.h.b16 %v3175
    %v3505 = vunpack.c.l.b16 %v3176
    %v3506 = vunpack.c.h.b16 %v3176
    %v3507 = vunpack.c.l.b16 %v3177
    %v3508 = vunpack.c.h.b16 %v3177
    %v3509 = vunpack.c.l.b16 %v3178
    %v3510 = vunpack.c.h.b16 %v3178
    %v3511 = vunpack.c.l.b16 %v3179
    %v3512 = vunpack.c.h.b16 %v3179
    %v3513 = vunpack.c.l.b16 %v3180
    %v3514 = vunpack.c.h.b16 %v3180
    %v3515 = vunpack.c.l.b16 %v3181
    %v3516 = vunpack.c.h.b16 %v3181
    %v3517 = vunpack.c.l.b16 %v3182
    %v3518 = vunpack.c.h.b16 %v3182
    %v3519 = vunpack.c.l.b16 %v3183
    %v3520 = vunpack.c.h.b16 %v3183
    %v3521 = vunpack.c.l.b16 %v3184
    %v3522 = vunpack.c.h.b16 %v3184
    %v3523 = vunpack.c.l.b16 %v3185
    %v3524 = vunpack.c.h.b16 %v3185
    %v3525 = vunpack.c.l.b16 %v3186
    %v3526 = vunpack.c.h.b16 %v3186
    %v3527 = vunpack.c.l.b16 %v3187
    %v3528 = vunpack.c.h.b16 %v3187
    %v3529 = vunpack.c.l.b16 %v3188
    %v3530 = vunpack.c.h.b16 %v3188
    %v3531 = vunpack.c.l.b16 %v3189
    %v3532 = vunpack.c.h.b16 %v3189
    %v3533 = vunpack.c.l.b16 %v3190
    %v3534 = vunpack.c.h.b16 %v3190
    %v3535 = vunpack.c.l.b16 %v3191
    %v3536 = vunpack.c.h.b16 %v3191
    %v3537 = vunpack.c.l.b16 %v3192
    %v3538 = vunpack.c.h.b16 %v3192
    %v3539 = vunpack.c.l.b16 %v3193
    %v3540 = vunpack.c.h.b16 %v3193
    %v3541 = vunpack.c.l.b16 %v3194
    %v3542 = vunpack.c.h.b16 %v3194
    %v3543 = vunpack.c.l.b16 %v3195
    %v3544 = vunpack.c.h.b16 %v3195
    %v3545 = vunpack.c.l.b16 %v3196
    %v3546 = vunpack.c.h.b16 %v3196
    %v3547 = vunpack.c.l.b16 %v3197
    %v3548 = vunpack.c.h.b16 %v3197
    %v3549 = vunpack.c.l.b16 %v3198
    %v3550 = vunpack.c.h.b16 %v3198
    %v3551 = vunpack.c.l.b16 %v3199
    %v3552 = vunpack.c.h.b16 %v3199
    %v3553 = vunpack.c.l.b16 %v3200
    %v3554 = vunpack.c.h.b16 %v3200
    %v3555 = vunpack.c.l.b16 %v3201
    %v3556 = vunpack.c.h.b16 %v3201
    %v3557 = vunpack.c.l.b16 %v3202
    %v3558 = vunpack.c.h.b16 %v3202
    %v3559 = vunpack.c.l.b16 %v3203
    %v3560 = vunpack.c.h.b16 %v3203
    %v3561 = vunpack.c.l.b16 %v3204
    %v3562 = vunpack.c.h.b16 %v3204
    %v3563 = vunpack.c.l.b16 %v3205
    %v3564 = vunpack.c.h.b16 %v3205
    %v3565 = vunpack.c.l.b16 %v3206
    %v3566 = vunpack.c.h.b16 %v3206
    %v3567 = vunpack.c.l.b16 %v3207
    %v3568 = vunpack.c.h.b16 %v3207
    %v3569 = vunpack.c.l.b16 %v3208
    %v3570 = vunpack.c.h.b16 %v3208
    %v3571 = vunpack.c.l.b16 %v3209
    %v3572 = vunpack.c.h.b16 %v3209
    %v3573 = vunpack.c.l.b16 %v3210
    %v3574 = vunpack.c.h.b16 %v3210
    %v3575 = vunpack.c.l.b16 %v3211
    %v3576 = vunpack.c.h.b16 %v3211
    %v3577 = vunpack.c.l.b16 %v3212
    %v3578 = vunpack.c.h.b16 %v3212
    %v3579 = vunpack.c.l.b16 %v3213
    %v3580 = vunpack.c.h.b16 %v3213
    %v3581 = vunpack.c.l.b16 %v3214
    %v3582 = vunpack.c.h.b16 %v3214
    %v3583 = vunpack.c.l.b16 %v3215
    %v3584 = vunpack.c.h.b16 %v3215
    %v3585 = vunpack.c.l.b16 %v3216
    %v3586 = vunpack.c.h.b16 %v3216
    %v3587 = vunpack.c.l.b16 %v3217
    %v3588 = vunpack.c.h.b16 %v3217
    %v3589 = vunpack.c.l.b16 %v3218
    %v3590 = vunpack.c.h.b16 %v3218
    %v3591 = vunpack.c.l.b16 %v3219
    %v3592 = vunpack.c.h.b16 %v3219
    %v3593 = vunpack.c.l.b16 %v3220
    %v3594 = vunpack.c.h.b16 %v3220
    %v3595 = vunpack.c.l.b16 %v3221
    %v3596 = vunpack.c.h.b16 %v3221
    %v3597 = vunpack.c.l.b16 %v3222
    %v3598 = vunpack.c.h.b16 %v3222
    %v3599 = vunpack.c.l.b16 %v3223
    %v3600 = vunpack.c.h.b16 %v3223
    %v3601 = vunpack.c.l.b16 %v3224
    %v3602 = vunpack.c.h.b16 %v3224
    %v3603 = vunpack.c.l.b16 %v3225
    %v3604 = vunpack.c.h.b16 %v3225
    %v3605 = vunpack.c.l.b16 %v3226
    %v3606 = vunpack.c.h.b16 %v3226
    %v3607 = vunpack.c.l.b16 %v3227
    %v3608 = vunpack.c.h.b16 %v3227
    %v3609 = vunpack.c.l.b16 %v3228
    %v3610 = vunpack.c.h.b16 %v3228
    %v3611 = vunpack.c.l.b16 %v3229
    %v3612 = vunpack.c.h.b16 %v3229
    %v3613 = vunpack.c.l.b16 %v3230
    %v3614 = vunpack.c.h.b16 %v3230
    %v3615 = vpack.c.b16 %v3367, %v3359
    %v3616 = vpack.c.b16 %v3368, %v3360
    %v3617 = vpack.c.b16 %v3369, %v3361
    %v3618 = vpack.c.b16 %v3370, %v3362
    %v3619 = vpack.c.b16 %v3371, %v3363
    %v3620 = vpack.c.b16 %v3372, %v3364
    %v3621 = vpack.c.b16 %v3373, %v3365
    %v3622 = vpack.c.b16 %v3374, %v3366
    %v3623 = vpack.c.b16 %v3383, %v3375
    %v3624 = vpack.c.b16 %v3384, %v3376
    %v3625 = vpack.c.b16 %v3385, %v3377
    %v3626 = vpack.c.b16 %v3386, %v3378
    %v3627 = vpack.c.b16 %v3387, %v3379
    %v3628 = vpack.c.b16 %v3388, %v3380
    %v3629 = vpack.c.b16 %v3389, %v3381
    %v3630 = vpack.c.b16 %v3390, %v3382
    %v3631 = vpack.c.b16 %v3399, %v3391
    %v3632 = vpack.c.b16 %v3400, %v3392
    %v3633 = vpack.c.b16 %v3401, %v3393
    %v3634 = vpack.c.b16 %v3402, %v3394
    %v3635 = vpack.c.b16 %v3403, %v3395
    %v3636 = vpack.c.b16 %v3404, %v3396
    %v3637 = vpack.c.b16 %v3405, %v3397
    %v3638 = vpack.c.b16 %v3406, %v3398
    %v3639 = vpack.c.b16 %v3415, %v3407
    %v3640 = vpack.c.b16 %v3416, %v3408
    %v3641 = vpack.c.b16 %v3417, %v3409
    %v3642 = vpack.c.b16 %v3418, %v3410
    %v3643 = vpack.c.b16 %v3419, %v3411
    %v3644 = vpack.c.b16 %v3420, %v3412
    %v3645 = vpack.c.b16 %v3421, %v3413
    %v3646 = vpack.c.b16 %v3422, %v3414
    %v3647 = vpack.c.b16 %v3431, %v3423
    %v3648 = vpack.c.b16 %v3432, %v3424
    %v3649 = vpack.c.b16 %v3433, %v3425
    %v3650 = vpack.c.b16 %v3434, %v3426
    %v3651 = vpack.c.b16 %v3435, %v3427
    %v3652 = vpack.c.b16 %v3436, %v3428
    %v3653 = vpack.c.b16 %v3437, %v3429
    %v3654 = vpack.c.b16 %v3438, %v3430
    %v3655 = vpack.c.b16 %v3447, %v3439
    %v3656 = vpack.c.b16 %v3448, %v3440
    %v3657 = vpack.c.b16 %v3449, %v3441
    %v3658 = vpack.c.b16 %v3450, %v3442
    %v3659 = vpack.c.b16 %v3451, %v3443
    %v3660 = vpack.c.b16 %v3452, %v3444
    %v3661 = vpack.c.b16 %v3453, %v3445
    %v3662 = vpack.c.b16 %v3454, %v3446
    %v3663 = vpack.c.b16 %v3463, %v3455
    %v3664 = vpack.c.b16 %v3464, %v3456
    %v3665 = vpack.c.b16 %v3465, %v3457
    %v3666 = vpack.c.b16 %v3466, %v3458
    %v3667 = vpack.c.b16 %v3467, %v3459
    %v3668 = vpack.c.b16 %v3468, %v3460
    %v3669 = vpack.c.b16 %v3469, %v3461
    %v3670 = vpack.c.b16 %v3470, %v3462
    %v3671 = vpack.c.b16 %v3479, %v3471
    %v3672 = vpack.c.b16 %v3480, %v3472
    %v3673 = vpack.c.b16 %v3481, %v3473
    %v3674 = vpack.c.b16 %v3482, %v3474
    %v3675 = vpack.c.b16 %v3483, %v3475
    %v3676 = vpack.c.b16 %v3484, %v3476
    %v3677 = vpack.c.b16 %v3485, %v3477
    %v3678 = vpack.c.b16 %v3486, %v3478
    %v3679 = vpack.c.b16 %v3495, %v3487
    %v3680 = vpack.c.b16 %v3496, %v3488
    %v3681 = vpack.c.b16 %v3497, %v3489
    %v3682 = vpack.c.b16 %v3498, %v3490
    %v3683 = vpack.c.b16 %v3499, %v3491
    %v3684 = vpack.c.b16 %v3500, %v3492
    %v3685 = vpack.c.b16 %v3501, %v3493
    %v3686 = vpack.c.b16 %v3502, %v3494
    %v3687 = vpack.c.b16 %v3511, %v3503
    %v3688 = vpack.c.b16 %v3512, %v3504
    %v3689 = vpack.c.b16 %v3513, %v3505
    %v3690 = vpack.c.b16 %v3514, %v3506
    %v3691 = vpack.c.b16 %v3515, %v3507
    %v3692 = vpack.c.b16 %v3516, %v3508
    %v3693 = vpack.c.b16 %v3517, %v3509
    %v3694 = vpack.c.b16 %v3518, %v3510
    %v3695 = vpack.c.b16 %v3527, %v3519
    %v3696 = vpack.c.b16 %v3528, %v3520
    %v3697 = vpack.c.b16 %v3529, %v3521
    %v3698 = vpack.c.b16 %v3530, %v3522
    %v3699 = vpack.c.b16 %v3531, %v3523
    %v3700 = vpack.c.b16 %v3532, %v3524
    %v3701 = vpack.c.b16 %v3533, %v3525
    %v3702 = vpack.c.b16 %v3534, %v3526
    %v3703 = vpack.c.b16 %v3543, %v3535
    %v3704 = vpack.c.b16 %v3544, %v3536
    %v3705 = vpack.c.b16 %v3545, %v3537
    %v3706 = vpack.c.b16 %v3546, %v3538
    %v3707 = vpack.c.b16 %v3547, %v3539
    %v3708 = vpack.c.b16 %v3548, %v3540
    %v3709 = vpack.c.b16 %v3549, %v3541
    %v3710 = vpack.c.b16 %v3550, %v3542
    %v3711 = vpack.c.b16 %v3559, %v3551
    %v3712 = vpack.c.b16 %v3560, %v3552
    %v3713 = vpack.c.b16 %v3561, %v3553
    %v3714 = vpack.c.b16 %v3562, %v3554
    %v3715 = vpack.c.b16 %v3563, %v3555
    %v3716 = vpack.c.b16 %v3564, %v3556
    %v3717 = vpack.c.b16 %v3565, %v3557
    %v3718 = vpack.c.b16 %v3566, %v3558
    %v3719 = vpack.c.b16 %v3575, %v3567
    %v3720 = vpack.c.b16 %v3576, %v3568
    %v3721 = vpack.c.b16 %v3577, %v3569
    %v3722 = vpack.c.b16 %v3578, %v3570
    %v3723 = vpack.c.b16 %v3579, %v3571
    %v3724 = vpack.c.b16 %v3580, %v3572
    %v3725 = vpack.c.b16 %v3581, %v3573
    %v3726 = vpack.c.b16 %v3582, %v3574
    %v3727 = vpack.c.b16 %v3591, %v3583
    %v3728 = vpack.c.b16 %v3592, %v3584
    %v3729 = vpack.c.b16 %v3593, %v3585
    %v3730 = vpack.c.b16 %v3594, %v3586
    %v3731 = vpack.c.b16 %v3595, %v3587
    %v3732 = vpack.c.b16 %v3596, %v3588
    %v3733 = vpack.c.b16 %v3597, %v3589
    %v3734 = vpack.c.b16 %v3598, %v3590
    %v3735 = vpack.c.b16 %v3607, %v3599
    %v3736 = vpack.c.b16 %v3608, %v3600
    %v3737 = vpack.c.b16 %v3609, %v3601
    %v3738 = vpack.c.b16 %v3610, %v3602
    %v3739 = vpack.c.b16 %v3611, %v3603
    %v3740 = vpack.c.b16 %v3612, %v3604
    %v3741 = vpack.c.b16 %v3613, %v3605
    %v3742 = vpack.c.b16 %v3614, %v3606
    %3871 = vmatpush.bf16.msra.mxu0 %v3671
    %3872 = vmatpush.bf16.msra.mxu0 %v3663
    %3873 = vmatpush.bf16.msra.mxu0 %v3655
    %3874 = vmatpush.bf16.msra.mxu0 %v3647
    %3875 = vmatpush.bf16.msra.mxu0 %v3639
    %3876 = vmatpush.bf16.msra.mxu0 %v3631
    %3877 = vmatpush.bf16.msra.mxu0 %v3623
    %3878 = vmatpush.bf16.msra.mxu0 %v3615
    %3879 = vmatmul.bf16.gmra.mxu0 %v3101
    %v3880 = vpop.f32.mrf.mxu0
    %v3881 = vadd.f32 0.0, %v3880
    %v3882 = vpop.f32.mrf.mxu0
    %3883 = vdwg.mxu0
    %3884 = vmatpush.bf16.msra.mxu0 %v3735
    %3885 = vmatpush.bf16.msra.mxu0 %v3727
    %3886 = vmatpush.bf16.msra.mxu0 %v3719
    %3887 = vmatpush.bf16.msra.mxu0 %v3711
    %3888 = vmatpush.bf16.msra.mxu0 %v3703
    %3889 = vmatpush.bf16.msra.mxu0 %v3695
    %3890 = vmatpush.bf16.msra.mxu0 %v3687
    %3891 = vmatpush.bf16.msra.mxu0 %v3679
    %3892 = vmatmul.bf16.gmra.mxu0 %v3102
    %v3893 = vpop.f32.mrf.mxu0
    %v3894 = vadd.f32 %v3881, %v3893
    %v3895 = vpop.f32.mrf.mxu0
    %3896 = vdwg.mxu0
    %3897 = vmatpush.bf16.msra.mxu0 %v3672
    %3898 = vmatpush.bf16.msra.mxu0 %v3664
    %3899 = vmatpush.bf16.msra.mxu0 %v3656
    %3900 = vmatpush.bf16.msra.mxu0 %v3648
    %3901 = vmatpush.bf16.msra.mxu0 %v3640
    %3902 = vmatpush.bf16.msra.mxu0 %v3632
    %3903 = vmatpush.bf16.msra.mxu0 %v3624
    %3904 = vmatpush.bf16.msra.mxu0 %v3616
    %3905 = vmatmul.bf16.gmra.mxu0 %v3101
    %v3906 = vpop.f32.mrf.mxu0
    %v3907 = vadd.f32 0.0, %v3906
    %v3908 = vpop.f32.mrf.mxu0
    %3909 = vdwg.mxu0
    %3910 = vmatpush.bf16.msra.mxu0 %v3736
    %3911 = vmatpush.bf16.msra.mxu0 %v3728
    %3912 = vmatpush.bf16.msra.mxu0 %v3720
    %3913 = vmatpush.bf16.msra.mxu0 %v3712
    %3914 = vmatpush.bf16.msra.mxu0 %v3704
    %3915 = vmatpush.bf16.msra.mxu0 %v3696
    %3916 = vmatpush.bf16.msra.mxu0 %v3688
    %3917 = vmatpush.bf16.msra.mxu0 %v3680
    %3918 = vmatmul.bf16.gmra.mxu0 %v3102
    %v3919 = vpop.f32.mrf.mxu0
    %v3920 = vadd.f32 %v3907, %v3919
    %v3921 = vpop.f32.mrf.mxu0
    %3922 = vdwg.mxu0
    %3923 = vmatpush.bf16.msra.mxu0 %v3673
    %3924 = vmatpush.bf16.msra.mxu0 %v3665
    %3925 = vmatpush.bf16.msra.mxu0 %v3657
    %3926 = vmatpush.bf16.msra.mxu0 %v3649
    %3927 = vmatpush.bf16.msra.mxu0 %v3641
    %3928 = vmatpush.bf16.msra.mxu0 %v3633
    %3929 = vmatpush.bf16.msra.mxu0 %v3625
    %3930 = vmatpush.bf16.msra.mxu0 %v3617
    %3931 = vmatmul.bf16.gmra.mxu0 %v3101
    %v3932 = vpop.f32.mrf.mxu0
    %v3933 = vadd.f32 0.0, %v3932
    %v3934 = vpop.f32.mrf.mxu0
    %3935 = vdwg.mxu0
    %3936 = vmatpush.bf16.msra.mxu0 %v3737
    %3937 = vmatpush.bf16.msra.mxu0 %v3729
    %3938 = vmatpush.bf16.msra.mxu0 %v3721
    %3939 = vmatpush.bf16.msra.mxu0 %v3713
    %3940 = vmatpush.bf16.msra.mxu0 %v3705
    %3941 = vmatpush.bf16.msra.mxu0 %v3697
    %3942 = vmatpush.bf16.msra.mxu0 %v3689
    %3943 = vmatpush.bf16.msra.mxu0 %v3681
    %3944 = vmatmul.bf16.gmra.mxu0 %v3102
    %v3945 = vpop.f32.mrf.mxu0
    %v3946 = vadd.f32 %v3933, %v3945
    %v3947 = vpop.f32.mrf.mxu0
    %3948 = vdwg.mxu0
    %3949 = vmatpush.bf16.msra.mxu0 %v3674
    %3950 = vmatpush.bf16.msra.mxu0 %v3666
    %3951 = vmatpush.bf16.msra.mxu0 %v3658
    %3952 = vmatpush.bf16.msra.mxu0 %v3650
    %3953 = vmatpush.bf16.msra.mxu0 %v3642
    %3954 = vmatpush.bf16.msra.mxu0 %v3634
    %3955 = vmatpush.bf16.msra.mxu0 %v3626
    %3956 = vmatpush.bf16.msra.mxu0 %v3618
    %3957 = vmatmul.bf16.gmra.mxu0 %v3101
    %v3958 = vpop.f32.mrf.mxu0
    %v3959 = vadd.f32 0.0, %v3958
    %v3960 = vpop.f32.mrf.mxu0
    %3961 = vdwg.mxu0
    %3962 = vmatpush.bf16.msra.mxu0 %v3738
    %3963 = vmatpush.bf16.msra.mxu0 %v3730
    %3964 = vmatpush.bf16.msra.mxu0 %v3722
    %3965 = vmatpush.bf16.msra.mxu0 %v3714
    %3966 = vmatpush.bf16.msra.mxu0 %v3706
    %3967 = vmatpush.bf16.msra.mxu0 %v3698
    %3968 = vmatpush.bf16.msra.mxu0 %v3690
    %3969 = vmatpush.bf16.msra.mxu0 %v3682
    %3970 = vmatmul.bf16.gmra.mxu0 %v3102
    %v3971 = vpop.f32.mrf.mxu0
    %v3972 = vadd.f32 %v3959, %v3971
    %v3973 = vpop.f32.mrf.mxu0
    %3974 = vdwg.mxu0
    %3975 = vmatpush.bf16.msra.mxu0 %v3675
    %3976 = vmatpush.bf16.msra.mxu0 %v3667
    %3977 = vmatpush.bf16.msra.mxu0 %v3659
    %3978 = vmatpush.bf16.msra.mxu0 %v3651
    %3979 = vmatpush.bf16.msra.mxu0 %v3643
    %3980 = vmatpush.bf16.msra.mxu0 %v3635
    %3981 = vmatpush.bf16.msra.mxu0 %v3627
    %3982 = vmatpush.bf16.msra.mxu0 %v3619
    %3983 = vmatmul.bf16.gmra.mxu0 %v3101
    %v3984 = vpop.f32.mrf.mxu0
    %v3985 = vadd.f32 0.0, %v3984
    %v3986 = vpop.f32.mrf.mxu0
    %3987 = vdwg.mxu0
    %3988 = vmatpush.bf16.msra.mxu0 %v3739
    %3989 = vmatpush.bf16.msra.mxu0 %v3731
    %3990 = vmatpush.bf16.msra.mxu0 %v3723
    %3991 = vmatpush.bf16.msra.mxu0 %v3715
    %3992 = vmatpush.bf16.msra.mxu0 %v3707
    %3993 = vmatpush.bf16.msra.mxu0 %v3699
    %3994 = vmatpush.bf16.msra.mxu0 %v3691
    %3995 = vmatpush.bf16.msra.mxu0 %v3683
    %3996 = vmatmul.bf16.gmra.mxu0 %v3102
    %v3997 = vpop.f32.mrf.mxu0
    %v3998 = vadd.f32 %v3985, %v3997
    %v3999 = vpop.f32.mrf.mxu0
    %4000 = vdwg.mxu0
    %4001 = vmatpush.bf16.msra.mxu0 %v3676
    %4002 = vmatpush.bf16.msra.mxu0 %v3668
    %4003 = vmatpush.bf16.msra.mxu0 %v3660
    %4004 = vmatpush.bf16.msra.mxu0 %v3652
    %4005 = vmatpush.bf16.msra.mxu0 %v3644
    %4006 = vmatpush.bf16.msra.mxu0 %v3636
    %4007 = vmatpush.bf16.msra.mxu0 %v3628
    %4008 = vmatpush.bf16.msra.mxu0 %v3620
    %4009 = vmatmul.bf16.gmra.mxu0 %v3101
    %v4010 = vpop.f32.mrf.mxu0
    %v4011 = vadd.f32 0.0, %v4010
    %v4012 = vpop.f32.mrf.mxu0
    %4013 = vdwg.mxu0
    %4014 = vmatpush.bf16.msra.mxu0 %v3740
    %4015 = vmatpush.bf16.msra.mxu0 %v3732
    %4016 = vmatpush.bf16.msra.mxu0 %v3724
    %4017 = vmatpush.bf16.msra.mxu0 %v3716
    %4018 = vmatpush.bf16.msra.mxu0 %v3708
    %4019 = vmatpush.bf16.msra.mxu0 %v3700
    %4020 = vmatpush.bf16.msra.mxu0 %v3692
    %4021 = vmatpush.bf16.msra.mxu0 %v3684
    %4022 = vmatmul.bf16.gmra.mxu0 %v3102
    %v4023 = vpop.f32.mrf.mxu0
    %v4024 = vadd.f32 %v4011, %v4023
    %v4025 = vpop.f32.mrf.mxu0
    %4026 = vdwg.mxu0
    %4027 = vmatpush.bf16.msra.mxu0 %v3677
    %4028 = vmatpush.bf16.msra.mxu0 %v3669
    %4029 = vmatpush.bf16.msra.mxu0 %v3661
    %4030 = vmatpush.bf16.msra.mxu0 %v3653
    %4031 = vmatpush.bf16.msra.mxu0 %v3645
    %4032 = vmatpush.bf16.msra.mxu0 %v3637
    %4033 = vmatpush.bf16.msra.mxu0 %v3629
    %4034 = vmatpush.bf16.msra.mxu0 %v3621
    %4035 = vmatmul.bf16.gmra.mxu0 %v3101
    %v4036 = vpop.f32.mrf.mxu0
    %v4037 = vadd.f32 0.0, %v4036
    %v4038 = vpop.f32.mrf.mxu0
    %4039 = vdwg.mxu0
    %4040 = vmatpush.bf16.msra.mxu0 %v3741
    %4041 = vmatpush.bf16.msra.mxu0 %v3733
    %4042 = vmatpush.bf16.msra.mxu0 %v3725
    %4043 = vmatpush.bf16.msra.mxu0 %v3717
    %4044 = vmatpush.bf16.msra.mxu0 %v3709
    %4045 = vmatpush.bf16.msra.mxu0 %v3701
    %4046 = vmatpush.bf16.msra.mxu0 %v3693
    %4047 = vmatpush.bf16.msra.mxu0 %v3685
    %4048 = vmatmul.bf16.gmra.mxu0 %v3102
    %v4049 = vpop.f32.mrf.mxu0
    %v4050 = vadd.f32 %v4037, %v4049
    %v4051 = vpop.f32.mrf.mxu0
    %4052 = vdwg.mxu0
    %4053 = vmatpush.bf16.msra.mxu0 %v3678
    %4054 = vmatpush.bf16.msra.mxu0 %v3670
    %4055 = vmatpush.bf16.msra.mxu0 %v3662
    %4056 = vmatpush.bf16.msra.mxu0 %v3654
    %4057 = vmatpush.bf16.msra.mxu0 %v3646
    %4058 = vmatpush.bf16.msra.mxu0 %v3638
    %4059 = vmatpush.bf16.msra.mxu0 %v3630
    %4060 = vmatpush.bf16.msra.mxu0 %v3622
    %4061 = vmatmul.bf16.gmra.mxu0 %v3101
    %v4062 = vpop.f32.mrf.mxu0
    %v4063 = vadd.f32 0.0, %v4062
    %v4064 = vpop.f32.mrf.mxu0
    %4065 = vdwg.mxu0
    %4066 = vmatpush.bf16.msra.mxu0 %v3742
    %4067 = vmatpush.bf16.msra.mxu0 %v3734
    %4068 = vmatpush.bf16.msra.mxu0 %v3726
    %4069 = vmatpush.bf16.msra.mxu0 %v3718
    %4070 = vmatpush.bf16.msra.mxu0 %v3710
    %4071 = vmatpush.bf16.msra.mxu0 %v3702
    %4072 = vmatpush.bf16.msra.mxu0 %v3694
    %4073 = vmatpush.bf16.msra.mxu0 %v3686
    %4074 = vmatmul.bf16.gmra.mxu0 %v3102
    %v4075 = vpop.f32.mrf.mxu0
    %v4076 = vadd.f32 %v4063, %v4075
    %v4077 = vpop.f32.mrf.mxu0
    %4078 = vdwg.mxu0
    %s4079 = scalar_lea.vmem [#allocation2], 128
    %v4080 = vld [vmem:[%s4079] sm:$0xff]
    %v4081 = vld [vmem:[%s4079 + $0x8] sm:$0xff]
    %v4082 = vld [vmem:[%s4079 + $0x10] sm:$0xff]
    %v4083 = vld [vmem:[%s4079 + $0x18] sm:$0xff]
    %v4084 = vadd.f32 %v4080, %v3894
    %v4085 = vadd.f32 %v4081, %v3920
    %v4086 = vadd.f32 %v4082, %v3946
    %v4087 = vadd.f32 %v4083, %v3972
    %s4088 = scalar_lea.vmem [#allocation2], 320
    %v4089 = vld [vmem:[%s4088 + $0x20] sm:$0xff]
    %v4090 = vld [vmem:[%s4088 + $0x28] sm:$0xff]
    %v4091 = vld [vmem:[%s4088 + $0x30] sm:$0xff]
    %v4092 = vld [vmem:[%s4088 + $0x38] sm:$0xff]
    %v4093 = vadd.f32 %v4089, %v3998
    %v4094 = vadd.f32 %v4090, %v4024
    %v4095 = vadd.f32 %v4091, %v4050
    %v4096 = vadd.f32 %v4092, %v4076
    %v4097 = vxor.u32 %v4084, 2147483648
    %v4098 = vmul.f32 %v4097, 1.442695
    %v4099 = vpow.pop %v4098
    %v4100 = vadd.f32 %v4099, 1.0
    %v4101 = vrcp.pop %v4100
    %v4102 = vmul.f32 %v4100, %v4101
    %v4103 = vsub.f32 1.0, %v4102
    %v4104 = vmul.f32 %v4101, %v4103
    %v4105 = vadd.f32 %v4101, %v4104
    %vm4106 = vweird.f32 %v4100
    %vm4107 = vweird.f32 %v4101
    %vm4108 = vmor %vm4106, %vm4107
    %v4109 = vsel %vm4108, %v4101, %v4105
    %v4110 = vand.u32 2147483647, %v4100
    %vm4111 = vcmp.eq.f32.partialorder %v4110, 8.507059e+37
    %v4112 = vand.u32 %v4100, 2147483648
    %v4113 = vor.u32 1.1754944e-38, %v4112
    %v4114 = vsel %vm4111, %v4113, %v4109
    %v4115 = vmul.f32 1.0, %v4114
    %v4116 = vxor.u32 %v4085, 2147483648
    %v4117 = vmul.f32 %v4116, 1.442695
    %v4118 = vpow.pop %v4117
    %v4119 = vadd.f32 %v4118, 1.0
    %v4120 = vrcp.pop %v4119
    %v4121 = vmul.f32 %v4119, %v4120
    %v4122 = vsub.f32 1.0, %v4121
    %v4123 = vmul.f32 %v4120, %v4122
    %v4124 = vadd.f32 %v4120, %v4123
    %vm4125 = vweird.f32 %v4119
    %vm4126 = vweird.f32 %v4120
    %vm4127 = vmor %vm4125, %vm4126
    %v4128 = vsel %vm4127, %v4120, %v4124
    %v4129 = vand.u32 2147483647, %v4119
    %vm4130 = vcmp.eq.f32.partialorder %v4129, 8.507059e+37
    %v4131 = vand.u32 %v4119, 2147483648
    %v4132 = vor.u32 1.1754944e-38, %v4131
    %v4133 = vsel %vm4130, %v4132, %v4128
    %v4134 = vmul.f32 1.0, %v4133
    %v4135 = vtanh.pop %v4086
    %v4136 = vxor.u32 %v4087, 2147483648
    %v4137 = vmul.f32 %v4136, 1.442695
    %v4138 = vpow.pop %v4137
    %v4139 = vadd.f32 %v4138, 1.0
    %v4140 = vrcp.pop %v4139
    %v4141 = vmul.f32 %v4139, %v4140
    %v4142 = vsub.f32 1.0, %v4141
    %v4143 = vmul.f32 %v4140, %v4142
    %v4144 = vadd.f32 %v4140, %v4143
    %vm4145 = vweird.f32 %v4139
    %vm4146 = vweird.f32 %v4140
    %vm4147 = vmor %vm4145, %vm4146
    %v4148 = vsel %vm4147, %v4140, %v4144
    %v4149 = vand.u32 2147483647, %v4139
    %vm4150 = vcmp.eq.f32.partialorder %v4149, 8.507059e+37
    %v4151 = vand.u32 %v4139, 2147483648
    %v4152 = vor.u32 1.1754944e-38, %v4151
    %v4153 = vsel %vm4150, %v4152, %v4148
    %v4154 = vmul.f32 1.0, %v4153
    %v4155 = vmul.f32 %v4134, %v3099
    %v4156 = vmul.f32 %v4115, %v4135
    %v4157 = vadd.f32 %v4155, %v4156
    %v4158 = vtanh.pop %v4157
    %v4159 = vmul.f32 %v4154, %v4158
    %v4160 = vxor.u32 %v4093, 2147483648
    %v4161 = vmul.f32 %v4160, 1.442695
    %v4162 = vpow.pop %v4161
    %v4163 = vadd.f32 %v4162, 1.0
    %v4164 = vrcp.pop %v4163
    %v4165 = vmul.f32 %v4163, %v4164
    %v4166 = vsub.f32 1.0, %v4165
    %v4167 = vmul.f32 %v4164, %v4166
    %v4168 = vadd.f32 %v4164, %v4167
    %vm4169 = vweird.f32 %v4163
    %vm4170 = vweird.f32 %v4164
    %vm4171 = vmor %vm4169, %vm4170
    %v4172 = vsel %vm4171, %v4164, %v4168
    %v4173 = vand.u32 2147483647, %v4163
    %vm4174 = vcmp.eq.f32.partialorder %v4173, 8.507059e+37
    %v4175 = vand.u32 %v4163, 2147483648
    %v4176 = vor.u32 1.1754944e-38, %v4175
    %v4177 = vsel %vm4174, %v4176, %v4172
    %v4178 = vmul.f32 1.0, %v4177
    %v4179 = vxor.u32 %v4094, 2147483648
    %v4180 = vmul.f32 %v4179, 1.442695
    %v4181 = vpow.pop %v4180
    %v4182 = vadd.f32 %v4181, 1.0
    %v4183 = vrcp.pop %v4182
    %v4184 = vmul.f32 %v4182, %v4183
    %v4185 = vsub.f32 1.0, %v4184
    %v4186 = vmul.f32 %v4183, %v4185
    %v4187 = vadd.f32 %v4183, %v4186
    %vm4188 = vweird.f32 %v4182
    %vm4189 = vweird.f32 %v4183
    %vm4190 = vmor %vm4188, %vm4189
    %v4191 = vsel %vm4190, %v4183, %v4187
    %v4192 = vand.u32 2147483647, %v4182
    %vm4193 = vcmp.eq.f32.partialorder %v4192, 8.507059e+37
    %v4194 = vand.u32 %v4182, 2147483648
    %v4195 = vor.u32 1.1754944e-38, %v4194
    %v4196 = vsel %vm4193, %v4195, %v4191
    %v4197 = vmul.f32 1.0, %v4196
    %v4198 = vtanh.pop %v4095
    %v4199 = vxor.u32 %v4096, 2147483648
    %v4200 = vmul.f32 %v4199, 1.442695
    %v4201 = vpow.pop %v4200
    %v4202 = vadd.f32 %v4201, 1.0
    %v4203 = vrcp.pop %v4202
    %v4204 = vmul.f32 %v4202, %v4203
    %v4205 = vsub.f32 1.0, %v4204
    %v4206 = vmul.f32 %v4203, %v4205
    %v4207 = vadd.f32 %v4203, %v4206
    %vm4208 = vweird.f32 %v4202
    %vm4209 = vweird.f32 %v4203
    %vm4210 = vmor %vm4208, %vm4209
    %v4211 = vsel %vm4210, %v4203, %v4207
    %v4212 = vand.u32 2147483647, %v4202
    %vm4213 = vcmp.eq.f32.partialorder %v4212, 8.507059e+37
    %v4214 = vand.u32 %v4202, 2147483648
    %v4215 = vor.u32 1.1754944e-38, %v4214
    %v4216 = vsel %vm4213, %v4215, %v4211
    %v4217 = vmul.f32 1.0, %v4216
    %v4218 = vmul.f32 %v4197, %v3100
    %v4219 = vmul.f32 %v4178, %v4198
    %v4220 = vadd.f32 %v4218, %v4219
    %v4221 = vtanh.pop %v4220
    %v4222 = vmul.f32 %v4217, %v4221
    %s4223 = scalar_lea.vmem %s1, 16
    %v4224 = vld [vmem:[%s4223] sm:$0xff]
    %vm4225 = vcmp.gt.f32.partialorder %v4224, 0.0
    %s4226 = scalar_lea.vmem %s1, 40
    %v4227 = vld [vmem:[%s4226] sm:$0xff]
    %vm4228 = vcmp.gt.f32.partialorder %v4227, 0.0
    %v4229 = vsel %vm4225, %v4159, 0.0
    %s4230 = scalar_lea.vmem [#allocation3], 16
    %4231 = vst [vmem:[%s4230] sm:$0xff] %v4229
    %v4232 = vsel %vm4228, %v4222, 0.0
    %s4233 = scalar_lea.vmem [#allocation4], 40
    %4234 = vst [vmem:[%s4233] sm:$0xff] %v4232
    %v4235 = vsel %vm4225, %v4159, %v3097
    %v4236 = vsel %vm4228, %v4222, %v3098
    %v4237 = vsel %vm4225, %v4157, %v3099
    %v4238 = vsel %vm4228, %v4220, %v3100
    %v4239 = vpack.c.bf16 %v4235, %v4235
    %v4240 = vpack.c.bf16 %v4236, %v4236
    %v4241 = vld [vmem:[#allocation7] sm:$0xff]
    %v4242 = vld [vmem:[#allocation7 + $0x8] sm:$0xff]
    %v4243 = vld [vmem:[#allocation7 + $0x10] sm:$0xff]
    %v4244 = vld [vmem:[#allocation7 + $0x18] sm:$0xff]
    %v4245 = vld [vmem:[#allocation7 + $0x20] sm:$0xff]
    %v4246 = vld [vmem:[#allocation7 + $0x28] sm:$0xff]
    %v4247 = vld [vmem:[#allocation7 + $0x30] sm:$0xff]
    %v4248 = vld [vmem:[#allocation7 + $0x38] sm:$0xff]
    %v4249 = vld [vmem:[#allocation7 + $0x40] sm:$0xff]
    %v4250 = vld [vmem:[#allocation7 + $0x48] sm:$0xff]
    %v4251 = vld [vmem:[#allocation7 + $0x50] sm:$0xff]
    %v4252 = vld [vmem:[#allocation7 + $0x58] sm:$0xff]
    %v4253 = vld [vmem:[#allocation7 + $0x60] sm:$0xff]
    %v4254 = vld [vmem:[#allocation7 + $0x68] sm:$0xff]
    %v4255 = vld [vmem:[#allocation7 + $0x70] sm:$0xff]
    %v4256 = vld [vmem:[#allocation7 + $0x78] sm:$0xff]
    %v4257 = vld [vmem:[#allocation7 + $0x80] sm:$0xff]
    %v4258 = vld [vmem:[#allocation7 + $0x88] sm:$0xff]
    %v4259 = vld [vmem:[#allocation7 + $0x90] sm:$0xff]
    %v4260 = vld [vmem:[#allocation7 + $0x98] sm:$0xff]
    %v4261 = vld [vmem:[#allocation7 + $0xa0] sm:$0xff]
    %v4262 = vld [vmem:[#allocation7 + $0xa8] sm:$0xff]
    %v4263 = vld [vmem:[#allocation7 + $0xb0] sm:$0xff]
    %v4264 = vld [vmem:[#allocation7 + $0xb8] sm:$0xff]
    %v4265 = vld [vmem:[#allocation7 + $0xc0] sm:$0xff]
    %v4266 = vld [vmem:[#allocation7 + $0xc8] sm:$0xff]
    %v4267 = vld [vmem:[#allocation7 + $0xd0] sm:$0xff]
    %v4268 = vld [vmem:[#allocation7 + $0xd8] sm:$0xff]
    %v4269 = vld [vmem:[#allocation7 + $0xe0] sm:$0xff]
    %v4270 = vld [vmem:[#allocation7 + $0xe8] sm:$0xff]
    %v4271 = vld [vmem:[#allocation7 + $0xf0] sm:$0xff]
    %v4272 = vld [vmem:[#allocation7 + $0xf8] sm:$0xff]
    %v4273 = vld [vmem:[#allocation7 + $0x100] sm:$0xff]
    %v4274 = vld [vmem:[#allocation7 + $0x108] sm:$0xff]
    %v4275 = vld [vmem:[#allocation7 + $0x110] sm:$0xff]
    %v4276 = vld [vmem:[#allocation7 + $0x118] sm:$0xff]
    %v4277 = vld [vmem:[#allocation7 + $0x120] sm:$0xff]
    %v4278 = vld [vmem:[#allocation7 + $0x128] sm:$0xff]
    %v4279 = vld [vmem:[#allocation7 + $0x130] sm:$0xff]
    %v4280 = vld [vmem:[#allocation7 + $0x138] sm:$0xff]
    %v4281 = vld [vmem:[#allocation7 + $0x140] sm:$0xff]
    %v4282 = vld [vmem:[#allocation7 + $0x148] sm:$0xff]
    %v4283 = vld [vmem:[#allocation7 + $0x150] sm:$0xff]
    %v4284 = vld [vmem:[#allocation7 + $0x158] sm:$0xff]
    %v4285 = vld [vmem:[#allocation7 + $0x160] sm:$0xff]
    %v4286 = vld [vmem:[#allocation7 + $0x168] sm:$0xff]
    %v4287 = vld [vmem:[#allocation7 + $0x170] sm:$0xff]
    %v4288 = vld [vmem:[#allocation7 + $0x178] sm:$0xff]
    %v4289 = vld [vmem:[#allocation7 + $0x180] sm:$0xff]
    %v4290 = vld [vmem:[#allocation7 + $0x188] sm:$0xff]
    %v4291 = vld [vmem:[#allocation7 + $0x190] sm:$0xff]
    %v4292 = vld [vmem:[#allocation7 + $0x198] sm:$0xff]
    %v4293 = vld [vmem:[#allocation7 + $0x1a0] sm:$0xff]
    %v4294 = vld [vmem:[#allocation7 + $0x1a8] sm:$0xff]
    %v4295 = vld [vmem:[#allocation7 + $0x1b0] sm:$0xff]
    %v4296 = vld [vmem:[#allocation7 + $0x1b8] sm:$0xff]
    %v4297 = vld [vmem:[#allocation7 + $0x1c0] sm:$0xff]
    %v4298 = vld [vmem:[#allocation7 + $0x1c8] sm:$0xff]
    %v4299 = vld [vmem:[#allocation7 + $0x1d0] sm:$0xff]
    %v4300 = vld [vmem:[#allocation7 + $0x1d8] sm:$0xff]
    %v4301 = vld [vmem:[#allocation7 + $0x1e0] sm:$0xff]
    %v4302 = vld [vmem:[#allocation7 + $0x1e8] sm:$0xff]
    %v4303 = vld [vmem:[#allocation7 + $0x1f0] sm:$0xff]
    %v4304 = vld [vmem:[#allocation7 + $0x1f8] sm:$0xff]
    %v4305 = vld [vmem:[#allocation7 + $0x200] sm:$0xff]
    %v4306 = vld [vmem:[#allocation7 + $0x208] sm:$0xff]
    %v4307 = vld [vmem:[#allocation7 + $0x210] sm:$0xff]
    %v4308 = vld [vmem:[#allocation7 + $0x218] sm:$0xff]
    %v4309 = vld [vmem:[#allocation7 + $0x220] sm:$0xff]
    %v4310 = vld [vmem:[#allocation7 + $0x228] sm:$0xff]
    %v4311 = vld [vmem:[#allocation7 + $0x230] sm:$0xff]
    %v4312 = vld [vmem:[#allocation7 + $0x238] sm:$0xff]
    %v4313 = vld [vmem:[#allocation7 + $0x240] sm:$0xff]
    %v4314 = vld [vmem:[#allocation7 + $0x248] sm:$0xff]
    %v4315 = vld [vmem:[#allocation7 + $0x250] sm:$0xff]
    %v4316 = vld [vmem:[#allocation7 + $0x258] sm:$0xff]
    %v4317 = vld [vmem:[#allocation7 + $0x260] sm:$0xff]
    %v4318 = vld [vmem:[#allocation7 + $0x268] sm:$0xff]
    %v4319 = vld [vmem:[#allocation7 + $0x270] sm:$0xff]
    %v4320 = vld [vmem:[#allocation7 + $0x278] sm:$0xff]
    %v4321 = vld [vmem:[#allocation7 + $0x280] sm:$0xff]
    %v4322 = vld [vmem:[#allocation7 + $0x288] sm:$0xff]
    %v4323 = vld [vmem:[#allocation7 + $0x290] sm:$0xff]
    %v4324 = vld [vmem:[#allocation7 + $0x298] sm:$0xff]
    %v4325 = vld [vmem:[#allocation7 + $0x2a0] sm:$0xff]
    %v4326 = vld [vmem:[#allocation7 + $0x2a8] sm:$0xff]
    %v4327 = vld [vmem:[#allocation7 + $0x2b0] sm:$0xff]
    %v4328 = vld [vmem:[#allocation7 + $0x2b8] sm:$0xff]
    %v4329 = vld [vmem:[#allocation7 + $0x2c0] sm:$0xff]
    %v4330 = vld [vmem:[#allocation7 + $0x2c8] sm:$0xff]
    %v4331 = vld [vmem:[#allocation7 + $0x2d0] sm:$0xff]
    %v4332 = vld [vmem:[#allocation7 + $0x2d8] sm:$0xff]
    %v4333 = vld [vmem:[#allocation7 + $0x2e0] sm:$0xff]
    %v4334 = vld [vmem:[#allocation7 + $0x2e8] sm:$0xff]
    %v4335 = vld [vmem:[#allocation7 + $0x2f0] sm:$0xff]
    %v4336 = vld [vmem:[#allocation7 + $0x2f8] sm:$0xff]
    %v4337 = vld [vmem:[#allocation7 + $0x300] sm:$0xff]
    %v4338 = vld [vmem:[#allocation7 + $0x308] sm:$0xff]
    %v4339 = vld [vmem:[#allocation7 + $0x310] sm:$0xff]
    %v4340 = vld [vmem:[#allocation7 + $0x318] sm:$0xff]
    %v4341 = vld [vmem:[#allocation7 + $0x320] sm:$0xff]
    %v4342 = vld [vmem:[#allocation7 + $0x328] sm:$0xff]
    %v4343 = vld [vmem:[#allocation7 + $0x330] sm:$0xff]
    %v4344 = vld [vmem:[#allocation7 + $0x338] sm:$0xff]
    %v4345 = vld [vmem:[#allocation7 + $0x340] sm:$0xff]
    %v4346 = vld [vmem:[#allocation7 + $0x348] sm:$0xff]
    %v4347 = vld [vmem:[#allocation7 + $0x350] sm:$0xff]
    %v4348 = vld [vmem:[#allocation7 + $0x358] sm:$0xff]
    %v4349 = vld [vmem:[#allocation7 + $0x360] sm:$0xff]
    %v4350 = vld [vmem:[#allocation7 + $0x368] sm:$0xff]
    %v4351 = vld [vmem:[#allocation7 + $0x370] sm:$0xff]
    %v4352 = vld [vmem:[#allocation7 + $0x378] sm:$0xff]
    %v4353 = vld [vmem:[#allocation7 + $0x380] sm:$0xff]
    %v4354 = vld [vmem:[#allocation7 + $0x388] sm:$0xff]
    %v4355 = vld [vmem:[#allocation7 + $0x390] sm:$0xff]
    %v4356 = vld [vmem:[#allocation7 + $0x398] sm:$0xff]
    %v4357 = vld [vmem:[#allocation7 + $0x3a0] sm:$0xff]
    %v4358 = vld [vmem:[#allocation7 + $0x3a8] sm:$0xff]
    %v4359 = vld [vmem:[#allocation7 + $0x3b0] sm:$0xff]
    %v4360 = vld [vmem:[#allocation7 + $0x3b8] sm:$0xff]
    %v4361 = vld [vmem:[#allocation7 + $0x3c0] sm:$0xff]
    %v4362 = vld [vmem:[#allocation7 + $0x3c8] sm:$0xff]
    %v4363 = vld [vmem:[#allocation7 + $0x3d0] sm:$0xff]
    %v4364 = vld [vmem:[#allocation7 + $0x3d8] sm:$0xff]
    %v4365 = vld [vmem:[#allocation7 + $0x3e0] sm:$0xff]
    %v4366 = vld [vmem:[#allocation7 + $0x3e8] sm:$0xff]
    %v4367 = vld [vmem:[#allocation7 + $0x3f0] sm:$0xff]
    %v4368 = vld [vmem:[#allocation7 + $0x3f8] sm:$0xff]
    %v4497 = vunpack.c.l.b16 %v4241
    %v4498 = vunpack.c.h.b16 %v4241
    %v4499 = vunpack.c.l.b16 %v4242
    %v4500 = vunpack.c.h.b16 %v4242
    %v4501 = vunpack.c.l.b16 %v4243
    %v4502 = vunpack.c.h.b16 %v4243
    %v4503 = vunpack.c.l.b16 %v4244
    %v4504 = vunpack.c.h.b16 %v4244
    %v4505 = vunpack.c.l.b16 %v4245
    %v4506 = vunpack.c.h.b16 %v4245
    %v4507 = vunpack.c.l.b16 %v4246
    %v4508 = vunpack.c.h.b16 %v4246
    %v4509 = vunpack.c.l.b16 %v4247
    %v4510 = vunpack.c.h.b16 %v4247
    %v4511 = vunpack.c.l.b16 %v4248
    %v4512 = vunpack.c.h.b16 %v4248
    %v4513 = vunpack.c.l.b16 %v4249
    %v4514 = vunpack.c.h.b16 %v4249
    %v4515 = vunpack.c.l.b16 %v4250
    %v4516 = vunpack.c.h.b16 %v4250
    %v4517 = vunpack.c.l.b16 %v4251
    %v4518 = vunpack.c.h.b16 %v4251
    %v4519 = vunpack.c.l.b16 %v4252
    %v4520 = vunpack.c.h.b16 %v4252
    %v4521 = vunpack.c.l.b16 %v4253
    %v4522 = vunpack.c.h.b16 %v4253
    %v4523 = vunpack.c.l.b16 %v4254
    %v4524 = vunpack.c.h.b16 %v4254
    %v4525 = vunpack.c.l.b16 %v4255
    %v4526 = vunpack.c.h.b16 %v4255
    %v4527 = vunpack.c.l.b16 %v4256
    %v4528 = vunpack.c.h.b16 %v4256
    %v4529 = vunpack.c.l.b16 %v4257
    %v4530 = vunpack.c.h.b16 %v4257
    %v4531 = vunpack.c.l.b16 %v4258
    %v4532 = vunpack.c.h.b16 %v4258
    %v4533 = vunpack.c.l.b16 %v4259
    %v4534 = vunpack.c.h.b16 %v4259
    %v4535 = vunpack.c.l.b16 %v4260
    %v4536 = vunpack.c.h.b16 %v4260
    %v4537 = vunpack.c.l.b16 %v4261
    %v4538 = vunpack.c.h.b16 %v4261
    %v4539 = vunpack.c.l.b16 %v4262
    %v4540 = vunpack.c.h.b16 %v4262
    %v4541 = vunpack.c.l.b16 %v4263
    %v4542 = vunpack.c.h.b16 %v4263
    %v4543 = vunpack.c.l.b16 %v4264
    %v4544 = vunpack.c.h.b16 %v4264
    %v4545 = vunpack.c.l.b16 %v4265
    %v4546 = vunpack.c.h.b16 %v4265
    %v4547 = vunpack.c.l.b16 %v4266
    %v4548 = vunpack.c.h.b16 %v4266
    %v4549 = vunpack.c.l.b16 %v4267
    %v4550 = vunpack.c.h.b16 %v4267
    %v4551 = vunpack.c.l.b16 %v4268
    %v4552 = vunpack.c.h.b16 %v4268
    %v4553 = vunpack.c.l.b16 %v4269
    %v4554 = vunpack.c.h.b16 %v4269
    %v4555 = vunpack.c.l.b16 %v4270
    %v4556 = vunpack.c.h.b16 %v4270
    %v4557 = vunpack.c.l.b16 %v4271
    %v4558 = vunpack.c.h.b16 %v4271
    %v4559 = vunpack.c.l.b16 %v4272
    %v4560 = vunpack.c.h.b16 %v4272
    %v4561 = vunpack.c.l.b16 %v4273
    %v4562 = vunpack.c.h.b16 %v4273
    %v4563 = vunpack.c.l.b16 %v4274
    %v4564 = vunpack.c.h.b16 %v4274
    %v4565 = vunpack.c.l.b16 %v4275
    %v4566 = vunpack.c.h.b16 %v4275
    %v4567 = vunpack.c.l.b16 %v4276
    %v4568 = vunpack.c.h.b16 %v4276
    %v4569 = vunpack.c.l.b16 %v4277
    %v4570 = vunpack.c.h.b16 %v4277
    %v4571 = vunpack.c.l.b16 %v4278
    %v4572 = vunpack.c.h.b16 %v4278
    %v4573 = vunpack.c.l.b16 %v4279
    %v4574 = vunpack.c.h.b16 %v4279
    %v4575 = vunpack.c.l.b16 %v4280
    %v4576 = vunpack.c.h.b16 %v4280
    %v4577 = vunpack.c.l.b16 %v4281
    %v4578 = vunpack.c.h.b16 %v4281
    %v4579 = vunpack.c.l.b16 %v4282
    %v4580 = vunpack.c.h.b16 %v4282
    %v4581 = vunpack.c.l.b16 %v4283
    %v4582 = vunpack.c.h.b16 %v4283
    %v4583 = vunpack.c.l.b16 %v4284
    %v4584 = vunpack.c.h.b16 %v4284
    %v4585 = vunpack.c.l.b16 %v4285
    %v4586 = vunpack.c.h.b16 %v4285
    %v4587 = vunpack.c.l.b16 %v4286
    %v4588 = vunpack.c.h.b16 %v4286
    %v4589 = vunpack.c.l.b16 %v4287
    %v4590 = vunpack.c.h.b16 %v4287
    %v4591 = vunpack.c.l.b16 %v4288
    %v4592 = vunpack.c.h.b16 %v4288
    %v4593 = vunpack.c.l.b16 %v4289
    %v4594 = vunpack.c.h.b16 %v4289
    %v4595 = vunpack.c.l.b16 %v4290
    %v4596 = vunpack.c.h.b16 %v4290
    %v4597 = vunpack.c.l.b16 %v4291
    %v4598 = vunpack.c.h.b16 %v4291
    %v4599 = vunpack.c.l.b16 %v4292
    %v4600 = vunpack.c.h.b16 %v4292
    %v4601 = vunpack.c.l.b16 %v4293
    %v4602 = vunpack.c.h.b16 %v4293
    %v4603 = vunpack.c.l.b16 %v4294
    %v4604 = vunpack.c.h.b16 %v4294
    %v4605 = vunpack.c.l.b16 %v4295
    %v4606 = vunpack.c.h.b16 %v4295
    %v4607 = vunpack.c.l.b16 %v4296
    %v4608 = vunpack.c.h.b16 %v4296
    %v4609 = vunpack.c.l.b16 %v4297
    %v4610 = vunpack.c.h.b16 %v4297
    %v4611 = vunpack.c.l.b16 %v4298
    %v4612 = vunpack.c.h.b16 %v4298
    %v4613 = vunpack.c.l.b16 %v4299
    %v4614 = vunpack.c.h.b16 %v4299
    %v4615 = vunpack.c.l.b16 %v4300
    %v4616 = vunpack.c.h.b16 %v4300
    %v4617 = vunpack.c.l.b16 %v4301
    %v4618 = vunpack.c.h.b16 %v4301
    %v4619 = vunpack.c.l.b16 %v4302
    %v4620 = vunpack.c.h.b16 %v4302
    %v4621 = vunpack.c.l.b16 %v4303
    %v4622 = vunpack.c.h.b16 %v4303
    %v4623 = vunpack.c.l.b16 %v4304
    %v4624 = vunpack.c.h.b16 %v4304
    %v4625 = vunpack.c.l.b16 %v4305
    %v4626 = vunpack.c.h.b16 %v4305
    %v4627 = vunpack.c.l.b16 %v4306
    %v4628 = vunpack.c.h.b16 %v4306
    %v4629 = vunpack.c.l.b16 %v4307
    %v4630 = vunpack.c.h.b16 %v4307
    %v4631 = vunpack.c.l.b16 %v4308
    %v4632 = vunpack.c.h.b16 %v4308
    %v4633 = vunpack.c.l.b16 %v4309
    %v4634 = vunpack.c.h.b16 %v4309
    %v4635 = vunpack.c.l.b16 %v4310
    %v4636 = vunpack.c.h.b16 %v4310
    %v4637 = vunpack.c.l.b16 %v4311
    %v4638 = vunpack.c.h.b16 %v4311
    %v4639 = vunpack.c.l.b16 %v4312
    %v4640 = vunpack.c.h.b16 %v4312
    %v4641 = vunpack.c.l.b16 %v4313
    %v4642 = vunpack.c.h.b16 %v4313
    %v4643 = vunpack.c.l.b16 %v4314
    %v4644 = vunpack.c.h.b16 %v4314
    %v4645 = vunpack.c.l.b16 %v4315
    %v4646 = vunpack.c.h.b16 %v4315
    %v4647 = vunpack.c.l.b16 %v4316
    %v4648 = vunpack.c.h.b16 %v4316
    %v4649 = vunpack.c.l.b16 %v4317
    %v4650 = vunpack.c.h.b16 %v4317
    %v4651 = vunpack.c.l.b16 %v4318
    %v4652 = vunpack.c.h.b16 %v4318
    %v4653 = vunpack.c.l.b16 %v4319
    %v4654 = vunpack.c.h.b16 %v4319
    %v4655 = vunpack.c.l.b16 %v4320
    %v4656 = vunpack.c.h.b16 %v4320
    %v4657 = vunpack.c.l.b16 %v4321
    %v4658 = vunpack.c.h.b16 %v4321
    %v4659 = vunpack.c.l.b16 %v4322
    %v4660 = vunpack.c.h.b16 %v4322
    %v4661 = vunpack.c.l.b16 %v4323
    %v4662 = vunpack.c.h.b16 %v4323
    %v4663 = vunpack.c.l.b16 %v4324
    %v4664 = vunpack.c.h.b16 %v4324
    %v4665 = vunpack.c.l.b16 %v4325
    %v4666 = vunpack.c.h.b16 %v4325
    %v4667 = vunpack.c.l.b16 %v4326
    %v4668 = vunpack.c.h.b16 %v4326
    %v4669 = vunpack.c.l.b16 %v4327
    %v4670 = vunpack.c.h.b16 %v4327
    %v4671 = vunpack.c.l.b16 %v4328
    %v4672 = vunpack.c.h.b16 %v4328
    %v4673 = vunpack.c.l.b16 %v4329
    %v4674 = vunpack.c.h.b16 %v4329
    %v4675 = vunpack.c.l.b16 %v4330
    %v4676 = vunpack.c.h.b16 %v4330
    %v4677 = vunpack.c.l.b16 %v4331
    %v4678 = vunpack.c.h.b16 %v4331
    %v4679 = vunpack.c.l.b16 %v4332
    %v4680 = vunpack.c.h.b16 %v4332
    %v4681 = vunpack.c.l.b16 %v4333
    %v4682 = vunpack.c.h.b16 %v4333
    %v4683 = vunpack.c.l.b16 %v4334
    %v4684 = vunpack.c.h.b16 %v4334
    %v4685 = vunpack.c.l.b16 %v4335
    %v4686 = vunpack.c.h.b16 %v4335
    %v4687 = vunpack.c.l.b16 %v4336
    %v4688 = vunpack.c.h.b16 %v4336
    %v4689 = vunpack.c.l.b16 %v4337
    %v4690 = vunpack.c.h.b16 %v4337
    %v4691 = vunpack.c.l.b16 %v4338
    %v4692 = vunpack.c.h.b16 %v4338
    %v4693 = vunpack.c.l.b16 %v4339
    %v4694 = vunpack.c.h.b16 %v4339
    %v4695 = vunpack.c.l.b16 %v4340
    %v4696 = vunpack.c.h.b16 %v4340
    %v4697 = vunpack.c.l.b16 %v4341
    %v4698 = vunpack.c.h.b16 %v4341
    %v4699 = vunpack.c.l.b16 %v4342
    %v4700 = vunpack.c.h.b16 %v4342
    %v4701 = vunpack.c.l.b16 %v4343
    %v4702 = vunpack.c.h.b16 %v4343
    %v4703 = vunpack.c.l.b16 %v4344
    %v4704 = vunpack.c.h.b16 %v4344
    %v4705 = vunpack.c.l.b16 %v4345
    %v4706 = vunpack.c.h.b16 %v4345
    %v4707 = vunpack.c.l.b16 %v4346
    %v4708 = vunpack.c.h.b16 %v4346
    %v4709 = vunpack.c.l.b16 %v4347
    %v4710 = vunpack.c.h.b16 %v4347
    %v4711 = vunpack.c.l.b16 %v4348
    %v4712 = vunpack.c.h.b16 %v4348
    %v4713 = vunpack.c.l.b16 %v4349
    %v4714 = vunpack.c.h.b16 %v4349
    %v4715 = vunpack.c.l.b16 %v4350
    %v4716 = vunpack.c.h.b16 %v4350
    %v4717 = vunpack.c.l.b16 %v4351
    %v4718 = vunpack.c.h.b16 %v4351
    %v4719 = vunpack.c.l.b16 %v4352
    %v4720 = vunpack.c.h.b16 %v4352
    %v4721 = vunpack.c.l.b16 %v4353
    %v4722 = vunpack.c.h.b16 %v4353
    %v4723 = vunpack.c.l.b16 %v4354
    %v4724 = vunpack.c.h.b16 %v4354
    %v4725 = vunpack.c.l.b16 %v4355
    %v4726 = vunpack.c.h.b16 %v4355
    %v4727 = vunpack.c.l.b16 %v4356
    %v4728 = vunpack.c.h.b16 %v4356
    %v4729 = vunpack.c.l.b16 %v4357
    %v4730 = vunpack.c.h.b16 %v4357
    %v4731 = vunpack.c.l.b16 %v4358
    %v4732 = vunpack.c.h.b16 %v4358
    %v4733 = vunpack.c.l.b16 %v4359
    %v4734 = vunpack.c.h.b16 %v4359
    %v4735 = vunpack.c.l.b16 %v4360
    %v4736 = vunpack.c.h.b16 %v4360
    %v4737 = vunpack.c.l.b16 %v4361
    %v4738 = vunpack.c.h.b16 %v4361
    %v4739 = vunpack.c.l.b16 %v4362
    %v4740 = vunpack.c.h.b16 %v4362
    %v4741 = vunpack.c.l.b16 %v4363
    %v4742 = vunpack.c.h.b16 %v4363
    %v4743 = vunpack.c.l.b16 %v4364
    %v4744 = vunpack.c.h.b16 %v4364
    %v4745 = vunpack.c.l.b16 %v4365
    %v4746 = vunpack.c.h.b16 %v4365
    %v4747 = vunpack.c.l.b16 %v4366
    %v4748 = vunpack.c.h.b16 %v4366
    %v4749 = vunpack.c.l.b16 %v4367
    %v4750 = vunpack.c.h.b16 %v4367
    %v4751 = vunpack.c.l.b16 %v4368
    %v4752 = vunpack.c.h.b16 %v4368
    %v4753 = vpack.c.b16 %v4505, %v4497
    %v4754 = vpack.c.b16 %v4506, %v4498
    %v4755 = vpack.c.b16 %v4507, %v4499
    %v4756 = vpack.c.b16 %v4508, %v4500
    %v4757 = vpack.c.b16 %v4509, %v4501
    %v4758 = vpack.c.b16 %v4510, %v4502
    %v4759 = vpack.c.b16 %v4511, %v4503
    %v4760 = vpack.c.b16 %v4512, %v4504
    %v4761 = vpack.c.b16 %v4521, %v4513
    %v4762 = vpack.c.b16 %v4522, %v4514
    %v4763 = vpack.c.b16 %v4523, %v4515
    %v4764 = vpack.c.b16 %v4524, %v4516
    %v4765 = vpack.c.b16 %v4525, %v4517
    %v4766 = vpack.c.b16 %v4526, %v4518
    %v4767 = vpack.c.b16 %v4527, %v4519
    %v4768 = vpack.c.b16 %v4528, %v4520
    %v4769 = vpack.c.b16 %v4537, %v4529
    %v4770 = vpack.c.b16 %v4538, %v4530
    %v4771 = vpack.c.b16 %v4539, %v4531
    %v4772 = vpack.c.b16 %v4540, %v4532
    %v4773 = vpack.c.b16 %v4541, %v4533
    %v4774 = vpack.c.b16 %v4542, %v4534
    %v4775 = vpack.c.b16 %v4543, %v4535
    %v4776 = vpack.c.b16 %v4544, %v4536
    %v4777 = vpack.c.b16 %v4553, %v4545
    %v4778 = vpack.c.b16 %v4554, %v4546
    %v4779 = vpack.c.b16 %v4555, %v4547
    %v4780 = vpack.c.b16 %v4556, %v4548
    %v4781 = vpack.c.b16 %v4557, %v4549
    %v4782 = vpack.c.b16 %v4558, %v4550
    %v4783 = vpack.c.b16 %v4559, %v4551
    %v4784 = vpack.c.b16 %v4560, %v4552
    %v4785 = vpack.c.b16 %v4569, %v4561
    %v4786 = vpack.c.b16 %v4570, %v4562
    %v4787 = vpack.c.b16 %v4571, %v4563
    %v4788 = vpack.c.b16 %v4572, %v4564
    %v4789 = vpack.c.b16 %v4573, %v4565
    %v4790 = vpack.c.b16 %v4574, %v4566
    %v4791 = vpack.c.b16 %v4575, %v4567
    %v4792 = vpack.c.b16 %v4576, %v4568
    %v4793 = vpack.c.b16 %v4585, %v4577
    %v4794 = vpack.c.b16 %v4586, %v4578
    %v4795 = vpack.c.b16 %v4587, %v4579
    %v4796 = vpack.c.b16 %v4588, %v4580
    %v4797 = vpack.c.b16 %v4589, %v4581
    %v4798 = vpack.c.b16 %v4590, %v4582
    %v4799 = vpack.c.b16 %v4591, %v4583
    %v4800 = vpack.c.b16 %v4592, %v4584
    %v4801 = vpack.c.b16 %v4601, %v4593
    %v4802 = vpack.c.b16 %v4602, %v4594
    %v4803 = vpack.c.b16 %v4603, %v4595
    %v4804 = vpack.c.b16 %v4604, %v4596
    %v4805 = vpack.c.b16 %v4605, %v4597
    %v4806 = vpack.c.b16 %v4606, %v4598
    %v4807 = vpack.c.b16 %v4607, %v4599
    %v4808 = vpack.c.b16 %v4608, %v4600
    %v4809 = vpack.c.b16 %v4617, %v4609
    %v4810 = vpack.c.b16 %v4618, %v4610
    %v4811 = vpack.c.b16 %v4619, %v4611
    %v4812 = vpack.c.b16 %v4620, %v4612
    %v4813 = vpack.c.b16 %v4621, %v4613
    %v4814 = vpack.c.b16 %v4622, %v4614
    %v4815 = vpack.c.b16 %v4623, %v4615
    %v4816 = vpack.c.b16 %v4624, %v4616
    %v4817 = vpack.c.b16 %v4633, %v4625
    %v4818 = vpack.c.b16 %v4634, %v4626
    %v4819 = vpack.c.b16 %v4635, %v4627
    %v4820 = vpack.c.b16 %v4636, %v4628
    %v4821 = vpack.c.b16 %v4637, %v4629
    %v4822 = vpack.c.b16 %v4638, %v4630
    %v4823 = vpack.c.b16 %v4639, %v4631
    %v4824 = vpack.c.b16 %v4640, %v4632
    %v4825 = vpack.c.b16 %v4649, %v4641
    %v4826 = vpack.c.b16 %v4650, %v4642
    %v4827 = vpack.c.b16 %v4651, %v4643
    %v4828 = vpack.c.b16 %v4652, %v4644
    %v4829 = vpack.c.b16 %v4653, %v4645
    %v4830 = vpack.c.b16 %v4654, %v4646
    %v4831 = vpack.c.b16 %v4655, %v4647
    %v4832 = vpack.c.b16 %v4656, %v4648
    %v4833 = vpack.c.b16 %v4665, %v4657
    %v4834 = vpack.c.b16 %v4666, %v4658
    %v4835 = vpack.c.b16 %v4667, %v4659
    %v4836 = vpack.c.b16 %v4668, %v4660
    %v4837 = vpack.c.b16 %v4669, %v4661
    %v4838 = vpack.c.b16 %v4670, %v4662
    %v4839 = vpack.c.b16 %v4671, %v4663
    %v4840 = vpack.c.b16 %v4672, %v4664
    %v4841 = vpack.c.b16 %v4681, %v4673
    %v4842 = vpack.c.b16 %v4682, %v4674
    %v4843 = vpack.c.b16 %v4683, %v4675
    %v4844 = vpack.c.b16 %v4684, %v4676
    %v4845 = vpack.c.b16 %v4685, %v4677
    %v4846 = vpack.c.b16 %v4686, %v4678
    %v4847 = vpack.c.b16 %v4687, %v4679
    %v4848 = vpack.c.b16 %v4688, %v4680
    %v4849 = vpack.c.b16 %v4697, %v4689
    %v4850 = vpack.c.b16 %v4698, %v4690
    %v4851 = vpack.c.b16 %v4699, %v4691
    %v4852 = vpack.c.b16 %v4700, %v4692
    %v4853 = vpack.c.b16 %v4701, %v4693
    %v4854 = vpack.c.b16 %v4702, %v4694
    %v4855 = vpack.c.b16 %v4703, %v4695
    %v4856 = vpack.c.b16 %v4704, %v4696
    %v4857 = vpack.c.b16 %v4713, %v4705
    %v4858 = vpack.c.b16 %v4714, %v4706
    %v4859 = vpack.c.b16 %v4715, %v4707
    %v4860 = vpack.c.b16 %v4716, %v4708
    %v4861 = vpack.c.b16 %v4717, %v4709
    %v4862 = vpack.c.b16 %v4718, %v4710
    %v4863 = vpack.c.b16 %v4719, %v4711
    %v4864 = vpack.c.b16 %v4720, %v4712
    %v4865 = vpack.c.b16 %v4729, %v4721
    %v4866 = vpack.c.b16 %v4730, %v4722
    %v4867 = vpack.c.b16 %v4731, %v4723
    %v4868 = vpack.c.b16 %v4732, %v4724
    %v4869 = vpack.c.b16 %v4733, %v4725
    %v4870 = vpack.c.b16 %v4734, %v4726
    %v4871 = vpack.c.b16 %v4735, %v4727
    %v4872 = vpack.c.b16 %v4736, %v4728
    %v4873 = vpack.c.b16 %v4745, %v4737
    %v4874 = vpack.c.b16 %v4746, %v4738
    %v4875 = vpack.c.b16 %v4747, %v4739
    %v4876 = vpack.c.b16 %v4748, %v4740
    %v4877 = vpack.c.b16 %v4749, %v4741
    %v4878 = vpack.c.b16 %v4750, %v4742
    %v4879 = vpack.c.b16 %v4751, %v4743
    %v4880 = vpack.c.b16 %v4752, %v4744
    %5009 = vmatpush.bf16.msra.mxu0 %v4809
    %5010 = vmatpush.bf16.msra.mxu0 %v4801
    %5011 = vmatpush.bf16.msra.mxu0 %v4793
    %5012 = vmatpush.bf16.msra.mxu0 %v4785
    %5013 = vmatpush.bf16.msra.mxu0 %v4777
    %5014 = vmatpush.bf16.msra.mxu0 %v4769
    %5015 = vmatpush.bf16.msra.mxu0 %v4761
    %5016 = vmatpush.bf16.msra.mxu0 %v4753
    %5017 = vmatmul.bf16.gmra.mxu0 %v4239
    %v5018 = vpop.f32.mrf.mxu0
    %v5019 = vadd.f32 0.0, %v5018
    %v5020 = vpop.f32.mrf.mxu0
    %5021 = vdwg.mxu0
    %5022 = vmatpush.bf16.msra.mxu0 %v4873
    %5023 = vmatpush.bf16.msra.mxu0 %v4865
    %5024 = vmatpush.bf16.msra.mxu0 %v4857
    %5025 = vmatpush.bf16.msra.mxu0 %v4849
    %5026 = vmatpush.bf16.msra.mxu0 %v4841
    %5027 = vmatpush.bf16.msra.mxu0 %v4833
    %5028 = vmatpush.bf16.msra.mxu0 %v4825
    %5029 = vmatpush.bf16.msra.mxu0 %v4817
    %5030 = vmatmul.bf16.gmra.mxu0 %v4240
    %v5031 = vpop.f32.mrf.mxu0
    %v5032 = vadd.f32 %v5019, %v5031
    %v5033 = vpop.f32.mrf.mxu0
    %5034 = vdwg.mxu0
    %5035 = vmatpush.bf16.msra.mxu0 %v4810
    %5036 = vmatpush.bf16.msra.mxu0 %v4802
    %5037 = vmatpush.bf16.msra.mxu0 %v4794
    %5038 = vmatpush.bf16.msra.mxu0 %v4786
    %5039 = vmatpush.bf16.msra.mxu0 %v4778
    %5040 = vmatpush.bf16.msra.mxu0 %v4770
    %5041 = vmatpush.bf16.msra.mxu0 %v4762
    %5042 = vmatpush.bf16.msra.mxu0 %v4754
    %5043 = vmatmul.bf16.gmra.mxu0 %v4239
    %v5044 = vpop.f32.mrf.mxu0
    %v5045 = vadd.f32 0.0, %v5044
    %v5046 = vpop.f32.mrf.mxu0
    %5047 = vdwg.mxu0
    %5048 = vmatpush.bf16.msra.mxu0 %v4874
    %5049 = vmatpush.bf16.msra.mxu0 %v4866
    %5050 = vmatpush.bf16.msra.mxu0 %v4858
    %5051 = vmatpush.bf16.msra.mxu0 %v4850
    %5052 = vmatpush.bf16.msra.mxu0 %v4842
    %5053 = vmatpush.bf16.msra.mxu0 %v4834
    %5054 = vmatpush.bf16.msra.mxu0 %v4826
    %5055 = vmatpush.bf16.msra.mxu0 %v4818
    %5056 = vmatmul.bf16.gmra.mxu0 %v4240
    %v5057 = vpop.f32.mrf.mxu0
    %v5058 = vadd.f32 %v5045, %v5057
    %v5059 = vpop.f32.mrf.mxu0
    %5060 = vdwg.mxu0
    %5061 = vmatpush.bf16.msra.mxu0 %v4811
    %5062 = vmatpush.bf16.msra.mxu0 %v4803
    %5063 = vmatpush.bf16.msra.mxu0 %v4795
    %5064 = vmatpush.bf16.msra.mxu0 %v4787
    %5065 = vmatpush.bf16.msra.mxu0 %v4779
    %5066 = vmatpush.bf16.msra.mxu0 %v4771
    %5067 = vmatpush.bf16.msra.mxu0 %v4763
    %5068 = vmatpush.bf16.msra.mxu0 %v4755
    %5069 = vmatmul.bf16.gmra.mxu0 %v4239
    %v5070 = vpop.f32.mrf.mxu0
    %v5071 = vadd.f32 0.0, %v5070
    %v5072 = vpop.f32.mrf.mxu0
    %5073 = vdwg.mxu0
    %5074 = vmatpush.bf16.msra.mxu0 %v4875
    %5075 = vmatpush.bf16.msra.mxu0 %v4867
    %5076 = vmatpush.bf16.msra.mxu0 %v4859
    %5077 = vmatpush.bf16.msra.mxu0 %v4851
    %5078 = vmatpush.bf16.msra.mxu0 %v4843
    %5079 = vmatpush.bf16.msra.mxu0 %v4835
    %5080 = vmatpush.bf16.msra.mxu0 %v4827
    %5081 = vmatpush.bf16.msra.mxu0 %v4819
    %5082 = vmatmul.bf16.gmra.mxu0 %v4240
    %v5083 = vpop.f32.mrf.mxu0
    %v5084 = vadd.f32 %v5071, %v5083
    %v5085 = vpop.f32.mrf.mxu0
    %5086 = vdwg.mxu0
    %5087 = vmatpush.bf16.msra.mxu0 %v4812
    %5088 = vmatpush.bf16.msra.mxu0 %v4804
    %5089 = vmatpush.bf16.msra.mxu0 %v4796
    %5090 = vmatpush.bf16.msra.mxu0 %v4788
    %5091 = vmatpush.bf16.msra.mxu0 %v4780
    %5092 = vmatpush.bf16.msra.mxu0 %v4772
    %5093 = vmatpush.bf16.msra.mxu0 %v4764
    %5094 = vmatpush.bf16.msra.mxu0 %v4756
    %5095 = vmatmul.bf16.gmra.mxu0 %v4239
    %v5096 = vpop.f32.mrf.mxu0
    %v5097 = vadd.f32 0.0, %v5096
    %v5098 = vpop.f32.mrf.mxu0
    %5099 = vdwg.mxu0
    %5100 = vmatpush.bf16.msra.mxu0 %v4876
    %5101 = vmatpush.bf16.msra.mxu0 %v4868
    %5102 = vmatpush.bf16.msra.mxu0 %v4860
    %5103 = vmatpush.bf16.msra.mxu0 %v4852
    %5104 = vmatpush.bf16.msra.mxu0 %v4844
    %5105 = vmatpush.bf16.msra.mxu0 %v4836
    %5106 = vmatpush.bf16.msra.mxu0 %v4828
    %5107 = vmatpush.bf16.msra.mxu0 %v4820
    %5108 = vmatmul.bf16.gmra.mxu0 %v4240
    %v5109 = vpop.f32.mrf.mxu0
    %v5110 = vadd.f32 %v5097, %v5109
    %v5111 = vpop.f32.mrf.mxu0
    %5112 = vdwg.mxu0
    %5113 = vmatpush.bf16.msra.mxu0 %v4813
    %5114 = vmatpush.bf16.msra.mxu0 %v4805
    %5115 = vmatpush.bf16.msra.mxu0 %v4797
    %5116 = vmatpush.bf16.msra.mxu0 %v4789
    %5117 = vmatpush.bf16.msra.mxu0 %v4781
    %5118 = vmatpush.bf16.msra.mxu0 %v4773
    %5119 = vmatpush.bf16.msra.mxu0 %v4765
    %5120 = vmatpush.bf16.msra.mxu0 %v4757
    %5121 = vmatmul.bf16.gmra.mxu0 %v4239
    %v5122 = vpop.f32.mrf.mxu0
    %v5123 = vadd.f32 0.0, %v5122
    %v5124 = vpop.f32.mrf.mxu0
    %5125 = vdwg.mxu0
    %5126 = vmatpush.bf16.msra.mxu0 %v4877
    %5127 = vmatpush.bf16.msra.mxu0 %v4869
    %5128 = vmatpush.bf16.msra.mxu0 %v4861
    %5129 = vmatpush.bf16.msra.mxu0 %v4853
    %5130 = vmatpush.bf16.msra.mxu0 %v4845
    %5131 = vmatpush.bf16.msra.mxu0 %v4837
    %5132 = vmatpush.bf16.msra.mxu0 %v4829
    %5133 = vmatpush.bf16.msra.mxu0 %v4821
    %5134 = vmatmul.bf16.gmra.mxu0 %v4240
    %v5135 = vpop.f32.mrf.mxu0
    %v5136 = vadd.f32 %v5123, %v5135
    %v5137 = vpop.f32.mrf.mxu0
    %5138 = vdwg.mxu0
    %5139 = vmatpush.bf16.msra.mxu0 %v4814
    %5140 = vmatpush.bf16.msra.mxu0 %v4806
    %5141 = vmatpush.bf16.msra.mxu0 %v4798
    %5142 = vmatpush.bf16.msra.mxu0 %v4790
    %5143 = vmatpush.bf16.msra.mxu0 %v4782
    %5144 = vmatpush.bf16.msra.mxu0 %v4774
    %5145 = vmatpush.bf16.msra.mxu0 %v4766
    %5146 = vmatpush.bf16.msra.mxu0 %v4758
    %5147 = vmatmul.bf16.gmra.mxu0 %v4239
    %v5148 = vpop.f32.mrf.mxu0
    %v5149 = vadd.f32 0.0, %v5148
    %v5150 = vpop.f32.mrf.mxu0
    %5151 = vdwg.mxu0
    %5152 = vmatpush.bf16.msra.mxu0 %v4878
    %5153 = vmatpush.bf16.msra.mxu0 %v4870
    %5154 = vmatpush.bf16.msra.mxu0 %v4862
    %5155 = vmatpush.bf16.msra.mxu0 %v4854
    %5156 = vmatpush.bf16.msra.mxu0 %v4846
    %5157 = vmatpush.bf16.msra.mxu0 %v4838
    %5158 = vmatpush.bf16.msra.mxu0 %v4830
    %5159 = vmatpush.bf16.msra.mxu0 %v4822
    %5160 = vmatmul.bf16.gmra.mxu0 %v4240
    %v5161 = vpop.f32.mrf.mxu0
    %v5162 = vadd.f32 %v5149, %v5161
    %v5163 = vpop.f32.mrf.mxu0
    %5164 = vdwg.mxu0
    %5165 = vmatpush.bf16.msra.mxu0 %v4815
    %5166 = vmatpush.bf16.msra.mxu0 %v4807
    %5167 = vmatpush.bf16.msra.mxu0 %v4799
    %5168 = vmatpush.bf16.msra.mxu0 %v4791
    %5169 = vmatpush.bf16.msra.mxu0 %v4783
    %5170 = vmatpush.bf16.msra.mxu0 %v4775
    %5171 = vmatpush.bf16.msra.mxu0 %v4767
    %5172 = vmatpush.bf16.msra.mxu0 %v4759
    %5173 = vmatmul.bf16.gmra.mxu0 %v4239
    %v5174 = vpop.f32.mrf.mxu0
    %v5175 = vadd.f32 0.0, %v5174
    %v5176 = vpop.f32.mrf.mxu0
    %5177 = vdwg.mxu0
    %5178 = vmatpush.bf16.msra.mxu0 %v4879
    %5179 = vmatpush.bf16.msra.mxu0 %v4871
    %5180 = vmatpush.bf16.msra.mxu0 %v4863
    %5181 = vmatpush.bf16.msra.mxu0 %v4855
    %5182 = vmatpush.bf16.msra.mxu0 %v4847
    %5183 = vmatpush.bf16.msra.mxu0 %v4839
    %5184 = vmatpush.bf16.msra.mxu0 %v4831
    %5185 = vmatpush.bf16.msra.mxu0 %v4823
    %5186 = vmatmul.bf16.gmra.mxu0 %v4240
    %v5187 = vpop.f32.mrf.mxu0
    %v5188 = vadd.f32 %v5175, %v5187
    %v5189 = vpop.f32.mrf.mxu0
    %5190 = vdwg.mxu0
    %5191 = vmatpush.bf16.msra.mxu0 %v4816
    %5192 = vmatpush.bf16.msra.mxu0 %v4808
    %5193 = vmatpush.bf16.msra.mxu0 %v4800
    %5194 = vmatpush.bf16.msra.mxu0 %v4792
    %5195 = vmatpush.bf16.msra.mxu0 %v4784
    %5196 = vmatpush.bf16.msra.mxu0 %v4776
    %5197 = vmatpush.bf16.msra.mxu0 %v4768
    %5198 = vmatpush.bf16.msra.mxu0 %v4760
    %5199 = vmatmul.bf16.gmra.mxu0 %v4239
    %v5200 = vpop.f32.mrf.mxu0
    %v5201 = vadd.f32 0.0, %v5200
    %v5202 = vpop.f32.mrf.mxu0
    %5203 = vdwg.mxu0
    %5204 = vmatpush.bf16.msra.mxu0 %v4880
    %5205 = vmatpush.bf16.msra.mxu0 %v4872
    %5206 = vmatpush.bf16.msra.mxu0 %v4864
    %5207 = vmatpush.bf16.msra.mxu0 %v4856
    %5208 = vmatpush.bf16.msra.mxu0 %v4848
    %5209 = vmatpush.bf16.msra.mxu0 %v4840
    %5210 = vmatpush.bf16.msra.mxu0 %v4832
    %5211 = vmatpush.bf16.msra.mxu0 %v4824
    %5212 = vmatmul.bf16.gmra.mxu0 %v4240
    %v5213 = vpop.f32.mrf.mxu0
    %v5214 = vadd.f32 %v5201, %v5213
    %v5215 = vpop.f32.mrf.mxu0
    %5216 = vdwg.mxu0
    %s5217 = scalar_lea.vmem [#allocation2], 192
    %v5218 = vld [vmem:[%s5217] sm:$0xff]
    %v5219 = vld [vmem:[%s5217 + $0x8] sm:$0xff]
    %v5220 = vld [vmem:[%s5217 + $0x10] sm:$0xff]
    %v5221 = vld [vmem:[%s5217 + $0x18] sm:$0xff]
    %v5222 = vadd.f32 %v5218, %v5032
    %v5223 = vadd.f32 %v5219, %v5058
    %v5224 = vadd.f32 %v5220, %v5084
    %v5225 = vadd.f32 %v5221, %v5110
    %s5226 = scalar_lea.vmem [#allocation2], 256
    %v5227 = vld [vmem:[%s5226 + $0x20] sm:$0xff]
    %v5228 = vld [vmem:[%s5226 + $0x28] sm:$0xff]
    %v5229 = vld [vmem:[%s5226 + $0x30] sm:$0xff]
    %v5230 = vld [vmem:[%s5226 + $0x38] sm:$0xff]
    %v5231 = vadd.f32 %v5227, %v5136
    %v5232 = vadd.f32 %v5228, %v5162
    %v5233 = vadd.f32 %v5229, %v5188
    %v5234 = vadd.f32 %v5230, %v5214
    %v5235 = vxor.u32 %v5222, 2147483648
    %v5236 = vmul.f32 %v5235, 1.442695
    %v5237 = vpow.pop %v5236
    %v5238 = vadd.f32 %v5237, 1.0
    %v5239 = vrcp.pop %v5238
    %v5240 = vmul.f32 %v5238, %v5239
    %v5241 = vsub.f32 1.0, %v5240
    %v5242 = vmul.f32 %v5239, %v5241
    %v5243 = vadd.f32 %v5239, %v5242
    %vm5244 = vweird.f32 %v5238
    %vm5245 = vweird.f32 %v5239
    %vm5246 = vmor %vm5244, %vm5245
    %v5247 = vsel %vm5246, %v5239, %v5243
    %v5248 = vand.u32 2147483647, %v5238
    %vm5249 = vcmp.eq.f32.partialorder %v5248, 8.507059e+37
    %v5250 = vand.u32 %v5238, 2147483648
    %v5251 = vor.u32 1.1754944e-38, %v5250
    %v5252 = vsel %vm5249, %v5251, %v5247
    %v5253 = vmul.f32 1.0, %v5252
    %v5254 = vxor.u32 %v5223, 2147483648
    %v5255 = vmul.f32 %v5254, 1.442695
    %v5256 = vpow.pop %v5255
    %v5257 = vadd.f32 %v5256, 1.0
    %v5258 = vrcp.pop %v5257
    %v5259 = vmul.f32 %v5257, %v5258
    %v5260 = vsub.f32 1.0, %v5259
    %v5261 = vmul.f32 %v5258, %v5260
    %v5262 = vadd.f32 %v5258, %v5261
    %vm5263 = vweird.f32 %v5257
    %vm5264 = vweird.f32 %v5258
    %vm5265 = vmor %vm5263, %vm5264
    %v5266 = vsel %vm5265, %v5258, %v5262
    %v5267 = vand.u32 2147483647, %v5257
    %vm5268 = vcmp.eq.f32.partialorder %v5267, 8.507059e+37
    %v5269 = vand.u32 %v5257, 2147483648
    %v5270 = vor.u32 1.1754944e-38, %v5269
    %v5271 = vsel %vm5268, %v5270, %v5266
    %v5272 = vmul.f32 1.0, %v5271
    %v5273 = vtanh.pop %v5224
    %v5274 = vxor.u32 %v5225, 2147483648
    %v5275 = vmul.f32 %v5274, 1.442695
    %v5276 = vpow.pop %v5275
    %v5277 = vadd.f32 %v5276, 1.0
    %v5278 = vrcp.pop %v5277
    %v5279 = vmul.f32 %v5277, %v5278
    %v5280 = vsub.f32 1.0, %v5279
    %v5281 = vmul.f32 %v5278, %v5280
    %v5282 = vadd.f32 %v5278, %v5281
    %vm5283 = vweird.f32 %v5277
    %vm5284 = vweird.f32 %v5278
    %vm5285 = vmor %vm5283, %vm5284
    %v5286 = vsel %vm5285, %v5278, %v5282
    %v5287 = vand.u32 2147483647, %v5277
    %vm5288 = vcmp.eq.f32.partialorder %v5287, 8.507059e+37
    %v5289 = vand.u32 %v5277, 2147483648
    %v5290 = vor.u32 1.1754944e-38, %v5289
    %v5291 = vsel %vm5288, %v5290, %v5286
    %v5292 = vmul.f32 1.0, %v5291
    %v5293 = vmul.f32 %v5272, %v4237
    %v5294 = vmul.f32 %v5253, %v5273
    %v5295 = vadd.f32 %v5293, %v5294
    %v5296 = vtanh.pop %v5295
    %v5297 = vmul.f32 %v5292, %v5296
    %v5298 = vxor.u32 %v5231, 2147483648
    %v5299 = vmul.f32 %v5298, 1.442695
    %v5300 = vpow.pop %v5299
    %v5301 = vadd.f32 %v5300, 1.0
    %v5302 = vrcp.pop %v5301
    %v5303 = vmul.f32 %v5301, %v5302
    %v5304 = vsub.f32 1.0, %v5303
    %v5305 = vmul.f32 %v5302, %v5304
    %v5306 = vadd.f32 %v5302, %v5305
    %vm5307 = vweird.f32 %v5301
    %vm5308 = vweird.f32 %v5302
    %vm5309 = vmor %vm5307, %vm5308
    %v5310 = vsel %vm5309, %v5302, %v5306
    %v5311 = vand.u32 2147483647, %v5301
    %vm5312 = vcmp.eq.f32.partialorder %v5311, 8.507059e+37
    %v5313 = vand.u32 %v5301, 2147483648
    %v5314 = vor.u32 1.1754944e-38, %v5313
    %v5315 = vsel %vm5312, %v5314, %v5310
    %v5316 = vmul.f32 1.0, %v5315
    %v5317 = vxor.u32 %v5232, 2147483648
    %v5318 = vmul.f32 %v5317, 1.442695
    %v5319 = vpow.pop %v5318
    %v5320 = vadd.f32 %v5319, 1.0
    %v5321 = vrcp.pop %v5320
    %v5322 = vmul.f32 %v5320, %v5321
    %v5323 = vsub.f32 1.0, %v5322
    %v5324 = vmul.f32 %v5321, %v5323
    %v5325 = vadd.f32 %v5321, %v5324
    %vm5326 = vweird.f32 %v5320
    %vm5327 = vweird.f32 %v5321
    %vm5328 = vmor %vm5326, %vm5327
    %v5329 = vsel %vm5328, %v5321, %v5325
    %v5330 = vand.u32 2147483647, %v5320
    %vm5331 = vcmp.eq.f32.partialorder %v5330, 8.507059e+37
    %v5332 = vand.u32 %v5320, 2147483648
    %v5333 = vor.u32 1.1754944e-38, %v5332
    %v5334 = vsel %vm5331, %v5333, %v5329
    %v5335 = vmul.f32 1.0, %v5334
    %v5336 = vtanh.pop %v5233
    %v5337 = vxor.u32 %v5234, 2147483648
    %v5338 = vmul.f32 %v5337, 1.442695
    %v5339 = vpow.pop %v5338
    %v5340 = vadd.f32 %v5339, 1.0
    %v5341 = vrcp.pop %v5340
    %v5342 = vmul.f32 %v5340, %v5341
    %v5343 = vsub.f32 1.0, %v5342
    %v5344 = vmul.f32 %v5341, %v5343
    %v5345 = vadd.f32 %v5341, %v5344
    %vm5346 = vweird.f32 %v5340
    %vm5347 = vweird.f32 %v5341
    %vm5348 = vmor %vm5346, %vm5347
    %v5349 = vsel %vm5348, %v5341, %v5345
    %v5350 = vand.u32 2147483647, %v5340
    %vm5351 = vcmp.eq.f32.partialorder %v5350, 8.507059e+37
    %v5352 = vand.u32 %v5340, 2147483648
    %v5353 = vor.u32 1.1754944e-38, %v5352
    %v5354 = vsel %vm5351, %v5353, %v5349
    %v5355 = vmul.f32 1.0, %v5354
    %v5356 = vmul.f32 %v5335, %v4238
    %v5357 = vmul.f32 %v5316, %v5336
    %v5358 = vadd.f32 %v5356, %v5357
    %v5359 = vtanh.pop %v5358
    %v5360 = vmul.f32 %v5355, %v5359
    %s5361 = scalar_lea.vmem %s1, 24
    %v5362 = vld [vmem:[%s5361] sm:$0xff]
    %vm5363 = vcmp.gt.f32.partialorder %v5362, 0.0
    %s5364 = scalar_lea.vmem %s1, 32
    %v5365 = vld [vmem:[%s5364] sm:$0xff]
    %vm5366 = vcmp.gt.f32.partialorder %v5365, 0.0
    %v5367 = vsel %vm5363, %v5297, 0.0
    %s5368 = scalar_lea.vmem [#allocation3], 24
    %5369 = vst [vmem:[%s5368] sm:$0xff] %v5367
    %v5370 = vsel %vm5366, %v5360, 0.0
    %s5371 = scalar_lea.vmem [#allocation4], 32
    %5372 = vst [vmem:[%s5371] sm:$0xff] %v5370
    %v5373 = vsel %vm5363, %v5297, %v4235
    %v5374 = vsel %vm5366, %v5360, %v4236
    %v5375 = vsel %vm5363, %v5295, %v4237
    %v5376 = vsel %vm5366, %v5358, %v4238
    %v5377 = vpack.c.bf16 %v5373, %v5373
    %v5378 = vpack.c.bf16 %v5374, %v5374
    %v5379 = vld [vmem:[#allocation7] sm:$0xff]
    %v5380 = vld [vmem:[#allocation7 + $0x8] sm:$0xff]
    %v5381 = vld [vmem:[#allocation7 + $0x10] sm:$0xff]
    %v5382 = vld [vmem:[#allocation7 + $0x18] sm:$0xff]
    %v5383 = vld [vmem:[#allocation7 + $0x20] sm:$0xff]
    %v5384 = vld [vmem:[#allocation7 + $0x28] sm:$0xff]
    %v5385 = vld [vmem:[#allocation7 + $0x30] sm:$0xff]
    %v5386 = vld [vmem:[#allocation7 + $0x38] sm:$0xff]
    %v5387 = vld [vmem:[#allocation7 + $0x40] sm:$0xff]
    %v5388 = vld [vmem:[#allocation7 + $0x48] sm:$0xff]
    %v5389 = vld [vmem:[#allocation7 + $0x50] sm:$0xff]
    %v5390 = vld [vmem:[#allocation7 + $0x58] sm:$0xff]
    %v5391 = vld [vmem:[#allocation7 + $0x60] sm:$0xff]
    %v5392 = vld [vmem:[#allocation7 + $0x68] sm:$0xff]
    %v5393 = vld [vmem:[#allocation7 + $0x70] sm:$0xff]
    %v5394 = vld [vmem:[#allocation7 + $0x78] sm:$0xff]
    %v5395 = vld [vmem:[#allocation7 + $0x80] sm:$0xff]
    %v5396 = vld [vmem:[#allocation7 + $0x88] sm:$0xff]
    %v5397 = vld [vmem:[#allocation7 + $0x90] sm:$0xff]
    %v5398 = vld [vmem:[#allocation7 + $0x98] sm:$0xff]
    %v5399 = vld [vmem:[#allocation7 + $0xa0] sm:$0xff]
    %v5400 = vld [vmem:[#allocation7 + $0xa8] sm:$0xff]
    %v5401 = vld [vmem:[#allocation7 + $0xb0] sm:$0xff]
    %v5402 = vld [vmem:[#allocation7 + $0xb8] sm:$0xff]
    %v5403 = vld [vmem:[#allocation7 + $0xc0] sm:$0xff]
    %v5404 = vld [vmem:[#allocation7 + $0xc8] sm:$0xff]
    %v5405 = vld [vmem:[#allocation7 + $0xd0] sm:$0xff]
    %v5406 = vld [vmem:[#allocation7 + $0xd8] sm:$0xff]
    %v5407 = vld [vmem:[#allocation7 + $0xe0] sm:$0xff]
    %v5408 = vld [vmem:[#allocation7 + $0xe8] sm:$0xff]
    %v5409 = vld [vmem:[#allocation7 + $0xf0] sm:$0xff]
    %v5410 = vld [vmem:[#allocation7 + $0xf8] sm:$0xff]
    %v5411 = vld [vmem:[#allocation7 + $0x100] sm:$0xff]
    %v5412 = vld [vmem:[#allocation7 + $0x108] sm:$0xff]
    %v5413 = vld [vmem:[#allocation7 + $0x110] sm:$0xff]
    %v5414 = vld [vmem:[#allocation7 + $0x118] sm:$0xff]
    %v5415 = vld [vmem:[#allocation7 + $0x120] sm:$0xff]
    %v5416 = vld [vmem:[#allocation7 + $0x128] sm:$0xff]
    %v5417 = vld [vmem:[#allocation7 + $0x130] sm:$0xff]
    %v5418 = vld [vmem:[#allocation7 + $0x138] sm:$0xff]
    %v5419 = vld [vmem:[#allocation7 + $0x140] sm:$0xff]
    %v5420 = vld [vmem:[#allocation7 + $0x148] sm:$0xff]
    %v5421 = vld [vmem:[#allocation7 + $0x150] sm:$0xff]
    %v5422 = vld [vmem:[#allocation7 + $0x158] sm:$0xff]
    %v5423 = vld [vmem:[#allocation7 + $0x160] sm:$0xff]
    %v5424 = vld [vmem:[#allocation7 + $0x168] sm:$0xff]
    %v5425 = vld [vmem:[#allocation7 + $0x170] sm:$0xff]
    %v5426 = vld [vmem:[#allocation7 + $0x178] sm:$0xff]
    %v5427 = vld [vmem:[#allocation7 + $0x180] sm:$0xff]
    %v5428 = vld [vmem:[#allocation7 + $0x188] sm:$0xff]
    %v5429 = vld [vmem:[#allocation7 + $0x190] sm:$0xff]
    %v5430 = vld [vmem:[#allocation7 + $0x198] sm:$0xff]
    %v5431 = vld [vmem:[#allocation7 + $0x1a0] sm:$0xff]
    %v5432 = vld [vmem:[#allocation7 + $0x1a8] sm:$0xff]
    %v5433 = vld [vmem:[#allocation7 + $0x1b0] sm:$0xff]
    %v5434 = vld [vmem:[#allocation7 + $0x1b8] sm:$0xff]
    %v5435 = vld [vmem:[#allocation7 + $0x1c0] sm:$0xff]
    %v5436 = vld [vmem:[#allocation7 + $0x1c8] sm:$0xff]
    %v5437 = vld [vmem:[#allocation7 + $0x1d0] sm:$0xff]
    %v5438 = vld [vmem:[#allocation7 + $0x1d8] sm:$0xff]
    %v5439 = vld [vmem:[#allocation7 + $0x1e0] sm:$0xff]
    %v5440 = vld [vmem:[#allocation7 + $0x1e8] sm:$0xff]
    %v5441 = vld [vmem:[#allocation7 + $0x1f0] sm:$0xff]
    %v5442 = vld [vmem:[#allocation7 + $0x1f8] sm:$0xff]
    %v5443 = vld [vmem:[#allocation7 + $0x200] sm:$0xff]
    %v5444 = vld [vmem:[#allocation7 + $0x208] sm:$0xff]
    %v5445 = vld [vmem:[#allocation7 + $0x210] sm:$0xff]
    %v5446 = vld [vmem:[#allocation7 + $0x218] sm:$0xff]
    %v5447 = vld [vmem:[#allocation7 + $0x220] sm:$0xff]
    %v5448 = vld [vmem:[#allocation7 + $0x228] sm:$0xff]
    %v5449 = vld [vmem:[#allocation7 + $0x230] sm:$0xff]
    %v5450 = vld [vmem:[#allocation7 + $0x238] sm:$0xff]
    %v5451 = vld [vmem:[#allocation7 + $0x240] sm:$0xff]
    %v5452 = vld [vmem:[#allocation7 + $0x248] sm:$0xff]
    %v5453 = vld [vmem:[#allocation7 + $0x250] sm:$0xff]
    %v5454 = vld [vmem:[#allocation7 + $0x258] sm:$0xff]
    %v5455 = vld [vmem:[#allocation7 + $0x260] sm:$0xff]
    %v5456 = vld [vmem:[#allocation7 + $0x268] sm:$0xff]
    %v5457 = vld [vmem:[#allocation7 + $0x270] sm:$0xff]
    %v5458 = vld [vmem:[#allocation7 + $0x278] sm:$0xff]
    %v5459 = vld [vmem:[#allocation7 + $0x280] sm:$0xff]
    %v5460 = vld [vmem:[#allocation7 + $0x288] sm:$0xff]
    %v5461 = vld [vmem:[#allocation7 + $0x290] sm:$0xff]
    %v5462 = vld [vmem:[#allocation7 + $0x298] sm:$0xff]
    %v5463 = vld [vmem:[#allocation7 + $0x2a0] sm:$0xff]
    %v5464 = vld [vmem:[#allocation7 + $0x2a8] sm:$0xff]
    %v5465 = vld [vmem:[#allocation7 + $0x2b0] sm:$0xff]
    %v5466 = vld [vmem:[#allocation7 + $0x2b8] sm:$0xff]
    %v5467 = vld [vmem:[#allocation7 + $0x2c0] sm:$0xff]
    %v5468 = vld [vmem:[#allocation7 + $0x2c8] sm:$0xff]
    %v5469 = vld [vmem:[#allocation7 + $0x2d0] sm:$0xff]
    %v5470 = vld [vmem:[#allocation7 + $0x2d8] sm:$0xff]
    %v5471 = vld [vmem:[#allocation7 + $0x2e0] sm:$0xff]
    %v5472 = vld [vmem:[#allocation7 + $0x2e8] sm:$0xff]
    %v5473 = vld [vmem:[#allocation7 + $0x2f0] sm:$0xff]
    %v5474 = vld [vmem:[#allocation7 + $0x2f8] sm:$0xff]
    %v5475 = vld [vmem:[#allocation7 + $0x300] sm:$0xff]
    %v5476 = vld [vmem:[#allocation7 + $0x308] sm:$0xff]
    %v5477 = vld [vmem:[#allocation7 + $0x310] sm:$0xff]
    %v5478 = vld [vmem:[#allocation7 + $0x318] sm:$0xff]
    %v5479 = vld [vmem:[#allocation7 + $0x320] sm:$0xff]
    %v5480 = vld [vmem:[#allocation7 + $0x328] sm:$0xff]
    %v5481 = vld [vmem:[#allocation7 + $0x330] sm:$0xff]
    %v5482 = vld [vmem:[#allocation7 + $0x338] sm:$0xff]
    %v5483 = vld [vmem:[#allocation7 + $0x340] sm:$0xff]
    %v5484 = vld [vmem:[#allocation7 + $0x348] sm:$0xff]
    %v5485 = vld [vmem:[#allocation7 + $0x350] sm:$0xff]
    %v5486 = vld [vmem:[#allocation7 + $0x358] sm:$0xff]
    %v5487 = vld [vmem:[#allocation7 + $0x360] sm:$0xff]
    %v5488 = vld [vmem:[#allocation7 + $0x368] sm:$0xff]
    %v5489 = vld [vmem:[#allocation7 + $0x370] sm:$0xff]
    %v5490 = vld [vmem:[#allocation7 + $0x378] sm:$0xff]
    %v5491 = vld [vmem:[#allocation7 + $0x380] sm:$0xff]
    %v5492 = vld [vmem:[#allocation7 + $0x388] sm:$0xff]
    %v5493 = vld [vmem:[#allocation7 + $0x390] sm:$0xff]
    %v5494 = vld [vmem:[#allocation7 + $0x398] sm:$0xff]
    %v5495 = vld [vmem:[#allocation7 + $0x3a0] sm:$0xff]
    %v5496 = vld [vmem:[#allocation7 + $0x3a8] sm:$0xff]
    %v5497 = vld [vmem:[#allocation7 + $0x3b0] sm:$0xff]
    %v5498 = vld [vmem:[#allocation7 + $0x3b8] sm:$0xff]
    %v5499 = vld [vmem:[#allocation7 + $0x3c0] sm:$0xff]
    %v5500 = vld [vmem:[#allocation7 + $0x3c8] sm:$0xff]
    %v5501 = vld [vmem:[#allocation7 + $0x3d0] sm:$0xff]
    %v5502 = vld [vmem:[#allocation7 + $0x3d8] sm:$0xff]
    %v5503 = vld [vmem:[#allocation7 + $0x3e0] sm:$0xff]
    %v5504 = vld [vmem:[#allocation7 + $0x3e8] sm:$0xff]
    %v5505 = vld [vmem:[#allocation7 + $0x3f0] sm:$0xff]
    %v5506 = vld [vmem:[#allocation7 + $0x3f8] sm:$0xff]
    %v5635 = vunpack.c.l.b16 %v5379
    %v5636 = vunpack.c.h.b16 %v5379
    %v5637 = vunpack.c.l.b16 %v5380
    %v5638 = vunpack.c.h.b16 %v5380
    %v5639 = vunpack.c.l.b16 %v5381
    %v5640 = vunpack.c.h.b16 %v5381
    %v5641 = vunpack.c.l.b16 %v5382
    %v5642 = vunpack.c.h.b16 %v5382
    %v5643 = vunpack.c.l.b16 %v5383
    %v5644 = vunpack.c.h.b16 %v5383
    %v5645 = vunpack.c.l.b16 %v5384
    %v5646 = vunpack.c.h.b16 %v5384
    %v5647 = vunpack.c.l.b16 %v5385
    %v5648 = vunpack.c.h.b16 %v5385
    %v5649 = vunpack.c.l.b16 %v5386
    %v5650 = vunpack.c.h.b16 %v5386
    %v5651 = vunpack.c.l.b16 %v5387
    %v5652 = vunpack.c.h.b16 %v5387
    %v5653 = vunpack.c.l.b16 %v5388
    %v5654 = vunpack.c.h.b16 %v5388
    %v5655 = vunpack.c.l.b16 %v5389
    %v5656 = vunpack.c.h.b16 %v5389
    %v5657 = vunpack.c.l.b16 %v5390
    %v5658 = vunpack.c.h.b16 %v5390
    %v5659 = vunpack.c.l.b16 %v5391
    %v5660 = vunpack.c.h.b16 %v5391
    %v5661 = vunpack.c.l.b16 %v5392
    %v5662 = vunpack.c.h.b16 %v5392
    %v5663 = vunpack.c.l.b16 %v5393
    %v5664 = vunpack.c.h.b16 %v5393
    %v5665 = vunpack.c.l.b16 %v5394
    %v5666 = vunpack.c.h.b16 %v5394
    %v5667 = vunpack.c.l.b16 %v5395
    %v5668 = vunpack.c.h.b16 %v5395
    %v5669 = vunpack.c.l.b16 %v5396
    %v5670 = vunpack.c.h.b16 %v5396
    %v5671 = vunpack.c.l.b16 %v5397
    %v5672 = vunpack.c.h.b16 %v5397
    %v5673 = vunpack.c.l.b16 %v5398
    %v5674 = vunpack.c.h.b16 %v5398
    %v5675 = vunpack.c.l.b16 %v5399
    %v5676 = vunpack.c.h.b16 %v5399
    %v5677 = vunpack.c.l.b16 %v5400
    %v5678 = vunpack.c.h.b16 %v5400
    %v5679 = vunpack.c.l.b16 %v5401
    %v5680 = vunpack.c.h.b16 %v5401
    %v5681 = vunpack.c.l.b16 %v5402
    %v5682 = vunpack.c.h.b16 %v5402
    %v5683 = vunpack.c.l.b16 %v5403
    %v5684 = vunpack.c.h.b16 %v5403
    %v5685 = vunpack.c.l.b16 %v5404
    %v5686 = vunpack.c.h.b16 %v5404
    %v5687 = vunpack.c.l.b16 %v5405
    %v5688 = vunpack.c.h.b16 %v5405
    %v5689 = vunpack.c.l.b16 %v5406
    %v5690 = vunpack.c.h.b16 %v5406
    %v5691 = vunpack.c.l.b16 %v5407
    %v5692 = vunpack.c.h.b16 %v5407
    %v5693 = vunpack.c.l.b16 %v5408
    %v5694 = vunpack.c.h.b16 %v5408
    %v5695 = vunpack.c.l.b16 %v5409
    %v5696 = vunpack.c.h.b16 %v5409
    %v5697 = vunpack.c.l.b16 %v5410
    %v5698 = vunpack.c.h.b16 %v5410
    %v5699 = vunpack.c.l.b16 %v5411
    %v5700 = vunpack.c.h.b16 %v5411
    %v5701 = vunpack.c.l.b16 %v5412
    %v5702 = vunpack.c.h.b16 %v5412
    %v5703 = vunpack.c.l.b16 %v5413
    %v5704 = vunpack.c.h.b16 %v5413
    %v5705 = vunpack.c.l.b16 %v5414
    %v5706 = vunpack.c.h.b16 %v5414
    %v5707 = vunpack.c.l.b16 %v5415
    %v5708 = vunpack.c.h.b16 %v5415
    %v5709 = vunpack.c.l.b16 %v5416
    %v5710 = vunpack.c.h.b16 %v5416
    %v5711 = vunpack.c.l.b16 %v5417
    %v5712 = vunpack.c.h.b16 %v5417
    %v5713 = vunpack.c.l.b16 %v5418
    %v5714 = vunpack.c.h.b16 %v5418
    %v5715 = vunpack.c.l.b16 %v5419
    %v5716 = vunpack.c.h.b16 %v5419
    %v5717 = vunpack.c.l.b16 %v5420
    %v5718 = vunpack.c.h.b16 %v5420
    %v5719 = vunpack.c.l.b16 %v5421
    %v5720 = vunpack.c.h.b16 %v5421
    %v5721 = vunpack.c.l.b16 %v5422
    %v5722 = vunpack.c.h.b16 %v5422
    %v5723 = vunpack.c.l.b16 %v5423
    %v5724 = vunpack.c.h.b16 %v5423
    %v5725 = vunpack.c.l.b16 %v5424
    %v5726 = vunpack.c.h.b16 %v5424
    %v5727 = vunpack.c.l.b16 %v5425
    %v5728 = vunpack.c.h.b16 %v5425
    %v5729 = vunpack.c.l.b16 %v5426
    %v5730 = vunpack.c.h.b16 %v5426
    %v5731 = vunpack.c.l.b16 %v5427
    %v5732 = vunpack.c.h.b16 %v5427
    %v5733 = vunpack.c.l.b16 %v5428
    %v5734 = vunpack.c.h.b16 %v5428
    %v5735 = vunpack.c.l.b16 %v5429
    %v5736 = vunpack.c.h.b16 %v5429
    %v5737 = vunpack.c.l.b16 %v5430
    %v5738 = vunpack.c.h.b16 %v5430
    %v5739 = vunpack.c.l.b16 %v5431
    %v5740 = vunpack.c.h.b16 %v5431
    %v5741 = vunpack.c.l.b16 %v5432
    %v5742 = vunpack.c.h.b16 %v5432
    %v5743 = vunpack.c.l.b16 %v5433
    %v5744 = vunpack.c.h.b16 %v5433
    %v5745 = vunpack.c.l.b16 %v5434
    %v5746 = vunpack.c.h.b16 %v5434
    %v5747 = vunpack.c.l.b16 %v5435
    %v5748 = vunpack.c.h.b16 %v5435
    %v5749 = vunpack.c.l.b16 %v5436
    %v5750 = vunpack.c.h.b16 %v5436
    %v5751 = vunpack.c.l.b16 %v5437
    %v5752 = vunpack.c.h.b16 %v5437
    %v5753 = vunpack.c.l.b16 %v5438
    %v5754 = vunpack.c.h.b16 %v5438
    %v5755 = vunpack.c.l.b16 %v5439
    %v5756 = vunpack.c.h.b16 %v5439
    %v5757 = vunpack.c.l.b16 %v5440
    %v5758 = vunpack.c.h.b16 %v5440
    %v5759 = vunpack.c.l.b16 %v5441
    %v5760 = vunpack.c.h.b16 %v5441
    %v5761 = vunpack.c.l.b16 %v5442
    %v5762 = vunpack.c.h.b16 %v5442
    %v5763 = vunpack.c.l.b16 %v5443
    %v5764 = vunpack.c.h.b16 %v5443
    %v5765 = vunpack.c.l.b16 %v5444
    %v5766 = vunpack.c.h.b16 %v5444
    %v5767 = vunpack.c.l.b16 %v5445
    %v5768 = vunpack.c.h.b16 %v5445
    %v5769 = vunpack.c.l.b16 %v5446
    %v5770 = vunpack.c.h.b16 %v5446
    %v5771 = vunpack.c.l.b16 %v5447
    %v5772 = vunpack.c.h.b16 %v5447
    %v5773 = vunpack.c.l.b16 %v5448
    %v5774 = vunpack.c.h.b16 %v5448
    %v5775 = vunpack.c.l.b16 %v5449
    %v5776 = vunpack.c.h.b16 %v5449
    %v5777 = vunpack.c.l.b16 %v5450
    %v5778 = vunpack.c.h.b16 %v5450
    %v5779 = vunpack.c.l.b16 %v5451
    %v5780 = vunpack.c.h.b16 %v5451
    %v5781 = vunpack.c.l.b16 %v5452
    %v5782 = vunpack.c.h.b16 %v5452
    %v5783 = vunpack.c.l.b16 %v5453
    %v5784 = vunpack.c.h.b16 %v5453
    %v5785 = vunpack.c.l.b16 %v5454
    %v5786 = vunpack.c.h.b16 %v5454
    %v5787 = vunpack.c.l.b16 %v5455
    %v5788 = vunpack.c.h.b16 %v5455
    %v5789 = vunpack.c.l.b16 %v5456
    %v5790 = vunpack.c.h.b16 %v5456
    %v5791 = vunpack.c.l.b16 %v5457
    %v5792 = vunpack.c.h.b16 %v5457
    %v5793 = vunpack.c.l.b16 %v5458
    %v5794 = vunpack.c.h.b16 %v5458
    %v5795 = vunpack.c.l.b16 %v5459
    %v5796 = vunpack.c.h.b16 %v5459
    %v5797 = vunpack.c.l.b16 %v5460
    %v5798 = vunpack.c.h.b16 %v5460
    %v5799 = vunpack.c.l.b16 %v5461
    %v5800 = vunpack.c.h.b16 %v5461
    %v5801 = vunpack.c.l.b16 %v5462
    %v5802 = vunpack.c.h.b16 %v5462
    %v5803 = vunpack.c.l.b16 %v5463
    %v5804 = vunpack.c.h.b16 %v5463
    %v5805 = vunpack.c.l.b16 %v5464
    %v5806 = vunpack.c.h.b16 %v5464
    %v5807 = vunpack.c.l.b16 %v5465
    %v5808 = vunpack.c.h.b16 %v5465
    %v5809 = vunpack.c.l.b16 %v5466
    %v5810 = vunpack.c.h.b16 %v5466
    %v5811 = vunpack.c.l.b16 %v5467
    %v5812 = vunpack.c.h.b16 %v5467
    %v5813 = vunpack.c.l.b16 %v5468
    %v5814 = vunpack.c.h.b16 %v5468
    %v5815 = vunpack.c.l.b16 %v5469
    %v5816 = vunpack.c.h.b16 %v5469
    %v5817 = vunpack.c.l.b16 %v5470
    %v5818 = vunpack.c.h.b16 %v5470
    %v5819 = vunpack.c.l.b16 %v5471
    %v5820 = vunpack.c.h.b16 %v5471
    %v5821 = vunpack.c.l.b16 %v5472
    %v5822 = vunpack.c.h.b16 %v5472
    %v5823 = vunpack.c.l.b16 %v5473
    %v5824 = vunpack.c.h.b16 %v5473
    %v5825 = vunpack.c.l.b16 %v5474
    %v5826 = vunpack.c.h.b16 %v5474
    %v5827 = vunpack.c.l.b16 %v5475
    %v5828 = vunpack.c.h.b16 %v5475
    %v5829 = vunpack.c.l.b16 %v5476
    %v5830 = vunpack.c.h.b16 %v5476
    %v5831 = vunpack.c.l.b16 %v5477
    %v5832 = vunpack.c.h.b16 %v5477
    %v5833 = vunpack.c.l.b16 %v5478
    %v5834 = vunpack.c.h.b16 %v5478
    %v5835 = vunpack.c.l.b16 %v5479
    %v5836 = vunpack.c.h.b16 %v5479
    %v5837 = vunpack.c.l.b16 %v5480
    %v5838 = vunpack.c.h.b16 %v5480
    %v5839 = vunpack.c.l.b16 %v5481
    %v5840 = vunpack.c.h.b16 %v5481
    %v5841 = vunpack.c.l.b16 %v5482
    %v5842 = vunpack.c.h.b16 %v5482
    %v5843 = vunpack.c.l.b16 %v5483
    %v5844 = vunpack.c.h.b16 %v5483
    %v5845 = vunpack.c.l.b16 %v5484
    %v5846 = vunpack.c.h.b16 %v5484
    %v5847 = vunpack.c.l.b16 %v5485
    %v5848 = vunpack.c.h.b16 %v5485
    %v5849 = vunpack.c.l.b16 %v5486
    %v5850 = vunpack.c.h.b16 %v5486
    %v5851 = vunpack.c.l.b16 %v5487
    %v5852 = vunpack.c.h.b16 %v5487
    %v5853 = vunpack.c.l.b16 %v5488
    %v5854 = vunpack.c.h.b16 %v5488
    %v5855 = vunpack.c.l.b16 %v5489
    %v5856 = vunpack.c.h.b16 %v5489
    %v5857 = vunpack.c.l.b16 %v5490
    %v5858 = vunpack.c.h.b16 %v5490
    %v5859 = vunpack.c.l.b16 %v5491
    %v5860 = vunpack.c.h.b16 %v5491
    %v5861 = vunpack.c.l.b16 %v5492
    %v5862 = vunpack.c.h.b16 %v5492
    %v5863 = vunpack.c.l.b16 %v5493
    %v5864 = vunpack.c.h.b16 %v5493
    %v5865 = vunpack.c.l.b16 %v5494
    %v5866 = vunpack.c.h.b16 %v5494
    %v5867 = vunpack.c.l.b16 %v5495
    %v5868 = vunpack.c.h.b16 %v5495
    %v5869 = vunpack.c.l.b16 %v5496
    %v5870 = vunpack.c.h.b16 %v5496
    %v5871 = vunpack.c.l.b16 %v5497
    %v5872 = vunpack.c.h.b16 %v5497
    %v5873 = vunpack.c.l.b16 %v5498
    %v5874 = vunpack.c.h.b16 %v5498
    %v5875 = vunpack.c.l.b16 %v5499
    %v5876 = vunpack.c.h.b16 %v5499
    %v5877 = vunpack.c.l.b16 %v5500
    %v5878 = vunpack.c.h.b16 %v5500
    %v5879 = vunpack.c.l.b16 %v5501
    %v5880 = vunpack.c.h.b16 %v5501
    %v5881 = vunpack.c.l.b16 %v5502
    %v5882 = vunpack.c.h.b16 %v5502
    %v5883 = vunpack.c.l.b16 %v5503
    %v5884 = vunpack.c.h.b16 %v5503
    %v5885 = vunpack.c.l.b16 %v5504
    %v5886 = vunpack.c.h.b16 %v5504
    %v5887 = vunpack.c.l.b16 %v5505
    %v5888 = vunpack.c.h.b16 %v5505
    %v5889 = vunpack.c.l.b16 %v5506
    %v5890 = vunpack.c.h.b16 %v5506
    %v5891 = vpack.c.b16 %v5643, %v5635
    %v5892 = vpack.c.b16 %v5644, %v5636
    %v5893 = vpack.c.b16 %v5645, %v5637
    %v5894 = vpack.c.b16 %v5646, %v5638
    %v5895 = vpack.c.b16 %v5647, %v5639
    %v5896 = vpack.c.b16 %v5648, %v5640
    %v5897 = vpack.c.b16 %v5649, %v5641
    %v5898 = vpack.c.b16 %v5650, %v5642
    %v5899 = vpack.c.b16 %v5659, %v5651
    %v5900 = vpack.c.b16 %v5660, %v5652
    %v5901 = vpack.c.b16 %v5661, %v5653
    %v5902 = vpack.c.b16 %v5662, %v5654
    %v5903 = vpack.c.b16 %v5663, %v5655
    %v5904 = vpack.c.b16 %v5664, %v5656
    %v5905 = vpack.c.b16 %v5665, %v5657
    %v5906 = vpack.c.b16 %v5666, %v5658
    %v5907 = vpack.c.b16 %v5675, %v5667
    %v5908 = vpack.c.b16 %v5676, %v5668
    %v5909 = vpack.c.b16 %v5677, %v5669
    %v5910 = vpack.c.b16 %v5678, %v5670
    %v5911 = vpack.c.b16 %v5679, %v5671
    %v5912 = vpack.c.b16 %v5680, %v5672
    %v5913 = vpack.c.b16 %v5681, %v5673
    %v5914 = vpack.c.b16 %v5682, %v5674
    %v5915 = vpack.c.b16 %v5691, %v5683
    %v5916 = vpack.c.b16 %v5692, %v5684
    %v5917 = vpack.c.b16 %v5693, %v5685
    %v5918 = vpack.c.b16 %v5694, %v5686
    %v5919 = vpack.c.b16 %v5695, %v5687
    %v5920 = vpack.c.b16 %v5696, %v5688
    %v5921 = vpack.c.b16 %v5697, %v5689
    %v5922 = vpack.c.b16 %v5698, %v5690
    %v5923 = vpack.c.b16 %v5707, %v5699
    %v5924 = vpack.c.b16 %v5708, %v5700
    %v5925 = vpack.c.b16 %v5709, %v5701
    %v5926 = vpack.c.b16 %v5710, %v5702
    %v5927 = vpack.c.b16 %v5711, %v5703
    %v5928 = vpack.c.b16 %v5712, %v5704
    %v5929 = vpack.c.b16 %v5713, %v5705
    %v5930 = vpack.c.b16 %v5714, %v5706
    %v5931 = vpack.c.b16 %v5723, %v5715
    %v5932 = vpack.c.b16 %v5724, %v5716
    %v5933 = vpack.c.b16 %v5725, %v5717
    %v5934 = vpack.c.b16 %v5726, %v5718
    %v5935 = vpack.c.b16 %v5727, %v5719
    %v5936 = vpack.c.b16 %v5728, %v5720
    %v5937 = vpack.c.b16 %v5729, %v5721
    %v5938 = vpack.c.b16 %v5730, %v5722
    %v5939 = vpack.c.b16 %v5739, %v5731
    %v5940 = vpack.c.b16 %v5740, %v5732
    %v5941 = vpack.c.b16 %v5741, %v5733
    %v5942 = vpack.c.b16 %v5742, %v5734
    %v5943 = vpack.c.b16 %v5743, %v5735
    %v5944 = vpack.c.b16 %v5744, %v5736
    %v5945 = vpack.c.b16 %v5745, %v5737
    %v5946 = vpack.c.b16 %v5746, %v5738
    %v5947 = vpack.c.b16 %v5755, %v5747
    %v5948 = vpack.c.b16 %v5756, %v5748
    %v5949 = vpack.c.b16 %v5757, %v5749
    %v5950 = vpack.c.b16 %v5758, %v5750
    %v5951 = vpack.c.b16 %v5759, %v5751
    %v5952 = vpack.c.b16 %v5760, %v5752
    %v5953 = vpack.c.b16 %v5761, %v5753
    %v5954 = vpack.c.b16 %v5762, %v5754
    %v5955 = vpack.c.b16 %v5771, %v5763
    %v5956 = vpack.c.b16 %v5772, %v5764
    %v5957 = vpack.c.b16 %v5773, %v5765
    %v5958 = vpack.c.b16 %v5774, %v5766
    %v5959 = vpack.c.b16 %v5775, %v5767
    %v5960 = vpack.c.b16 %v5776, %v5768
    %v5961 = vpack.c.b16 %v5777, %v5769
    %v5962 = vpack.c.b16 %v5778, %v5770
    %v5963 = vpack.c.b16 %v5787, %v5779
    %v5964 = vpack.c.b16 %v5788, %v5780
    %v5965 = vpack.c.b16 %v5789, %v5781
    %v5966 = vpack.c.b16 %v5790, %v5782
    %v5967 = vpack.c.b16 %v5791, %v5783
    %v5968 = vpack.c.b16 %v5792, %v5784
    %v5969 = vpack.c.b16 %v5793, %v5785
    %v5970 = vpack.c.b16 %v5794, %v5786
    %v5971 = vpack.c.b16 %v5803, %v5795
    %v5972 = vpack.c.b16 %v5804, %v5796
    %v5973 = vpack.c.b16 %v5805, %v5797
    %v5974 = vpack.c.b16 %v5806, %v5798
    %v5975 = vpack.c.b16 %v5807, %v5799
    %v5976 = vpack.c.b16 %v5808, %v5800
    %v5977 = vpack.c.b16 %v5809, %v5801
    %v5978 = vpack.c.b16 %v5810, %v5802
    %v5979 = vpack.c.b16 %v5819, %v5811
    %v5980 = vpack.c.b16 %v5820, %v5812
    %v5981 = vpack.c.b16 %v5821, %v5813
    %v5982 = vpack.c.b16 %v5822, %v5814
    %v5983 = vpack.c.b16 %v5823, %v5815
    %v5984 = vpack.c.b16 %v5824, %v5816
    %v5985 = vpack.c.b16 %v5825, %v5817
    %v5986 = vpack.c.b16 %v5826, %v5818
    %v5987 = vpack.c.b16 %v5835, %v5827
    %v5988 = vpack.c.b16 %v5836, %v5828
    %v5989 = vpack.c.b16 %v5837, %v5829
    %v5990 = vpack.c.b16 %v5838, %v5830
    %v5991 = vpack.c.b16 %v5839, %v5831
    %v5992 = vpack.c.b16 %v5840, %v5832
    %v5993 = vpack.c.b16 %v5841, %v5833
    %v5994 = vpack.c.b16 %v5842, %v5834
    %v5995 = vpack.c.b16 %v5851, %v5843
    %v5996 = vpack.c.b16 %v5852, %v5844
    %v5997 = vpack.c.b16 %v5853, %v5845
    %v5998 = vpack.c.b16 %v5854, %v5846
    %v5999 = vpack.c.b16 %v5855, %v5847
    %v6000 = vpack.c.b16 %v5856, %v5848
    %v6001 = vpack.c.b16 %v5857, %v5849
    %v6002 = vpack.c.b16 %v5858, %v5850
    %v6003 = vpack.c.b16 %v5867, %v5859
    %v6004 = vpack.c.b16 %v5868, %v5860
    %v6005 = vpack.c.b16 %v5869, %v5861
    %v6006 = vpack.c.b16 %v5870, %v5862
    %v6007 = vpack.c.b16 %v5871, %v5863
    %v6008 = vpack.c.b16 %v5872, %v5864
    %v6009 = vpack.c.b16 %v5873, %v5865
    %v6010 = vpack.c.b16 %v5874, %v5866
    %v6011 = vpack.c.b16 %v5883, %v5875
    %v6012 = vpack.c.b16 %v5884, %v5876
    %v6013 = vpack.c.b16 %v5885, %v5877
    %v6014 = vpack.c.b16 %v5886, %v5878
    %v6015 = vpack.c.b16 %v5887, %v5879
    %v6016 = vpack.c.b16 %v5888, %v5880
    %v6017 = vpack.c.b16 %v5889, %v5881
    %v6018 = vpack.c.b16 %v5890, %v5882
    %6147 = vmatpush.bf16.msra.mxu0 %v5947
    %6148 = vmatpush.bf16.msra.mxu0 %v5939
    %6149 = vmatpush.bf16.msra.mxu0 %v5931
    %6150 = vmatpush.bf16.msra.mxu0 %v5923
    %6151 = vmatpush.bf16.msra.mxu0 %v5915
    %6152 = vmatpush.bf16.msra.mxu0 %v5907
    %6153 = vmatpush.bf16.msra.mxu0 %v5899
    %6154 = vmatpush.bf16.msra.mxu0 %v5891
    %6155 = vmatmul.bf16.gmra.mxu0 %v5377
    %v6156 = vpop.f32.mrf.mxu0
    %v6157 = vadd.f32 0.0, %v6156
    %v6158 = vpop.f32.mrf.mxu0
    %6159 = vdwg.mxu0
    %6160 = vmatpush.bf16.msra.mxu0 %v6011
    %6161 = vmatpush.bf16.msra.mxu0 %v6003
    %6162 = vmatpush.bf16.msra.mxu0 %v5995
    %6163 = vmatpush.bf16.msra.mxu0 %v5987
    %6164 = vmatpush.bf16.msra.mxu0 %v5979
    %6165 = vmatpush.bf16.msra.mxu0 %v5971
    %6166 = vmatpush.bf16.msra.mxu0 %v5963
    %6167 = vmatpush.bf16.msra.mxu0 %v5955
    %6168 = vmatmul.bf16.gmra.mxu0 %v5378
    %v6169 = vpop.f32.mrf.mxu0
    %v6170 = vadd.f32 %v6157, %v6169
    %v6171 = vpop.f32.mrf.mxu0
    %6172 = vdwg.mxu0
    %6173 = vmatpush.bf16.msra.mxu0 %v5948
    %6174 = vmatpush.bf16.msra.mxu0 %v5940
    %6175 = vmatpush.bf16.msra.mxu0 %v5932
    %6176 = vmatpush.bf16.msra.mxu0 %v5924
    %6177 = vmatpush.bf16.msra.mxu0 %v5916
    %6178 = vmatpush.bf16.msra.mxu0 %v5908
    %6179 = vmatpush.bf16.msra.mxu0 %v5900
    %6180 = vmatpush.bf16.msra.mxu0 %v5892
    %6181 = vmatmul.bf16.gmra.mxu0 %v5377
    %v6182 = vpop.f32.mrf.mxu0
    %v6183 = vadd.f32 0.0, %v6182
    %v6184 = vpop.f32.mrf.mxu0
    %6185 = vdwg.mxu0
    %6186 = vmatpush.bf16.msra.mxu0 %v6012
    %6187 = vmatpush.bf16.msra.mxu0 %v6004
    %6188 = vmatpush.bf16.msra.mxu0 %v5996
    %6189 = vmatpush.bf16.msra.mxu0 %v5988
    %6190 = vmatpush.bf16.msra.mxu0 %v5980
    %6191 = vmatpush.bf16.msra.mxu0 %v5972
    %6192 = vmatpush.bf16.msra.mxu0 %v5964
    %6193 = vmatpush.bf16.msra.mxu0 %v5956
    %6194 = vmatmul.bf16.gmra.mxu0 %v5378
    %v6195 = vpop.f32.mrf.mxu0
    %v6196 = vadd.f32 %v6183, %v6195
    %v6197 = vpop.f32.mrf.mxu0
    %6198 = vdwg.mxu0
    %6199 = vmatpush.bf16.msra.mxu0 %v5949
    %6200 = vmatpush.bf16.msra.mxu0 %v5941
    %6201 = vmatpush.bf16.msra.mxu0 %v5933
    %6202 = vmatpush.bf16.msra.mxu0 %v5925
    %6203 = vmatpush.bf16.msra.mxu0 %v5917
    %6204 = vmatpush.bf16.msra.mxu0 %v5909
    %6205 = vmatpush.bf16.msra.mxu0 %v5901
    %6206 = vmatpush.bf16.msra.mxu0 %v5893
    %6207 = vmatmul.bf16.gmra.mxu0 %v5377
    %v6208 = vpop.f32.mrf.mxu0
    %v6209 = vadd.f32 0.0, %v6208
    %v6210 = vpop.f32.mrf.mxu0
    %6211 = vdwg.mxu0
    %6212 = vmatpush.bf16.msra.mxu0 %v6013
    %6213 = vmatpush.bf16.msra.mxu0 %v6005
    %6214 = vmatpush.bf16.msra.mxu0 %v5997
    %6215 = vmatpush.bf16.msra.mxu0 %v5989
    %6216 = vmatpush.bf16.msra.mxu0 %v5981
    %6217 = vmatpush.bf16.msra.mxu0 %v5973
    %6218 = vmatpush.bf16.msra.mxu0 %v5965
    %6219 = vmatpush.bf16.msra.mxu0 %v5957
    %6220 = vmatmul.bf16.gmra.mxu0 %v5378
    %v6221 = vpop.f32.mrf.mxu0
    %v6222 = vadd.f32 %v6209, %v6221
    %v6223 = vpop.f32.mrf.mxu0
    %6224 = vdwg.mxu0
    %6225 = vmatpush.bf16.msra.mxu0 %v5950
    %6226 = vmatpush.bf16.msra.mxu0 %v5942
    %6227 = vmatpush.bf16.msra.mxu0 %v5934
    %6228 = vmatpush.bf16.msra.mxu0 %v5926
    %6229 = vmatpush.bf16.msra.mxu0 %v5918
    %6230 = vmatpush.bf16.msra.mxu0 %v5910
    %6231 = vmatpush.bf16.msra.mxu0 %v5902
    %6232 = vmatpush.bf16.msra.mxu0 %v5894
    %6233 = vmatmul.bf16.gmra.mxu0 %v5377
    %v6234 = vpop.f32.mrf.mxu0
    %v6235 = vadd.f32 0.0, %v6234
    %v6236 = vpop.f32.mrf.mxu0
    %6237 = vdwg.mxu0
    %6238 = vmatpush.bf16.msra.mxu0 %v6014
    %6239 = vmatpush.bf16.msra.mxu0 %v6006
    %6240 = vmatpush.bf16.msra.mxu0 %v5998
    %6241 = vmatpush.bf16.msra.mxu0 %v5990
    %6242 = vmatpush.bf16.msra.mxu0 %v5982
    %6243 = vmatpush.bf16.msra.mxu0 %v5974
    %6244 = vmatpush.bf16.msra.mxu0 %v5966
    %6245 = vmatpush.bf16.msra.mxu0 %v5958
    %6246 = vmatmul.bf16.gmra.mxu0 %v5378
    %v6247 = vpop.f32.mrf.mxu0
    %v6248 = vadd.f32 %v6235, %v6247
    %v6249 = vpop.f32.mrf.mxu0
    %6250 = vdwg.mxu0
    %6251 = vmatpush.bf16.msra.mxu0 %v5951
    %6252 = vmatpush.bf16.msra.mxu0 %v5943
    %6253 = vmatpush.bf16.msra.mxu0 %v5935
    %6254 = vmatpush.bf16.msra.mxu0 %v5927
    %6255 = vmatpush.bf16.msra.mxu0 %v5919
    %6256 = vmatpush.bf16.msra.mxu0 %v5911
    %6257 = vmatpush.bf16.msra.mxu0 %v5903
    %6258 = vmatpush.bf16.msra.mxu0 %v5895
    %6259 = vmatmul.bf16.gmra.mxu0 %v5377
    %v6260 = vpop.f32.mrf.mxu0
    %v6261 = vadd.f32 0.0, %v6260
    %v6262 = vpop.f32.mrf.mxu0
    %6263 = vdwg.mxu0
    %6264 = vmatpush.bf16.msra.mxu0 %v6015
    %6265 = vmatpush.bf16.msra.mxu0 %v6007
    %6266 = vmatpush.bf16.msra.mxu0 %v5999
    %6267 = vmatpush.bf16.msra.mxu0 %v5991
    %6268 = vmatpush.bf16.msra.mxu0 %v5983
    %6269 = vmatpush.bf16.msra.mxu0 %v5975
    %6270 = vmatpush.bf16.msra.mxu0 %v5967
    %6271 = vmatpush.bf16.msra.mxu0 %v5959
    %6272 = vmatmul.bf16.gmra.mxu0 %v5378
    %v6273 = vpop.f32.mrf.mxu0
    %v6274 = vadd.f32 %v6261, %v6273
    %v6275 = vpop.f32.mrf.mxu0
    %6276 = vdwg.mxu0
    %6277 = vmatpush.bf16.msra.mxu0 %v5952
    %6278 = vmatpush.bf16.msra.mxu0 %v5944
    %6279 = vmatpush.bf16.msra.mxu0 %v5936
    %6280 = vmatpush.bf16.msra.mxu0 %v5928
    %6281 = vmatpush.bf16.msra.mxu0 %v5920
    %6282 = vmatpush.bf16.msra.mxu0 %v5912
    %6283 = vmatpush.bf16.msra.mxu0 %v5904
    %6284 = vmatpush.bf16.msra.mxu0 %v5896
    %6285 = vmatmul.bf16.gmra.mxu0 %v5377
    %v6286 = vpop.f32.mrf.mxu0
    %v6287 = vadd.f32 0.0, %v6286
    %v6288 = vpop.f32.mrf.mxu0
    %6289 = vdwg.mxu0
    %6290 = vmatpush.bf16.msra.mxu0 %v6016
    %6291 = vmatpush.bf16.msra.mxu0 %v6008
    %6292 = vmatpush.bf16.msra.mxu0 %v6000
    %6293 = vmatpush.bf16.msra.mxu0 %v5992
    %6294 = vmatpush.bf16.msra.mxu0 %v5984
    %6295 = vmatpush.bf16.msra.mxu0 %v5976
    %6296 = vmatpush.bf16.msra.mxu0 %v5968
    %6297 = vmatpush.bf16.msra.mxu0 %v5960
    %6298 = vmatmul.bf16.gmra.mxu0 %v5378
    %v6299 = vpop.f32.mrf.mxu0
    %v6300 = vadd.f32 %v6287, %v6299
    %v6301 = vpop.f32.mrf.mxu0
    %6302 = vdwg.mxu0
    %6303 = vmatpush.bf16.msra.mxu0 %v5953
    %6304 = vmatpush.bf16.msra.mxu0 %v5945
    %6305 = vmatpush.bf16.msra.mxu0 %v5937
    %6306 = vmatpush.bf16.msra.mxu0 %v5929
    %6307 = vmatpush.bf16.msra.mxu0 %v5921
    %6308 = vmatpush.bf16.msra.mxu0 %v5913
    %6309 = vmatpush.bf16.msra.mxu0 %v5905
    %6310 = vmatpush.bf16.msra.mxu0 %v5897
    %6311 = vmatmul.bf16.gmra.mxu0 %v5377
    %v6312 = vpop.f32.mrf.mxu0
    %v6313 = vadd.f32 0.0, %v6312
    %v6314 = vpop.f32.mrf.mxu0
    %6315 = vdwg.mxu0
    %6316 = vmatpush.bf16.msra.mxu0 %v6017
    %6317 = vmatpush.bf16.msra.mxu0 %v6009
    %6318 = vmatpush.bf16.msra.mxu0 %v6001
    %6319 = vmatpush.bf16.msra.mxu0 %v5993
    %6320 = vmatpush.bf16.msra.mxu0 %v5985
    %6321 = vmatpush.bf16.msra.mxu0 %v5977
    %6322 = vmatpush.bf16.msra.mxu0 %v5969
    %6323 = vmatpush.bf16.msra.mxu0 %v5961
    %6324 = vmatmul.bf16.gmra.mxu0 %v5378
    %v6325 = vpop.f32.mrf.mxu0
    %v6326 = vadd.f32 %v6313, %v6325
    %v6327 = vpop.f32.mrf.mxu0
    %6328 = vdwg.mxu0
    %6329 = vmatpush.bf16.msra.mxu0 %v5954
    %6330 = vmatpush.bf16.msra.mxu0 %v5946
    %6331 = vmatpush.bf16.msra.mxu0 %v5938
    %6332 = vmatpush.bf16.msra.mxu0 %v5930
    %6333 = vmatpush.bf16.msra.mxu0 %v5922
    %6334 = vmatpush.bf16.msra.mxu0 %v5914
    %6335 = vmatpush.bf16.msra.mxu0 %v5906
    %6336 = vmatpush.bf16.msra.mxu0 %v5898
    %6337 = vmatmul.bf16.gmra.mxu0 %v5377
    %v6338 = vpop.f32.mrf.mxu0
    %v6339 = vadd.f32 0.0, %v6338
    %v6340 = vpop.f32.mrf.mxu0
    %6341 = vdwg.mxu0
    %6342 = vmatpush.bf16.msra.mxu0 %v6018
    %6343 = vmatpush.bf16.msra.mxu0 %v6010
    %6344 = vmatpush.bf16.msra.mxu0 %v6002
    %6345 = vmatpush.bf16.msra.mxu0 %v5994
    %6346 = vmatpush.bf16.msra.mxu0 %v5986
    %6347 = vmatpush.bf16.msra.mxu0 %v5978
    %6348 = vmatpush.bf16.msra.mxu0 %v5970
    %6349 = vmatpush.bf16.msra.mxu0 %v5962
    %6350 = vmatmul.bf16.gmra.mxu0 %v5378
    %v6351 = vpop.f32.mrf.mxu0
    %v6352 = vadd.f32 %v6339, %v6351
    %v6353 = vpop.f32.mrf.mxu0
    %6354 = vdwg.mxu0
    %v6355 = vld [vmem:[%s5226] sm:$0xff]
    %v6356 = vld [vmem:[%s5226 + $0x8] sm:$0xff]
    %v6357 = vld [vmem:[%s5226 + $0x10] sm:$0xff]
    %v6358 = vld [vmem:[%s5226 + $0x18] sm:$0xff]
    %v6359 = vadd.f32 %v6355, %v6170
    %v6360 = vadd.f32 %v6356, %v6196
    %v6361 = vadd.f32 %v6357, %v6222
    %v6362 = vadd.f32 %v6358, %v6248
    %v6363 = vld [vmem:[%s5217 + $0x20] sm:$0xff]
    %v6364 = vld [vmem:[%s5217 + $0x28] sm:$0xff]
    %v6365 = vld [vmem:[%s5217 + $0x30] sm:$0xff]
    %v6366 = vld [vmem:[%s5217 + $0x38] sm:$0xff]
    %v6367 = vadd.f32 %v6363, %v6274
    %v6368 = vadd.f32 %v6364, %v6300
    %v6369 = vadd.f32 %v6365, %v6326
    %v6370 = vadd.f32 %v6366, %v6352
    %v6371 = vxor.u32 %v6359, 2147483648
    %v6372 = vmul.f32 %v6371, 1.442695
    %v6373 = vpow.pop %v6372
    %v6374 = vadd.f32 %v6373, 1.0
    %v6375 = vrcp.pop %v6374
    %v6376 = vmul.f32 %v6374, %v6375
    %v6377 = vsub.f32 1.0, %v6376
    %v6378 = vmul.f32 %v6375, %v6377
    %v6379 = vadd.f32 %v6375, %v6378
    %vm6380 = vweird.f32 %v6374
    %vm6381 = vweird.f32 %v6375
    %vm6382 = vmor %vm6380, %vm6381
    %v6383 = vsel %vm6382, %v6375, %v6379
    %v6384 = vand.u32 2147483647, %v6374
    %vm6385 = vcmp.eq.f32.partialorder %v6384, 8.507059e+37
    %v6386 = vand.u32 %v6374, 2147483648
    %v6387 = vor.u32 1.1754944e-38, %v6386
    %v6388 = vsel %vm6385, %v6387, %v6383
    %v6389 = vmul.f32 1.0, %v6388
    %v6390 = vxor.u32 %v6360, 2147483648
    %v6391 = vmul.f32 %v6390, 1.442695
    %v6392 = vpow.pop %v6391
    %v6393 = vadd.f32 %v6392, 1.0
    %v6394 = vrcp.pop %v6393
    %v6395 = vmul.f32 %v6393, %v6394
    %v6396 = vsub.f32 1.0, %v6395
    %v6397 = vmul.f32 %v6394, %v6396
    %v6398 = vadd.f32 %v6394, %v6397
    %vm6399 = vweird.f32 %v6393
    %vm6400 = vweird.f32 %v6394
    %vm6401 = vmor %vm6399, %vm6400
    %v6402 = vsel %vm6401, %v6394, %v6398
    %v6403 = vand.u32 2147483647, %v6393
    %vm6404 = vcmp.eq.f32.partialorder %v6403, 8.507059e+37
    %v6405 = vand.u32 %v6393, 2147483648
    %v6406 = vor.u32 1.1754944e-38, %v6405
    %v6407 = vsel %vm6404, %v6406, %v6402
    %v6408 = vmul.f32 1.0, %v6407
    %v6409 = vtanh.pop %v6361
    %v6410 = vxor.u32 %v6362, 2147483648
    %v6411 = vmul.f32 %v6410, 1.442695
    %v6412 = vpow.pop %v6411
    %v6413 = vadd.f32 %v6412, 1.0
    %v6414 = vrcp.pop %v6413
    %v6415 = vmul.f32 %v6413, %v6414
    %v6416 = vsub.f32 1.0, %v6415
    %v6417 = vmul.f32 %v6414, %v6416
    %v6418 = vadd.f32 %v6414, %v6417
    %vm6419 = vweird.f32 %v6413
    %vm6420 = vweird.f32 %v6414
    %vm6421 = vmor %vm6419, %vm6420
    %v6422 = vsel %vm6421, %v6414, %v6418
    %v6423 = vand.u32 2147483647, %v6413
    %vm6424 = vcmp.eq.f32.partialorder %v6423, 8.507059e+37
    %v6425 = vand.u32 %v6413, 2147483648
    %v6426 = vor.u32 1.1754944e-38, %v6425
    %v6427 = vsel %vm6424, %v6426, %v6422
    %v6428 = vmul.f32 1.0, %v6427
    %v6429 = vmul.f32 %v6408, %v5375
    %v6430 = vmul.f32 %v6389, %v6409
    %v6431 = vadd.f32 %v6429, %v6430
    %v6432 = vtanh.pop %v6431
    %v6433 = vmul.f32 %v6428, %v6432
    %v6434 = vxor.u32 %v6367, 2147483648
    %v6435 = vmul.f32 %v6434, 1.442695
    %v6436 = vpow.pop %v6435
    %v6437 = vadd.f32 %v6436, 1.0
    %v6438 = vrcp.pop %v6437
    %v6439 = vmul.f32 %v6437, %v6438
    %v6440 = vsub.f32 1.0, %v6439
    %v6441 = vmul.f32 %v6438, %v6440
    %v6442 = vadd.f32 %v6438, %v6441
    %vm6443 = vweird.f32 %v6437
    %vm6444 = vweird.f32 %v6438
    %vm6445 = vmor %vm6443, %vm6444
    %v6446 = vsel %vm6445, %v6438, %v6442
    %v6447 = vand.u32 2147483647, %v6437
    %vm6448 = vcmp.eq.f32.partialorder %v6447, 8.507059e+37
    %v6449 = vand.u32 %v6437, 2147483648
    %v6450 = vor.u32 1.1754944e-38, %v6449
    %v6451 = vsel %vm6448, %v6450, %v6446
    %v6452 = vmul.f32 1.0, %v6451
    %v6453 = vxor.u32 %v6368, 2147483648
    %v6454 = vmul.f32 %v6453, 1.442695
    %v6455 = vpow.pop %v6454
    %v6456 = vadd.f32 %v6455, 1.0
    %v6457 = vrcp.pop %v6456
    %v6458 = vmul.f32 %v6456, %v6457
    %v6459 = vsub.f32 1.0, %v6458
    %v6460 = vmul.f32 %v6457, %v6459
    %v6461 = vadd.f32 %v6457, %v6460
    %vm6462 = vweird.f32 %v6456
    %vm6463 = vweird.f32 %v6457
    %vm6464 = vmor %vm6462, %vm6463
    %v6465 = vsel %vm6464, %v6457, %v6461
    %v6466 = vand.u32 2147483647, %v6456
    %vm6467 = vcmp.eq.f32.partialorder %v6466, 8.507059e+37
    %v6468 = vand.u32 %v6456, 2147483648
    %v6469 = vor.u32 1.1754944e-38, %v6468
    %v6470 = vsel %vm6467, %v6469, %v6465
    %v6471 = vmul.f32 1.0, %v6470
    %v6472 = vtanh.pop %v6369
    %v6473 = vxor.u32 %v6370, 2147483648
    %v6474 = vmul.f32 %v6473, 1.442695
    %v6475 = vpow.pop %v6474
    %v6476 = vadd.f32 %v6475, 1.0
    %v6477 = vrcp.pop %v6476
    %v6478 = vmul.f32 %v6476, %v6477
    %v6479 = vsub.f32 1.0, %v6478
    %v6480 = vmul.f32 %v6477, %v6479
    %v6481 = vadd.f32 %v6477, %v6480
    %vm6482 = vweird.f32 %v6476
    %vm6483 = vweird.f32 %v6477
    %vm6484 = vmor %vm6482, %vm6483
    %v6485 = vsel %vm6484, %v6477, %v6481
    %v6486 = vand.u32 2147483647, %v6476
    %vm6487 = vcmp.eq.f32.partialorder %v6486, 8.507059e+37
    %v6488 = vand.u32 %v6476, 2147483648
    %v6489 = vor.u32 1.1754944e-38, %v6488
    %v6490 = vsel %vm6487, %v6489, %v6485
    %v6491 = vmul.f32 1.0, %v6490
    %v6492 = vmul.f32 %v6471, %v5376
    %v6493 = vmul.f32 %v6452, %v6472
    %v6494 = vadd.f32 %v6492, %v6493
    %v6495 = vtanh.pop %v6494
    %v6496 = vmul.f32 %v6491, %v6495
    %v6497 = vld [vmem:[%s5364] sm:$0xff]
    %vm6498 = vcmp.gt.f32.partialorder %v6497, 0.0
    %v6499 = vld [vmem:[%s5361] sm:$0xff]
    %vm6500 = vcmp.gt.f32.partialorder %v6499, 0.0
    %v6501 = vsel %vm6498, %v6433, 0.0
    %s6502 = scalar_lea.vmem [#allocation3], 32
    %6503 = vst [vmem:[%s6502] sm:$0xff] %v6501
    %v6504 = vsel %vm6500, %v6496, 0.0
    %s6505 = scalar_lea.vmem [#allocation4], 24
    %6506 = vst [vmem:[%s6505] sm:$0xff] %v6504
    %v6507 = vsel %vm6498, %v6433, %v5373
    %v6508 = vsel %vm6500, %v6496, %v5374
    %v6509 = vsel %vm6498, %v6431, %v5375
    %v6510 = vsel %vm6500, %v6494, %v5376
    %v6511 = vpack.c.bf16 %v6507, %v6507
    %v6512 = vpack.c.bf16 %v6508, %v6508
    %v6513 = vld [vmem:[#allocation7] sm:$0xff]
    %v6514 = vld [vmem:[#allocation7 + $0x8] sm:$0xff]
    %v6515 = vld [vmem:[#allocation7 + $0x10] sm:$0xff]
    %v6516 = vld [vmem:[#allocation7 + $0x18] sm:$0xff]
    %v6517 = vld [vmem:[#allocation7 + $0x20] sm:$0xff]
    %v6518 = vld [vmem:[#allocation7 + $0x28] sm:$0xff]
    %v6519 = vld [vmem:[#allocation7 + $0x30] sm:$0xff]
    %v6520 = vld [vmem:[#allocation7 + $0x38] sm:$0xff]
    %v6521 = vld [vmem:[#allocation7 + $0x40] sm:$0xff]
    %v6522 = vld [vmem:[#allocation7 + $0x48] sm:$0xff]
    %v6523 = vld [vmem:[#allocation7 + $0x50] sm:$0xff]
    %v6524 = vld [vmem:[#allocation7 + $0x58] sm:$0xff]
    %v6525 = vld [vmem:[#allocation7 + $0x60] sm:$0xff]
    %v6526 = vld [vmem:[#allocation7 + $0x68] sm:$0xff]
    %v6527 = vld [vmem:[#allocation7 + $0x70] sm:$0xff]
    %v6528 = vld [vmem:[#allocation7 + $0x78] sm:$0xff]
    %v6529 = vld [vmem:[#allocation7 + $0x80] sm:$0xff]
    %v6530 = vld [vmem:[#allocation7 + $0x88] sm:$0xff]
    %v6531 = vld [vmem:[#allocation7 + $0x90] sm:$0xff]
    %v6532 = vld [vmem:[#allocation7 + $0x98] sm:$0xff]
    %v6533 = vld [vmem:[#allocation7 + $0xa0] sm:$0xff]
    %v6534 = vld [vmem:[#allocation7 + $0xa8] sm:$0xff]
    %v6535 = vld [vmem:[#allocation7 + $0xb0] sm:$0xff]
    %v6536 = vld [vmem:[#allocation7 + $0xb8] sm:$0xff]
    %v6537 = vld [vmem:[#allocation7 + $0xc0] sm:$0xff]
    %v6538 = vld [vmem:[#allocation7 + $0xc8] sm:$0xff]
    %v6539 = vld [vmem:[#allocation7 + $0xd0] sm:$0xff]
    %v6540 = vld [vmem:[#allocation7 + $0xd8] sm:$0xff]
    %v6541 = vld [vmem:[#allocation7 + $0xe0] sm:$0xff]
    %v6542 = vld [vmem:[#allocation7 + $0xe8] sm:$0xff]
    %v6543 = vld [vmem:[#allocation7 + $0xf0] sm:$0xff]
    %v6544 = vld [vmem:[#allocation7 + $0xf8] sm:$0xff]
    %v6545 = vld [vmem:[#allocation7 + $0x100] sm:$0xff]
    %v6546 = vld [vmem:[#allocation7 + $0x108] sm:$0xff]
    %v6547 = vld [vmem:[#allocation7 + $0x110] sm:$0xff]
    %v6548 = vld [vmem:[#allocation7 + $0x118] sm:$0xff]
    %v6549 = vld [vmem:[#allocation7 + $0x120] sm:$0xff]
    %v6550 = vld [vmem:[#allocation7 + $0x128] sm:$0xff]
    %v6551 = vld [vmem:[#allocation7 + $0x130] sm:$0xff]
    %v6552 = vld [vmem:[#allocation7 + $0x138] sm:$0xff]
    %v6553 = vld [vmem:[#allocation7 + $0x140] sm:$0xff]
    %v6554 = vld [vmem:[#allocation7 + $0x148] sm:$0xff]
    %v6555 = vld [vmem:[#allocation7 + $0x150] sm:$0xff]
    %v6556 = vld [vmem:[#allocation7 + $0x158] sm:$0xff]
    %v6557 = vld [vmem:[#allocation7 + $0x160] sm:$0xff]
    %v6558 = vld [vmem:[#allocation7 + $0x168] sm:$0xff]
    %v6559 = vld [vmem:[#allocation7 + $0x170] sm:$0xff]
    %v6560 = vld [vmem:[#allocation7 + $0x178] sm:$0xff]
    %v6561 = vld [vmem:[#allocation7 + $0x180] sm:$0xff]
    %v6562 = vld [vmem:[#allocation7 + $0x188] sm:$0xff]
    %v6563 = vld [vmem:[#allocation7 + $0x190] sm:$0xff]
    %v6564 = vld [vmem:[#allocation7 + $0x198] sm:$0xff]
    %v6565 = vld [vmem:[#allocation7 + $0x1a0] sm:$0xff]
    %v6566 = vld [vmem:[#allocation7 + $0x1a8] sm:$0xff]
    %v6567 = vld [vmem:[#allocation7 + $0x1b0] sm:$0xff]
    %v6568 = vld [vmem:[#allocation7 + $0x1b8] sm:$0xff]
    %v6569 = vld [vmem:[#allocation7 + $0x1c0] sm:$0xff]
    %v6570 = vld [vmem:[#allocation7 + $0x1c8] sm:$0xff]
    %v6571 = vld [vmem:[#allocation7 + $0x1d0] sm:$0xff]
    %v6572 = vld [vmem:[#allocation7 + $0x1d8] sm:$0xff]
    %v6573 = vld [vmem:[#allocation7 + $0x1e0] sm:$0xff]
    %v6574 = vld [vmem:[#allocation7 + $0x1e8] sm:$0xff]
    %v6575 = vld [vmem:[#allocation7 + $0x1f0] sm:$0xff]
    %v6576 = vld [vmem:[#allocation7 + $0x1f8] sm:$0xff]
    %v6577 = vld [vmem:[#allocation7 + $0x200] sm:$0xff]
    %v6578 = vld [vmem:[#allocation7 + $0x208] sm:$0xff]
    %v6579 = vld [vmem:[#allocation7 + $0x210] sm:$0xff]
    %v6580 = vld [vmem:[#allocation7 + $0x218] sm:$0xff]
    %v6581 = vld [vmem:[#allocation7 + $0x220] sm:$0xff]
    %v6582 = vld [vmem:[#allocation7 + $0x228] sm:$0xff]
    %v6583 = vld [vmem:[#allocation7 + $0x230] sm:$0xff]
    %v6584 = vld [vmem:[#allocation7 + $0x238] sm:$0xff]
    %v6585 = vld [vmem:[#allocation7 + $0x240] sm:$0xff]
    %v6586 = vld [vmem:[#allocation7 + $0x248] sm:$0xff]
    %v6587 = vld [vmem:[#allocation7 + $0x250] sm:$0xff]
    %v6588 = vld [vmem:[#allocation7 + $0x258] sm:$0xff]
    %v6589 = vld [vmem:[#allocation7 + $0x260] sm:$0xff]
    %v6590 = vld [vmem:[#allocation7 + $0x268] sm:$0xff]
    %v6591 = vld [vmem:[#allocation7 + $0x270] sm:$0xff]
    %v6592 = vld [vmem:[#allocation7 + $0x278] sm:$0xff]
    %v6593 = vld [vmem:[#allocation7 + $0x280] sm:$0xff]
    %v6594 = vld [vmem:[#allocation7 + $0x288] sm:$0xff]
    %v6595 = vld [vmem:[#allocation7 + $0x290] sm:$0xff]
    %v6596 = vld [vmem:[#allocation7 + $0x298] sm:$0xff]
    %v6597 = vld [vmem:[#allocation7 + $0x2a0] sm:$0xff]
    %v6598 = vld [vmem:[#allocation7 + $0x2a8] sm:$0xff]
    %v6599 = vld [vmem:[#allocation7 + $0x2b0] sm:$0xff]
    %v6600 = vld [vmem:[#allocation7 + $0x2b8] sm:$0xff]
    %v6601 = vld [vmem:[#allocation7 + $0x2c0] sm:$0xff]
    %v6602 = vld [vmem:[#allocation7 + $0x2c8] sm:$0xff]
    %v6603 = vld [vmem:[#allocation7 + $0x2d0] sm:$0xff]
    %v6604 = vld [vmem:[#allocation7 + $0x2d8] sm:$0xff]
    %v6605 = vld [vmem:[#allocation7 + $0x2e0] sm:$0xff]
    %v6606 = vld [vmem:[#allocation7 + $0x2e8] sm:$0xff]
    %v6607 = vld [vmem:[#allocation7 + $0x2f0] sm:$0xff]
    %v6608 = vld [vmem:[#allocation7 + $0x2f8] sm:$0xff]
    %v6609 = vld [vmem:[#allocation7 + $0x300] sm:$0xff]
    %v6610 = vld [vmem:[#allocation7 + $0x308] sm:$0xff]
    %v6611 = vld [vmem:[#allocation7 + $0x310] sm:$0xff]
    %v6612 = vld [vmem:[#allocation7 + $0x318] sm:$0xff]
    %v6613 = vld [vmem:[#allocation7 + $0x320] sm:$0xff]
    %v6614 = vld [vmem:[#allocation7 + $0x328] sm:$0xff]
    %v6615 = vld [vmem:[#allocation7 + $0x330] sm:$0xff]
    %v6616 = vld [vmem:[#allocation7 + $0x338] sm:$0xff]
    %v6617 = vld [vmem:[#allocation7 + $0x340] sm:$0xff]
    %v6618 = vld [vmem:[#allocation7 + $0x348] sm:$0xff]
    %v6619 = vld [vmem:[#allocation7 + $0x350] sm:$0xff]
    %v6620 = vld [vmem:[#allocation7 + $0x358] sm:$0xff]
    %v6621 = vld [vmem:[#allocation7 + $0x360] sm:$0xff]
    %v6622 = vld [vmem:[#allocation7 + $0x368] sm:$0xff]
    %v6623 = vld [vmem:[#allocation7 + $0x370] sm:$0xff]
    %v6624 = vld [vmem:[#allocation7 + $0x378] sm:$0xff]
    %v6625 = vld [vmem:[#allocation7 + $0x380] sm:$0xff]
    %v6626 = vld [vmem:[#allocation7 + $0x388] sm:$0xff]
    %v6627 = vld [vmem:[#allocation7 + $0x390] sm:$0xff]
    %v6628 = vld [vmem:[#allocation7 + $0x398] sm:$0xff]
    %v6629 = vld [vmem:[#allocation7 + $0x3a0] sm:$0xff]
    %v6630 = vld [vmem:[#allocation7 + $0x3a8] sm:$0xff]
    %v6631 = vld [vmem:[#allocation7 + $0x3b0] sm:$0xff]
    %v6632 = vld [vmem:[#allocation7 + $0x3b8] sm:$0xff]
    %v6633 = vld [vmem:[#allocation7 + $0x3c0] sm:$0xff]
    %v6634 = vld [vmem:[#allocation7 + $0x3c8] sm:$0xff]
    %v6635 = vld [vmem:[#allocation7 + $0x3d0] sm:$0xff]
    %v6636 = vld [vmem:[#allocation7 + $0x3d8] sm:$0xff]
    %v6637 = vld [vmem:[#allocation7 + $0x3e0] sm:$0xff]
    %v6638 = vld [vmem:[#allocation7 + $0x3e8] sm:$0xff]
    %v6639 = vld [vmem:[#allocation7 + $0x3f0] sm:$0xff]
    %v6640 = vld [vmem:[#allocation7 + $0x3f8] sm:$0xff]
    %v6769 = vunpack.c.l.b16 %v6513
    %v6770 = vunpack.c.h.b16 %v6513
    %v6771 = vunpack.c.l.b16 %v6514
    %v6772 = vunpack.c.h.b16 %v6514
    %v6773 = vunpack.c.l.b16 %v6515
    %v6774 = vunpack.c.h.b16 %v6515
    %v6775 = vunpack.c.l.b16 %v6516
    %v6776 = vunpack.c.h.b16 %v6516
    %v6777 = vunpack.c.l.b16 %v6517
    %v6778 = vunpack.c.h.b16 %v6517
    %v6779 = vunpack.c.l.b16 %v6518
    %v6780 = vunpack.c.h.b16 %v6518
    %v6781 = vunpack.c.l.b16 %v6519
    %v6782 = vunpack.c.h.b16 %v6519
    %v6783 = vunpack.c.l.b16 %v6520
    %v6784 = vunpack.c.h.b16 %v6520
    %v6785 = vunpack.c.l.b16 %v6521
    %v6786 = vunpack.c.h.b16 %v6521
    %v6787 = vunpack.c.l.b16 %v6522
    %v6788 = vunpack.c.h.b16 %v6522
    %v6789 = vunpack.c.l.b16 %v6523
    %v6790 = vunpack.c.h.b16 %v6523
    %v6791 = vunpack.c.l.b16 %v6524
    %v6792 = vunpack.c.h.b16 %v6524
    %v6793 = vunpack.c.l.b16 %v6525
    %v6794 = vunpack.c.h.b16 %v6525
    %v6795 = vunpack.c.l.b16 %v6526
    %v6796 = vunpack.c.h.b16 %v6526
    %v6797 = vunpack.c.l.b16 %v6527
    %v6798 = vunpack.c.h.b16 %v6527
    %v6799 = vunpack.c.l.b16 %v6528
    %v6800 = vunpack.c.h.b16 %v6528
    %v6801 = vunpack.c.l.b16 %v6529
    %v6802 = vunpack.c.h.b16 %v6529
    %v6803 = vunpack.c.l.b16 %v6530
    %v6804 = vunpack.c.h.b16 %v6530
    %v6805 = vunpack.c.l.b16 %v6531
    %v6806 = vunpack.c.h.b16 %v6531
    %v6807 = vunpack.c.l.b16 %v6532
    %v6808 = vunpack.c.h.b16 %v6532
    %v6809 = vunpack.c.l.b16 %v6533
    %v6810 = vunpack.c.h.b16 %v6533
    %v6811 = vunpack.c.l.b16 %v6534
    %v6812 = vunpack.c.h.b16 %v6534
    %v6813 = vunpack.c.l.b16 %v6535
    %v6814 = vunpack.c.h.b16 %v6535
    %v6815 = vunpack.c.l.b16 %v6536
    %v6816 = vunpack.c.h.b16 %v6536
    %v6817 = vunpack.c.l.b16 %v6537
    %v6818 = vunpack.c.h.b16 %v6537
    %v6819 = vunpack.c.l.b16 %v6538
    %v6820 = vunpack.c.h.b16 %v6538
    %v6821 = vunpack.c.l.b16 %v6539
    %v6822 = vunpack.c.h.b16 %v6539
    %v6823 = vunpack.c.l.b16 %v6540
    %v6824 = vunpack.c.h.b16 %v6540
    %v6825 = vunpack.c.l.b16 %v6541
    %v6826 = vunpack.c.h.b16 %v6541
    %v6827 = vunpack.c.l.b16 %v6542
    %v6828 = vunpack.c.h.b16 %v6542
    %v6829 = vunpack.c.l.b16 %v6543
    %v6830 = vunpack.c.h.b16 %v6543
    %v6831 = vunpack.c.l.b16 %v6544
    %v6832 = vunpack.c.h.b16 %v6544
    %v6833 = vunpack.c.l.b16 %v6545
    %v6834 = vunpack.c.h.b16 %v6545
    %v6835 = vunpack.c.l.b16 %v6546
    %v6836 = vunpack.c.h.b16 %v6546
    %v6837 = vunpack.c.l.b16 %v6547
    %v6838 = vunpack.c.h.b16 %v6547
    %v6839 = vunpack.c.l.b16 %v6548
    %v6840 = vunpack.c.h.b16 %v6548
    %v6841 = vunpack.c.l.b16 %v6549
    %v6842 = vunpack.c.h.b16 %v6549
    %v6843 = vunpack.c.l.b16 %v6550
    %v6844 = vunpack.c.h.b16 %v6550
    %v6845 = vunpack.c.l.b16 %v6551
    %v6846 = vunpack.c.h.b16 %v6551
    %v6847 = vunpack.c.l.b16 %v6552
    %v6848 = vunpack.c.h.b16 %v6552
    %v6849 = vunpack.c.l.b16 %v6553
    %v6850 = vunpack.c.h.b16 %v6553
    %v6851 = vunpack.c.l.b16 %v6554
    %v6852 = vunpack.c.h.b16 %v6554
    %v6853 = vunpack.c.l.b16 %v6555
    %v6854 = vunpack.c.h.b16 %v6555
    %v6855 = vunpack.c.l.b16 %v6556
    %v6856 = vunpack.c.h.b16 %v6556
    %v6857 = vunpack.c.l.b16 %v6557
    %v6858 = vunpack.c.h.b16 %v6557
    %v6859 = vunpack.c.l.b16 %v6558
    %v6860 = vunpack.c.h.b16 %v6558
    %v6861 = vunpack.c.l.b16 %v6559
    %v6862 = vunpack.c.h.b16 %v6559
    %v6863 = vunpack.c.l.b16 %v6560
    %v6864 = vunpack.c.h.b16 %v6560
    %v6865 = vunpack.c.l.b16 %v6561
    %v6866 = vunpack.c.h.b16 %v6561
    %v6867 = vunpack.c.l.b16 %v6562
    %v6868 = vunpack.c.h.b16 %v6562
    %v6869 = vunpack.c.l.b16 %v6563
    %v6870 = vunpack.c.h.b16 %v6563
    %v6871 = vunpack.c.l.b16 %v6564
    %v6872 = vunpack.c.h.b16 %v6564
    %v6873 = vunpack.c.l.b16 %v6565
    %v6874 = vunpack.c.h.b16 %v6565
    %v6875 = vunpack.c.l.b16 %v6566
    %v6876 = vunpack.c.h.b16 %v6566
    %v6877 = vunpack.c.l.b16 %v6567
    %v6878 = vunpack.c.h.b16 %v6567
    %v6879 = vunpack.c.l.b16 %v6568
    %v6880 = vunpack.c.h.b16 %v6568
    %v6881 = vunpack.c.l.b16 %v6569
    %v6882 = vunpack.c.h.b16 %v6569
    %v6883 = vunpack.c.l.b16 %v6570
    %v6884 = vunpack.c.h.b16 %v6570
    %v6885 = vunpack.c.l.b16 %v6571
    %v6886 = vunpack.c.h.b16 %v6571
    %v6887 = vunpack.c.l.b16 %v6572
    %v6888 = vunpack.c.h.b16 %v6572
    %v6889 = vunpack.c.l.b16 %v6573
    %v6890 = vunpack.c.h.b16 %v6573
    %v6891 = vunpack.c.l.b16 %v6574
    %v6892 = vunpack.c.h.b16 %v6574
    %v6893 = vunpack.c.l.b16 %v6575
    %v6894 = vunpack.c.h.b16 %v6575
    %v6895 = vunpack.c.l.b16 %v6576
    %v6896 = vunpack.c.h.b16 %v6576
    %v6897 = vunpack.c.l.b16 %v6577
    %v6898 = vunpack.c.h.b16 %v6577
    %v6899 = vunpack.c.l.b16 %v6578
    %v6900 = vunpack.c.h.b16 %v6578
    %v6901 = vunpack.c.l.b16 %v6579
    %v6902 = vunpack.c.h.b16 %v6579
    %v6903 = vunpack.c.l.b16 %v6580
    %v6904 = vunpack.c.h.b16 %v6580
    %v6905 = vunpack.c.l.b16 %v6581
    %v6906 = vunpack.c.h.b16 %v6581
    %v6907 = vunpack.c.l.b16 %v6582
    %v6908 = vunpack.c.h.b16 %v6582
    %v6909 = vunpack.c.l.b16 %v6583
    %v6910 = vunpack.c.h.b16 %v6583
    %v6911 = vunpack.c.l.b16 %v6584
    %v6912 = vunpack.c.h.b16 %v6584
    %v6913 = vunpack.c.l.b16 %v6585
    %v6914 = vunpack.c.h.b16 %v6585
    %v6915 = vunpack.c.l.b16 %v6586
    %v6916 = vunpack.c.h.b16 %v6586
    %v6917 = vunpack.c.l.b16 %v6587
    %v6918 = vunpack.c.h.b16 %v6587
    %v6919 = vunpack.c.l.b16 %v6588
    %v6920 = vunpack.c.h.b16 %v6588
    %v6921 = vunpack.c.l.b16 %v6589
    %v6922 = vunpack.c.h.b16 %v6589
    %v6923 = vunpack.c.l.b16 %v6590
    %v6924 = vunpack.c.h.b16 %v6590
    %v6925 = vunpack.c.l.b16 %v6591
    %v6926 = vunpack.c.h.b16 %v6591
    %v6927 = vunpack.c.l.b16 %v6592
    %v6928 = vunpack.c.h.b16 %v6592
    %v6929 = vunpack.c.l.b16 %v6593
    %v6930 = vunpack.c.h.b16 %v6593
    %v6931 = vunpack.c.l.b16 %v6594
    %v6932 = vunpack.c.h.b16 %v6594
    %v6933 = vunpack.c.l.b16 %v6595
    %v6934 = vunpack.c.h.b16 %v6595
    %v6935 = vunpack.c.l.b16 %v6596
    %v6936 = vunpack.c.h.b16 %v6596
    %v6937 = vunpack.c.l.b16 %v6597
    %v6938 = vunpack.c.h.b16 %v6597
    %v6939 = vunpack.c.l.b16 %v6598
    %v6940 = vunpack.c.h.b16 %v6598
    %v6941 = vunpack.c.l.b16 %v6599
    %v6942 = vunpack.c.h.b16 %v6599
    %v6943 = vunpack.c.l.b16 %v6600
    %v6944 = vunpack.c.h.b16 %v6600
    %v6945 = vunpack.c.l.b16 %v6601
    %v6946 = vunpack.c.h.b16 %v6601
    %v6947 = vunpack.c.l.b16 %v6602
    %v6948 = vunpack.c.h.b16 %v6602
    %v6949 = vunpack.c.l.b16 %v6603
    %v6950 = vunpack.c.h.b16 %v6603
    %v6951 = vunpack.c.l.b16 %v6604
    %v6952 = vunpack.c.h.b16 %v6604
    %v6953 = vunpack.c.l.b16 %v6605
    %v6954 = vunpack.c.h.b16 %v6605
    %v6955 = vunpack.c.l.b16 %v6606
    %v6956 = vunpack.c.h.b16 %v6606
    %v6957 = vunpack.c.l.b16 %v6607
    %v6958 = vunpack.c.h.b16 %v6607
    %v6959 = vunpack.c.l.b16 %v6608
    %v6960 = vunpack.c.h.b16 %v6608
    %v6961 = vunpack.c.l.b16 %v6609
    %v6962 = vunpack.c.h.b16 %v6609
    %v6963 = vunpack.c.l.b16 %v6610
    %v6964 = vunpack.c.h.b16 %v6610
    %v6965 = vunpack.c.l.b16 %v6611
    %v6966 = vunpack.c.h.b16 %v6611
    %v6967 = vunpack.c.l.b16 %v6612
    %v6968 = vunpack.c.h.b16 %v6612
    %v6969 = vunpack.c.l.b16 %v6613
    %v6970 = vunpack.c.h.b16 %v6613
    %v6971 = vunpack.c.l.b16 %v6614
    %v6972 = vunpack.c.h.b16 %v6614
    %v6973 = vunpack.c.l.b16 %v6615
    %v6974 = vunpack.c.h.b16 %v6615
    %v6975 = vunpack.c.l.b16 %v6616
    %v6976 = vunpack.c.h.b16 %v6616
    %v6977 = vunpack.c.l.b16 %v6617
    %v6978 = vunpack.c.h.b16 %v6617
    %v6979 = vunpack.c.l.b16 %v6618
    %v6980 = vunpack.c.h.b16 %v6618
    %v6981 = vunpack.c.l.b16 %v6619
    %v6982 = vunpack.c.h.b16 %v6619
    %v6983 = vunpack.c.l.b16 %v6620
    %v6984 = vunpack.c.h.b16 %v6620
    %v6985 = vunpack.c.l.b16 %v6621
    %v6986 = vunpack.c.h.b16 %v6621
    %v6987 = vunpack.c.l.b16 %v6622
    %v6988 = vunpack.c.h.b16 %v6622
    %v6989 = vunpack.c.l.b16 %v6623
    %v6990 = vunpack.c.h.b16 %v6623
    %v6991 = vunpack.c.l.b16 %v6624
    %v6992 = vunpack.c.h.b16 %v6624
    %v6993 = vunpack.c.l.b16 %v6625
    %v6994 = vunpack.c.h.b16 %v6625
    %v6995 = vunpack.c.l.b16 %v6626
    %v6996 = vunpack.c.h.b16 %v6626
    %v6997 = vunpack.c.l.b16 %v6627
    %v6998 = vunpack.c.h.b16 %v6627
    %v6999 = vunpack.c.l.b16 %v6628
    %v7000 = vunpack.c.h.b16 %v6628
    %v7001 = vunpack.c.l.b16 %v6629
    %v7002 = vunpack.c.h.b16 %v6629
    %v7003 = vunpack.c.l.b16 %v6630
    %v7004 = vunpack.c.h.b16 %v6630
    %v7005 = vunpack.c.l.b16 %v6631
    %v7006 = vunpack.c.h.b16 %v6631
    %v7007 = vunpack.c.l.b16 %v6632
    %v7008 = vunpack.c.h.b16 %v6632
    %v7009 = vunpack.c.l.b16 %v6633
    %v7010 = vunpack.c.h.b16 %v6633
    %v7011 = vunpack.c.l.b16 %v6634
    %v7012 = vunpack.c.h.b16 %v6634
    %v7013 = vunpack.c.l.b16 %v6635
    %v7014 = vunpack.c.h.b16 %v6635
    %v7015 = vunpack.c.l.b16 %v6636
    %v7016 = vunpack.c.h.b16 %v6636
    %v7017 = vunpack.c.l.b16 %v6637
    %v7018 = vunpack.c.h.b16 %v6637
    %v7019 = vunpack.c.l.b16 %v6638
    %v7020 = vunpack.c.h.b16 %v6638
    %v7021 = vunpack.c.l.b16 %v6639
    %v7022 = vunpack.c.h.b16 %v6639
    %v7023 = vunpack.c.l.b16 %v6640
    %v7024 = vunpack.c.h.b16 %v6640
    %v7025 = vpack.c.b16 %v6777, %v6769
    %v7026 = vpack.c.b16 %v6778, %v6770
    %v7027 = vpack.c.b16 %v6779, %v6771
    %v7028 = vpack.c.b16 %v6780, %v6772
    %v7029 = vpack.c.b16 %v6781, %v6773
    %v7030 = vpack.c.b16 %v6782, %v6774
    %v7031 = vpack.c.b16 %v6783, %v6775
    %v7032 = vpack.c.b16 %v6784, %v6776
    %v7033 = vpack.c.b16 %v6793, %v6785
    %v7034 = vpack.c.b16 %v6794, %v6786
    %v7035 = vpack.c.b16 %v6795, %v6787
    %v7036 = vpack.c.b16 %v6796, %v6788
    %v7037 = vpack.c.b16 %v6797, %v6789
    %v7038 = vpack.c.b16 %v6798, %v6790
    %v7039 = vpack.c.b16 %v6799, %v6791
    %v7040 = vpack.c.b16 %v6800, %v6792
    %v7041 = vpack.c.b16 %v6809, %v6801
    %v7042 = vpack.c.b16 %v6810, %v6802
    %v7043 = vpack.c.b16 %v6811, %v6803
    %v7044 = vpack.c.b16 %v6812, %v6804
    %v7045 = vpack.c.b16 %v6813, %v6805
    %v7046 = vpack.c.b16 %v6814, %v6806
    %v7047 = vpack.c.b16 %v6815, %v6807
    %v7048 = vpack.c.b16 %v6816, %v6808
    %v7049 = vpack.c.b16 %v6825, %v6817
    %v7050 = vpack.c.b16 %v6826, %v6818
    %v7051 = vpack.c.b16 %v6827, %v6819
    %v7052 = vpack.c.b16 %v6828, %v6820
    %v7053 = vpack.c.b16 %v6829, %v6821
    %v7054 = vpack.c.b16 %v6830, %v6822
    %v7055 = vpack.c.b16 %v6831, %v6823
    %v7056 = vpack.c.b16 %v6832, %v6824
    %v7057 = vpack.c.b16 %v6841, %v6833
    %v7058 = vpack.c.b16 %v6842, %v6834
    %v7059 = vpack.c.b16 %v6843, %v6835
    %v7060 = vpack.c.b16 %v6844, %v6836
    %v7061 = vpack.c.b16 %v6845, %v6837
    %v7062 = vpack.c.b16 %v6846, %v6838
    %v7063 = vpack.c.b16 %v6847, %v6839
    %v7064 = vpack.c.b16 %v6848, %v6840
    %v7065 = vpack.c.b16 %v6857, %v6849
    %v7066 = vpack.c.b16 %v6858, %v6850
    %v7067 = vpack.c.b16 %v6859, %v6851
    %v7068 = vpack.c.b16 %v6860, %v6852
    %v7069 = vpack.c.b16 %v6861, %v6853
    %v7070 = vpack.c.b16 %v6862, %v6854
    %v7071 = vpack.c.b16 %v6863, %v6855
    %v7072 = vpack.c.b16 %v6864, %v6856
    %v7073 = vpack.c.b16 %v6873, %v6865
    %v7074 = vpack.c.b16 %v6874, %v6866
    %v7075 = vpack.c.b16 %v6875, %v6867
    %v7076 = vpack.c.b16 %v6876, %v6868
    %v7077 = vpack.c.b16 %v6877, %v6869
    %v7078 = vpack.c.b16 %v6878, %v6870
    %v7079 = vpack.c.b16 %v6879, %v6871
    %v7080 = vpack.c.b16 %v6880, %v6872
    %v7081 = vpack.c.b16 %v6889, %v6881
    %v7082 = vpack.c.b16 %v6890, %v6882
    %v7083 = vpack.c.b16 %v6891, %v6883
    %v7084 = vpack.c.b16 %v6892, %v6884
    %v7085 = vpack.c.b16 %v6893, %v6885
    %v7086 = vpack.c.b16 %v6894, %v6886
    %v7087 = vpack.c.b16 %v6895, %v6887
    %v7088 = vpack.c.b16 %v6896, %v6888
    %v7089 = vpack.c.b16 %v6905, %v6897
    %v7090 = vpack.c.b16 %v6906, %v6898
    %v7091 = vpack.c.b16 %v6907, %v6899
    %v7092 = vpack.c.b16 %v6908, %v6900
    %v7093 = vpack.c.b16 %v6909, %v6901
    %v7094 = vpack.c.b16 %v6910, %v6902
    %v7095 = vpack.c.b16 %v6911, %v6903
    %v7096 = vpack.c.b16 %v6912, %v6904
    %v7097 = vpack.c.b16 %v6921, %v6913
    %v7098 = vpack.c.b16 %v6922, %v6914
    %v7099 = vpack.c.b16 %v6923, %v6915
    %v7100 = vpack.c.b16 %v6924, %v6916
    %v7101 = vpack.c.b16 %v6925, %v6917
    %v7102 = vpack.c.b16 %v6926, %v6918
    %v7103 = vpack.c.b16 %v6927, %v6919
    %v7104 = vpack.c.b16 %v6928, %v6920
    %v7105 = vpack.c.b16 %v6937, %v6929
    %v7106 = vpack.c.b16 %v6938, %v6930
    %v7107 = vpack.c.b16 %v6939, %v6931
    %v7108 = vpack.c.b16 %v6940, %v6932
    %v7109 = vpack.c.b16 %v6941, %v6933
    %v7110 = vpack.c.b16 %v6942, %v6934
    %v7111 = vpack.c.b16 %v6943, %v6935
    %v7112 = vpack.c.b16 %v6944, %v6936
    %v7113 = vpack.c.b16 %v6953, %v6945
    %v7114 = vpack.c.b16 %v6954, %v6946
    %v7115 = vpack.c.b16 %v6955, %v6947
    %v7116 = vpack.c.b16 %v6956, %v6948
    %v7117 = vpack.c.b16 %v6957, %v6949
    %v7118 = vpack.c.b16 %v6958, %v6950
    %v7119 = vpack.c.b16 %v6959, %v6951
    %v7120 = vpack.c.b16 %v6960, %v6952
    %v7121 = vpack.c.b16 %v6969, %v6961
    %v7122 = vpack.c.b16 %v6970, %v6962
    %v7123 = vpack.c.b16 %v6971, %v6963
    %v7124 = vpack.c.b16 %v6972, %v6964
    %v7125 = vpack.c.b16 %v6973, %v6965
    %v7126 = vpack.c.b16 %v6974, %v6966
    %v7127 = vpack.c.b16 %v6975, %v6967
    %v7128 = vpack.c.b16 %v6976, %v6968
    %v7129 = vpack.c.b16 %v6985, %v6977
    %v7130 = vpack.c.b16 %v6986, %v6978
    %v7131 = vpack.c.b16 %v6987, %v6979
    %v7132 = vpack.c.b16 %v6988, %v6980
    %v7133 = vpack.c.b16 %v6989, %v6981
    %v7134 = vpack.c.b16 %v6990, %v6982
    %v7135 = vpack.c.b16 %v6991, %v6983
    %v7136 = vpack.c.b16 %v6992, %v6984
    %v7137 = vpack.c.b16 %v7001, %v6993
    %v7138 = vpack.c.b16 %v7002, %v6994
    %v7139 = vpack.c.b16 %v7003, %v6995
    %v7140 = vpack.c.b16 %v7004, %v6996
    %v7141 = vpack.c.b16 %v7005, %v6997
    %v7142 = vpack.c.b16 %v7006, %v6998
    %v7143 = vpack.c.b16 %v7007, %v6999
    %v7144 = vpack.c.b16 %v7008, %v7000
    %v7145 = vpack.c.b16 %v7017, %v7009
    %v7146 = vpack.c.b16 %v7018, %v7010
    %v7147 = vpack.c.b16 %v7019, %v7011
    %v7148 = vpack.c.b16 %v7020, %v7012
    %v7149 = vpack.c.b16 %v7021, %v7013
    %v7150 = vpack.c.b16 %v7022, %v7014
    %v7151 = vpack.c.b16 %v7023, %v7015
    %v7152 = vpack.c.b16 %v7024, %v7016
    %7281 = vmatpush.bf16.msra.mxu0 %v7081
    %7282 = vmatpush.bf16.msra.mxu0 %v7073
    %7283 = vmatpush.bf16.msra.mxu0 %v7065
    %7284 = vmatpush.bf16.msra.mxu0 %v7057
    %7285 = vmatpush.bf16.msra.mxu0 %v7049
    %7286 = vmatpush.bf16.msra.mxu0 %v7041
    %7287 = vmatpush.bf16.msra.mxu0 %v7033
    %7288 = vmatpush.bf16.msra.mxu0 %v7025
    %7289 = vmatmul.bf16.gmra.mxu0 %v6511
    %v7290 = vpop.f32.mrf.mxu0
    %v7291 = vadd.f32 0.0, %v7290
    %v7292 = vpop.f32.mrf.mxu0
    %7293 = vdwg.mxu0
    %7294 = vmatpush.bf16.msra.mxu0 %v7145
    %7295 = vmatpush.bf16.msra.mxu0 %v7137
    %7296 = vmatpush.bf16.msra.mxu0 %v7129
    %7297 = vmatpush.bf16.msra.mxu0 %v7121
    %7298 = vmatpush.bf16.msra.mxu0 %v7113
    %7299 = vmatpush.bf16.msra.mxu0 %v7105
    %7300 = vmatpush.bf16.msra.mxu0 %v7097
    %7301 = vmatpush.bf16.msra.mxu0 %v7089
    %7302 = vmatmul.bf16.gmra.mxu0 %v6512
    %v7303 = vpop.f32.mrf.mxu0
    %v7304 = vadd.f32 %v7291, %v7303
    %v7305 = vpop.f32.mrf.mxu0
    %7306 = vdwg.mxu0
    %7307 = vmatpush.bf16.msra.mxu0 %v7082
    %7308 = vmatpush.bf16.msra.mxu0 %v7074
    %7309 = vmatpush.bf16.msra.mxu0 %v7066
    %7310 = vmatpush.bf16.msra.mxu0 %v7058
    %7311 = vmatpush.bf16.msra.mxu0 %v7050
    %7312 = vmatpush.bf16.msra.mxu0 %v7042
    %7313 = vmatpush.bf16.msra.mxu0 %v7034
    %7314 = vmatpush.bf16.msra.mxu0 %v7026
    %7315 = vmatmul.bf16.gmra.mxu0 %v6511
    %v7316 = vpop.f32.mrf.mxu0
    %v7317 = vadd.f32 0.0, %v7316
    %v7318 = vpop.f32.mrf.mxu0
    %7319 = vdwg.mxu0
    %7320 = vmatpush.bf16.msra.mxu0 %v7146
    %7321 = vmatpush.bf16.msra.mxu0 %v7138
    %7322 = vmatpush.bf16.msra.mxu0 %v7130
    %7323 = vmatpush.bf16.msra.mxu0 %v7122
    %7324 = vmatpush.bf16.msra.mxu0 %v7114
    %7325 = vmatpush.bf16.msra.mxu0 %v7106
    %7326 = vmatpush.bf16.msra.mxu0 %v7098
    %7327 = vmatpush.bf16.msra.mxu0 %v7090
    %7328 = vmatmul.bf16.gmra.mxu0 %v6512
    %v7329 = vpop.f32.mrf.mxu0
    %v7330 = vadd.f32 %v7317, %v7329
    %v7331 = vpop.f32.mrf.mxu0
    %7332 = vdwg.mxu0
    %7333 = vmatpush.bf16.msra.mxu0 %v7083
    %7334 = vmatpush.bf16.msra.mxu0 %v7075
    %7335 = vmatpush.bf16.msra.mxu0 %v7067
    %7336 = vmatpush.bf16.msra.mxu0 %v7059
    %7337 = vmatpush.bf16.msra.mxu0 %v7051
    %7338 = vmatpush.bf16.msra.mxu0 %v7043
    %7339 = vmatpush.bf16.msra.mxu0 %v7035
    %7340 = vmatpush.bf16.msra.mxu0 %v7027
    %7341 = vmatmul.bf16.gmra.mxu0 %v6511
    %v7342 = vpop.f32.mrf.mxu0
    %v7343 = vadd.f32 0.0, %v7342
    %v7344 = vpop.f32.mrf.mxu0
    %7345 = vdwg.mxu0
    %7346 = vmatpush.bf16.msra.mxu0 %v7147
    %7347 = vmatpush.bf16.msra.mxu0 %v7139
    %7348 = vmatpush.bf16.msra.mxu0 %v7131
    %7349 = vmatpush.bf16.msra.mxu0 %v7123
    %7350 = vmatpush.bf16.msra.mxu0 %v7115
    %7351 = vmatpush.bf16.msra.mxu0 %v7107
    %7352 = vmatpush.bf16.msra.mxu0 %v7099
    %7353 = vmatpush.bf16.msra.mxu0 %v7091
    %7354 = vmatmul.bf16.gmra.mxu0 %v6512
    %v7355 = vpop.f32.mrf.mxu0
    %v7356 = vadd.f32 %v7343, %v7355
    %v7357 = vpop.f32.mrf.mxu0
    %7358 = vdwg.mxu0
    %7359 = vmatpush.bf16.msra.mxu0 %v7084
    %7360 = vmatpush.bf16.msra.mxu0 %v7076
    %7361 = vmatpush.bf16.msra.mxu0 %v7068
    %7362 = vmatpush.bf16.msra.mxu0 %v7060
    %7363 = vmatpush.bf16.msra.mxu0 %v7052
    %7364 = vmatpush.bf16.msra.mxu0 %v7044
    %7365 = vmatpush.bf16.msra.mxu0 %v7036
    %7366 = vmatpush.bf16.msra.mxu0 %v7028
    %7367 = vmatmul.bf16.gmra.mxu0 %v6511
    %v7368 = vpop.f32.mrf.mxu0
    %v7369 = vadd.f32 0.0, %v7368
    %v7370 = vpop.f32.mrf.mxu0
    %7371 = vdwg.mxu0
    %7372 = vmatpush.bf16.msra.mxu0 %v7148
    %7373 = vmatpush.bf16.msra.mxu0 %v7140
    %7374 = vmatpush.bf16.msra.mxu0 %v7132
    %7375 = vmatpush.bf16.msra.mxu0 %v7124
    %7376 = vmatpush.bf16.msra.mxu0 %v7116
    %7377 = vmatpush.bf16.msra.mxu0 %v7108
    %7378 = vmatpush.bf16.msra.mxu0 %v7100
    %7379 = vmatpush.bf16.msra.mxu0 %v7092
    %7380 = vmatmul.bf16.gmra.mxu0 %v6512
    %v7381 = vpop.f32.mrf.mxu0
    %v7382 = vadd.f32 %v7369, %v7381
    %v7383 = vpop.f32.mrf.mxu0
    %7384 = vdwg.mxu0
    %7385 = vmatpush.bf16.msra.mxu0 %v7085
    %7386 = vmatpush.bf16.msra.mxu0 %v7077
    %7387 = vmatpush.bf16.msra.mxu0 %v7069
    %7388 = vmatpush.bf16.msra.mxu0 %v7061
    %7389 = vmatpush.bf16.msra.mxu0 %v7053
    %7390 = vmatpush.bf16.msra.mxu0 %v7045
    %7391 = vmatpush.bf16.msra.mxu0 %v7037
    %7392 = vmatpush.bf16.msra.mxu0 %v7029
    %7393 = vmatmul.bf16.gmra.mxu0 %v6511
    %v7394 = vpop.f32.mrf.mxu0
    %v7395 = vadd.f32 0.0, %v7394
    %v7396 = vpop.f32.mrf.mxu0
    %7397 = vdwg.mxu0
    %7398 = vmatpush.bf16.msra.mxu0 %v7149
    %7399 = vmatpush.bf16.msra.mxu0 %v7141
    %7400 = vmatpush.bf16.msra.mxu0 %v7133
    %7401 = vmatpush.bf16.msra.mxu0 %v7125
    %7402 = vmatpush.bf16.msra.mxu0 %v7117
    %7403 = vmatpush.bf16.msra.mxu0 %v7109
    %7404 = vmatpush.bf16.msra.mxu0 %v7101
    %7405 = vmatpush.bf16.msra.mxu0 %v7093
    %7406 = vmatmul.bf16.gmra.mxu0 %v6512
    %v7407 = vpop.f32.mrf.mxu0
    %v7408 = vadd.f32 %v7395, %v7407
    %v7409 = vpop.f32.mrf.mxu0
    %7410 = vdwg.mxu0
    %7411 = vmatpush.bf16.msra.mxu0 %v7086
    %7412 = vmatpush.bf16.msra.mxu0 %v7078
    %7413 = vmatpush.bf16.msra.mxu0 %v7070
    %7414 = vmatpush.bf16.msra.mxu0 %v7062
    %7415 = vmatpush.bf16.msra.mxu0 %v7054
    %7416 = vmatpush.bf16.msra.mxu0 %v7046
    %7417 = vmatpush.bf16.msra.mxu0 %v7038
    %7418 = vmatpush.bf16.msra.mxu0 %v7030
    %7419 = vmatmul.bf16.gmra.mxu0 %v6511
    %v7420 = vpop.f32.mrf.mxu0
    %v7421 = vadd.f32 0.0, %v7420
    %v7422 = vpop.f32.mrf.mxu0
    %7423 = vdwg.mxu0
    %7424 = vmatpush.bf16.msra.mxu0 %v7150
    %7425 = vmatpush.bf16.msra.mxu0 %v7142
    %7426 = vmatpush.bf16.msra.mxu0 %v7134
    %7427 = vmatpush.bf16.msra.mxu0 %v7126
    %7428 = vmatpush.bf16.msra.mxu0 %v7118
    %7429 = vmatpush.bf16.msra.mxu0 %v7110
    %7430 = vmatpush.bf16.msra.mxu0 %v7102
    %7431 = vmatpush.bf16.msra.mxu0 %v7094
    %7432 = vmatmul.bf16.gmra.mxu0 %v6512
    %v7433 = vpop.f32.mrf.mxu0
    %v7434 = vadd.f32 %v7421, %v7433
    %v7435 = vpop.f32.mrf.mxu0
    %7436 = vdwg.mxu0
    %7437 = vmatpush.bf16.msra.mxu0 %v7087
    %7438 = vmatpush.bf16.msra.mxu0 %v7079
    %7439 = vmatpush.bf16.msra.mxu0 %v7071
    %7440 = vmatpush.bf16.msra.mxu0 %v7063
    %7441 = vmatpush.bf16.msra.mxu0 %v7055
    %7442 = vmatpush.bf16.msra.mxu0 %v7047
    %7443 = vmatpush.bf16.msra.mxu0 %v7039
    %7444 = vmatpush.bf16.msra.mxu0 %v7031
    %7445 = vmatmul.bf16.gmra.mxu0 %v6511
    %v7446 = vpop.f32.mrf.mxu0
    %v7447 = vadd.f32 0.0, %v7446
    %v7448 = vpop.f32.mrf.mxu0
    %7449 = vdwg.mxu0
    %7450 = vmatpush.bf16.msra.mxu0 %v7151
    %7451 = vmatpush.bf16.msra.mxu0 %v7143
    %7452 = vmatpush.bf16.msra.mxu0 %v7135
    %7453 = vmatpush.bf16.msra.mxu0 %v7127
    %7454 = vmatpush.bf16.msra.mxu0 %v7119
    %7455 = vmatpush.bf16.msra.mxu0 %v7111
    %7456 = vmatpush.bf16.msra.mxu0 %v7103
    %7457 = vmatpush.bf16.msra.mxu0 %v7095
    %7458 = vmatmul.bf16.gmra.mxu0 %v6512
    %v7459 = vpop.f32.mrf.mxu0
    %v7460 = vadd.f32 %v7447, %v7459
    %v7461 = vpop.f32.mrf.mxu0
    %7462 = vdwg.mxu0
    %7463 = vmatpush.bf16.msra.mxu0 %v7088
    %7464 = vmatpush.bf16.msra.mxu0 %v7080
    %7465 = vmatpush.bf16.msra.mxu0 %v7072
    %7466 = vmatpush.bf16.msra.mxu0 %v7064
    %7467 = vmatpush.bf16.msra.mxu0 %v7056
    %7468 = vmatpush.bf16.msra.mxu0 %v7048
    %7469 = vmatpush.bf16.msra.mxu0 %v7040
    %7470 = vmatpush.bf16.msra.mxu0 %v7032
    %7471 = vmatmul.bf16.gmra.mxu0 %v6511
    %v7472 = vpop.f32.mrf.mxu0
    %v7473 = vadd.f32 0.0, %v7472
    %v7474 = vpop.f32.mrf.mxu0
    %7475 = vdwg.mxu0
    %7476 = vmatpush.bf16.msra.mxu0 %v7152
    %7477 = vmatpush.bf16.msra.mxu0 %v7144
    %7478 = vmatpush.bf16.msra.mxu0 %v7136
    %7479 = vmatpush.bf16.msra.mxu0 %v7128
    %7480 = vmatpush.bf16.msra.mxu0 %v7120
    %7481 = vmatpush.bf16.msra.mxu0 %v7112
    %7482 = vmatpush.bf16.msra.mxu0 %v7104
    %7483 = vmatpush.bf16.msra.mxu0 %v7096
    %7484 = vmatmul.bf16.gmra.mxu0 %v6512
    %v7485 = vpop.f32.mrf.mxu0
    %v7486 = vadd.f32 %v7473, %v7485
    %v7487 = vpop.f32.mrf.mxu0
    %7488 = vdwg.mxu0
    %v7489 = vld [vmem:[%s4088] sm:$0xff]
    %v7490 = vld [vmem:[%s4088 + $0x8] sm:$0xff]
    %v7491 = vld [vmem:[%s4088 + $0x10] sm:$0xff]
    %v7492 = vld [vmem:[%s4088 + $0x18] sm:$0xff]
    %v7493 = vadd.f32 %v7489, %v7304
    %v7494 = vadd.f32 %v7490, %v7330
    %v7495 = vadd.f32 %v7491, %v7356
    %v7496 = vadd.f32 %v7492, %v7382
    %v7497 = vld [vmem:[%s4079 + $0x20] sm:$0xff]
    %v7498 = vld [vmem:[%s4079 + $0x28] sm:$0xff]
    %v7499 = vld [vmem:[%s4079 + $0x30] sm:$0xff]
    %v7500 = vld [vmem:[%s4079 + $0x38] sm:$0xff]
    %v7501 = vadd.f32 %v7497, %v7408
    %v7502 = vadd.f32 %v7498, %v7434
    %v7503 = vadd.f32 %v7499, %v7460
    %v7504 = vadd.f32 %v7500, %v7486
    %v7505 = vxor.u32 %v7493, 2147483648
    %v7506 = vmul.f32 %v7505, 1.442695
    %v7507 = vpow.pop %v7506
    %v7508 = vadd.f32 %v7507, 1.0
    %v7509 = vrcp.pop %v7508
    %v7510 = vmul.f32 %v7508, %v7509
    %v7511 = vsub.f32 1.0, %v7510
    %v7512 = vmul.f32 %v7509, %v7511
    %v7513 = vadd.f32 %v7509, %v7512
    %vm7514 = vweird.f32 %v7508
    %vm7515 = vweird.f32 %v7509
    %vm7516 = vmor %vm7514, %vm7515
    %v7517 = vsel %vm7516, %v7509, %v7513
    %v7518 = vand.u32 2147483647, %v7508
    %vm7519 = vcmp.eq.f32.partialorder %v7518, 8.507059e+37
    %v7520 = vand.u32 %v7508, 2147483648
    %v7521 = vor.u32 1.1754944e-38, %v7520
    %v7522 = vsel %vm7519, %v7521, %v7517
    %v7523 = vmul.f32 1.0, %v7522
    %v7524 = vxor.u32 %v7494, 2147483648
    %v7525 = vmul.f32 %v7524, 1.442695
    %v7526 = vpow.pop %v7525
    %v7527 = vadd.f32 %v7526, 1.0
    %v7528 = vrcp.pop %v7527
    %v7529 = vmul.f32 %v7527, %v7528
    %v7530 = vsub.f32 1.0, %v7529
    %v7531 = vmul.f32 %v7528, %v7530
    %v7532 = vadd.f32 %v7528, %v7531
    %vm7533 = vweird.f32 %v7527
    %vm7534 = vweird.f32 %v7528
    %vm7535 = vmor %vm7533, %vm7534
    %v7536 = vsel %vm7535, %v7528, %v7532
    %v7537 = vand.u32 2147483647, %v7527
    %vm7538 = vcmp.eq.f32.partialorder %v7537, 8.507059e+37
    %v7539 = vand.u32 %v7527, 2147483648
    %v7540 = vor.u32 1.1754944e-38, %v7539
    %v7541 = vsel %vm7538, %v7540, %v7536
    %v7542 = vmul.f32 1.0, %v7541
    %v7543 = vtanh.pop %v7495
    %v7544 = vxor.u32 %v7496, 2147483648
    %v7545 = vmul.f32 %v7544, 1.442695
    %v7546 = vpow.pop %v7545
    %v7547 = vadd.f32 %v7546, 1.0
    %v7548 = vrcp.pop %v7547
    %v7549 = vmul.f32 %v7547, %v7548
    %v7550 = vsub.f32 1.0, %v7549
    %v7551 = vmul.f32 %v7548, %v7550
    %v7552 = vadd.f32 %v7548, %v7551
    %vm7553 = vweird.f32 %v7547
    %vm7554 = vweird.f32 %v7548
    %vm7555 = vmor %vm7553, %vm7554
    %v7556 = vsel %vm7555, %v7548, %v7552
    %v7557 = vand.u32 2147483647, %v7547
    %vm7558 = vcmp.eq.f32.partialorder %v7557, 8.507059e+37
    %v7559 = vand.u32 %v7547, 2147483648
    %v7560 = vor.u32 1.1754944e-38, %v7559
    %v7561 = vsel %vm7558, %v7560, %v7556
    %v7562 = vmul.f32 1.0, %v7561
    %v7563 = vmul.f32 %v7542, %v6509
    %v7564 = vmul.f32 %v7523, %v7543
    %v7565 = vadd.f32 %v7563, %v7564
    %v7566 = vtanh.pop %v7565
    %v7567 = vmul.f32 %v7562, %v7566
    %v7568 = vxor.u32 %v7501, 2147483648
    %v7569 = vmul.f32 %v7568, 1.442695
    %v7570 = vpow.pop %v7569
    %v7571 = vadd.f32 %v7570, 1.0
    %v7572 = vrcp.pop %v7571
    %v7573 = vmul.f32 %v7571, %v7572
    %v7574 = vsub.f32 1.0, %v7573
    %v7575 = vmul.f32 %v7572, %v7574
    %v7576 = vadd.f32 %v7572, %v7575
    %vm7577 = vweird.f32 %v7571
    %vm7578 = vweird.f32 %v7572
    %vm7579 = vmor %vm7577, %vm7578
    %v7580 = vsel %vm7579, %v7572, %v7576
    %v7581 = vand.u32 2147483647, %v7571
    %vm7582 = vcmp.eq.f32.partialorder %v7581, 8.507059e+37
    %v7583 = vand.u32 %v7571, 2147483648
    %v7584 = vor.u32 1.1754944e-38, %v7583
    %v7585 = vsel %vm7582, %v7584, %v7580
    %v7586 = vmul.f32 1.0, %v7585
    %v7587 = vxor.u32 %v7502, 2147483648
    %v7588 = vmul.f32 %v7587, 1.442695
    %v7589 = vpow.pop %v7588
    %v7590 = vadd.f32 %v7589, 1.0
    %v7591 = vrcp.pop %v7590
    %v7592 = vmul.f32 %v7590, %v7591
    %v7593 = vsub.f32 1.0, %v7592
    %v7594 = vmul.f32 %v7591, %v7593
    %v7595 = vadd.f32 %v7591, %v7594
    %vm7596 = vweird.f32 %v7590
    %vm7597 = vweird.f32 %v7591
    %vm7598 = vmor %vm7596, %vm7597
    %v7599 = vsel %vm7598, %v7591, %v7595
    %v7600 = vand.u32 2147483647, %v7590
    %vm7601 = vcmp.eq.f32.partialorder %v7600, 8.507059e+37
    %v7602 = vand.u32 %v7590, 2147483648
    %v7603 = vor.u32 1.1754944e-38, %v7602
    %v7604 = vsel %vm7601, %v7603, %v7599
    %v7605 = vmul.f32 1.0, %v7604
    %v7606 = vtanh.pop %v7503
    %v7607 = vxor.u32 %v7504, 2147483648
    %v7608 = vmul.f32 %v7607, 1.442695
    %v7609 = vpow.pop %v7608
    %v7610 = vadd.f32 %v7609, 1.0
    %v7611 = vrcp.pop %v7610
    %v7612 = vmul.f32 %v7610, %v7611
    %v7613 = vsub.f32 1.0, %v7612
    %v7614 = vmul.f32 %v7611, %v7613
    %v7615 = vadd.f32 %v7611, %v7614
    %vm7616 = vweird.f32 %v7610
    %vm7617 = vweird.f32 %v7611
    %vm7618 = vmor %vm7616, %vm7617
    %v7619 = vsel %vm7618, %v7611, %v7615
    %v7620 = vand.u32 2147483647, %v7610
    %vm7621 = vcmp.eq.f32.partialorder %v7620, 8.507059e+37
    %v7622 = vand.u32 %v7610, 2147483648
    %v7623 = vor.u32 1.1754944e-38, %v7622
    %v7624 = vsel %vm7621, %v7623, %v7619
    %v7625 = vmul.f32 1.0, %v7624
    %v7626 = vmul.f32 %v7605, %v6510
    %v7627 = vmul.f32 %v7586, %v7606
    %v7628 = vadd.f32 %v7626, %v7627
    %v7629 = vtanh.pop %v7628
    %v7630 = vmul.f32 %v7625, %v7629
    %v7631 = vld [vmem:[%s4226] sm:$0xff]
    %vm7632 = vcmp.gt.f32.partialorder %v7631, 0.0
    %v7633 = vld [vmem:[%s4223] sm:$0xff]
    %vm7634 = vcmp.gt.f32.partialorder %v7633, 0.0
    %v7635 = vsel %vm7632, %v7567, 0.0
    %s7636 = scalar_lea.vmem [#allocation3], 40
    %7637 = vst [vmem:[%s7636] sm:$0xff] %v7635
    %v7638 = vsel %vm7634, %v7630, 0.0
    %s7639 = scalar_lea.vmem [#allocation4], 16
    %7640 = vst [vmem:[%s7639] sm:$0xff] %v7638
    %v7641 = vsel %vm7632, %v7567, %v6507
    %v7642 = vsel %vm7634, %v7630, %v6508
    %v7643 = vsel %vm7632, %v7565, %v6509
    %v7644 = vsel %vm7634, %v7628, %v6510
    %v7645 = vpack.c.bf16 %v7641, %v7641
    %v7646 = vpack.c.bf16 %v7642, %v7642
    %v7647 = vld [vmem:[#allocation7] sm:$0xff]
    %v7648 = vld [vmem:[#allocation7 + $0x8] sm:$0xff]
    %v7649 = vld [vmem:[#allocation7 + $0x10] sm:$0xff]
    %v7650 = vld [vmem:[#allocation7 + $0x18] sm:$0xff]
    %v7651 = vld [vmem:[#allocation7 + $0x20] sm:$0xff]
    %v7652 = vld [vmem:[#allocation7 + $0x28] sm:$0xff]
    %v7653 = vld [vmem:[#allocation7 + $0x30] sm:$0xff]
    %v7654 = vld [vmem:[#allocation7 + $0x38] sm:$0xff]
    %v7655 = vld [vmem:[#allocation7 + $0x40] sm:$0xff]
    %v7656 = vld [vmem:[#allocation7 + $0x48] sm:$0xff]
    %v7657 = vld [vmem:[#allocation7 + $0x50] sm:$0xff]
    %v7658 = vld [vmem:[#allocation7 + $0x58] sm:$0xff]
    %v7659 = vld [vmem:[#allocation7 + $0x60] sm:$0xff]
    %v7660 = vld [vmem:[#allocation7 + $0x68] sm:$0xff]
    %v7661 = vld [vmem:[#allocation7 + $0x70] sm:$0xff]
    %v7662 = vld [vmem:[#allocation7 + $0x78] sm:$0xff]
    %v7663 = vld [vmem:[#allocation7 + $0x80] sm:$0xff]
    %v7664 = vld [vmem:[#allocation7 + $0x88] sm:$0xff]
    %v7665 = vld [vmem:[#allocation7 + $0x90] sm:$0xff]
    %v7666 = vld [vmem:[#allocation7 + $0x98] sm:$0xff]
    %v7667 = vld [vmem:[#allocation7 + $0xa0] sm:$0xff]
    %v7668 = vld [vmem:[#allocation7 + $0xa8] sm:$0xff]
    %v7669 = vld [vmem:[#allocation7 + $0xb0] sm:$0xff]
    %v7670 = vld [vmem:[#allocation7 + $0xb8] sm:$0xff]
    %v7671 = vld [vmem:[#allocation7 + $0xc0] sm:$0xff]
    %v7672 = vld [vmem:[#allocation7 + $0xc8] sm:$0xff]
    %v7673 = vld [vmem:[#allocation7 + $0xd0] sm:$0xff]
    %v7674 = vld [vmem:[#allocation7 + $0xd8] sm:$0xff]
    %v7675 = vld [vmem:[#allocation7 + $0xe0] sm:$0xff]
    %v7676 = vld [vmem:[#allocation7 + $0xe8] sm:$0xff]
    %v7677 = vld [vmem:[#allocation7 + $0xf0] sm:$0xff]
    %v7678 = vld [vmem:[#allocation7 + $0xf8] sm:$0xff]
    %v7679 = vld [vmem:[#allocation7 + $0x100] sm:$0xff]
    %v7680 = vld [vmem:[#allocation7 + $0x108] sm:$0xff]
    %v7681 = vld [vmem:[#allocation7 + $0x110] sm:$0xff]
    %v7682 = vld [vmem:[#allocation7 + $0x118] sm:$0xff]
    %v7683 = vld [vmem:[#allocation7 + $0x120] sm:$0xff]
    %v7684 = vld [vmem:[#allocation7 + $0x128] sm:$0xff]
    %v7685 = vld [vmem:[#allocation7 + $0x130] sm:$0xff]
    %v7686 = vld [vmem:[#allocation7 + $0x138] sm:$0xff]
    %v7687 = vld [vmem:[#allocation7 + $0x140] sm:$0xff]
    %v7688 = vld [vmem:[#allocation7 + $0x148] sm:$0xff]
    %v7689 = vld [vmem:[#allocation7 + $0x150] sm:$0xff]
    %v7690 = vld [vmem:[#allocation7 + $0x158] sm:$0xff]
    %v7691 = vld [vmem:[#allocation7 + $0x160] sm:$0xff]
    %v7692 = vld [vmem:[#allocation7 + $0x168] sm:$0xff]
    %v7693 = vld [vmem:[#allocation7 + $0x170] sm:$0xff]
    %v7694 = vld [vmem:[#allocation7 + $0x178] sm:$0xff]
    %v7695 = vld [vmem:[#allocation7 + $0x180] sm:$0xff]
    %v7696 = vld [vmem:[#allocation7 + $0x188] sm:$0xff]
    %v7697 = vld [vmem:[#allocation7 + $0x190] sm:$0xff]
    %v7698 = vld [vmem:[#allocation7 + $0x198] sm:$0xff]
    %v7699 = vld [vmem:[#allocation7 + $0x1a0] sm:$0xff]
    %v7700 = vld [vmem:[#allocation7 + $0x1a8] sm:$0xff]
    %v7701 = vld [vmem:[#allocation7 + $0x1b0] sm:$0xff]
    %v7702 = vld [vmem:[#allocation7 + $0x1b8] sm:$0xff]
    %v7703 = vld [vmem:[#allocation7 + $0x1c0] sm:$0xff]
    %v7704 = vld [vmem:[#allocation7 + $0x1c8] sm:$0xff]
    %v7705 = vld [vmem:[#allocation7 + $0x1d0] sm:$0xff]
    %v7706 = vld [vmem:[#allocation7 + $0x1d8] sm:$0xff]
    %v7707 = vld [vmem:[#allocation7 + $0x1e0] sm:$0xff]
    %v7708 = vld [vmem:[#allocation7 + $0x1e8] sm:$0xff]
    %v7709 = vld [vmem:[#allocation7 + $0x1f0] sm:$0xff]
    %v7710 = vld [vmem:[#allocation7 + $0x1f8] sm:$0xff]
    %v7711 = vld [vmem:[#allocation7 + $0x200] sm:$0xff]
    %v7712 = vld [vmem:[#allocation7 + $0x208] sm:$0xff]
    %v7713 = vld [vmem:[#allocation7 + $0x210] sm:$0xff]
    %v7714 = vld [vmem:[#allocation7 + $0x218] sm:$0xff]
    %v7715 = vld [vmem:[#allocation7 + $0x220] sm:$0xff]
    %v7716 = vld [vmem:[#allocation7 + $0x228] sm:$0xff]
    %v7717 = vld [vmem:[#allocation7 + $0x230] sm:$0xff]
    %v7718 = vld [vmem:[#allocation7 + $0x238] sm:$0xff]
    %v7719 = vld [vmem:[#allocation7 + $0x240] sm:$0xff]
    %v7720 = vld [vmem:[#allocation7 + $0x248] sm:$0xff]
    %v7721 = vld [vmem:[#allocation7 + $0x250] sm:$0xff]
    %v7722 = vld [vmem:[#allocation7 + $0x258] sm:$0xff]
    %v7723 = vld [vmem:[#allocation7 + $0x260] sm:$0xff]
    %v7724 = vld [vmem:[#allocation7 + $0x268] sm:$0xff]
    %v7725 = vld [vmem:[#allocation7 + $0x270] sm:$0xff]
    %v7726 = vld [vmem:[#allocation7 + $0x278] sm:$0xff]
    %v7727 = vld [vmem:[#allocation7 + $0x280] sm:$0xff]
    %v7728 = vld [vmem:[#allocation7 + $0x288] sm:$0xff]
    %v7729 = vld [vmem:[#allocation7 + $0x290] sm:$0xff]
    %v7730 = vld [vmem:[#allocation7 + $0x298] sm:$0xff]
    %v7731 = vld [vmem:[#allocation7 + $0x2a0] sm:$0xff]
    %v7732 = vld [vmem:[#allocation7 + $0x2a8] sm:$0xff]
    %v7733 = vld [vmem:[#allocation7 + $0x2b0] sm:$0xff]
    %v7734 = vld [vmem:[#allocation7 + $0x2b8] sm:$0xff]
    %v7735 = vld [vmem:[#allocation7 + $0x2c0] sm:$0xff]
    %v7736 = vld [vmem:[#allocation7 + $0x2c8] sm:$0xff]
    %v7737 = vld [vmem:[#allocation7 + $0x2d0] sm:$0xff]
    %v7738 = vld [vmem:[#allocation7 + $0x2d8] sm:$0xff]
    %v7739 = vld [vmem:[#allocation7 + $0x2e0] sm:$0xff]
    %v7740 = vld [vmem:[#allocation7 + $0x2e8] sm:$0xff]
    %v7741 = vld [vmem:[#allocation7 + $0x2f0] sm:$0xff]
    %v7742 = vld [vmem:[#allocation7 + $0x2f8] sm:$0xff]
    %v7743 = vld [vmem:[#allocation7 + $0x300] sm:$0xff]
    %v7744 = vld [vmem:[#allocation7 + $0x308] sm:$0xff]
    %v7745 = vld [vmem:[#allocation7 + $0x310] sm:$0xff]
    %v7746 = vld [vmem:[#allocation7 + $0x318] sm:$0xff]
    %v7747 = vld [vmem:[#allocation7 + $0x320] sm:$0xff]
    %v7748 = vld [vmem:[#allocation7 + $0x328] sm:$0xff]
    %v7749 = vld [vmem:[#allocation7 + $0x330] sm:$0xff]
    %v7750 = vld [vmem:[#allocation7 + $0x338] sm:$0xff]
    %v7751 = vld [vmem:[#allocation7 + $0x340] sm:$0xff]
    %v7752 = vld [vmem:[#allocation7 + $0x348] sm:$0xff]
    %v7753 = vld [vmem:[#allocation7 + $0x350] sm:$0xff]
    %v7754 = vld [vmem:[#allocation7 + $0x358] sm:$0xff]
    %v7755 = vld [vmem:[#allocation7 + $0x360] sm:$0xff]
    %v7756 = vld [vmem:[#allocation7 + $0x368] sm:$0xff]
    %v7757 = vld [vmem:[#allocation7 + $0x370] sm:$0xff]
    %v7758 = vld [vmem:[#allocation7 + $0x378] sm:$0xff]
    %v7759 = vld [vmem:[#allocation7 + $0x380] sm:$0xff]
    %v7760 = vld [vmem:[#allocation7 + $0x388] sm:$0xff]
    %v7761 = vld [vmem:[#allocation7 + $0x390] sm:$0xff]
    %v7762 = vld [vmem:[#allocation7 + $0x398] sm:$0xff]
    %v7763 = vld [vmem:[#allocation7 + $0x3a0] sm:$0xff]
    %v7764 = vld [vmem:[#allocation7 + $0x3a8] sm:$0xff]
    %v7765 = vld [vmem:[#allocation7 + $0x3b0] sm:$0xff]
    %v7766 = vld [vmem:[#allocation7 + $0x3b8] sm:$0xff]
    %v7767 = vld [vmem:[#allocation7 + $0x3c0] sm:$0xff]
    %v7768 = vld [vmem:[#allocation7 + $0x3c8] sm:$0xff]
    %v7769 = vld [vmem:[#allocation7 + $0x3d0] sm:$0xff]
    %v7770 = vld [vmem:[#allocation7 + $0x3d8] sm:$0xff]
    %v7771 = vld [vmem:[#allocation7 + $0x3e0] sm:$0xff]
    %v7772 = vld [vmem:[#allocation7 + $0x3e8] sm:$0xff]
    %v7773 = vld [vmem:[#allocation7 + $0x3f0] sm:$0xff]
    %v7774 = vld [vmem:[#allocation7 + $0x3f8] sm:$0xff]
    %v7903 = vunpack.c.l.b16 %v7647
    %v7904 = vunpack.c.h.b16 %v7647
    %v7905 = vunpack.c.l.b16 %v7648
    %v7906 = vunpack.c.h.b16 %v7648
    %v7907 = vunpack.c.l.b16 %v7649
    %v7908 = vunpack.c.h.b16 %v7649
    %v7909 = vunpack.c.l.b16 %v7650
    %v7910 = vunpack.c.h.b16 %v7650
    %v7911 = vunpack.c.l.b16 %v7651
    %v7912 = vunpack.c.h.b16 %v7651
    %v7913 = vunpack.c.l.b16 %v7652
    %v7914 = vunpack.c.h.b16 %v7652
    %v7915 = vunpack.c.l.b16 %v7653
    %v7916 = vunpack.c.h.b16 %v7653
    %v7917 = vunpack.c.l.b16 %v7654
    %v7918 = vunpack.c.h.b16 %v7654
    %v7919 = vunpack.c.l.b16 %v7655
    %v7920 = vunpack.c.h.b16 %v7655
    %v7921 = vunpack.c.l.b16 %v7656
    %v7922 = vunpack.c.h.b16 %v7656
    %v7923 = vunpack.c.l.b16 %v7657
    %v7924 = vunpack.c.h.b16 %v7657
    %v7925 = vunpack.c.l.b16 %v7658
    %v7926 = vunpack.c.h.b16 %v7658
    %v7927 = vunpack.c.l.b16 %v7659
    %v7928 = vunpack.c.h.b16 %v7659
    %v7929 = vunpack.c.l.b16 %v7660
    %v7930 = vunpack.c.h.b16 %v7660
    %v7931 = vunpack.c.l.b16 %v7661
    %v7932 = vunpack.c.h.b16 %v7661
    %v7933 = vunpack.c.l.b16 %v7662
    %v7934 = vunpack.c.h.b16 %v7662
    %v7935 = vunpack.c.l.b16 %v7663
    %v7936 = vunpack.c.h.b16 %v7663
    %v7937 = vunpack.c.l.b16 %v7664
    %v7938 = vunpack.c.h.b16 %v7664
    %v7939 = vunpack.c.l.b16 %v7665
    %v7940 = vunpack.c.h.b16 %v7665
    %v7941 = vunpack.c.l.b16 %v7666
    %v7942 = vunpack.c.h.b16 %v7666
    %v7943 = vunpack.c.l.b16 %v7667
    %v7944 = vunpack.c.h.b16 %v7667
    %v7945 = vunpack.c.l.b16 %v7668
    %v7946 = vunpack.c.h.b16 %v7668
    %v7947 = vunpack.c.l.b16 %v7669
    %v7948 = vunpack.c.h.b16 %v7669
    %v7949 = vunpack.c.l.b16 %v7670
    %v7950 = vunpack.c.h.b16 %v7670
    %v7951 = vunpack.c.l.b16 %v7671
    %v7952 = vunpack.c.h.b16 %v7671
    %v7953 = vunpack.c.l.b16 %v7672
    %v7954 = vunpack.c.h.b16 %v7672
    %v7955 = vunpack.c.l.b16 %v7673
    %v7956 = vunpack.c.h.b16 %v7673
    %v7957 = vunpack.c.l.b16 %v7674
    %v7958 = vunpack.c.h.b16 %v7674
    %v7959 = vunpack.c.l.b16 %v7675
    %v7960 = vunpack.c.h.b16 %v7675
    %v7961 = vunpack.c.l.b16 %v7676
    %v7962 = vunpack.c.h.b16 %v7676
    %v7963 = vunpack.c.l.b16 %v7677
    %v7964 = vunpack.c.h.b16 %v7677
    %v7965 = vunpack.c.l.b16 %v7678
    %v7966 = vunpack.c.h.b16 %v7678
    %v7967 = vunpack.c.l.b16 %v7679
    %v7968 = vunpack.c.h.b16 %v7679
    %v7969 = vunpack.c.l.b16 %v7680
    %v7970 = vunpack.c.h.b16 %v7680
    %v7971 = vunpack.c.l.b16 %v7681
    %v7972 = vunpack.c.h.b16 %v7681
    %v7973 = vunpack.c.l.b16 %v7682
    %v7974 = vunpack.c.h.b16 %v7682
    %v7975 = vunpack.c.l.b16 %v7683
    %v7976 = vunpack.c.h.b16 %v7683
    %v7977 = vunpack.c.l.b16 %v7684
    %v7978 = vunpack.c.h.b16 %v7684
    %v7979 = vunpack.c.l.b16 %v7685
    %v7980 = vunpack.c.h.b16 %v7685
    %v7981 = vunpack.c.l.b16 %v7686
    %v7982 = vunpack.c.h.b16 %v7686
    %v7983 = vunpack.c.l.b16 %v7687
    %v7984 = vunpack.c.h.b16 %v7687
    %v7985 = vunpack.c.l.b16 %v7688
    %v7986 = vunpack.c.h.b16 %v7688
    %v7987 = vunpack.c.l.b16 %v7689
    %v7988 = vunpack.c.h.b16 %v7689
    %v7989 = vunpack.c.l.b16 %v7690
    %v7990 = vunpack.c.h.b16 %v7690
    %v7991 = vunpack.c.l.b16 %v7691
    %v7992 = vunpack.c.h.b16 %v7691
    %v7993 = vunpack.c.l.b16 %v7692
    %v7994 = vunpack.c.h.b16 %v7692
    %v7995 = vunpack.c.l.b16 %v7693
    %v7996 = vunpack.c.h.b16 %v7693
    %v7997 = vunpack.c.l.b16 %v7694
    %v7998 = vunpack.c.h.b16 %v7694
    %v7999 = vunpack.c.l.b16 %v7695
    %v8000 = vunpack.c.h.b16 %v7695
    %v8001 = vunpack.c.l.b16 %v7696
    %v8002 = vunpack.c.h.b16 %v7696
    %v8003 = vunpack.c.l.b16 %v7697
    %v8004 = vunpack.c.h.b16 %v7697
    %v8005 = vunpack.c.l.b16 %v7698
    %v8006 = vunpack.c.h.b16 %v7698
    %v8007 = vunpack.c.l.b16 %v7699
    %v8008 = vunpack.c.h.b16 %v7699
    %v8009 = vunpack.c.l.b16 %v7700
    %v8010 = vunpack.c.h.b16 %v7700
    %v8011 = vunpack.c.l.b16 %v7701
    %v8012 = vunpack.c.h.b16 %v7701
    %v8013 = vunpack.c.l.b16 %v7702
    %v8014 = vunpack.c.h.b16 %v7702
    %v8015 = vunpack.c.l.b16 %v7703
    %v8016 = vunpack.c.h.b16 %v7703
    %v8017 = vunpack.c.l.b16 %v7704
    %v8018 = vunpack.c.h.b16 %v7704
    %v8019 = vunpack.c.l.b16 %v7705
    %v8020 = vunpack.c.h.b16 %v7705
    %v8021 = vunpack.c.l.b16 %v7706
    %v8022 = vunpack.c.h.b16 %v7706
    %v8023 = vunpack.c.l.b16 %v7707
    %v8024 = vunpack.c.h.b16 %v7707
    %v8025 = vunpack.c.l.b16 %v7708
    %v8026 = vunpack.c.h.b16 %v7708
    %v8027 = vunpack.c.l.b16 %v7709
    %v8028 = vunpack.c.h.b16 %v7709
    %v8029 = vunpack.c.l.b16 %v7710
    %v8030 = vunpack.c.h.b16 %v7710
    %v8031 = vunpack.c.l.b16 %v7711
    %v8032 = vunpack.c.h.b16 %v7711
    %v8033 = vunpack.c.l.b16 %v7712
    %v8034 = vunpack.c.h.b16 %v7712
    %v8035 = vunpack.c.l.b16 %v7713
    %v8036 = vunpack.c.h.b16 %v7713
    %v8037 = vunpack.c.l.b16 %v7714
    %v8038 = vunpack.c.h.b16 %v7714
    %v8039 = vunpack.c.l.b16 %v7715
    %v8040 = vunpack.c.h.b16 %v7715
    %v8041 = vunpack.c.l.b16 %v7716
    %v8042 = vunpack.c.h.b16 %v7716
    %v8043 = vunpack.c.l.b16 %v7717
    %v8044 = vunpack.c.h.b16 %v7717
    %v8045 = vunpack.c.l.b16 %v7718
    %v8046 = vunpack.c.h.b16 %v7718
    %v8047 = vunpack.c.l.b16 %v7719
    %v8048 = vunpack.c.h.b16 %v7719
    %v8049 = vunpack.c.l.b16 %v7720
    %v8050 = vunpack.c.h.b16 %v7720
    %v8051 = vunpack.c.l.b16 %v7721
    %v8052 = vunpack.c.h.b16 %v7721
    %v8053 = vunpack.c.l.b16 %v7722
    %v8054 = vunpack.c.h.b16 %v7722
    %v8055 = vunpack.c.l.b16 %v7723
    %v8056 = vunpack.c.h.b16 %v7723
    %v8057 = vunpack.c.l.b16 %v7724
    %v8058 = vunpack.c.h.b16 %v7724
    %v8059 = vunpack.c.l.b16 %v7725
    %v8060 = vunpack.c.h.b16 %v7725
    %v8061 = vunpack.c.l.b16 %v7726
    %v8062 = vunpack.c.h.b16 %v7726
    %v8063 = vunpack.c.l.b16 %v7727
    %v8064 = vunpack.c.h.b16 %v7727
    %v8065 = vunpack.c.l.b16 %v7728
    %v8066 = vunpack.c.h.b16 %v7728
    %v8067 = vunpack.c.l.b16 %v7729
    %v8068 = vunpack.c.h.b16 %v7729
    %v8069 = vunpack.c.l.b16 %v7730
    %v8070 = vunpack.c.h.b16 %v7730
    %v8071 = vunpack.c.l.b16 %v7731
    %v8072 = vunpack.c.h.b16 %v7731
    %v8073 = vunpack.c.l.b16 %v7732
    %v8074 = vunpack.c.h.b16 %v7732
    %v8075 = vunpack.c.l.b16 %v7733
    %v8076 = vunpack.c.h.b16 %v7733
    %v8077 = vunpack.c.l.b16 %v7734
    %v8078 = vunpack.c.h.b16 %v7734
    %v8079 = vunpack.c.l.b16 %v7735
    %v8080 = vunpack.c.h.b16 %v7735
    %v8081 = vunpack.c.l.b16 %v7736
    %v8082 = vunpack.c.h.b16 %v7736
    %v8083 = vunpack.c.l.b16 %v7737
    %v8084 = vunpack.c.h.b16 %v7737
    %v8085 = vunpack.c.l.b16 %v7738
    %v8086 = vunpack.c.h.b16 %v7738
    %v8087 = vunpack.c.l.b16 %v7739
    %v8088 = vunpack.c.h.b16 %v7739
    %v8089 = vunpack.c.l.b16 %v7740
    %v8090 = vunpack.c.h.b16 %v7740
    %v8091 = vunpack.c.l.b16 %v7741
    %v8092 = vunpack.c.h.b16 %v7741
    %v8093 = vunpack.c.l.b16 %v7742
    %v8094 = vunpack.c.h.b16 %v7742
    %v8095 = vunpack.c.l.b16 %v7743
    %v8096 = vunpack.c.h.b16 %v7743
    %v8097 = vunpack.c.l.b16 %v7744
    %v8098 = vunpack.c.h.b16 %v7744
    %v8099 = vunpack.c.l.b16 %v7745
    %v8100 = vunpack.c.h.b16 %v7745
    %v8101 = vunpack.c.l.b16 %v7746
    %v8102 = vunpack.c.h.b16 %v7746
    %v8103 = vunpack.c.l.b16 %v7747
    %v8104 = vunpack.c.h.b16 %v7747
    %v8105 = vunpack.c.l.b16 %v7748
    %v8106 = vunpack.c.h.b16 %v7748
    %v8107 = vunpack.c.l.b16 %v7749
    %v8108 = vunpack.c.h.b16 %v7749
    %v8109 = vunpack.c.l.b16 %v7750
    %v8110 = vunpack.c.h.b16 %v7750
    %v8111 = vunpack.c.l.b16 %v7751
    %v8112 = vunpack.c.h.b16 %v7751
    %v8113 = vunpack.c.l.b16 %v7752
    %v8114 = vunpack.c.h.b16 %v7752
    %v8115 = vunpack.c.l.b16 %v7753
    %v8116 = vunpack.c.h.b16 %v7753
    %v8117 = vunpack.c.l.b16 %v7754
    %v8118 = vunpack.c.h.b16 %v7754
    %v8119 = vunpack.c.l.b16 %v7755
    %v8120 = vunpack.c.h.b16 %v7755
    %v8121 = vunpack.c.l.b16 %v7756
    %v8122 = vunpack.c.h.b16 %v7756
    %v8123 = vunpack.c.l.b16 %v7757
    %v8124 = vunpack.c.h.b16 %v7757
    %v8125 = vunpack.c.l.b16 %v7758
    %v8126 = vunpack.c.h.b16 %v7758
    %v8127 = vunpack.c.l.b16 %v7759
    %v8128 = vunpack.c.h.b16 %v7759
    %v8129 = vunpack.c.l.b16 %v7760
    %v8130 = vunpack.c.h.b16 %v7760
    %v8131 = vunpack.c.l.b16 %v7761
    %v8132 = vunpack.c.h.b16 %v7761
    %v8133 = vunpack.c.l.b16 %v7762
    %v8134 = vunpack.c.h.b16 %v7762
    %v8135 = vunpack.c.l.b16 %v7763
    %v8136 = vunpack.c.h.b16 %v7763
    %v8137 = vunpack.c.l.b16 %v7764
    %v8138 = vunpack.c.h.b16 %v7764
    %v8139 = vunpack.c.l.b16 %v7765
    %v8140 = vunpack.c.h.b16 %v7765
    %v8141 = vunpack.c.l.b16 %v7766
    %v8142 = vunpack.c.h.b16 %v7766
    %v8143 = vunpack.c.l.b16 %v7767
    %v8144 = vunpack.c.h.b16 %v7767
    %v8145 = vunpack.c.l.b16 %v7768
    %v8146 = vunpack.c.h.b16 %v7768
    %v8147 = vunpack.c.l.b16 %v7769
    %v8148 = vunpack.c.h.b16 %v7769
    %v8149 = vunpack.c.l.b16 %v7770
    %v8150 = vunpack.c.h.b16 %v7770
    %v8151 = vunpack.c.l.b16 %v7771
    %v8152 = vunpack.c.h.b16 %v7771
    %v8153 = vunpack.c.l.b16 %v7772
    %v8154 = vunpack.c.h.b16 %v7772
    %v8155 = vunpack.c.l.b16 %v7773
    %v8156 = vunpack.c.h.b16 %v7773
    %v8157 = vunpack.c.l.b16 %v7774
    %v8158 = vunpack.c.h.b16 %v7774
    %v8159 = vpack.c.b16 %v7911, %v7903
    %v8160 = vpack.c.b16 %v7912, %v7904
    %v8161 = vpack.c.b16 %v7913, %v7905
    %v8162 = vpack.c.b16 %v7914, %v7906
    %v8163 = vpack.c.b16 %v7915, %v7907
    %v8164 = vpack.c.b16 %v7916, %v7908
    %v8165 = vpack.c.b16 %v7917, %v7909
    %v8166 = vpack.c.b16 %v7918, %v7910
    %v8167 = vpack.c.b16 %v7927, %v7919
    %v8168 = vpack.c.b16 %v7928, %v7920
    %v8169 = vpack.c.b16 %v7929, %v7921
    %v8170 = vpack.c.b16 %v7930, %v7922
    %v8171 = vpack.c.b16 %v7931, %v7923
    %v8172 = vpack.c.b16 %v7932, %v7924
    %v8173 = vpack.c.b16 %v7933, %v7925
    %v8174 = vpack.c.b16 %v7934, %v7926
    %v8175 = vpack.c.b16 %v7943, %v7935
    %v8176 = vpack.c.b16 %v7944, %v7936
    %v8177 = vpack.c.b16 %v7945, %v7937
    %v8178 = vpack.c.b16 %v7946, %v7938
    %v8179 = vpack.c.b16 %v7947, %v7939
    %v8180 = vpack.c.b16 %v7948, %v7940
    %v8181 = vpack.c.b16 %v7949, %v7941
    %v8182 = vpack.c.b16 %v7950, %v7942
    %v8183 = vpack.c.b16 %v7959, %v7951
    %v8184 = vpack.c.b16 %v7960, %v7952
    %v8185 = vpack.c.b16 %v7961, %v7953
    %v8186 = vpack.c.b16 %v7962, %v7954
    %v8187 = vpack.c.b16 %v7963, %v7955
    %v8188 = vpack.c.b16 %v7964, %v7956
    %v8189 = vpack.c.b16 %v7965, %v7957
    %v8190 = vpack.c.b16 %v7966, %v7958
    %v8191 = vpack.c.b16 %v7975, %v7967
    %v8192 = vpack.c.b16 %v7976, %v7968
    %v8193 = vpack.c.b16 %v7977, %v7969
    %v8194 = vpack.c.b16 %v7978, %v7970
    %v8195 = vpack.c.b16 %v7979, %v7971
    %v8196 = vpack.c.b16 %v7980, %v7972
    %v8197 = vpack.c.b16 %v7981, %v7973
    %v8198 = vpack.c.b16 %v7982, %v7974
    %v8199 = vpack.c.b16 %v7991, %v7983
    %v8200 = vpack.c.b16 %v7992, %v7984
    %v8201 = vpack.c.b16 %v7993, %v7985
    %v8202 = vpack.c.b16 %v7994, %v7986
    %v8203 = vpack.c.b16 %v7995, %v7987
    %v8204 = vpack.c.b16 %v7996, %v7988
    %v8205 = vpack.c.b16 %v7997, %v7989
    %v8206 = vpack.c.b16 %v7998, %v7990
    %v8207 = vpack.c.b16 %v8007, %v7999
    %v8208 = vpack.c.b16 %v8008, %v8000
    %v8209 = vpack.c.b16 %v8009, %v8001
    %v8210 = vpack.c.b16 %v8010, %v8002
    %v8211 = vpack.c.b16 %v8011, %v8003
    %v8212 = vpack.c.b16 %v8012, %v8004
    %v8213 = vpack.c.b16 %v8013, %v8005
    %v8214 = vpack.c.b16 %v8014, %v8006
    %v8215 = vpack.c.b16 %v8023, %v8015
    %v8216 = vpack.c.b16 %v8024, %v8016
    %v8217 = vpack.c.b16 %v8025, %v8017
    %v8218 = vpack.c.b16 %v8026, %v8018
    %v8219 = vpack.c.b16 %v8027, %v8019
    %v8220 = vpack.c.b16 %v8028, %v8020
    %v8221 = vpack.c.b16 %v8029, %v8021
    %v8222 = vpack.c.b16 %v8030, %v8022
    %v8223 = vpack.c.b16 %v8039, %v8031
    %v8224 = vpack.c.b16 %v8040, %v8032
    %v8225 = vpack.c.b16 %v8041, %v8033
    %v8226 = vpack.c.b16 %v8042, %v8034
    %v8227 = vpack.c.b16 %v8043, %v8035
    %v8228 = vpack.c.b16 %v8044, %v8036
    %v8229 = vpack.c.b16 %v8045, %v8037
    %v8230 = vpack.c.b16 %v8046, %v8038
    %v8231 = vpack.c.b16 %v8055, %v8047
    %v8232 = vpack.c.b16 %v8056, %v8048
    %v8233 = vpack.c.b16 %v8057, %v8049
    %v8234 = vpack.c.b16 %v8058, %v8050
    %v8235 = vpack.c.b16 %v8059, %v8051
    %v8236 = vpack.c.b16 %v8060, %v8052
    %v8237 = vpack.c.b16 %v8061, %v8053
    %v8238 = vpack.c.b16 %v8062, %v8054
    %v8239 = vpack.c.b16 %v8071, %v8063
    %v8240 = vpack.c.b16 %v8072, %v8064
    %v8241 = vpack.c.b16 %v8073, %v8065
    %v8242 = vpack.c.b16 %v8074, %v8066
    %v8243 = vpack.c.b16 %v8075, %v8067
    %v8244 = vpack.c.b16 %v8076, %v8068
    %v8245 = vpack.c.b16 %v8077, %v8069
    %v8246 = vpack.c.b16 %v8078, %v8070
    %v8247 = vpack.c.b16 %v8087, %v8079
    %v8248 = vpack.c.b16 %v8088, %v8080
    %v8249 = vpack.c.b16 %v8089, %v8081
    %v8250 = vpack.c.b16 %v8090, %v8082
    %v8251 = vpack.c.b16 %v8091, %v8083
    %v8252 = vpack.c.b16 %v8092, %v8084
    %v8253 = vpack.c.b16 %v8093, %v8085
    %v8254 = vpack.c.b16 %v8094, %v8086
    %v8255 = vpack.c.b16 %v8103, %v8095
    %v8256 = vpack.c.b16 %v8104, %v8096
    %v8257 = vpack.c.b16 %v8105, %v8097
    %v8258 = vpack.c.b16 %v8106, %v8098
    %v8259 = vpack.c.b16 %v8107, %v8099
    %v8260 = vpack.c.b16 %v8108, %v8100
    %v8261 = vpack.c.b16 %v8109, %v8101
    %v8262 = vpack.c.b16 %v8110, %v8102
    %v8263 = vpack.c.b16 %v8119, %v8111
    %v8264 = vpack.c.b16 %v8120, %v8112
    %v8265 = vpack.c.b16 %v8121, %v8113
    %v8266 = vpack.c.b16 %v8122, %v8114
    %v8267 = vpack.c.b16 %v8123, %v8115
    %v8268 = vpack.c.b16 %v8124, %v8116
    %v8269 = vpack.c.b16 %v8125, %v8117
    %v8270 = vpack.c.b16 %v8126, %v8118
    %v8271 = vpack.c.b16 %v8135, %v8127
    %v8272 = vpack.c.b16 %v8136, %v8128
    %v8273 = vpack.c.b16 %v8137, %v8129
    %v8274 = vpack.c.b16 %v8138, %v8130
    %v8275 = vpack.c.b16 %v8139, %v8131
    %v8276 = vpack.c.b16 %v8140, %v8132
    %v8277 = vpack.c.b16 %v8141, %v8133
    %v8278 = vpack.c.b16 %v8142, %v8134
    %v8279 = vpack.c.b16 %v8151, %v8143
    %v8280 = vpack.c.b16 %v8152, %v8144
    %v8281 = vpack.c.b16 %v8153, %v8145
    %v8282 = vpack.c.b16 %v8154, %v8146
    %v8283 = vpack.c.b16 %v8155, %v8147
    %v8284 = vpack.c.b16 %v8156, %v8148
    %v8285 = vpack.c.b16 %v8157, %v8149
    %v8286 = vpack.c.b16 %v8158, %v8150
    %8415 = vmatpush.bf16.msra.mxu0 %v8215
    %8416 = vmatpush.bf16.msra.mxu0 %v8207
    %8417 = vmatpush.bf16.msra.mxu0 %v8199
    %8418 = vmatpush.bf16.msra.mxu0 %v8191
    %8419 = vmatpush.bf16.msra.mxu0 %v8183
    %8420 = vmatpush.bf16.msra.mxu0 %v8175
    %8421 = vmatpush.bf16.msra.mxu0 %v8167
    %8422 = vmatpush.bf16.msra.mxu0 %v8159
    %8423 = vmatmul.bf16.gmra.mxu0 %v7645
    %v8424 = vpop.f32.mrf.mxu0
    %v8425 = vadd.f32 0.0, %v8424
    %v8426 = vpop.f32.mrf.mxu0
    %8427 = vdwg.mxu0
    %8428 = vmatpush.bf16.msra.mxu0 %v8279
    %8429 = vmatpush.bf16.msra.mxu0 %v8271
    %8430 = vmatpush.bf16.msra.mxu0 %v8263
    %8431 = vmatpush.bf16.msra.mxu0 %v8255
    %8432 = vmatpush.bf16.msra.mxu0 %v8247
    %8433 = vmatpush.bf16.msra.mxu0 %v8239
    %8434 = vmatpush.bf16.msra.mxu0 %v8231
    %8435 = vmatpush.bf16.msra.mxu0 %v8223
    %8436 = vmatmul.bf16.gmra.mxu0 %v7646
    %v8437 = vpop.f32.mrf.mxu0
    %v8438 = vadd.f32 %v8425, %v8437
    %v8439 = vpop.f32.mrf.mxu0
    %8440 = vdwg.mxu0
    %8441 = vmatpush.bf16.msra.mxu0 %v8216
    %8442 = vmatpush.bf16.msra.mxu0 %v8208
    %8443 = vmatpush.bf16.msra.mxu0 %v8200
    %8444 = vmatpush.bf16.msra.mxu0 %v8192
    %8445 = vmatpush.bf16.msra.mxu0 %v8184
    %8446 = vmatpush.bf16.msra.mxu0 %v8176
    %8447 = vmatpush.bf16.msra.mxu0 %v8168
    %8448 = vmatpush.bf16.msra.mxu0 %v8160
    %8449 = vmatmul.bf16.gmra.mxu0 %v7645
    %v8450 = vpop.f32.mrf.mxu0
    %v8451 = vadd.f32 0.0, %v8450
    %v8452 = vpop.f32.mrf.mxu0
    %8453 = vdwg.mxu0
    %8454 = vmatpush.bf16.msra.mxu0 %v8280
    %8455 = vmatpush.bf16.msra.mxu0 %v8272
    %8456 = vmatpush.bf16.msra.mxu0 %v8264
    %8457 = vmatpush.bf16.msra.mxu0 %v8256
    %8458 = vmatpush.bf16.msra.mxu0 %v8248
    %8459 = vmatpush.bf16.msra.mxu0 %v8240
    %8460 = vmatpush.bf16.msra.mxu0 %v8232
    %8461 = vmatpush.bf16.msra.mxu0 %v8224
    %8462 = vmatmul.bf16.gmra.mxu0 %v7646
    %v8463 = vpop.f32.mrf.mxu0
    %v8464 = vadd.f32 %v8451, %v8463
    %v8465 = vpop.f32.mrf.mxu0
    %8466 = vdwg.mxu0
    %8467 = vmatpush.bf16.msra.mxu0 %v8217
    %8468 = vmatpush.bf16.msra.mxu0 %v8209
    %8469 = vmatpush.bf16.msra.mxu0 %v8201
    %8470 = vmatpush.bf16.msra.mxu0 %v8193
    %8471 = vmatpush.bf16.msra.mxu0 %v8185
    %8472 = vmatpush.bf16.msra.mxu0 %v8177
    %8473 = vmatpush.bf16.msra.mxu0 %v8169
    %8474 = vmatpush.bf16.msra.mxu0 %v8161
    %8475 = vmatmul.bf16.gmra.mxu0 %v7645
    %v8476 = vpop.f32.mrf.mxu0
    %v8477 = vadd.f32 0.0, %v8476
    %v8478 = vpop.f32.mrf.mxu0
    %8479 = vdwg.mxu0
    %8480 = vmatpush.bf16.msra.mxu0 %v8281
    %8481 = vmatpush.bf16.msra.mxu0 %v8273
    %8482 = vmatpush.bf16.msra.mxu0 %v8265
    %8483 = vmatpush.bf16.msra.mxu0 %v8257
    %8484 = vmatpush.bf16.msra.mxu0 %v8249
    %8485 = vmatpush.bf16.msra.mxu0 %v8241
    %8486 = vmatpush.bf16.msra.mxu0 %v8233
    %8487 = vmatpush.bf16.msra.mxu0 %v8225
    %8488 = vmatmul.bf16.gmra.mxu0 %v7646
    %v8489 = vpop.f32.mrf.mxu0
    %v8490 = vadd.f32 %v8477, %v8489
    %v8491 = vpop.f32.mrf.mxu0
    %8492 = vdwg.mxu0
    %8493 = vmatpush.bf16.msra.mxu0 %v8218
    %8494 = vmatpush.bf16.msra.mxu0 %v8210
    %8495 = vmatpush.bf16.msra.mxu0 %v8202
    %8496 = vmatpush.bf16.msra.mxu0 %v8194
    %8497 = vmatpush.bf16.msra.mxu0 %v8186
    %8498 = vmatpush.bf16.msra.mxu0 %v8178
    %8499 = vmatpush.bf16.msra.mxu0 %v8170
    %8500 = vmatpush.bf16.msra.mxu0 %v8162
    %8501 = vmatmul.bf16.gmra.mxu0 %v7645
    %v8502 = vpop.f32.mrf.mxu0
    %v8503 = vadd.f32 0.0, %v8502
    %v8504 = vpop.f32.mrf.mxu0
    %8505 = vdwg.mxu0
    %8506 = vmatpush.bf16.msra.mxu0 %v8282
    %8507 = vmatpush.bf16.msra.mxu0 %v8274
    %8508 = vmatpush.bf16.msra.mxu0 %v8266
    %8509 = vmatpush.bf16.msra.mxu0 %v8258
    %8510 = vmatpush.bf16.msra.mxu0 %v8250
    %8511 = vmatpush.bf16.msra.mxu0 %v8242
    %8512 = vmatpush.bf16.msra.mxu0 %v8234
    %8513 = vmatpush.bf16.msra.mxu0 %v8226
    %8514 = vmatmul.bf16.gmra.mxu0 %v7646
    %v8515 = vpop.f32.mrf.mxu0
    %v8516 = vadd.f32 %v8503, %v8515
    %v8517 = vpop.f32.mrf.mxu0
    %8518 = vdwg.mxu0
    %8519 = vmatpush.bf16.msra.mxu0 %v8219
    %8520 = vmatpush.bf16.msra.mxu0 %v8211
    %8521 = vmatpush.bf16.msra.mxu0 %v8203
    %8522 = vmatpush.bf16.msra.mxu0 %v8195
    %8523 = vmatpush.bf16.msra.mxu0 %v8187
    %8524 = vmatpush.bf16.msra.mxu0 %v8179
    %8525 = vmatpush.bf16.msra.mxu0 %v8171
    %8526 = vmatpush.bf16.msra.mxu0 %v8163
    %8527 = vmatmul.bf16.gmra.mxu0 %v7645
    %v8528 = vpop.f32.mrf.mxu0
    %v8529 = vadd.f32 0.0, %v8528
    %v8530 = vpop.f32.mrf.mxu0
    %8531 = vdwg.mxu0
    %8532 = vmatpush.bf16.msra.mxu0 %v8283
    %8533 = vmatpush.bf16.msra.mxu0 %v8275
    %8534 = vmatpush.bf16.msra.mxu0 %v8267
    %8535 = vmatpush.bf16.msra.mxu0 %v8259
    %8536 = vmatpush.bf16.msra.mxu0 %v8251
    %8537 = vmatpush.bf16.msra.mxu0 %v8243
    %8538 = vmatpush.bf16.msra.mxu0 %v8235
    %8539 = vmatpush.bf16.msra.mxu0 %v8227
    %8540 = vmatmul.bf16.gmra.mxu0 %v7646
    %v8541 = vpop.f32.mrf.mxu0
    %v8542 = vadd.f32 %v8529, %v8541
    %v8543 = vpop.f32.mrf.mxu0
    %8544 = vdwg.mxu0
    %8545 = vmatpush.bf16.msra.mxu0 %v8220
    %8546 = vmatpush.bf16.msra.mxu0 %v8212
    %8547 = vmatpush.bf16.msra.mxu0 %v8204
    %8548 = vmatpush.bf16.msra.mxu0 %v8196
    %8549 = vmatpush.bf16.msra.mxu0 %v8188
    %8550 = vmatpush.bf16.msra.mxu0 %v8180
    %8551 = vmatpush.bf16.msra.mxu0 %v8172
    %8552 = vmatpush.bf16.msra.mxu0 %v8164
    %8553 = vmatmul.bf16.gmra.mxu0 %v7645
    %v8554 = vpop.f32.mrf.mxu0
    %v8555 = vadd.f32 0.0, %v8554
    %v8556 = vpop.f32.mrf.mxu0
    %8557 = vdwg.mxu0
    %8558 = vmatpush.bf16.msra.mxu0 %v8284
    %8559 = vmatpush.bf16.msra.mxu0 %v8276
    %8560 = vmatpush.bf16.msra.mxu0 %v8268
    %8561 = vmatpush.bf16.msra.mxu0 %v8260
    %8562 = vmatpush.bf16.msra.mxu0 %v8252
    %8563 = vmatpush.bf16.msra.mxu0 %v8244
    %8564 = vmatpush.bf16.msra.mxu0 %v8236
    %8565 = vmatpush.bf16.msra.mxu0 %v8228
    %8566 = vmatmul.bf16.gmra.mxu0 %v7646
    %v8567 = vpop.f32.mrf.mxu0
    %v8568 = vadd.f32 %v8555, %v8567
    %v8569 = vpop.f32.mrf.mxu0
    %8570 = vdwg.mxu0
    %8571 = vmatpush.bf16.msra.mxu0 %v8221
    %8572 = vmatpush.bf16.msra.mxu0 %v8213
    %8573 = vmatpush.bf16.msra.mxu0 %v8205
    %8574 = vmatpush.bf16.msra.mxu0 %v8197
    %8575 = vmatpush.bf16.msra.mxu0 %v8189
    %8576 = vmatpush.bf16.msra.mxu0 %v8181
    %8577 = vmatpush.bf16.msra.mxu0 %v8173
    %8578 = vmatpush.bf16.msra.mxu0 %v8165
    %8579 = vmatmul.bf16.gmra.mxu0 %v7645
    %v8580 = vpop.f32.mrf.mxu0
    %v8581 = vadd.f32 0.0, %v8580
    %v8582 = vpop.f32.mrf.mxu0
    %8583 = vdwg.mxu0
    %8584 = vmatpush.bf16.msra.mxu0 %v8285
    %8585 = vmatpush.bf16.msra.mxu0 %v8277
    %8586 = vmatpush.bf16.msra.mxu0 %v8269
    %8587 = vmatpush.bf16.msra.mxu0 %v8261
    %8588 = vmatpush.bf16.msra.mxu0 %v8253
    %8589 = vmatpush.bf16.msra.mxu0 %v8245
    %8590 = vmatpush.bf16.msra.mxu0 %v8237
    %8591 = vmatpush.bf16.msra.mxu0 %v8229
    %8592 = vmatmul.bf16.gmra.mxu0 %v7646
    %v8593 = vpop.f32.mrf.mxu0
    %v8594 = vadd.f32 %v8581, %v8593
    %v8595 = vpop.f32.mrf.mxu0
    %8596 = vdwg.mxu0
    %8597 = vmatpush.bf16.msra.mxu0 %v8222
    %8598 = vmatpush.bf16.msra.mxu0 %v8214
    %8599 = vmatpush.bf16.msra.mxu0 %v8206
    %8600 = vmatpush.bf16.msra.mxu0 %v8198
    %8601 = vmatpush.bf16.msra.mxu0 %v8190
    %8602 = vmatpush.bf16.msra.mxu0 %v8182
    %8603 = vmatpush.bf16.msra.mxu0 %v8174
    %8604 = vmatpush.bf16.msra.mxu0 %v8166
    %8605 = vmatmul.bf16.gmra.mxu0 %v7645
    %v8606 = vpop.f32.mrf.mxu0
    %v8607 = vadd.f32 0.0, %v8606
    %v8608 = vpop.f32.mrf.mxu0
    %8609 = vdwg.mxu0
    %8610 = vmatpush.bf16.msra.mxu0 %v8286
    %8611 = vmatpush.bf16.msra.mxu0 %v8278
    %8612 = vmatpush.bf16.msra.mxu0 %v8270
    %8613 = vmatpush.bf16.msra.mxu0 %v8262
    %8614 = vmatpush.bf16.msra.mxu0 %v8254
    %8615 = vmatpush.bf16.msra.mxu0 %v8246
    %8616 = vmatpush.bf16.msra.mxu0 %v8238
    %8617 = vmatpush.bf16.msra.mxu0 %v8230
    %8618 = vmatmul.bf16.gmra.mxu0 %v7646
    %v8619 = vpop.f32.mrf.mxu0
    %v8620 = vadd.f32 %v8607, %v8619
    %v8621 = vpop.f32.mrf.mxu0
    %8622 = vdwg.mxu0
    %v8623 = vld [vmem:[%s2950] sm:$0xff]
    %v8624 = vld [vmem:[%s2950 + $0x8] sm:$0xff]
    %v8625 = vld [vmem:[%s2950 + $0x10] sm:$0xff]
    %v8626 = vld [vmem:[%s2950 + $0x18] sm:$0xff]
    %v8627 = vadd.f32 %v8623, %v8438
    %v8628 = vadd.f32 %v8624, %v8464
    %v8629 = vadd.f32 %v8625, %v8490
    %v8630 = vadd.f32 %v8626, %v8516
    %v8631 = vld [vmem:[%s2941 + $0x20] sm:$0xff]
    %v8632 = vld [vmem:[%s2941 + $0x28] sm:$0xff]
    %v8633 = vld [vmem:[%s2941 + $0x30] sm:$0xff]
    %v8634 = vld [vmem:[%s2941 + $0x38] sm:$0xff]
    %v8635 = vadd.f32 %v8631, %v8542
    %v8636 = vadd.f32 %v8632, %v8568
    %v8637 = vadd.f32 %v8633, %v8594
    %v8638 = vadd.f32 %v8634, %v8620
    %v8639 = vxor.u32 %v8627, 2147483648
    %v8640 = vmul.f32 %v8639, 1.442695
    %v8641 = vpow.pop %v8640
    %v8642 = vadd.f32 %v8641, 1.0
    %v8643 = vrcp.pop %v8642
    %v8644 = vmul.f32 %v8642, %v8643
    %v8645 = vsub.f32 1.0, %v8644
    %v8646 = vmul.f32 %v8643, %v8645
    %v8647 = vadd.f32 %v8643, %v8646
    %vm8648 = vweird.f32 %v8642
    %vm8649 = vweird.f32 %v8643
    %vm8650 = vmor %vm8648, %vm8649
    %v8651 = vsel %vm8650, %v8643, %v8647
    %v8652 = vand.u32 2147483647, %v8642
    %vm8653 = vcmp.eq.f32.partialorder %v8652, 8.507059e+37
    %v8654 = vand.u32 %v8642, 2147483648
    %v8655 = vor.u32 1.1754944e-38, %v8654
    %v8656 = vsel %vm8653, %v8655, %v8651
    %v8657 = vmul.f32 1.0, %v8656
    %v8658 = vxor.u32 %v8628, 2147483648
    %v8659 = vmul.f32 %v8658, 1.442695
    %v8660 = vpow.pop %v8659
    %v8661 = vadd.f32 %v8660, 1.0
    %v8662 = vrcp.pop %v8661
    %v8663 = vmul.f32 %v8661, %v8662
    %v8664 = vsub.f32 1.0, %v8663
    %v8665 = vmul.f32 %v8662, %v8664
    %v8666 = vadd.f32 %v8662, %v8665
    %vm8667 = vweird.f32 %v8661
    %vm8668 = vweird.f32 %v8662
    %vm8669 = vmor %vm8667, %vm8668
    %v8670 = vsel %vm8669, %v8662, %v8666
    %v8671 = vand.u32 2147483647, %v8661
    %vm8672 = vcmp.eq.f32.partialorder %v8671, 8.507059e+37
    %v8673 = vand.u32 %v8661, 2147483648
    %v8674 = vor.u32 1.1754944e-38, %v8673
    %v8675 = vsel %vm8672, %v8674, %v8670
    %v8676 = vmul.f32 1.0, %v8675
    %v8677 = vtanh.pop %v8629
    %v8678 = vxor.u32 %v8630, 2147483648
    %v8679 = vmul.f32 %v8678, 1.442695
    %v8680 = vpow.pop %v8679
    %v8681 = vadd.f32 %v8680, 1.0
    %v8682 = vrcp.pop %v8681
    %v8683 = vmul.f32 %v8681, %v8682
    %v8684 = vsub.f32 1.0, %v8683
    %v8685 = vmul.f32 %v8682, %v8684
    %v8686 = vadd.f32 %v8682, %v8685
    %vm8687 = vweird.f32 %v8681
    %vm8688 = vweird.f32 %v8682
    %vm8689 = vmor %vm8687, %vm8688
    %v8690 = vsel %vm8689, %v8682, %v8686
    %v8691 = vand.u32 2147483647, %v8681
    %vm8692 = vcmp.eq.f32.partialorder %v8691, 8.507059e+37
    %v8693 = vand.u32 %v8681, 2147483648
    %v8694 = vor.u32 1.1754944e-38, %v8693
    %v8695 = vsel %vm8692, %v8694, %v8690
    %v8696 = vmul.f32 1.0, %v8695
    %v8697 = vmul.f32 %v8676, %v7643
    %v8698 = vmul.f32 %v8657, %v8677
    %v8699 = vadd.f32 %v8697, %v8698
    %v8700 = vtanh.pop %v8699
    %v8701 = vmul.f32 %v8696, %v8700
    %v8702 = vxor.u32 %v8635, 2147483648
    %v8703 = vmul.f32 %v8702, 1.442695
    %v8704 = vpow.pop %v8703
    %v8705 = vadd.f32 %v8704, 1.0
    %v8706 = vrcp.pop %v8705
    %v8707 = vmul.f32 %v8705, %v8706
    %v8708 = vsub.f32 1.0, %v8707
    %v8709 = vmul.f32 %v8706, %v8708
    %v8710 = vadd.f32 %v8706, %v8709
    %vm8711 = vweird.f32 %v8705
    %vm8712 = vweird.f32 %v8706
    %vm8713 = vmor %vm8711, %vm8712
    %v8714 = vsel %vm8713, %v8706, %v8710
    %v8715 = vand.u32 2147483647, %v8705
    %vm8716 = vcmp.eq.f32.partialorder %v8715, 8.507059e+37
    %v8717 = vand.u32 %v8705, 2147483648
    %v8718 = vor.u32 1.1754944e-38, %v8717
    %v8719 = vsel %vm8716, %v8718, %v8714
    %v8720 = vmul.f32 1.0, %v8719
    %v8721 = vxor.u32 %v8636, 2147483648
    %v8722 = vmul.f32 %v8721, 1.442695
    %v8723 = vpow.pop %v8722
    %v8724 = vadd.f32 %v8723, 1.0
    %v8725 = vrcp.pop %v8724
    %v8726 = vmul.f32 %v8724, %v8725
    %v8727 = vsub.f32 1.0, %v8726
    %v8728 = vmul.f32 %v8725, %v8727
    %v8729 = vadd.f32 %v8725, %v8728
    %vm8730 = vweird.f32 %v8724
    %vm8731 = vweird.f32 %v8725
    %vm8732 = vmor %vm8730, %vm8731
    %v8733 = vsel %vm8732, %v8725, %v8729
    %v8734 = vand.u32 2147483647, %v8724
    %vm8735 = vcmp.eq.f32.partialorder %v8734, 8.507059e+37
    %v8736 = vand.u32 %v8724, 2147483648
    %v8737 = vor.u32 1.1754944e-38, %v8736
    %v8738 = vsel %vm8735, %v8737, %v8733
    %v8739 = vmul.f32 1.0, %v8738
    %v8740 = vtanh.pop %v8637
    %v8741 = vxor.u32 %v8638, 2147483648
    %v8742 = vmul.f32 %v8741, 1.442695
    %v8743 = vpow.pop %v8742
    %v8744 = vadd.f32 %v8743, 1.0
    %v8745 = vrcp.pop %v8744
    %v8746 = vmul.f32 %v8744, %v8745
    %v8747 = vsub.f32 1.0, %v8746
    %v8748 = vmul.f32 %v8745, %v8747
    %v8749 = vadd.f32 %v8745, %v8748
    %vm8750 = vweird.f32 %v8744
    %vm8751 = vweird.f32 %v8745
    %vm8752 = vmor %vm8750, %vm8751
    %v8753 = vsel %vm8752, %v8745, %v8749
    %v8754 = vand.u32 2147483647, %v8744
    %vm8755 = vcmp.eq.f32.partialorder %v8754, 8.507059e+37
    %v8756 = vand.u32 %v8744, 2147483648
    %v8757 = vor.u32 1.1754944e-38, %v8756
    %v8758 = vsel %vm8755, %v8757, %v8753
    %v8759 = vmul.f32 1.0, %v8758
    %v8760 = vmul.f32 %v8739, %v7644
    %v8761 = vmul.f32 %v8720, %v8740
    %v8762 = vadd.f32 %v8760, %v8761
    %v8763 = vtanh.pop %v8762
    %v8764 = vmul.f32 %v8759, %v8763
    %v8765 = vld [vmem:[%s3088] sm:$0xff]
    %vm8766 = vcmp.gt.f32.partialorder %v8765, 0.0
    %v8767 = vld [vmem:[%s3085] sm:$0xff]
    %vm8768 = vcmp.gt.f32.partialorder %v8767, 0.0
    %v8769 = vsel %vm8766, %v8701, 0.0
    %s8770 = scalar_lea.vmem [#allocation3], 48
    %8771 = vst [vmem:[%s8770] sm:$0xff] %v8769
    %v8772 = vsel %vm8768, %v8764, 0.0
    %s8773 = scalar_lea.vmem [#allocation4], 8
    %8774 = vst [vmem:[%s8773] sm:$0xff] %v8772
    %v8775 = vsel %vm8766, %v8701, %v7641
    %v8776 = vsel %vm8768, %v8764, %v7642
    %v8777 = vsel %vm8766, %v8699, %v7643
    %v8778 = vsel %vm8768, %v8762, %v7644
    %v8779 = vpack.c.bf16 %v8775, %v8775
    %v8780 = vpack.c.bf16 %v8776, %v8776
    %v8781 = vld [vmem:[#allocation7] sm:$0xff]
    %v8782 = vld [vmem:[#allocation7 + $0x8] sm:$0xff]
    %v8783 = vld [vmem:[#allocation7 + $0x10] sm:$0xff]
    %v8784 = vld [vmem:[#allocation7 + $0x18] sm:$0xff]
    %v8785 = vld [vmem:[#allocation7 + $0x20] sm:$0xff]
    %v8786 = vld [vmem:[#allocation7 + $0x28] sm:$0xff]
    %v8787 = vld [vmem:[#allocation7 + $0x30] sm:$0xff]
    %v8788 = vld [vmem:[#allocation7 + $0x38] sm:$0xff]
    %v8789 = vld [vmem:[#allocation7 + $0x40] sm:$0xff]
    %v8790 = vld [vmem:[#allocation7 + $0x48] sm:$0xff]
    %v8791 = vld [vmem:[#allocation7 + $0x50] sm:$0xff]
    %v8792 = vld [vmem:[#allocation7 + $0x58] sm:$0xff]
    %v8793 = vld [vmem:[#allocation7 + $0x60] sm:$0xff]
    %v8794 = vld [vmem:[#allocation7 + $0x68] sm:$0xff]
    %v8795 = vld [vmem:[#allocation7 + $0x70] sm:$0xff]
    %v8796 = vld [vmem:[#allocation7 + $0x78] sm:$0xff]
    %v8797 = vld [vmem:[#allocation7 + $0x80] sm:$0xff]
    %v8798 = vld [vmem:[#allocation7 + $0x88] sm:$0xff]
    %v8799 = vld [vmem:[#allocation7 + $0x90] sm:$0xff]
    %v8800 = vld [vmem:[#allocation7 + $0x98] sm:$0xff]
    %v8801 = vld [vmem:[#allocation7 + $0xa0] sm:$0xff]
    %v8802 = vld [vmem:[#allocation7 + $0xa8] sm:$0xff]
    %v8803 = vld [vmem:[#allocation7 + $0xb0] sm:$0xff]
    %v8804 = vld [vmem:[#allocation7 + $0xb8] sm:$0xff]
    %v8805 = vld [vmem:[#allocation7 + $0xc0] sm:$0xff]
    %v8806 = vld [vmem:[#allocation7 + $0xc8] sm:$0xff]
    %v8807 = vld [vmem:[#allocation7 + $0xd0] sm:$0xff]
    %v8808 = vld [vmem:[#allocation7 + $0xd8] sm:$0xff]
    %v8809 = vld [vmem:[#allocation7 + $0xe0] sm:$0xff]
    %v8810 = vld [vmem:[#allocation7 + $0xe8] sm:$0xff]
    %v8811 = vld [vmem:[#allocation7 + $0xf0] sm:$0xff]
    %v8812 = vld [vmem:[#allocation7 + $0xf8] sm:$0xff]
    %v8813 = vld [vmem:[#allocation7 + $0x100] sm:$0xff]
    %v8814 = vld [vmem:[#allocation7 + $0x108] sm:$0xff]
    %v8815 = vld [vmem:[#allocation7 + $0x110] sm:$0xff]
    %v8816 = vld [vmem:[#allocation7 + $0x118] sm:$0xff]
    %v8817 = vld [vmem:[#allocation7 + $0x120] sm:$0xff]
    %v8818 = vld [vmem:[#allocation7 + $0x128] sm:$0xff]
    %v8819 = vld [vmem:[#allocation7 + $0x130] sm:$0xff]
    %v8820 = vld [vmem:[#allocation7 + $0x138] sm:$0xff]
    %v8821 = vld [vmem:[#allocation7 + $0x140] sm:$0xff]
    %v8822 = vld [vmem:[#allocation7 + $0x148] sm:$0xff]
    %v8823 = vld [vmem:[#allocation7 + $0x150] sm:$0xff]
    %v8824 = vld [vmem:[#allocation7 + $0x158] sm:$0xff]
    %v8825 = vld [vmem:[#allocation7 + $0x160] sm:$0xff]
    %v8826 = vld [vmem:[#allocation7 + $0x168] sm:$0xff]
    %v8827 = vld [vmem:[#allocation7 + $0x170] sm:$0xff]
    %v8828 = vld [vmem:[#allocation7 + $0x178] sm:$0xff]
    %v8829 = vld [vmem:[#allocation7 + $0x180] sm:$0xff]
    %v8830 = vld [vmem:[#allocation7 + $0x188] sm:$0xff]
    %v8831 = vld [vmem:[#allocation7 + $0x190] sm:$0xff]
    %v8832 = vld [vmem:[#allocation7 + $0x198] sm:$0xff]
    %v8833 = vld [vmem:[#allocation7 + $0x1a0] sm:$0xff]
    %v8834 = vld [vmem:[#allocation7 + $0x1a8] sm:$0xff]
    %v8835 = vld [vmem:[#allocation7 + $0x1b0] sm:$0xff]
    %v8836 = vld [vmem:[#allocation7 + $0x1b8] sm:$0xff]
    %v8837 = vld [vmem:[#allocation7 + $0x1c0] sm:$0xff]
    %v8838 = vld [vmem:[#allocation7 + $0x1c8] sm:$0xff]
    %v8839 = vld [vmem:[#allocation7 + $0x1d0] sm:$0xff]
    %v8840 = vld [vmem:[#allocation7 + $0x1d8] sm:$0xff]
    %v8841 = vld [vmem:[#allocation7 + $0x1e0] sm:$0xff]
    %v8842 = vld [vmem:[#allocation7 + $0x1e8] sm:$0xff]
    %v8843 = vld [vmem:[#allocation7 + $0x1f0] sm:$0xff]
    %v8844 = vld [vmem:[#allocation7 + $0x1f8] sm:$0xff]
    %v8845 = vld [vmem:[#allocation7 + $0x200] sm:$0xff]
    %v8846 = vld [vmem:[#allocation7 + $0x208] sm:$0xff]
    %v8847 = vld [vmem:[#allocation7 + $0x210] sm:$0xff]
    %v8848 = vld [vmem:[#allocation7 + $0x218] sm:$0xff]
    %v8849 = vld [vmem:[#allocation7 + $0x220] sm:$0xff]
    %v8850 = vld [vmem:[#allocation7 + $0x228] sm:$0xff]
    %v8851 = vld [vmem:[#allocation7 + $0x230] sm:$0xff]
    %v8852 = vld [vmem:[#allocation7 + $0x238] sm:$0xff]
    %v8853 = vld [vmem:[#allocation7 + $0x240] sm:$0xff]
    %v8854 = vld [vmem:[#allocation7 + $0x248] sm:$0xff]
    %v8855 = vld [vmem:[#allocation7 + $0x250] sm:$0xff]
    %v8856 = vld [vmem:[#allocation7 + $0x258] sm:$0xff]
    %v8857 = vld [vmem:[#allocation7 + $0x260] sm:$0xff]
    %v8858 = vld [vmem:[#allocation7 + $0x268] sm:$0xff]
    %v8859 = vld [vmem:[#allocation7 + $0x270] sm:$0xff]
    %v8860 = vld [vmem:[#allocation7 + $0x278] sm:$0xff]
    %v8861 = vld [vmem:[#allocation7 + $0x280] sm:$0xff]
    %v8862 = vld [vmem:[#allocation7 + $0x288] sm:$0xff]
    %v8863 = vld [vmem:[#allocation7 + $0x290] sm:$0xff]
    %v8864 = vld [vmem:[#allocation7 + $0x298] sm:$0xff]
    %v8865 = vld [vmem:[#allocation7 + $0x2a0] sm:$0xff]
    %v8866 = vld [vmem:[#allocation7 + $0x2a8] sm:$0xff]
    %v8867 = vld [vmem:[#allocation7 + $0x2b0] sm:$0xff]
    %v8868 = vld [vmem:[#allocation7 + $0x2b8] sm:$0xff]
    %v8869 = vld [vmem:[#allocation7 + $0x2c0] sm:$0xff]
    %v8870 = vld [vmem:[#allocation7 + $0x2c8] sm:$0xff]
    %v8871 = vld [vmem:[#allocation7 + $0x2d0] sm:$0xff]
    %v8872 = vld [vmem:[#allocation7 + $0x2d8] sm:$0xff]
    %v8873 = vld [vmem:[#allocation7 + $0x2e0] sm:$0xff]
    %v8874 = vld [vmem:[#allocation7 + $0x2e8] sm:$0xff]
    %v8875 = vld [vmem:[#allocation7 + $0x2f0] sm:$0xff]
    %v8876 = vld [vmem:[#allocation7 + $0x2f8] sm:$0xff]
    %v8877 = vld [vmem:[#allocation7 + $0x300] sm:$0xff]
    %v8878 = vld [vmem:[#allocation7 + $0x308] sm:$0xff]
    %v8879 = vld [vmem:[#allocation7 + $0x310] sm:$0xff]
    %v8880 = vld [vmem:[#allocation7 + $0x318] sm:$0xff]
    %v8881 = vld [vmem:[#allocation7 + $0x320] sm:$0xff]
    %v8882 = vld [vmem:[#allocation7 + $0x328] sm:$0xff]
    %v8883 = vld [vmem:[#allocation7 + $0x330] sm:$0xff]
    %v8884 = vld [vmem:[#allocation7 + $0x338] sm:$0xff]
    %v8885 = vld [vmem:[#allocation7 + $0x340] sm:$0xff]
    %v8886 = vld [vmem:[#allocation7 + $0x348] sm:$0xff]
    %v8887 = vld [vmem:[#allocation7 + $0x350] sm:$0xff]
    %v8888 = vld [vmem:[#allocation7 + $0x358] sm:$0xff]
    %v8889 = vld [vmem:[#allocation7 + $0x360] sm:$0xff]
    %v8890 = vld [vmem:[#allocation7 + $0x368] sm:$0xff]
    %v8891 = vld [vmem:[#allocation7 + $0x370] sm:$0xff]
    %v8892 = vld [vmem:[#allocation7 + $0x378] sm:$0xff]
    %v8893 = vld [vmem:[#allocation7 + $0x380] sm:$0xff]
    %v8894 = vld [vmem:[#allocation7 + $0x388] sm:$0xff]
    %v8895 = vld [vmem:[#allocation7 + $0x390] sm:$0xff]
    %v8896 = vld [vmem:[#allocation7 + $0x398] sm:$0xff]
    %v8897 = vld [vmem:[#allocation7 + $0x3a0] sm:$0xff]
    %v8898 = vld [vmem:[#allocation7 + $0x3a8] sm:$0xff]
    %v8899 = vld [vmem:[#allocation7 + $0x3b0] sm:$0xff]
    %v8900 = vld [vmem:[#allocation7 + $0x3b8] sm:$0xff]
    %v8901 = vld [vmem:[#allocation7 + $0x3c0] sm:$0xff]
    %v8902 = vld [vmem:[#allocation7 + $0x3c8] sm:$0xff]
    %v8903 = vld [vmem:[#allocation7 + $0x3d0] sm:$0xff]
    %v8904 = vld [vmem:[#allocation7 + $0x3d8] sm:$0xff]
    %v8905 = vld [vmem:[#allocation7 + $0x3e0] sm:$0xff]
    %v8906 = vld [vmem:[#allocation7 + $0x3e8] sm:$0xff]
    %v8907 = vld [vmem:[#allocation7 + $0x3f0] sm:$0xff]
    %v8908 = vld [vmem:[#allocation7 + $0x3f8] sm:$0xff]
    %v9037 = vunpack.c.l.b16 %v8781
    %v9038 = vunpack.c.h.b16 %v8781
    %v9039 = vunpack.c.l.b16 %v8782
    %v9040 = vunpack.c.h.b16 %v8782
    %v9041 = vunpack.c.l.b16 %v8783
    %v9042 = vunpack.c.h.b16 %v8783
    %v9043 = vunpack.c.l.b16 %v8784
    %v9044 = vunpack.c.h.b16 %v8784
    %v9045 = vunpack.c.l.b16 %v8785
    %v9046 = vunpack.c.h.b16 %v8785
    %v9047 = vunpack.c.l.b16 %v8786
    %v9048 = vunpack.c.h.b16 %v8786
    %v9049 = vunpack.c.l.b16 %v8787
    %v9050 = vunpack.c.h.b16 %v8787
    %v9051 = vunpack.c.l.b16 %v8788
    %v9052 = vunpack.c.h.b16 %v8788
    %v9053 = vunpack.c.l.b16 %v8789
    %v9054 = vunpack.c.h.b16 %v8789
    %v9055 = vunpack.c.l.b16 %v8790
    %v9056 = vunpack.c.h.b16 %v8790
    %v9057 = vunpack.c.l.b16 %v8791
    %v9058 = vunpack.c.h.b16 %v8791
    %v9059 = vunpack.c.l.b16 %v8792
    %v9060 = vunpack.c.h.b16 %v8792
    %v9061 = vunpack.c.l.b16 %v8793
    %v9062 = vunpack.c.h.b16 %v8793
    %v9063 = vunpack.c.l.b16 %v8794
    %v9064 = vunpack.c.h.b16 %v8794
    %v9065 = vunpack.c.l.b16 %v8795
    %v9066 = vunpack.c.h.b16 %v8795
    %v9067 = vunpack.c.l.b16 %v8796
    %v9068 = vunpack.c.h.b16 %v8796
    %v9069 = vunpack.c.l.b16 %v8797
    %v9070 = vunpack.c.h.b16 %v8797
    %v9071 = vunpack.c.l.b16 %v8798
    %v9072 = vunpack.c.h.b16 %v8798
    %v9073 = vunpack.c.l.b16 %v8799
    %v9074 = vunpack.c.h.b16 %v8799
    %v9075 = vunpack.c.l.b16 %v8800
    %v9076 = vunpack.c.h.b16 %v8800
    %v9077 = vunpack.c.l.b16 %v8801
    %v9078 = vunpack.c.h.b16 %v8801
    %v9079 = vunpack.c.l.b16 %v8802
    %v9080 = vunpack.c.h.b16 %v8802
    %v9081 = vunpack.c.l.b16 %v8803
    %v9082 = vunpack.c.h.b16 %v8803
    %v9083 = vunpack.c.l.b16 %v8804
    %v9084 = vunpack.c.h.b16 %v8804
    %v9085 = vunpack.c.l.b16 %v8805
    %v9086 = vunpack.c.h.b16 %v8805
    %v9087 = vunpack.c.l.b16 %v8806
    %v9088 = vunpack.c.h.b16 %v8806
    %v9089 = vunpack.c.l.b16 %v8807
    %v9090 = vunpack.c.h.b16 %v8807
    %v9091 = vunpack.c.l.b16 %v8808
    %v9092 = vunpack.c.h.b16 %v8808
    %v9093 = vunpack.c.l.b16 %v8809
    %v9094 = vunpack.c.h.b16 %v8809
    %v9095 = vunpack.c.l.b16 %v8810
    %v9096 = vunpack.c.h.b16 %v8810
    %v9097 = vunpack.c.l.b16 %v8811
    %v9098 = vunpack.c.h.b16 %v8811
    %v9099 = vunpack.c.l.b16 %v8812
    %v9100 = vunpack.c.h.b16 %v8812
    %v9101 = vunpack.c.l.b16 %v8813
    %v9102 = vunpack.c.h.b16 %v8813
    %v9103 = vunpack.c.l.b16 %v8814
    %v9104 = vunpack.c.h.b16 %v8814
    %v9105 = vunpack.c.l.b16 %v8815
    %v9106 = vunpack.c.h.b16 %v8815
    %v9107 = vunpack.c.l.b16 %v8816
    %v9108 = vunpack.c.h.b16 %v8816
    %v9109 = vunpack.c.l.b16 %v8817
    %v9110 = vunpack.c.h.b16 %v8817
    %v9111 = vunpack.c.l.b16 %v8818
    %v9112 = vunpack.c.h.b16 %v8818
    %v9113 = vunpack.c.l.b16 %v8819
    %v9114 = vunpack.c.h.b16 %v8819
    %v9115 = vunpack.c.l.b16 %v8820
    %v9116 = vunpack.c.h.b16 %v8820
    %v9117 = vunpack.c.l.b16 %v8821
    %v9118 = vunpack.c.h.b16 %v8821
    %v9119 = vunpack.c.l.b16 %v8822
    %v9120 = vunpack.c.h.b16 %v8822
    %v9121 = vunpack.c.l.b16 %v8823
    %v9122 = vunpack.c.h.b16 %v8823
    %v9123 = vunpack.c.l.b16 %v8824
    %v9124 = vunpack.c.h.b16 %v8824
    %v9125 = vunpack.c.l.b16 %v8825
    %v9126 = vunpack.c.h.b16 %v8825
    %v9127 = vunpack.c.l.b16 %v8826
    %v9128 = vunpack.c.h.b16 %v8826
    %v9129 = vunpack.c.l.b16 %v8827
    %v9130 = vunpack.c.h.b16 %v8827
    %v9131 = vunpack.c.l.b16 %v8828
    %v9132 = vunpack.c.h.b16 %v8828
    %v9133 = vunpack.c.l.b16 %v8829
    %v9134 = vunpack.c.h.b16 %v8829
    %v9135 = vunpack.c.l.b16 %v8830
    %v9136 = vunpack.c.h.b16 %v8830
    %v9137 = vunpack.c.l.b16 %v8831
    %v9138 = vunpack.c.h.b16 %v8831
    %v9139 = vunpack.c.l.b16 %v8832
    %v9140 = vunpack.c.h.b16 %v8832
    %v9141 = vunpack.c.l.b16 %v8833
    %v9142 = vunpack.c.h.b16 %v8833
    %v9143 = vunpack.c.l.b16 %v8834
    %v9144 = vunpack.c.h.b16 %v8834
    %v9145 = vunpack.c.l.b16 %v8835
    %v9146 = vunpack.c.h.b16 %v8835
    %v9147 = vunpack.c.l.b16 %v8836
    %v9148 = vunpack.c.h.b16 %v8836
    %v9149 = vunpack.c.l.b16 %v8837
    %v9150 = vunpack.c.h.b16 %v8837
    %v9151 = vunpack.c.l.b16 %v8838
    %v9152 = vunpack.c.h.b16 %v8838
    %v9153 = vunpack.c.l.b16 %v8839
    %v9154 = vunpack.c.h.b16 %v8839
    %v9155 = vunpack.c.l.b16 %v8840
    %v9156 = vunpack.c.h.b16 %v8840
    %v9157 = vunpack.c.l.b16 %v8841
    %v9158 = vunpack.c.h.b16 %v8841
    %v9159 = vunpack.c.l.b16 %v8842
    %v9160 = vunpack.c.h.b16 %v8842
    %v9161 = vunpack.c.l.b16 %v8843
    %v9162 = vunpack.c.h.b16 %v8843
    %v9163 = vunpack.c.l.b16 %v8844
    %v9164 = vunpack.c.h.b16 %v8844
    %v9165 = vunpack.c.l.b16 %v8845
    %v9166 = vunpack.c.h.b16 %v8845
    %v9167 = vunpack.c.l.b16 %v8846
    %v9168 = vunpack.c.h.b16 %v8846
    %v9169 = vunpack.c.l.b16 %v8847
    %v9170 = vunpack.c.h.b16 %v8847
    %v9171 = vunpack.c.l.b16 %v8848
    %v9172 = vunpack.c.h.b16 %v8848
    %v9173 = vunpack.c.l.b16 %v8849
    %v9174 = vunpack.c.h.b16 %v8849
    %v9175 = vunpack.c.l.b16 %v8850
    %v9176 = vunpack.c.h.b16 %v8850
    %v9177 = vunpack.c.l.b16 %v8851
    %v9178 = vunpack.c.h.b16 %v8851
    %v9179 = vunpack.c.l.b16 %v8852
    %v9180 = vunpack.c.h.b16 %v8852
    %v9181 = vunpack.c.l.b16 %v8853
    %v9182 = vunpack.c.h.b16 %v8853
    %v9183 = vunpack.c.l.b16 %v8854
    %v9184 = vunpack.c.h.b16 %v8854
    %v9185 = vunpack.c.l.b16 %v8855
    %v9186 = vunpack.c.h.b16 %v8855
    %v9187 = vunpack.c.l.b16 %v8856
    %v9188 = vunpack.c.h.b16 %v8856
    %v9189 = vunpack.c.l.b16 %v8857
    %v9190 = vunpack.c.h.b16 %v8857
    %v9191 = vunpack.c.l.b16 %v8858
    %v9192 = vunpack.c.h.b16 %v8858
    %v9193 = vunpack.c.l.b16 %v8859
    %v9194 = vunpack.c.h.b16 %v8859
    %v9195 = vunpack.c.l.b16 %v8860
    %v9196 = vunpack.c.h.b16 %v8860
    %v9197 = vunpack.c.l.b16 %v8861
    %v9198 = vunpack.c.h.b16 %v8861
    %v9199 = vunpack.c.l.b16 %v8862
    %v9200 = vunpack.c.h.b16 %v8862
    %v9201 = vunpack.c.l.b16 %v8863
    %v9202 = vunpack.c.h.b16 %v8863
    %v9203 = vunpack.c.l.b16 %v8864
    %v9204 = vunpack.c.h.b16 %v8864
    %v9205 = vunpack.c.l.b16 %v8865
    %v9206 = vunpack.c.h.b16 %v8865
    %v9207 = vunpack.c.l.b16 %v8866
    %v9208 = vunpack.c.h.b16 %v8866
    %v9209 = vunpack.c.l.b16 %v8867
    %v9210 = vunpack.c.h.b16 %v8867
    %v9211 = vunpack.c.l.b16 %v8868
    %v9212 = vunpack.c.h.b16 %v8868
    %v9213 = vunpack.c.l.b16 %v8869
    %v9214 = vunpack.c.h.b16 %v8869
    %v9215 = vunpack.c.l.b16 %v8870
    %v9216 = vunpack.c.h.b16 %v8870
    %v9217 = vunpack.c.l.b16 %v8871
    %v9218 = vunpack.c.h.b16 %v8871
    %v9219 = vunpack.c.l.b16 %v8872
    %v9220 = vunpack.c.h.b16 %v8872
    %v9221 = vunpack.c.l.b16 %v8873
    %v9222 = vunpack.c.h.b16 %v8873
    %v9223 = vunpack.c.l.b16 %v8874
    %v9224 = vunpack.c.h.b16 %v8874
    %v9225 = vunpack.c.l.b16 %v8875
    %v9226 = vunpack.c.h.b16 %v8875
    %v9227 = vunpack.c.l.b16 %v8876
    %v9228 = vunpack.c.h.b16 %v8876
    %v9229 = vunpack.c.l.b16 %v8877
    %v9230 = vunpack.c.h.b16 %v8877
    %v9231 = vunpack.c.l.b16 %v8878
    %v9232 = vunpack.c.h.b16 %v8878
    %v9233 = vunpack.c.l.b16 %v8879
    %v9234 = vunpack.c.h.b16 %v8879
    %v9235 = vunpack.c.l.b16 %v8880
    %v9236 = vunpack.c.h.b16 %v8880
    %v9237 = vunpack.c.l.b16 %v8881
    %v9238 = vunpack.c.h.b16 %v8881
    %v9239 = vunpack.c.l.b16 %v8882
    %v9240 = vunpack.c.h.b16 %v8882
    %v9241 = vunpack.c.l.b16 %v8883
    %v9242 = vunpack.c.h.b16 %v8883
    %v9243 = vunpack.c.l.b16 %v8884
    %v9244 = vunpack.c.h.b16 %v8884
    %v9245 = vunpack.c.l.b16 %v8885
    %v9246 = vunpack.c.h.b16 %v8885
    %v9247 = vunpack.c.l.b16 %v8886
    %v9248 = vunpack.c.h.b16 %v8886
    %v9249 = vunpack.c.l.b16 %v8887
    %v9250 = vunpack.c.h.b16 %v8887
    %v9251 = vunpack.c.l.b16 %v8888
    %v9252 = vunpack.c.h.b16 %v8888
    %v9253 = vunpack.c.l.b16 %v8889
    %v9254 = vunpack.c.h.b16 %v8889
    %v9255 = vunpack.c.l.b16 %v8890
    %v9256 = vunpack.c.h.b16 %v8890
    %v9257 = vunpack.c.l.b16 %v8891
    %v9258 = vunpack.c.h.b16 %v8891
    %v9259 = vunpack.c.l.b16 %v8892
    %v9260 = vunpack.c.h.b16 %v8892
    %v9261 = vunpack.c.l.b16 %v8893
    %v9262 = vunpack.c.h.b16 %v8893
    %v9263 = vunpack.c.l.b16 %v8894
    %v9264 = vunpack.c.h.b16 %v8894
    %v9265 = vunpack.c.l.b16 %v8895
    %v9266 = vunpack.c.h.b16 %v8895
    %v9267 = vunpack.c.l.b16 %v8896
    %v9268 = vunpack.c.h.b16 %v8896
    %v9269 = vunpack.c.l.b16 %v8897
    %v9270 = vunpack.c.h.b16 %v8897
    %v9271 = vunpack.c.l.b16 %v8898
    %v9272 = vunpack.c.h.b16 %v8898
    %v9273 = vunpack.c.l.b16 %v8899
    %v9274 = vunpack.c.h.b16 %v8899
    %v9275 = vunpack.c.l.b16 %v8900
    %v9276 = vunpack.c.h.b16 %v8900
    %v9277 = vunpack.c.l.b16 %v8901
    %v9278 = vunpack.c.h.b16 %v8901
    %v9279 = vunpack.c.l.b16 %v8902
    %v9280 = vunpack.c.h.b16 %v8902
    %v9281 = vunpack.c.l.b16 %v8903
    %v9282 = vunpack.c.h.b16 %v8903
    %v9283 = vunpack.c.l.b16 %v8904
    %v9284 = vunpack.c.h.b16 %v8904
    %v9285 = vunpack.c.l.b16 %v8905
    %v9286 = vunpack.c.h.b16 %v8905
    %v9287 = vunpack.c.l.b16 %v8906
    %v9288 = vunpack.c.h.b16 %v8906
    %v9289 = vunpack.c.l.b16 %v8907
    %v9290 = vunpack.c.h.b16 %v8907
    %v9291 = vunpack.c.l.b16 %v8908
    %v9292 = vunpack.c.h.b16 %v8908
    %v9293 = vpack.c.b16 %v9045, %v9037
    %v9294 = vpack.c.b16 %v9046, %v9038
    %v9295 = vpack.c.b16 %v9047, %v9039
    %v9296 = vpack.c.b16 %v9048, %v9040
    %v9297 = vpack.c.b16 %v9049, %v9041
    %v9298 = vpack.c.b16 %v9050, %v9042
    %v9299 = vpack.c.b16 %v9051, %v9043
    %v9300 = vpack.c.b16 %v9052, %v9044
    %v9301 = vpack.c.b16 %v9061, %v9053
    %v9302 = vpack.c.b16 %v9062, %v9054
    %v9303 = vpack.c.b16 %v9063, %v9055
    %v9304 = vpack.c.b16 %v9064, %v9056
    %v9305 = vpack.c.b16 %v9065, %v9057
    %v9306 = vpack.c.b16 %v9066, %v9058
    %v9307 = vpack.c.b16 %v9067, %v9059
    %v9308 = vpack.c.b16 %v9068, %v9060
    %v9309 = vpack.c.b16 %v9077, %v9069
    %v9310 = vpack.c.b16 %v9078, %v9070
    %v9311 = vpack.c.b16 %v9079, %v9071
    %v9312 = vpack.c.b16 %v9080, %v9072
    %v9313 = vpack.c.b16 %v9081, %v9073
    %v9314 = vpack.c.b16 %v9082, %v9074
    %v9315 = vpack.c.b16 %v9083, %v9075
    %v9316 = vpack.c.b16 %v9084, %v9076
    %v9317 = vpack.c.b16 %v9093, %v9085
    %v9318 = vpack.c.b16 %v9094, %v9086
    %v9319 = vpack.c.b16 %v9095, %v9087
    %v9320 = vpack.c.b16 %v9096, %v9088
    %v9321 = vpack.c.b16 %v9097, %v9089
    %v9322 = vpack.c.b16 %v9098, %v9090
    %v9323 = vpack.c.b16 %v9099, %v9091
    %v9324 = vpack.c.b16 %v9100, %v9092
    %v9325 = vpack.c.b16 %v9109, %v9101
    %v9326 = vpack.c.b16 %v9110, %v9102
    %v9327 = vpack.c.b16 %v9111, %v9103
    %v9328 = vpack.c.b16 %v9112, %v9104
    %v9329 = vpack.c.b16 %v9113, %v9105
    %v9330 = vpack.c.b16 %v9114, %v9106
    %v9331 = vpack.c.b16 %v9115, %v9107
    %v9332 = vpack.c.b16 %v9116, %v9108
    %v9333 = vpack.c.b16 %v9125, %v9117
    %v9334 = vpack.c.b16 %v9126, %v9118
    %v9335 = vpack.c.b16 %v9127, %v9119
    %v9336 = vpack.c.b16 %v9128, %v9120
    %v9337 = vpack.c.b16 %v9129, %v9121
    %v9338 = vpack.c.b16 %v9130, %v9122
    %v9339 = vpack.c.b16 %v9131, %v9123
    %v9340 = vpack.c.b16 %v9132, %v9124
    %v9341 = vpack.c.b16 %v9141, %v9133
    %v9342 = vpack.c.b16 %v9142, %v9134
    %v9343 = vpack.c.b16 %v9143, %v9135
    %v9344 = vpack.c.b16 %v9144, %v9136
    %v9345 = vpack.c.b16 %v9145, %v9137
    %v9346 = vpack.c.b16 %v9146, %v9138
    %v9347 = vpack.c.b16 %v9147, %v9139
    %v9348 = vpack.c.b16 %v9148, %v9140
    %v9349 = vpack.c.b16 %v9157, %v9149
    %v9350 = vpack.c.b16 %v9158, %v9150
    %v9351 = vpack.c.b16 %v9159, %v9151
    %v9352 = vpack.c.b16 %v9160, %v9152
    %v9353 = vpack.c.b16 %v9161, %v9153
    %v9354 = vpack.c.b16 %v9162, %v9154
    %v9355 = vpack.c.b16 %v9163, %v9155
    %v9356 = vpack.c.b16 %v9164, %v9156
    %v9357 = vpack.c.b16 %v9173, %v9165
    %v9358 = vpack.c.b16 %v9174, %v9166
    %v9359 = vpack.c.b16 %v9175, %v9167
    %v9360 = vpack.c.b16 %v9176, %v9168
    %v9361 = vpack.c.b16 %v9177, %v9169
    %v9362 = vpack.c.b16 %v9178, %v9170
    %v9363 = vpack.c.b16 %v9179, %v9171
    %v9364 = vpack.c.b16 %v9180, %v9172
    %v9365 = vpack.c.b16 %v9189, %v9181
    %v9366 = vpack.c.b16 %v9190, %v9182
    %v9367 = vpack.c.b16 %v9191, %v9183
    %v9368 = vpack.c.b16 %v9192, %v9184
    %v9369 = vpack.c.b16 %v9193, %v9185
    %v9370 = vpack.c.b16 %v9194, %v9186
    %v9371 = vpack.c.b16 %v9195, %v9187
    %v9372 = vpack.c.b16 %v9196, %v9188
    %v9373 = vpack.c.b16 %v9205, %v9197
    %v9374 = vpack.c.b16 %v9206, %v9198
    %v9375 = vpack.c.b16 %v9207, %v9199
    %v9376 = vpack.c.b16 %v9208, %v9200
    %v9377 = vpack.c.b16 %v9209, %v9201
    %v9378 = vpack.c.b16 %v9210, %v9202
    %v9379 = vpack.c.b16 %v9211, %v9203
    %v9380 = vpack.c.b16 %v9212, %v9204
    %v9381 = vpack.c.b16 %v9221, %v9213
    %v9382 = vpack.c.b16 %v9222, %v9214
    %v9383 = vpack.c.b16 %v9223, %v9215
    %v9384 = vpack.c.b16 %v9224, %v9216
    %v9385 = vpack.c.b16 %v9225, %v9217
    %v9386 = vpack.c.b16 %v9226, %v9218
    %v9387 = vpack.c.b16 %v9227, %v9219
    %v9388 = vpack.c.b16 %v9228, %v9220
    %v9389 = vpack.c.b16 %v9237, %v9229
    %v9390 = vpack.c.b16 %v9238, %v9230
    %v9391 = vpack.c.b16 %v9239, %v9231
    %v9392 = vpack.c.b16 %v9240, %v9232
    %v9393 = vpack.c.b16 %v9241, %v9233
    %v9394 = vpack.c.b16 %v9242, %v9234
    %v9395 = vpack.c.b16 %v9243, %v9235
    %v9396 = vpack.c.b16 %v9244, %v9236
    %v9397 = vpack.c.b16 %v9253, %v9245
    %v9398 = vpack.c.b16 %v9254, %v9246
    %v9399 = vpack.c.b16 %v9255, %v9247
    %v9400 = vpack.c.b16 %v9256, %v9248
    %v9401 = vpack.c.b16 %v9257, %v9249
    %v9402 = vpack.c.b16 %v9258, %v9250
    %v9403 = vpack.c.b16 %v9259, %v9251
    %v9404 = vpack.c.b16 %v9260, %v9252
    %v9405 = vpack.c.b16 %v9269, %v9261
    %v9406 = vpack.c.b16 %v9270, %v9262
    %v9407 = vpack.c.b16 %v9271, %v9263
    %v9408 = vpack.c.b16 %v9272, %v9264
    %v9409 = vpack.c.b16 %v9273, %v9265
    %v9410 = vpack.c.b16 %v9274, %v9266
    %v9411 = vpack.c.b16 %v9275, %v9267
    %v9412 = vpack.c.b16 %v9276, %v9268
    %v9413 = vpack.c.b16 %v9285, %v9277
    %v9414 = vpack.c.b16 %v9286, %v9278
    %v9415 = vpack.c.b16 %v9287, %v9279
    %v9416 = vpack.c.b16 %v9288, %v9280
    %v9417 = vpack.c.b16 %v9289, %v9281
    %v9418 = vpack.c.b16 %v9290, %v9282
    %v9419 = vpack.c.b16 %v9291, %v9283
    %v9420 = vpack.c.b16 %v9292, %v9284
    %9549 = vmatpush.bf16.msra.mxu0 %v9349
    %9550 = vmatpush.bf16.msra.mxu0 %v9341
    %9551 = vmatpush.bf16.msra.mxu0 %v9333
    %9552 = vmatpush.bf16.msra.mxu0 %v9325
    %9553 = vmatpush.bf16.msra.mxu0 %v9317
    %9554 = vmatpush.bf16.msra.mxu0 %v9309
    %9555 = vmatpush.bf16.msra.mxu0 %v9301
    %9556 = vmatpush.bf16.msra.mxu0 %v9293
    %9557 = vmatmul.bf16.gmra.mxu0 %v8779
    %v9558 = vpop.f32.mrf.mxu0
    %v9559 = vadd.f32 0.0, %v9558
    %v9560 = vpop.f32.mrf.mxu0
    %9561 = vdwg.mxu0
    %9562 = vmatpush.bf16.msra.mxu0 %v9413
    %9563 = vmatpush.bf16.msra.mxu0 %v9405
    %9564 = vmatpush.bf16.msra.mxu0 %v9397
    %9565 = vmatpush.bf16.msra.mxu0 %v9389
    %9566 = vmatpush.bf16.msra.mxu0 %v9381
    %9567 = vmatpush.bf16.msra.mxu0 %v9373
    %9568 = vmatpush.bf16.msra.mxu0 %v9365
    %9569 = vmatpush.bf16.msra.mxu0 %v9357
    %9570 = vmatmul.bf16.gmra.mxu0 %v8780
    %v9571 = vpop.f32.mrf.mxu0
    %v9572 = vadd.f32 %v9559, %v9571
    %v9573 = vpop.f32.mrf.mxu0
    %9574 = vdwg.mxu0
    %9575 = vmatpush.bf16.msra.mxu0 %v9350
    %9576 = vmatpush.bf16.msra.mxu0 %v9342
    %9577 = vmatpush.bf16.msra.mxu0 %v9334
    %9578 = vmatpush.bf16.msra.mxu0 %v9326
    %9579 = vmatpush.bf16.msra.mxu0 %v9318
    %9580 = vmatpush.bf16.msra.mxu0 %v9310
    %9581 = vmatpush.bf16.msra.mxu0 %v9302
    %9582 = vmatpush.bf16.msra.mxu0 %v9294
    %9583 = vmatmul.bf16.gmra.mxu0 %v8779
    %v9584 = vpop.f32.mrf.mxu0
    %v9585 = vadd.f32 0.0, %v9584
    %v9586 = vpop.f32.mrf.mxu0
    %9587 = vdwg.mxu0
    %9588 = vmatpush.bf16.msra.mxu0 %v9414
    %9589 = vmatpush.bf16.msra.mxu0 %v9406
    %9590 = vmatpush.bf16.msra.mxu0 %v9398
    %9591 = vmatpush.bf16.msra.mxu0 %v9390
    %9592 = vmatpush.bf16.msra.mxu0 %v9382
    %9593 = vmatpush.bf16.msra.mxu0 %v9374
    %9594 = vmatpush.bf16.msra.mxu0 %v9366
    %9595 = vmatpush.bf16.msra.mxu0 %v9358
    %9596 = vmatmul.bf16.gmra.mxu0 %v8780
    %v9597 = vpop.f32.mrf.mxu0
    %v9598 = vadd.f32 %v9585, %v9597
    %v9599 = vpop.f32.mrf.mxu0
    %9600 = vdwg.mxu0
    %9601 = vmatpush.bf16.msra.mxu0 %v9351
    %9602 = vmatpush.bf16.msra.mxu0 %v9343
    %9603 = vmatpush.bf16.msra.mxu0 %v9335
    %9604 = vmatpush.bf16.msra.mxu0 %v9327
    %9605 = vmatpush.bf16.msra.mxu0 %v9319
    %9606 = vmatpush.bf16.msra.mxu0 %v9311
    %9607 = vmatpush.bf16.msra.mxu0 %v9303
    %9608 = vmatpush.bf16.msra.mxu0 %v9295
    %9609 = vmatmul.bf16.gmra.mxu0 %v8779
    %v9610 = vpop.f32.mrf.mxu0
    %v9611 = vadd.f32 0.0, %v9610
    %v9612 = vpop.f32.mrf.mxu0
    %9613 = vdwg.mxu0
    %9614 = vmatpush.bf16.msra.mxu0 %v9415
    %9615 = vmatpush.bf16.msra.mxu0 %v9407
    %9616 = vmatpush.bf16.msra.mxu0 %v9399
    %9617 = vmatpush.bf16.msra.mxu0 %v9391
    %9618 = vmatpush.bf16.msra.mxu0 %v9383
    %9619 = vmatpush.bf16.msra.mxu0 %v9375
    %9620 = vmatpush.bf16.msra.mxu0 %v9367
    %9621 = vmatpush.bf16.msra.mxu0 %v9359
    %9622 = vmatmul.bf16.gmra.mxu0 %v8780
    %v9623 = vpop.f32.mrf.mxu0
    %v9624 = vadd.f32 %v9611, %v9623
    %v9625 = vpop.f32.mrf.mxu0
    %9626 = vdwg.mxu0
    %9627 = vmatpush.bf16.msra.mxu0 %v9352
    %9628 = vmatpush.bf16.msra.mxu0 %v9344
    %9629 = vmatpush.bf16.msra.mxu0 %v9336
    %9630 = vmatpush.bf16.msra.mxu0 %v9328
    %9631 = vmatpush.bf16.msra.mxu0 %v9320
    %9632 = vmatpush.bf16.msra.mxu0 %v9312
    %9633 = vmatpush.bf16.msra.mxu0 %v9304
    %9634 = vmatpush.bf16.msra.mxu0 %v9296
    %9635 = vmatmul.bf16.gmra.mxu0 %v8779
    %v9636 = vpop.f32.mrf.mxu0
    %v9637 = vadd.f32 0.0, %v9636
    %v9638 = vpop.f32.mrf.mxu0
    %9639 = vdwg.mxu0
    %9640 = vmatpush.bf16.msra.mxu0 %v9416
    %9641 = vmatpush.bf16.msra.mxu0 %v9408
    %9642 = vmatpush.bf16.msra.mxu0 %v9400
    %9643 = vmatpush.bf16.msra.mxu0 %v9392
    %9644 = vmatpush.bf16.msra.mxu0 %v9384
    %9645 = vmatpush.bf16.msra.mxu0 %v9376
    %9646 = vmatpush.bf16.msra.mxu0 %v9368
    %9647 = vmatpush.bf16.msra.mxu0 %v9360
    %9648 = vmatmul.bf16.gmra.mxu0 %v8780
    %v9649 = vpop.f32.mrf.mxu0
    %v9650 = vadd.f32 %v9637, %v9649
    %v9651 = vpop.f32.mrf.mxu0
    %9652 = vdwg.mxu0
    %9653 = vmatpush.bf16.msra.mxu0 %v9353
    %9654 = vmatpush.bf16.msra.mxu0 %v9345
    %9655 = vmatpush.bf16.msra.mxu0 %v9337
    %9656 = vmatpush.bf16.msra.mxu0 %v9329
    %9657 = vmatpush.bf16.msra.mxu0 %v9321
    %9658 = vmatpush.bf16.msra.mxu0 %v9313
    %9659 = vmatpush.bf16.msra.mxu0 %v9305
    %9660 = vmatpush.bf16.msra.mxu0 %v9297
    %9661 = vmatmul.bf16.gmra.mxu0 %v8779
    %v9662 = vpop.f32.mrf.mxu0
    %v9663 = vadd.f32 0.0, %v9662
    %v9664 = vpop.f32.mrf.mxu0
    %9665 = vdwg.mxu0
    %9666 = vmatpush.bf16.msra.mxu0 %v9417
    %9667 = vmatpush.bf16.msra.mxu0 %v9409
    %9668 = vmatpush.bf16.msra.mxu0 %v9401
    %9669 = vmatpush.bf16.msra.mxu0 %v9393
    %9670 = vmatpush.bf16.msra.mxu0 %v9385
    %9671 = vmatpush.bf16.msra.mxu0 %v9377
    %9672 = vmatpush.bf16.msra.mxu0 %v9369
    %9673 = vmatpush.bf16.msra.mxu0 %v9361
    %9674 = vmatmul.bf16.gmra.mxu0 %v8780
    %v9675 = vpop.f32.mrf.mxu0
    %v9676 = vadd.f32 %v9663, %v9675
    %v9677 = vpop.f32.mrf.mxu0
    %9678 = vdwg.mxu0
    %9679 = vmatpush.bf16.msra.mxu0 %v9354
    %9680 = vmatpush.bf16.msra.mxu0 %v9346
    %9681 = vmatpush.bf16.msra.mxu0 %v9338
    %9682 = vmatpush.bf16.msra.mxu0 %v9330
    %9683 = vmatpush.bf16.msra.mxu0 %v9322
    %9684 = vmatpush.bf16.msra.mxu0 %v9314
    %9685 = vmatpush.bf16.msra.mxu0 %v9306
    %9686 = vmatpush.bf16.msra.mxu0 %v9298
    %9687 = vmatmul.bf16.gmra.mxu0 %v8779
    %v9688 = vpop.f32.mrf.mxu0
    %v9689 = vadd.f32 0.0, %v9688
    %v9690 = vpop.f32.mrf.mxu0
    %9691 = vdwg.mxu0
    %9692 = vmatpush.bf16.msra.mxu0 %v9418
    %9693 = vmatpush.bf16.msra.mxu0 %v9410
    %9694 = vmatpush.bf16.msra.mxu0 %v9402
    %9695 = vmatpush.bf16.msra.mxu0 %v9394
    %9696 = vmatpush.bf16.msra.mxu0 %v9386
    %9697 = vmatpush.bf16.msra.mxu0 %v9378
    %9698 = vmatpush.bf16.msra.mxu0 %v9370
    %9699 = vmatpush.bf16.msra.mxu0 %v9362
    %9700 = vmatmul.bf16.gmra.mxu0 %v8780
    %v9701 = vpop.f32.mrf.mxu0
    %v9702 = vadd.f32 %v9689, %v9701
    %v9703 = vpop.f32.mrf.mxu0
    %9704 = vdwg.mxu0
    %9705 = vmatpush.bf16.msra.mxu0 %v9355
    %9706 = vmatpush.bf16.msra.mxu0 %v9347
    %9707 = vmatpush.bf16.msra.mxu0 %v9339
    %9708 = vmatpush.bf16.msra.mxu0 %v9331
    %9709 = vmatpush.bf16.msra.mxu0 %v9323
    %9710 = vmatpush.bf16.msra.mxu0 %v9315
    %9711 = vmatpush.bf16.msra.mxu0 %v9307
    %9712 = vmatpush.bf16.msra.mxu0 %v9299
    %9713 = vmatmul.bf16.gmra.mxu0 %v8779
    %v9714 = vpop.f32.mrf.mxu0
    %v9715 = vadd.f32 0.0, %v9714
    %v9716 = vpop.f32.mrf.mxu0
    %9717 = vdwg.mxu0
    %9718 = vmatpush.bf16.msra.mxu0 %v9419
    %9719 = vmatpush.bf16.msra.mxu0 %v9411
    %9720 = vmatpush.bf16.msra.mxu0 %v9403
    %9721 = vmatpush.bf16.msra.mxu0 %v9395
    %9722 = vmatpush.bf16.msra.mxu0 %v9387
    %9723 = vmatpush.bf16.msra.mxu0 %v9379
    %9724 = vmatpush.bf16.msra.mxu0 %v9371
    %9725 = vmatpush.bf16.msra.mxu0 %v9363
    %9726 = vmatmul.bf16.gmra.mxu0 %v8780
    %v9727 = vpop.f32.mrf.mxu0
    %v9728 = vadd.f32 %v9715, %v9727
    %v9729 = vpop.f32.mrf.mxu0
    %9730 = vdwg.mxu0
    %9731 = vmatpush.bf16.msra.mxu0 %v9356
    %9732 = vmatpush.bf16.msra.mxu0 %v9348
    %9733 = vmatpush.bf16.msra.mxu0 %v9340
    %9734 = vmatpush.bf16.msra.mxu0 %v9332
    %9735 = vmatpush.bf16.msra.mxu0 %v9324
    %9736 = vmatpush.bf16.msra.mxu0 %v9316
    %9737 = vmatpush.bf16.msra.mxu0 %v9308
    %9738 = vmatpush.bf16.msra.mxu0 %v9300
    %9739 = vmatmul.bf16.gmra.mxu0 %v8779
    %v9740 = vpop.f32.mrf.mxu0
    %v9741 = vadd.f32 0.0, %v9740
    %v9742 = vpop.f32.mrf.mxu0
    %9743 = vdwg.mxu0
    %9744 = vmatpush.bf16.msra.mxu0 %v9420
    %9745 = vmatpush.bf16.msra.mxu0 %v9412
    %9746 = vmatpush.bf16.msra.mxu0 %v9404
    %9747 = vmatpush.bf16.msra.mxu0 %v9396
    %9748 = vmatpush.bf16.msra.mxu0 %v9388
    %9749 = vmatpush.bf16.msra.mxu0 %v9380
    %9750 = vmatpush.bf16.msra.mxu0 %v9372
    %9751 = vmatpush.bf16.msra.mxu0 %v9364
    %9752 = vmatmul.bf16.gmra.mxu0 %v8780
    %v9753 = vpop.f32.mrf.mxu0
    %v9754 = vadd.f32 %v9741, %v9753
    %v9755 = vpop.f32.mrf.mxu0
    %9756 = vdwg.mxu0
    %v9757 = vld [vmem:[%s1816] sm:$0xff]
    %v9758 = vld [vmem:[%s1816 + $0x8] sm:$0xff]
    %v9759 = vld [vmem:[%s1816 + $0x10] sm:$0xff]
    %v9760 = vld [vmem:[%s1816 + $0x18] sm:$0xff]
    %v9761 = vadd.f32 %v9757, %v9572
    %v9762 = vadd.f32 %v9758, %v9598
    %v9763 = vadd.f32 %v9759, %v9624
    %v9764 = vadd.f32 %v9760, %v9650
    %v9765 = vld [vmem:[#allocation2 + $0x20] sm:$0xff]
    %v9766 = vld [vmem:[#allocation2 + $0x28] sm:$0xff]
    %v9767 = vld [vmem:[#allocation2 + $0x30] sm:$0xff]
    %v9768 = vld [vmem:[#allocation2 + $0x38] sm:$0xff]
    %v9769 = vadd.f32 %v9765, %v9676
    %v9770 = vadd.f32 %v9766, %v9702
    %v9771 = vadd.f32 %v9767, %v9728
    %v9772 = vadd.f32 %v9768, %v9754
    %v9773 = vxor.u32 %v9761, 2147483648
    %v9774 = vmul.f32 %v9773, 1.442695
    %v9775 = vpow.pop %v9774
    %v9776 = vadd.f32 %v9775, 1.0
    %v9777 = vrcp.pop %v9776
    %v9778 = vmul.f32 %v9776, %v9777
    %v9779 = vsub.f32 1.0, %v9778
    %v9780 = vmul.f32 %v9777, %v9779
    %v9781 = vadd.f32 %v9777, %v9780
    %vm9782 = vweird.f32 %v9776
    %vm9783 = vweird.f32 %v9777
    %vm9784 = vmor %vm9782, %vm9783
    %v9785 = vsel %vm9784, %v9777, %v9781
    %v9786 = vand.u32 2147483647, %v9776
    %vm9787 = vcmp.eq.f32.partialorder %v9786, 8.507059e+37
    %v9788 = vand.u32 %v9776, 2147483648
    %v9789 = vor.u32 1.1754944e-38, %v9788
    %v9790 = vsel %vm9787, %v9789, %v9785
    %v9791 = vmul.f32 1.0, %v9790
    %v9792 = vxor.u32 %v9762, 2147483648
    %v9793 = vmul.f32 %v9792, 1.442695
    %v9794 = vpow.pop %v9793
    %v9795 = vadd.f32 %v9794, 1.0
    %v9796 = vrcp.pop %v9795
    %v9797 = vmul.f32 %v9795, %v9796
    %v9798 = vsub.f32 1.0, %v9797
    %v9799 = vmul.f32 %v9796, %v9798
    %v9800 = vadd.f32 %v9796, %v9799
    %vm9801 = vweird.f32 %v9795
    %vm9802 = vweird.f32 %v9796
    %vm9803 = vmor %vm9801, %vm9802
    %v9804 = vsel %vm9803, %v9796, %v9800
    %v9805 = vand.u32 2147483647, %v9795
    %vm9806 = vcmp.eq.f32.partialorder %v9805, 8.507059e+37
    %v9807 = vand.u32 %v9795, 2147483648
    %v9808 = vor.u32 1.1754944e-38, %v9807
    %v9809 = vsel %vm9806, %v9808, %v9804
    %v9810 = vmul.f32 1.0, %v9809
    %v9811 = vtanh.pop %v9763
    %v9812 = vxor.u32 %v9764, 2147483648
    %v9813 = vmul.f32 %v9812, 1.442695
    %v9814 = vpow.pop %v9813
    %v9815 = vadd.f32 %v9814, 1.0
    %v9816 = vrcp.pop %v9815
    %v9817 = vmul.f32 %v9815, %v9816
    %v9818 = vsub.f32 1.0, %v9817
    %v9819 = vmul.f32 %v9816, %v9818
    %v9820 = vadd.f32 %v9816, %v9819
    %vm9821 = vweird.f32 %v9815
    %vm9822 = vweird.f32 %v9816
    %vm9823 = vmor %vm9821, %vm9822
    %v9824 = vsel %vm9823, %v9816, %v9820
    %v9825 = vand.u32 2147483647, %v9815
    %vm9826 = vcmp.eq.f32.partialorder %v9825, 8.507059e+37
    %v9827 = vand.u32 %v9815, 2147483648
    %v9828 = vor.u32 1.1754944e-38, %v9827
    %v9829 = vsel %vm9826, %v9828, %v9824
    %v9830 = vmul.f32 1.0, %v9829
    %v9831 = vmul.f32 %v9810, %v8777
    %v9832 = vmul.f32 %v9791, %v9811
    %v9833 = vadd.f32 %v9831, %v9832
    %v9834 = vtanh.pop %v9833
    %v9835 = vmul.f32 %v9830, %v9834
    %v9836 = vxor.u32 %v9769, 2147483648
    %v9837 = vmul.f32 %v9836, 1.442695
    %v9838 = vpow.pop %v9837
    %v9839 = vadd.f32 %v9838, 1.0
    %v9840 = vrcp.pop %v9839
    %v9841 = vmul.f32 %v9839, %v9840
    %v9842 = vsub.f32 1.0, %v9841
    %v9843 = vmul.f32 %v9840, %v9842
    %v9844 = vadd.f32 %v9840, %v9843
    %vm9845 = vweird.f32 %v9839
    %vm9846 = vweird.f32 %v9840
    %vm9847 = vmor %vm9845, %vm9846
    %v9848 = vsel %vm9847, %v9840, %v9844
    %v9849 = vand.u32 2147483647, %v9839
    %vm9850 = vcmp.eq.f32.partialorder %v9849, 8.507059e+37
    %v9851 = vand.u32 %v9839, 2147483648
    %v9852 = vor.u32 1.1754944e-38, %v9851
    %v9853 = vsel %vm9850, %v9852, %v9848
    %v9854 = vmul.f32 1.0, %v9853
    %v9855 = vxor.u32 %v9770, 2147483648
    %v9856 = vmul.f32 %v9855, 1.442695
    %v9857 = vpow.pop %v9856
    %v9858 = vadd.f32 %v9857, 1.0
    %v9859 = vrcp.pop %v9858
    %v9860 = vmul.f32 %v9858, %v9859
    %v9861 = vsub.f32 1.0, %v9860
    %v9862 = vmul.f32 %v9859, %v9861
    %v9863 = vadd.f32 %v9859, %v9862
    %vm9864 = vweird.f32 %v9858
    %vm9865 = vweird.f32 %v9859
    %vm9866 = vmor %vm9864, %vm9865
    %v9867 = vsel %vm9866, %v9859, %v9863
    %v9868 = vand.u32 2147483647, %v9858
    %vm9869 = vcmp.eq.f32.partialorder %v9868, 8.507059e+37
    %v9870 = vand.u32 %v9858, 2147483648
    %v9871 = vor.u32 1.1754944e-38, %v9870
    %v9872 = vsel %vm9869, %v9871, %v9867
    %v9873 = vmul.f32 1.0, %v9872
    %v9874 = vtanh.pop %v9771
    %v9875 = vxor.u32 %v9772, 2147483648
    %v9876 = vmul.f32 %v9875, 1.442695
    %v9877 = vpow.pop %v9876
    %v9878 = vadd.f32 %v9877, 1.0
    %v9879 = vrcp.pop %v9878
    %v9880 = vmul.f32 %v9878, %v9879
    %v9881 = vsub.f32 1.0, %v9880
    %v9882 = vmul.f32 %v9879, %v9881
    %v9883 = vadd.f32 %v9879, %v9882
    %vm9884 = vweird.f32 %v9878
    %vm9885 = vweird.f32 %v9879
    %vm9886 = vmor %vm9884, %vm9885
    %v9887 = vsel %vm9886, %v9879, %v9883
    %v9888 = vand.u32 2147483647, %v9878
    %vm9889 = vcmp.eq.f32.partialorder %v9888, 8.507059e+37
    %v9890 = vand.u32 %v9878, 2147483648
    %v9891 = vor.u32 1.1754944e-38, %v9890
    %v9892 = vsel %vm9889, %v9891, %v9887
    %v9893 = vmul.f32 1.0, %v9892
    %v9894 = vmul.f32 %v9873, %v8778
    %v9895 = vmul.f32 %v9854, %v9874
    %v9896 = vadd.f32 %v9894, %v9895
    %v9897 = vtanh.pop %v9896
    %v9898 = vmul.f32 %v9893, %v9897
    %v9899 = vld [vmem:[%s1953] sm:$0xff]
    %vm9900 = vcmp.gt.f32.partialorder %v9899, 0.0
    %v9901 = vld [vmem:[%s1] sm:$0xff]
    %vm9902 = vcmp.gt.f32.partialorder %v9901, 0.0
    %v9903 = vsel %vm9900, %v9835, 0.0
    %s9904 = scalar_lea.vmem [#allocation3], 56
    %9905 = vst [vmem:[%s9904] sm:$0xff] %v9903
    %v9906 = vsel %vm9902, %v9898, 0.0
    %9907 = vst [vmem:[#allocation4] sm:$0xff] %v9906
    %v9908 = vld [vmem:[#allocation3] sm:$0xff]
    %v9909 = vld [vmem:[#allocation3 + $0x8] sm:$0xff]
    %v9910 = vld [vmem:[#allocation3 + $0x10] sm:$0xff]
    %v9911 = vld [vmem:[#allocation3 + $0x18] sm:$0xff]
    %v9912 = vld [vmem:[#allocation3 + $0x20] sm:$0xff]
    %v9913 = vld [vmem:[#allocation3 + $0x28] sm:$0xff]
    %v9914 = vld [vmem:[#allocation3 + $0x30] sm:$0xff]
    %v9915 = vld [vmem:[#allocation3 + $0x38] sm:$0xff]
    %v9916 = vld [vmem:[#allocation4] sm:$0xff]
    %v9917 = vld [vmem:[#allocation4 + $0x8] sm:$0xff]
    %v9918 = vld [vmem:[#allocation4 + $0x10] sm:$0xff]
    %v9919 = vld [vmem:[#allocation4 + $0x18] sm:$0xff]
    %v9920 = vld [vmem:[#allocation4 + $0x20] sm:$0xff]
    %v9921 = vld [vmem:[#allocation4 + $0x28] sm:$0xff]
    %v9922 = vld [vmem:[#allocation4 + $0x30] sm:$0xff]
    %v9923 = vld [vmem:[#allocation4 + $0x38] sm:$0xff]
    %v9924 = vpack.c.bf16 %v9909, %v9908
    %v9925 = vpack.c.bf16 %v9917, %v9916
    %v9926 = vpack.c.bf16 %v9911, %v9910
    %v9927 = vpack.c.bf16 %v9919, %v9918
    %v9928 = vpack.c.bf16 %v9913, %v9912
    %v9929 = vpack.c.bf16 %v9921, %v9920
    %v9930 = vpack.c.bf16 %v9915, %v9914
    %v9931 = vpack.c.bf16 %v9923, %v9922
    %v9932 = vld [vmem:[#allocation9] sm:$0xff]
    %v9933 = vld [vmem:[#allocation9 + $0x8] sm:$0xff]
    %v9934 = vld [vmem:[#allocation9 + $0x10] sm:$0xff]
    %v9935 = vld [vmem:[#allocation9 + $0x18] sm:$0xff]
    %v9936 = vld [vmem:[#allocation9 + $0x20] sm:$0xff]
    %v9937 = vld [vmem:[#allocation9 + $0x28] sm:$0xff]
    %v9938 = vld [vmem:[#allocation9 + $0x30] sm:$0xff]
    %v9939 = vld [vmem:[#allocation9 + $0x38] sm:$0xff]
    %v9940 = vld [vmem:[#allocation9 + $0x40] sm:$0xff]
    %v9941 = vld [vmem:[#allocation9 + $0x48] sm:$0xff]
    %v9942 = vld [vmem:[#allocation9 + $0x50] sm:$0xff]
    %v9943 = vld [vmem:[#allocation9 + $0x58] sm:$0xff]
    %v9944 = vld [vmem:[#allocation9 + $0x60] sm:$0xff]
    %v9945 = vld [vmem:[#allocation9 + $0x68] sm:$0xff]
    %v9946 = vld [vmem:[#allocation9 + $0x70] sm:$0xff]
    %v9947 = vld [vmem:[#allocation9 + $0x78] sm:$0xff]
    %v9948 = vld [vmem:[#allocation9 + $0x80] sm:$0xff]
    %v9949 = vld [vmem:[#allocation9 + $0x88] sm:$0xff]
    %v9950 = vld [vmem:[#allocation9 + $0x90] sm:$0xff]
    %v9951 = vld [vmem:[#allocation9 + $0x98] sm:$0xff]
    %v9952 = vld [vmem:[#allocation9 + $0xa0] sm:$0xff]
    %v9953 = vld [vmem:[#allocation9 + $0xa8] sm:$0xff]
    %v9954 = vld [vmem:[#allocation9 + $0xb0] sm:$0xff]
    %v9955 = vld [vmem:[#allocation9 + $0xb8] sm:$0xff]
    %v9956 = vld [vmem:[#allocation9 + $0xc0] sm:$0xff]
    %v9957 = vld [vmem:[#allocation9 + $0xc8] sm:$0xff]
    %v9958 = vld [vmem:[#allocation9 + $0xd0] sm:$0xff]
    %v9959 = vld [vmem:[#allocation9 + $0xd8] sm:$0xff]
    %v9960 = vld [vmem:[#allocation9 + $0xe0] sm:$0xff]
    %v9961 = vld [vmem:[#allocation9 + $0xe8] sm:$0xff]
    %v9962 = vld [vmem:[#allocation9 + $0xf0] sm:$0xff]
    %v9963 = vld [vmem:[#allocation9 + $0xf8] sm:$0xff]
    %v9964 = vld [vmem:[#allocation9 + $0x100] sm:$0xff]
    %v9965 = vld [vmem:[#allocation9 + $0x108] sm:$0xff]
    %v9966 = vld [vmem:[#allocation9 + $0x110] sm:$0xff]
    %v9967 = vld [vmem:[#allocation9 + $0x118] sm:$0xff]
    %v9968 = vld [vmem:[#allocation9 + $0x120] sm:$0xff]
    %v9969 = vld [vmem:[#allocation9 + $0x128] sm:$0xff]
    %v9970 = vld [vmem:[#allocation9 + $0x130] sm:$0xff]
    %v9971 = vld [vmem:[#allocation9 + $0x138] sm:$0xff]
    %v9972 = vld [vmem:[#allocation9 + $0x140] sm:$0xff]
    %v9973 = vld [vmem:[#allocation9 + $0x148] sm:$0xff]
    %v9974 = vld [vmem:[#allocation9 + $0x150] sm:$0xff]
    %v9975 = vld [vmem:[#allocation9 + $0x158] sm:$0xff]
    %v9976 = vld [vmem:[#allocation9 + $0x160] sm:$0xff]
    %v9977 = vld [vmem:[#allocation9 + $0x168] sm:$0xff]
    %v9978 = vld [vmem:[#allocation9 + $0x170] sm:$0xff]
    %v9979 = vld [vmem:[#allocation9 + $0x178] sm:$0xff]
    %v9980 = vld [vmem:[#allocation9 + $0x180] sm:$0xff]
    %v9981 = vld [vmem:[#allocation9 + $0x188] sm:$0xff]
    %v9982 = vld [vmem:[#allocation9 + $0x190] sm:$0xff]
    %v9983 = vld [vmem:[#allocation9 + $0x198] sm:$0xff]
    %v9984 = vld [vmem:[#allocation9 + $0x1a0] sm:$0xff]
    %v9985 = vld [vmem:[#allocation9 + $0x1a8] sm:$0xff]
    %v9986 = vld [vmem:[#allocation9 + $0x1b0] sm:$0xff]
    %v9987 = vld [vmem:[#allocation9 + $0x1b8] sm:$0xff]
    %v9988 = vld [vmem:[#allocation9 + $0x1c0] sm:$0xff]
    %v9989 = vld [vmem:[#allocation9 + $0x1c8] sm:$0xff]
    %v9990 = vld [vmem:[#allocation9 + $0x1d0] sm:$0xff]
    %v9991 = vld [vmem:[#allocation9 + $0x1d8] sm:$0xff]
    %v9992 = vld [vmem:[#allocation9 + $0x1e0] sm:$0xff]
    %v9993 = vld [vmem:[#allocation9 + $0x1e8] sm:$0xff]
    %v9994 = vld [vmem:[#allocation9 + $0x1f0] sm:$0xff]
    %v9995 = vld [vmem:[#allocation9 + $0x1f8] sm:$0xff]
    %v9996 = vld [vmem:[%s6] sm:$0xf]
    %v9998 = vperm.slane %v9996, 0
    %v9999 = vperm.slane %v9996, 1
    %v10000 = vperm.slane %v9996, 2
    %v10001 = vperm.slane %v9996, 3
    %v10070 = vunpack.c.l.b16 %v9932
    %v10071 = vunpack.c.h.b16 %v9932
    %v10072 = vunpack.c.l.b16 %v9933
    %v10073 = vunpack.c.h.b16 %v9933
    %v10074 = vunpack.c.l.b16 %v9934
    %v10075 = vunpack.c.h.b16 %v9934
    %v10076 = vunpack.c.l.b16 %v9935
    %v10077 = vunpack.c.h.b16 %v9935
    %v10078 = vunpack.c.l.b16 %v9936
    %v10079 = vunpack.c.h.b16 %v9936
    %v10080 = vunpack.c.l.b16 %v9937
    %v10081 = vunpack.c.h.b16 %v9937
    %v10082 = vunpack.c.l.b16 %v9938
    %v10083 = vunpack.c.h.b16 %v9938
    %v10084 = vunpack.c.l.b16 %v9939
    %v10085 = vunpack.c.h.b16 %v9939
    %v10086 = vunpack.c.l.b16 %v9940
    %v10087 = vunpack.c.h.b16 %v9940
    %v10088 = vunpack.c.l.b16 %v9941
    %v10089 = vunpack.c.h.b16 %v9941
    %v10090 = vunpack.c.l.b16 %v9942
    %v10091 = vunpack.c.h.b16 %v9942
    %v10092 = vunpack.c.l.b16 %v9943
    %v10093 = vunpack.c.h.b16 %v9943
    %v10094 = vunpack.c.l.b16 %v9944
    %v10095 = vunpack.c.h.b16 %v9944
    %v10096 = vunpack.c.l.b16 %v9945
    %v10097 = vunpack.c.h.b16 %v9945
    %v10098 = vunpack.c.l.b16 %v9946
    %v10099 = vunpack.c.h.b16 %v9946
    %v10100 = vunpack.c.l.b16 %v9947
    %v10101 = vunpack.c.h.b16 %v9947
    %v10102 = vunpack.c.l.b16 %v9948
    %v10103 = vunpack.c.h.b16 %v9948
    %v10104 = vunpack.c.l.b16 %v9949
    %v10105 = vunpack.c.h.b16 %v9949
    %v10106 = vunpack.c.l.b16 %v9950
    %v10107 = vunpack.c.h.b16 %v9950
    %v10108 = vunpack.c.l.b16 %v9951
    %v10109 = vunpack.c.h.b16 %v9951
    %v10110 = vunpack.c.l.b16 %v9952
    %v10111 = vunpack.c.h.b16 %v9952
    %v10112 = vunpack.c.l.b16 %v9953
    %v10113 = vunpack.c.h.b16 %v9953
    %v10114 = vunpack.c.l.b16 %v9954
    %v10115 = vunpack.c.h.b16 %v9954
    %v10116 = vunpack.c.l.b16 %v9955
    %v10117 = vunpack.c.h.b16 %v9955
    %v10118 = vunpack.c.l.b16 %v9956
    %v10119 = vunpack.c.h.b16 %v9956
    %v10120 = vunpack.c.l.b16 %v9957
    %v10121 = vunpack.c.h.b16 %v9957
    %v10122 = vunpack.c.l.b16 %v9958
    %v10123 = vunpack.c.h.b16 %v9958
    %v10124 = vunpack.c.l.b16 %v9959
    %v10125 = vunpack.c.h.b16 %v9959
    %v10126 = vunpack.c.l.b16 %v9960
    %v10127 = vunpack.c.h.b16 %v9960
    %v10128 = vunpack.c.l.b16 %v9961
    %v10129 = vunpack.c.h.b16 %v9961
    %v10130 = vunpack.c.l.b16 %v9962
    %v10131 = vunpack.c.h.b16 %v9962
    %v10132 = vunpack.c.l.b16 %v9963
    %v10133 = vunpack.c.h.b16 %v9963
    %v10134 = vunpack.c.l.b16 %v9964
    %v10135 = vunpack.c.h.b16 %v9964
    %v10136 = vunpack.c.l.b16 %v9965
    %v10137 = vunpack.c.h.b16 %v9965
    %v10138 = vunpack.c.l.b16 %v9966
    %v10139 = vunpack.c.h.b16 %v9966
    %v10140 = vunpack.c.l.b16 %v9967
    %v10141 = vunpack.c.h.b16 %v9967
    %v10142 = vunpack.c.l.b16 %v9968
    %v10143 = vunpack.c.h.b16 %v9968
    %v10144 = vunpack.c.l.b16 %v9969
    %v10145 = vunpack.c.h.b16 %v9969
    %v10146 = vunpack.c.l.b16 %v9970
    %v10147 = vunpack.c.h.b16 %v9970
    %v10148 = vunpack.c.l.b16 %v9971
    %v10149 = vunpack.c.h.b16 %v9971
    %v10150 = vunpack.c.l.b16 %v9972
    %v10151 = vunpack.c.h.b16 %v9972
    %v10152 = vunpack.c.l.b16 %v9973
    %v10153 = vunpack.c.h.b16 %v9973
    %v10154 = vunpack.c.l.b16 %v9974
    %v10155 = vunpack.c.h.b16 %v9974
    %v10156 = vunpack.c.l.b16 %v9975
    %v10157 = vunpack.c.h.b16 %v9975
    %v10158 = vunpack.c.l.b16 %v9976
    %v10159 = vunpack.c.h.b16 %v9976
    %v10160 = vunpack.c.l.b16 %v9977
    %v10161 = vunpack.c.h.b16 %v9977
    %v10162 = vunpack.c.l.b16 %v9978
    %v10163 = vunpack.c.h.b16 %v9978
    %v10164 = vunpack.c.l.b16 %v9979
    %v10165 = vunpack.c.h.b16 %v9979
    %v10166 = vunpack.c.l.b16 %v9980
    %v10167 = vunpack.c.h.b16 %v9980
    %v10168 = vunpack.c.l.b16 %v9981
    %v10169 = vunpack.c.h.b16 %v9981
    %v10170 = vunpack.c.l.b16 %v9982
    %v10171 = vunpack.c.h.b16 %v9982
    %v10172 = vunpack.c.l.b16 %v9983
    %v10173 = vunpack.c.h.b16 %v9983
    %v10174 = vunpack.c.l.b16 %v9984
    %v10175 = vunpack.c.h.b16 %v9984
    %v10176 = vunpack.c.l.b16 %v9985
    %v10177 = vunpack.c.h.b16 %v9985
    %v10178 = vunpack.c.l.b16 %v9986
    %v10179 = vunpack.c.h.b16 %v9986
    %v10180 = vunpack.c.l.b16 %v9987
    %v10181 = vunpack.c.h.b16 %v9987
    %v10182 = vunpack.c.l.b16 %v9988
    %v10183 = vunpack.c.h.b16 %v9988
    %v10184 = vunpack.c.l.b16 %v9989
    %v10185 = vunpack.c.h.b16 %v9989
    %v10186 = vunpack.c.l.b16 %v9990
    %v10187 = vunpack.c.h.b16 %v9990
    %v10188 = vunpack.c.l.b16 %v9991
    %v10189 = vunpack.c.h.b16 %v9991
    %v10190 = vunpack.c.l.b16 %v9992
    %v10191 = vunpack.c.h.b16 %v9992
    %v10192 = vunpack.c.l.b16 %v9993
    %v10193 = vunpack.c.h.b16 %v9993
    %v10194 = vunpack.c.l.b16 %v9994
    %v10195 = vunpack.c.h.b16 %v9994
    %v10196 = vunpack.c.l.b16 %v9995
    %v10197 = vunpack.c.h.b16 %v9995
    %v10198 = vpack.c.b16 %v10074, %v10070
    %v10199 = vpack.c.b16 %v10075, %v10071
    %v10200 = vpack.c.b16 %v10076, %v10072
    %v10201 = vpack.c.b16 %v10077, %v10073
    %v10202 = vpack.c.b16 %v10082, %v10078
    %v10203 = vpack.c.b16 %v10083, %v10079
    %v10204 = vpack.c.b16 %v10084, %v10080
    %v10205 = vpack.c.b16 %v10085, %v10081
    %v10206 = vpack.c.b16 %v10090, %v10086
    %v10207 = vpack.c.b16 %v10091, %v10087
    %v10208 = vpack.c.b16 %v10092, %v10088
    %v10209 = vpack.c.b16 %v10093, %v10089
    %v10210 = vpack.c.b16 %v10098, %v10094
    %v10211 = vpack.c.b16 %v10099, %v10095
    %v10212 = vpack.c.b16 %v10100, %v10096
    %v10213 = vpack.c.b16 %v10101, %v10097
    %v10214 = vpack.c.b16 %v10106, %v10102
    %v10215 = vpack.c.b16 %v10107, %v10103
    %v10216 = vpack.c.b16 %v10108, %v10104
    %v10217 = vpack.c.b16 %v10109, %v10105
    %v10218 = vpack.c.b16 %v10114, %v10110
    %v10219 = vpack.c.b16 %v10115, %v10111
    %v10220 = vpack.c.b16 %v10116, %v10112
    %v10221 = vpack.c.b16 %v10117, %v10113
    %v10222 = vpack.c.b16 %v10122, %v10118
    %v10223 = vpack.c.b16 %v10123, %v10119
    %v10224 = vpack.c.b16 %v10124, %v10120
    %v10225 = vpack.c.b16 %v10125, %v10121
    %v10226 = vpack.c.b16 %v10130, %v10126
    %v10227 = vpack.c.b16 %v10131, %v10127
    %v10228 = vpack.c.b16 %v10132, %v10128
    %v10229 = vpack.c.b16 %v10133, %v10129
    %v10230 = vpack.c.b16 %v10138, %v10134
    %v10231 = vpack.c.b16 %v10139, %v10135
    %v10232 = vpack.c.b16 %v10140, %v10136
    %v10233 = vpack.c.b16 %v10141, %v10137
    %v10234 = vpack.c.b16 %v10146, %v10142
    %v10235 = vpack.c.b16 %v10147, %v10143
    %v10236 = vpack.c.b16 %v10148, %v10144
    %v10237 = vpack.c.b16 %v10149, %v10145
    %v10238 = vpack.c.b16 %v10154, %v10150
    %v10239 = vpack.c.b16 %v10155, %v10151
    %v10240 = vpack.c.b16 %v10156, %v10152
    %v10241 = vpack.c.b16 %v10157, %v10153
    %v10242 = vpack.c.b16 %v10162, %v10158
    %v10243 = vpack.c.b16 %v10163, %v10159
    %v10244 = vpack.c.b16 %v10164, %v10160
    %v10245 = vpack.c.b16 %v10165, %v10161
    %v10246 = vpack.c.b16 %v10170, %v10166
    %v10247 = vpack.c.b16 %v10171, %v10167
    %v10248 = vpack.c.b16 %v10172, %v10168
    %v10249 = vpack.c.b16 %v10173, %v10169
    %v10250 = vpack.c.b16 %v10178, %v10174
    %v10251 = vpack.c.b16 %v10179, %v10175
    %v10252 = vpack.c.b16 %v10180, %v10176
    %v10253 = vpack.c.b16 %v10181, %v10177
    %v10254 = vpack.c.b16 %v10186, %v10182
    %v10255 = vpack.c.b16 %v10187, %v10183
    %v10256 = vpack.c.b16 %v10188, %v10184
    %v10257 = vpack.c.b16 %v10189, %v10185
    %v10258 = vpack.c.b16 %v10194, %v10190
    %v10259 = vpack.c.b16 %v10195, %v10191
    %v10260 = vpack.c.b16 %v10196, %v10192
    %v10261 = vpack.c.b16 %v10197, %v10193
    %10326 = vmatpush.bf16.msra.mxu0 %v10226
    %10327 = vmatpush.bf16.msra.mxu0 %v10222
    %10328 = vmatpush.bf16.msra.mxu0 %v10218
    %10329 = vmatpush.bf16.msra.mxu0 %v10214
    %10330 = vmatpush.bf16.msra.mxu0 %v10210
    %10331 = vmatpush.bf16.msra.mxu0 %v10206
    %10332 = vmatpush.bf16.msra.mxu0 %v10202
    %10333 = vmatpush.bf16.msra.mxu0 %v10198
    %10334 = vmatmul.bf16.gmra.mxu0 %v9924
    %v10335 = vpop.f32.mrf.mxu0
    %v10336 = vadd.f32 %v9998, %v10335
    %v10337 = vpop.f32.mrf.mxu0
    %v10338 = vadd.f32 %v9998, %v10337
    %10339 = vmatmul.bf16.gmra.mxu0 %v9926
    %v10340 = vpop.f32.mrf.mxu0
    %v10341 = vadd.f32 %v9998, %v10340
    %v10342 = vpop.f32.mrf.mxu0
    %v10343 = vadd.f32 %v9998, %v10342
    %10344 = vmatmul.bf16.gmra.mxu0 %v9928
    %v10345 = vpop.f32.mrf.mxu0
    %v10346 = vadd.f32 %v9998, %v10345
    %v10347 = vpop.f32.mrf.mxu0
    %v10348 = vadd.f32 %v9998, %v10347
    %10349 = vmatmul.bf16.gmra.mxu0 %v9930
    %v10350 = vpop.f32.mrf.mxu0
    %v10351 = vadd.f32 %v9998, %v10350
    %v10352 = vpop.f32.mrf.mxu0
    %v10353 = vadd.f32 %v9998, %v10352
    %10354 = vdwg.mxu0
    %10355 = vmatpush.bf16.msra.mxu0 %v10258
    %10356 = vmatpush.bf16.msra.mxu0 %v10254
    %10357 = vmatpush.bf16.msra.mxu0 %v10250
    %10358 = vmatpush.bf16.msra.mxu0 %v10246
    %10359 = vmatpush.bf16.msra.mxu0 %v10242
    %10360 = vmatpush.bf16.msra.mxu0 %v10238
    %10361 = vmatpush.bf16.msra.mxu0 %v10234
    %10362 = vmatpush.bf16.msra.mxu0 %v10230
    %10363 = vmatmul.bf16.gmra.mxu0 %v9925
    %v10364 = vpop.f32.mrf.mxu0
    %v10365 = vadd.f32 %v10336, %v10364
    %v10366 = vpop.f32.mrf.mxu0
    %v10367 = vadd.f32 %v10338, %v10366
    %10368 = vmatmul.bf16.gmra.mxu0 %v9927
    %v10369 = vpop.f32.mrf.mxu0
    %v10370 = vadd.f32 %v10341, %v10369
    %v10371 = vpop.f32.mrf.mxu0
    %v10372 = vadd.f32 %v10343, %v10371
    %10373 = vmatmul.bf16.gmra.mxu0 %v9929
    %v10374 = vpop.f32.mrf.mxu0
    %v10375 = vadd.f32 %v10346, %v10374
    %v10376 = vpop.f32.mrf.mxu0
    %v10377 = vadd.f32 %v10348, %v10376
    %10378 = vmatmul.bf16.gmra.mxu0 %v9931
    %v10379 = vpop.f32.mrf.mxu0
    %v10380 = vadd.f32 %v10351, %v10379
    %v10381 = vpop.f32.mrf.mxu0
    %v10382 = vadd.f32 %v10353, %v10381
    %10383 = vdwg.mxu0
    %10384 = vmatpush.bf16.msra.mxu0 %v10227
    %10385 = vmatpush.bf16.msra.mxu0 %v10223
    %10386 = vmatpush.bf16.msra.mxu0 %v10219
    %10387 = vmatpush.bf16.msra.mxu0 %v10215
    %10388 = vmatpush.bf16.msra.mxu0 %v10211
    %10389 = vmatpush.bf16.msra.mxu0 %v10207
    %10390 = vmatpush.bf16.msra.mxu0 %v10203
    %10391 = vmatpush.bf16.msra.mxu0 %v10199
    %10392 = vmatmul.bf16.gmra.mxu0 %v9924
    %v10393 = vpop.f32.mrf.mxu0
    %v10394 = vadd.f32 %v9999, %v10393
    %v10395 = vpop.f32.mrf.mxu0
    %v10396 = vadd.f32 %v9999, %v10395
    %10397 = vmatmul.bf16.gmra.mxu0 %v9926
    %v10398 = vpop.f32.mrf.mxu0
    %v10399 = vadd.f32 %v9999, %v10398
    %v10400 = vpop.f32.mrf.mxu0
    %v10401 = vadd.f32 %v9999, %v10400
    %10402 = vmatmul.bf16.gmra.mxu0 %v9928
    %v10403 = vpop.f32.mrf.mxu0
    %v10404 = vadd.f32 %v9999, %v10403
    %v10405 = vpop.f32.mrf.mxu0
    %v10406 = vadd.f32 %v9999, %v10405
    %10407 = vmatmul.bf16.gmra.mxu0 %v9930
    %v10408 = vpop.f32.mrf.mxu0
    %v10409 = vadd.f32 %v9999, %v10408
    %v10410 = vpop.f32.mrf.mxu0
    %v10411 = vadd.f32 %v9999, %v10410
    %10412 = vdwg.mxu0
    %10413 = vmatpush.bf16.msra.mxu0 %v10259
    %10414 = vmatpush.bf16.msra.mxu0 %v10255
    %10415 = vmatpush.bf16.msra.mxu0 %v10251
    %10416 = vmatpush.bf16.msra.mxu0 %v10247
    %10417 = vmatpush.bf16.msra.mxu0 %v10243
    %10418 = vmatpush.bf16.msra.mxu0 %v10239
    %10419 = vmatpush.bf16.msra.mxu0 %v10235
    %10420 = vmatpush.bf16.msra.mxu0 %v10231
    %10421 = vmatmul.bf16.gmra.mxu0 %v9925
    %v10422 = vpop.f32.mrf.mxu0
    %v10423 = vadd.f32 %v10394, %v10422
    %v10424 = vpop.f32.mrf.mxu0
    %v10425 = vadd.f32 %v10396, %v10424
    %10426 = vmatmul.bf16.gmra.mxu0 %v9927
    %v10427 = vpop.f32.mrf.mxu0
    %v10428 = vadd.f32 %v10399, %v10427
    %v10429 = vpop.f32.mrf.mxu0
    %v10430 = vadd.f32 %v10401, %v10429
    %10431 = vmatmul.bf16.gmra.mxu0 %v9929
    %v10432 = vpop.f32.mrf.mxu0
    %v10433 = vadd.f32 %v10404, %v10432
    %v10434 = vpop.f32.mrf.mxu0
    %v10435 = vadd.f32 %v10406, %v10434
    %10436 = vmatmul.bf16.gmra.mxu0 %v9931
    %v10437 = vpop.f32.mrf.mxu0
    %v10438 = vadd.f32 %v10409, %v10437
    %v10439 = vpop.f32.mrf.mxu0
    %v10440 = vadd.f32 %v10411, %v10439
    %10441 = vdwg.mxu0
    %10442 = vmatpush.bf16.msra.mxu0 %v10228
    %10443 = vmatpush.bf16.msra.mxu0 %v10224
    %10444 = vmatpush.bf16.msra.mxu0 %v10220
    %10445 = vmatpush.bf16.msra.mxu0 %v10216
    %10446 = vmatpush.bf16.msra.mxu0 %v10212
    %10447 = vmatpush.bf16.msra.mxu0 %v10208
    %10448 = vmatpush.bf16.msra.mxu0 %v10204
    %10449 = vmatpush.bf16.msra.mxu0 %v10200
    %10450 = vmatmul.bf16.gmra.mxu0 %v9924
    %v10451 = vpop.f32.mrf.mxu0
    %v10452 = vadd.f32 %v10000, %v10451
    %v10453 = vpop.f32.mrf.mxu0
    %v10454 = vadd.f32 %v10000, %v10453
    %10455 = vmatmul.bf16.gmra.mxu0 %v9926
    %v10456 = vpop.f32.mrf.mxu0
    %v10457 = vadd.f32 %v10000, %v10456
    %v10458 = vpop.f32.mrf.mxu0
    %v10459 = vadd.f32 %v10000, %v10458
    %10460 = vmatmul.bf16.gmra.mxu0 %v9928
    %v10461 = vpop.f32.mrf.mxu0
    %v10462 = vadd.f32 %v10000, %v10461
    %v10463 = vpop.f32.mrf.mxu0
    %v10464 = vadd.f32 %v10000, %v10463
    %10465 = vmatmul.bf16.gmra.mxu0 %v9930
    %v10466 = vpop.f32.mrf.mxu0
    %v10467 = vadd.f32 %v10000, %v10466
    %v10468 = vpop.f32.mrf.mxu0
    %v10469 = vadd.f32 %v10000, %v10468
    %10470 = vdwg.mxu0
    %10471 = vmatpush.bf16.msra.mxu0 %v10260
    %10472 = vmatpush.bf16.msra.mxu0 %v10256
    %10473 = vmatpush.bf16.msra.mxu0 %v10252
    %10474 = vmatpush.bf16.msra.mxu0 %v10248
    %10475 = vmatpush.bf16.msra.mxu0 %v10244
    %10476 = vmatpush.bf16.msra.mxu0 %v10240
    %10477 = vmatpush.bf16.msra.mxu0 %v10236
    %10478 = vmatpush.bf16.msra.mxu0 %v10232
    %10479 = vmatmul.bf16.gmra.mxu0 %v9925
    %v10480 = vpop.f32.mrf.mxu0
    %v10481 = vadd.f32 %v10452, %v10480
    %v10482 = vpop.f32.mrf.mxu0
    %v10483 = vadd.f32 %v10454, %v10482
    %10484 = vmatmul.bf16.gmra.mxu0 %v9927
    %v10485 = vpop.f32.mrf.mxu0
    %v10486 = vadd.f32 %v10457, %v10485
    %v10487 = vpop.f32.mrf.mxu0
    %v10488 = vadd.f32 %v10459, %v10487
    %10489 = vmatmul.bf16.gmra.mxu0 %v9929
    %v10490 = vpop.f32.mrf.mxu0
    %v10491 = vadd.f32 %v10462, %v10490
    %v10492 = vpop.f32.mrf.mxu0
    %v10493 = vadd.f32 %v10464, %v10492
    %10494 = vmatmul.bf16.gmra.mxu0 %v9931
    %v10495 = vpop.f32.mrf.mxu0
    %v10496 = vadd.f32 %v10467, %v10495
    %v10497 = vpop.f32.mrf.mxu0
    %v10498 = vadd.f32 %v10469, %v10497
    %10499 = vdwg.mxu0
    %10500 = vmatpush.bf16.msra.mxu0 %v10229
    %10501 = vmatpush.bf16.msra.mxu0 %v10225
    %10502 = vmatpush.bf16.msra.mxu0 %v10221
    %10503 = vmatpush.bf16.msra.mxu0 %v10217
    %10504 = vmatpush.bf16.msra.mxu0 %v10213
    %10505 = vmatpush.bf16.msra.mxu0 %v10209
    %10506 = vmatpush.bf16.msra.mxu0 %v10205
    %10507 = vmatpush.bf16.msra.mxu0 %v10201
    %10508 = vmatmul.bf16.gmra.mxu0 %v9924
    %v10509 = vpop.f32.mrf.mxu0
    %v10510 = vadd.f32 %v10001, %v10509
    %v10511 = vpop.f32.mrf.mxu0
    %v10512 = vadd.f32 %v10001, %v10511
    %10513 = vmatmul.bf16.gmra.mxu0 %v9926
    %v10514 = vpop.f32.mrf.mxu0
    %v10515 = vadd.f32 %v10001, %v10514
    %v10516 = vpop.f32.mrf.mxu0
    %v10517 = vadd.f32 %v10001, %v10516
    %10518 = vmatmul.bf16.gmra.mxu0 %v9928
    %v10519 = vpop.f32.mrf.mxu0
    %v10520 = vadd.f32 %v10001, %v10519
    %v10521 = vpop.f32.mrf.mxu0
    %v10522 = vadd.f32 %v10001, %v10521
    %10523 = vmatmul.bf16.gmra.mxu0 %v9930
    %v10524 = vpop.f32.mrf.mxu0
    %v10525 = vadd.f32 %v10001, %v10524
    %v10526 = vpop.f32.mrf.mxu0
    %v10527 = vadd.f32 %v10001, %v10526
    %10528 = vdwg.mxu0
    %10529 = vmatpush.bf16.msra.mxu0 %v10261
    %10530 = vmatpush.bf16.msra.mxu0 %v10257
    %10531 = vmatpush.bf16.msra.mxu0 %v10253
    %10532 = vmatpush.bf16.msra.mxu0 %v10249
    %10533 = vmatpush.bf16.msra.mxu0 %v10245
    %10534 = vmatpush.bf16.msra.mxu0 %v10241
    %10535 = vmatpush.bf16.msra.mxu0 %v10237
    %10536 = vmatpush.bf16.msra.mxu0 %v10233
    %10537 = vmatmul.bf16.gmra.mxu0 %v9925
    %v10538 = vpop.f32.mrf.mxu0
    %v10539 = vadd.f32 %v10510, %v10538
    %v10540 = vpop.f32.mrf.mxu0
    %v10541 = vadd.f32 %v10512, %v10540
    %10542 = vmatmul.bf16.gmra.mxu0 %v9927
    %v10543 = vpop.f32.mrf.mxu0
    %v10544 = vadd.f32 %v10515, %v10543
    %v10545 = vpop.f32.mrf.mxu0
    %v10546 = vadd.f32 %v10517, %v10545
    %10547 = vmatmul.bf16.gmra.mxu0 %v9929
    %v10548 = vpop.f32.mrf.mxu0
    %v10549 = vadd.f32 %v10520, %v10548
    %v10550 = vpop.f32.mrf.mxu0
    %v10551 = vadd.f32 %v10522, %v10550
    %10552 = vmatmul.bf16.gmra.mxu0 %v9931
    %v10553 = vpop.f32.mrf.mxu0
    %v10554 = vadd.f32 %v10525, %v10553
    %v10555 = vpop.f32.mrf.mxu0
    %v10556 = vadd.f32 %v10527, %v10555
    %10557 = vdwg.mxu0
    %v10558 = vmax.f32 %v10365, 0.0
    %v10559 = vmax.f32 %v10423, 0.0
    %v10560 = vmax.f32 %v10481, 0.0
    %v10561 = vmax.f32 %v10539, 0.0
    %v10562 = vmax.f32 %v10367, 0.0
    %v10563 = vmax.f32 %v10425, 0.0
    %v10564 = vmax.f32 %v10483, 0.0
    %v10565 = vmax.f32 %v10541, 0.0
    %v10566 = vmax.f32 %v10370, 0.0
    %v10567 = vmax.f32 %v10428, 0.0
    %v10568 = vmax.f32 %v10486, 0.0
    %v10569 = vmax.f32 %v10544, 0.0
    %v10570 = vmax.f32 %v10372, 0.0
    %v10571 = vmax.f32 %v10430, 0.0
    %v10572 = vmax.f32 %v10488, 0.0
    %v10573 = vmax.f32 %v10546, 0.0
    %v10574 = vmax.f32 %v10375, 0.0
    %v10575 = vmax.f32 %v10433, 0.0
    %v10576 = vmax.f32 %v10491, 0.0
    %v10577 = vmax.f32 %v10549, 0.0
    %v10578 = vmax.f32 %v10377, 0.0
    %v10579 = vmax.f32 %v10435, 0.0
    %v10580 = vmax.f32 %v10493, 0.0
    %v10581 = vmax.f32 %v10551, 0.0
    %v10582 = vmax.f32 %v10380, 0.0
    %v10583 = vmax.f32 %v10438, 0.0
    %v10584 = vmax.f32 %v10496, 0.0
    %v10585 = vmax.f32 %v10554, 0.0
    %v10586 = vmax.f32 %v10382, 0.0
    %v10587 = vmax.f32 %v10440, 0.0
    %v10588 = vmax.f32 %v10498, 0.0
    %v10589 = vmax.f32 %v10556, 0.0
    %v10590 = vpack.c.bf16 %v10562, %v10558
    %v10591 = vpack.c.bf16 %v10563, %v10559
    %v10592 = vpack.c.bf16 %v10564, %v10560
    %v10593 = vpack.c.bf16 %v10565, %v10561
    %v10594 = vpack.c.bf16 %v10570, %v10566
    %v10595 = vpack.c.bf16 %v10571, %v10567
    %v10596 = vpack.c.bf16 %v10572, %v10568
    %v10597 = vpack.c.bf16 %v10573, %v10569
    %v10598 = vpack.c.bf16 %v10578, %v10574
    %v10599 = vpack.c.bf16 %v10579, %v10575
    %v10600 = vpack.c.bf16 %v10580, %v10576
    %v10601 = vpack.c.bf16 %v10581, %v10577
    %v10602 = vpack.c.bf16 %v10586, %v10582
    %v10603 = vpack.c.bf16 %v10587, %v10583
    %v10604 = vpack.c.bf16 %v10588, %v10584
    %v10605 = vpack.c.bf16 %v10589, %v10585
    %v10606 = vld [vmem:[#allocation10] sm:$0xff]
    %v10607 = vld [vmem:[#allocation10 + $0x8] sm:$0xff]
    %v10608 = vld [vmem:[#allocation10 + $0x10] sm:$0xff]
    %v10609 = vld [vmem:[#allocation10 + $0x18] sm:$0xff]
    %v10610 = vld [vmem:[#allocation10 + $0x20] sm:$0xff]
    %v10611 = vld [vmem:[#allocation10 + $0x28] sm:$0xff]
    %v10612 = vld [vmem:[#allocation10 + $0x30] sm:$0xff]
    %v10613 = vld [vmem:[#allocation10 + $0x38] sm:$0xff]
    %v10614 = vld [vmem:[#allocation10 + $0x40] sm:$0xff]
    %v10615 = vld [vmem:[#allocation10 + $0x48] sm:$0xff]
    %v10616 = vld [vmem:[#allocation10 + $0x50] sm:$0xff]
    %v10617 = vld [vmem:[#allocation10 + $0x58] sm:$0xff]
    %v10618 = vld [vmem:[#allocation10 + $0x60] sm:$0xff]
    %v10619 = vld [vmem:[#allocation10 + $0x68] sm:$0xff]
    %v10620 = vld [vmem:[#allocation10 + $0x70] sm:$0xff]
    %v10621 = vld [vmem:[#allocation10 + $0x78] sm:$0xff]
    %v10622 = vld [vmem:[#allocation10 + $0x80] sm:$0xff]
    %v10623 = vld [vmem:[#allocation10 + $0x88] sm:$0xff]
    %v10624 = vld [vmem:[#allocation10 + $0x90] sm:$0xff]
    %v10625 = vld [vmem:[#allocation10 + $0x98] sm:$0xff]
    %v10626 = vld [vmem:[#allocation10 + $0xa0] sm:$0xff]
    %v10627 = vld [vmem:[#allocation10 + $0xa8] sm:$0xff]
    %v10628 = vld [vmem:[#allocation10 + $0xb0] sm:$0xff]
    %v10629 = vld [vmem:[#allocation10 + $0xb8] sm:$0xff]
    %v10630 = vld [vmem:[#allocation10 + $0xc0] sm:$0xff]
    %v10631 = vld [vmem:[#allocation10 + $0xc8] sm:$0xff]
    %v10632 = vld [vmem:[#allocation10 + $0xd0] sm:$0xff]
    %v10633 = vld [vmem:[#allocation10 + $0xd8] sm:$0xff]
    %v10634 = vld [vmem:[#allocation10 + $0xe0] sm:$0xff]
    %v10635 = vld [vmem:[#allocation10 + $0xe8] sm:$0xff]
    %v10636 = vld [vmem:[#allocation10 + $0xf0] sm:$0xff]
    %v10637 = vld [vmem:[#allocation10 + $0xf8] sm:$0xff]
    %v10638 = vld [vmem:[#allocation10 + $0x100] sm:$0xff]
    %v10639 = vld [vmem:[#allocation10 + $0x108] sm:$0xff]
    %v10640 = vld [vmem:[#allocation10 + $0x110] sm:$0xff]
    %v10641 = vld [vmem:[#allocation10 + $0x118] sm:$0xff]
    %v10642 = vld [vmem:[#allocation10 + $0x120] sm:$0xff]
    %v10643 = vld [vmem:[#allocation10 + $0x128] sm:$0xff]
    %v10644 = vld [vmem:[#allocation10 + $0x130] sm:$0xff]
    %v10645 = vld [vmem:[#allocation10 + $0x138] sm:$0xff]
    %v10646 = vld [vmem:[#allocation10 + $0x140] sm:$0xff]
    %v10647 = vld [vmem:[#allocation10 + $0x148] sm:$0xff]
    %v10648 = vld [vmem:[#allocation10 + $0x150] sm:$0xff]
    %v10649 = vld [vmem:[#allocation10 + $0x158] sm:$0xff]
    %v10650 = vld [vmem:[#allocation10 + $0x160] sm:$0xff]
    %v10651 = vld [vmem:[#allocation10 + $0x168] sm:$0xff]
    %v10652 = vld [vmem:[#allocation10 + $0x170] sm:$0xff]
    %v10653 = vld [vmem:[#allocation10 + $0x178] sm:$0xff]
    %v10654 = vld [vmem:[#allocation10 + $0x180] sm:$0xff]
    %v10655 = vld [vmem:[#allocation10 + $0x188] sm:$0xff]
    %v10656 = vld [vmem:[#allocation10 + $0x190] sm:$0xff]
    %v10657 = vld [vmem:[#allocation10 + $0x198] sm:$0xff]
    %v10658 = vld [vmem:[#allocation10 + $0x1a0] sm:$0xff]
    %v10659 = vld [vmem:[#allocation10 + $0x1a8] sm:$0xff]
    %v10660 = vld [vmem:[#allocation10 + $0x1b0] sm:$0xff]
    %v10661 = vld [vmem:[#allocation10 + $0x1b8] sm:$0xff]
    %v10662 = vld [vmem:[#allocation10 + $0x1c0] sm:$0xff]
    %v10663 = vld [vmem:[#allocation10 + $0x1c8] sm:$0xff]
    %v10664 = vld [vmem:[#allocation10 + $0x1d0] sm:$0xff]
    %v10665 = vld [vmem:[#allocation10 + $0x1d8] sm:$0xff]
    %v10666 = vld [vmem:[#allocation10 + $0x1e0] sm:$0xff]
    %v10667 = vld [vmem:[#allocation10 + $0x1e8] sm:$0xff]
    %v10668 = vld [vmem:[#allocation10 + $0x1f0] sm:$0xff]
    %v10669 = vld [vmem:[#allocation10 + $0x1f8] sm:$0xff]
    %v10670 = vld [vmem:[%s8] sm:$0x3]
    %v10672 = vperm.slane %v10670, 0
    %v10673 = vperm.slane %v10670, 1
    %v10740 = vunpack.c.l.b16 %v10606
    %v10741 = vunpack.c.h.b16 %v10606
    %v10742 = vunpack.c.l.b16 %v10607
    %v10743 = vunpack.c.h.b16 %v10607
    %v10744 = vunpack.c.l.b16 %v10608
    %v10745 = vunpack.c.h.b16 %v10608
    %v10746 = vunpack.c.l.b16 %v10609
    %v10747 = vunpack.c.h.b16 %v10609
    %v10748 = vunpack.c.l.b16 %v10610
    %v10749 = vunpack.c.h.b16 %v10610
    %v10750 = vunpack.c.l.b16 %v10611
    %v10751 = vunpack.c.h.b16 %v10611
    %v10752 = vunpack.c.l.b16 %v10612
    %v10753 = vunpack.c.h.b16 %v10612
    %v10754 = vunpack.c.l.b16 %v10613
    %v10755 = vunpack.c.h.b16 %v10613
    %v10756 = vunpack.c.l.b16 %v10614
    %v10757 = vunpack.c.h.b16 %v10614
    %v10758 = vunpack.c.l.b16 %v10615
    %v10759 = vunpack.c.h.b16 %v10615
    %v10760 = vunpack.c.l.b16 %v10616
    %v10761 = vunpack.c.h.b16 %v10616
    %v10762 = vunpack.c.l.b16 %v10617
    %v10763 = vunpack.c.h.b16 %v10617
    %v10764 = vunpack.c.l.b16 %v10618
    %v10765 = vunpack.c.h.b16 %v10618
    %v10766 = vunpack.c.l.b16 %v10619
    %v10767 = vunpack.c.h.b16 %v10619
    %v10768 = vunpack.c.l.b16 %v10620
    %v10769 = vunpack.c.h.b16 %v10620
    %v10770 = vunpack.c.l.b16 %v10621
    %v10771 = vunpack.c.h.b16 %v10621
    %v10772 = vunpack.c.l.b16 %v10622
    %v10773 = vunpack.c.h.b16 %v10622
    %v10774 = vunpack.c.l.b16 %v10623
    %v10775 = vunpack.c.h.b16 %v10623
    %v10776 = vunpack.c.l.b16 %v10624
    %v10777 = vunpack.c.h.b16 %v10624
    %v10778 = vunpack.c.l.b16 %v10625
    %v10779 = vunpack.c.h.b16 %v10625
    %v10780 = vunpack.c.l.b16 %v10626
    %v10781 = vunpack.c.h.b16 %v10626
    %v10782 = vunpack.c.l.b16 %v10627
    %v10783 = vunpack.c.h.b16 %v10627
    %v10784 = vunpack.c.l.b16 %v10628
    %v10785 = vunpack.c.h.b16 %v10628
    %v10786 = vunpack.c.l.b16 %v10629
    %v10787 = vunpack.c.h.b16 %v10629
    %v10788 = vunpack.c.l.b16 %v10630
    %v10789 = vunpack.c.h.b16 %v10630
    %v10790 = vunpack.c.l.b16 %v10631
    %v10791 = vunpack.c.h.b16 %v10631
    %v10792 = vunpack.c.l.b16 %v10632
    %v10793 = vunpack.c.h.b16 %v10632
    %v10794 = vunpack.c.l.b16 %v10633
    %v10795 = vunpack.c.h.b16 %v10633
    %v10796 = vunpack.c.l.b16 %v10634
    %v10797 = vunpack.c.h.b16 %v10634
    %v10798 = vunpack.c.l.b16 %v10635
    %v10799 = vunpack.c.h.b16 %v10635
    %v10800 = vunpack.c.l.b16 %v10636
    %v10801 = vunpack.c.h.b16 %v10636
    %v10802 = vunpack.c.l.b16 %v10637
    %v10803 = vunpack.c.h.b16 %v10637
    %v10804 = vunpack.c.l.b16 %v10638
    %v10805 = vunpack.c.h.b16 %v10638
    %v10806 = vunpack.c.l.b16 %v10639
    %v10807 = vunpack.c.h.b16 %v10639
    %v10808 = vunpack.c.l.b16 %v10640
    %v10809 = vunpack.c.h.b16 %v10640
    %v10810 = vunpack.c.l.b16 %v10641
    %v10811 = vunpack.c.h.b16 %v10641
    %v10812 = vunpack.c.l.b16 %v10642
    %v10813 = vunpack.c.h.b16 %v10642
    %v10814 = vunpack.c.l.b16 %v10643
    %v10815 = vunpack.c.h.b16 %v10643
    %v10816 = vunpack.c.l.b16 %v10644
    %v10817 = vunpack.c.h.b16 %v10644
    %v10818 = vunpack.c.l.b16 %v10645
    %v10819 = vunpack.c.h.b16 %v10645
    %v10820 = vunpack.c.l.b16 %v10646
    %v10821 = vunpack.c.h.b16 %v10646
    %v10822 = vunpack.c.l.b16 %v10647
    %v10823 = vunpack.c.h.b16 %v10647
    %v10824 = vunpack.c.l.b16 %v10648
    %v10825 = vunpack.c.h.b16 %v10648
    %v10826 = vunpack.c.l.b16 %v10649
    %v10827 = vunpack.c.h.b16 %v10649
    %v10828 = vunpack.c.l.b16 %v10650
    %v10829 = vunpack.c.h.b16 %v10650
    %v10830 = vunpack.c.l.b16 %v10651
    %v10831 = vunpack.c.h.b16 %v10651
    %v10832 = vunpack.c.l.b16 %v10652
    %v10833 = vunpack.c.h.b16 %v10652
    %v10834 = vunpack.c.l.b16 %v10653
    %v10835 = vunpack.c.h.b16 %v10653
    %v10836 = vunpack.c.l.b16 %v10654
    %v10837 = vunpack.c.h.b16 %v10654
    %v10838 = vunpack.c.l.b16 %v10655
    %v10839 = vunpack.c.h.b16 %v10655
    %v10840 = vunpack.c.l.b16 %v10656
    %v10841 = vunpack.c.h.b16 %v10656
    %v10842 = vunpack.c.l.b16 %v10657
    %v10843 = vunpack.c.h.b16 %v10657
    %v10844 = vunpack.c.l.b16 %v10658
    %v10845 = vunpack.c.h.b16 %v10658
    %v10846 = vunpack.c.l.b16 %v10659
    %v10847 = vunpack.c.h.b16 %v10659
    %v10848 = vunpack.c.l.b16 %v10660
    %v10849 = vunpack.c.h.b16 %v10660
    %v10850 = vunpack.c.l.b16 %v10661
    %v10851 = vunpack.c.h.b16 %v10661
    %v10852 = vunpack.c.l.b16 %v10662
    %v10853 = vunpack.c.h.b16 %v10662
    %v10854 = vunpack.c.l.b16 %v10663
    %v10855 = vunpack.c.h.b16 %v10663
    %v10856 = vunpack.c.l.b16 %v10664
    %v10857 = vunpack.c.h.b16 %v10664
    %v10858 = vunpack.c.l.b16 %v10665
    %v10859 = vunpack.c.h.b16 %v10665
    %v10860 = vunpack.c.l.b16 %v10666
    %v10861 = vunpack.c.h.b16 %v10666
    %v10862 = vunpack.c.l.b16 %v10667
    %v10863 = vunpack.c.h.b16 %v10667
    %v10864 = vunpack.c.l.b16 %v10668
    %v10865 = vunpack.c.h.b16 %v10668
    %v10866 = vunpack.c.l.b16 %v10669
    %v10867 = vunpack.c.h.b16 %v10669
    %v10868 = vpack.c.b16 %v10742, %v10740
    %v10869 = vpack.c.b16 %v10743, %v10741
    %v10870 = vpack.c.b16 %v10746, %v10744
    %v10871 = vpack.c.b16 %v10747, %v10745
    %v10872 = vpack.c.b16 %v10750, %v10748
    %v10873 = vpack.c.b16 %v10751, %v10749
    %v10874 = vpack.c.b16 %v10754, %v10752
    %v10875 = vpack.c.b16 %v10755, %v10753
    %v10876 = vpack.c.b16 %v10758, %v10756
    %v10877 = vpack.c.b16 %v10759, %v10757
    %v10878 = vpack.c.b16 %v10762, %v10760
    %v10879 = vpack.c.b16 %v10763, %v10761
    %v10880 = vpack.c.b16 %v10766, %v10764
    %v10881 = vpack.c.b16 %v10767, %v10765
    %v10882 = vpack.c.b16 %v10770, %v10768
    %v10883 = vpack.c.b16 %v10771, %v10769
    %v10884 = vpack.c.b16 %v10774, %v10772
    %v10885 = vpack.c.b16 %v10775, %v10773
    %v10886 = vpack.c.b16 %v10778, %v10776
    %v10887 = vpack.c.b16 %v10779, %v10777
    %v10888 = vpack.c.b16 %v10782, %v10780
    %v10889 = vpack.c.b16 %v10783, %v10781
    %v10890 = vpack.c.b16 %v10786, %v10784
    %v10891 = vpack.c.b16 %v10787, %v10785
    %v10892 = vpack.c.b16 %v10790, %v10788
    %v10893 = vpack.c.b16 %v10791, %v10789
    %v10894 = vpack.c.b16 %v10794, %v10792
    %v10895 = vpack.c.b16 %v10795, %v10793
    %v10896 = vpack.c.b16 %v10798, %v10796
    %v10897 = vpack.c.b16 %v10799, %v10797
    %v10898 = vpack.c.b16 %v10802, %v10800
    %v10899 = vpack.c.b16 %v10803, %v10801
    %v10900 = vpack.c.b16 %v10806, %v10804
    %v10901 = vpack.c.b16 %v10807, %v10805
    %v10902 = vpack.c.b16 %v10810, %v10808
    %v10903 = vpack.c.b16 %v10811, %v10809
    %v10904 = vpack.c.b16 %v10814, %v10812
    %v10905 = vpack.c.b16 %v10815, %v10813
    %v10906 = vpack.c.b16 %v10818, %v10816
    %v10907 = vpack.c.b16 %v10819, %v10817
    %v10908 = vpack.c.b16 %v10822, %v10820
    %v10909 = vpack.c.b16 %v10823, %v10821
    %v10910 = vpack.c.b16 %v10826, %v10824
    %v10911 = vpack.c.b16 %v10827, %v10825
    %v10912 = vpack.c.b16 %v10830, %v10828
    %v10913 = vpack.c.b16 %v10831, %v10829
    %v10914 = vpack.c.b16 %v10834, %v10832
    %v10915 = vpack.c.b16 %v10835, %v10833
    %v10916 = vpack.c.b16 %v10838, %v10836
    %v10917 = vpack.c.b16 %v10839, %v10837
    %v10918 = vpack.c.b16 %v10842, %v10840
    %v10919 = vpack.c.b16 %v10843, %v10841
    %v10920 = vpack.c.b16 %v10846, %v10844
    %v10921 = vpack.c.b16 %v10847, %v10845
    %v10922 = vpack.c.b16 %v10850, %v10848
    %v10923 = vpack.c.b16 %v10851, %v10849
    %v10924 = vpack.c.b16 %v10854, %v10852
    %v10925 = vpack.c.b16 %v10855, %v10853
    %v10926 = vpack.c.b16 %v10858, %v10856
    %v10927 = vpack.c.b16 %v10859, %v10857
    %v10928 = vpack.c.b16 %v10862, %v10860
    %v10929 = vpack.c.b16 %v10863, %v10861
    %v10930 = vpack.c.b16 %v10866, %v10864
    %v10931 = vpack.c.b16 %v10867, %v10865
    %10996 = vmatpush.bf16.msra.mxu0 %v10882
    %10997 = vmatpush.bf16.msra.mxu0 %v10880
    %10998 = vmatpush.bf16.msra.mxu0 %v10878
    %10999 = vmatpush.bf16.msra.mxu0 %v10876
    %11000 = vmatpush.bf16.msra.mxu0 %v10874
    %11001 = vmatpush.bf16.msra.mxu0 %v10872
    %11002 = vmatpush.bf16.msra.mxu0 %v10870
    %11003 = vmatpush.bf16.msra.mxu0 %v10868
    %11004 = vmatmul.bf16.gmra.mxu0 %v10590
    %v11005 = vpop.f32.mrf.mxu0
    %v11006 = vadd.f32 %v10672, %v11005
    %v11007 = vpop.f32.mrf.mxu0
    %v11008 = vadd.f32 %v10672, %v11007
    %11009 = vmatmul.bf16.gmra.mxu0 %v10594
    %v11010 = vpop.f32.mrf.mxu0
    %v11011 = vadd.f32 %v10672, %v11010
    %v11012 = vpop.f32.mrf.mxu0
    %v11013 = vadd.f32 %v10672, %v11012
    %11014 = vmatmul.bf16.gmra.mxu0 %v10598
    %v11015 = vpop.f32.mrf.mxu0
    %v11016 = vadd.f32 %v10672, %v11015
    %v11017 = vpop.f32.mrf.mxu0
    %v11018 = vadd.f32 %v10672, %v11017
    %11019 = vmatmul.bf16.gmra.mxu0 %v10602
    %v11020 = vpop.f32.mrf.mxu0
    %v11021 = vadd.f32 %v10672, %v11020
    %v11022 = vpop.f32.mrf.mxu0
    %v11023 = vadd.f32 %v10672, %v11022
    %11024 = vdwg.mxu0
    %11025 = vmatpush.bf16.msra.mxu0 %v10898
    %11026 = vmatpush.bf16.msra.mxu0 %v10896
    %11027 = vmatpush.bf16.msra.mxu0 %v10894
    %11028 = vmatpush.bf16.msra.mxu0 %v10892
    %11029 = vmatpush.bf16.msra.mxu0 %v10890
    %11030 = vmatpush.bf16.msra.mxu0 %v10888
    %11031 = vmatpush.bf16.msra.mxu0 %v10886
    %11032 = vmatpush.bf16.msra.mxu0 %v10884
    %11033 = vmatmul.bf16.gmra.mxu0 %v10591
    %v11034 = vpop.f32.mrf.mxu0
    %v11035 = vadd.f32 %v11006, %v11034
    %v11036 = vpop.f32.mrf.mxu0
    %v11037 = vadd.f32 %v11008, %v11036
    %11038 = vmatmul.bf16.gmra.mxu0 %v10595
    %v11039 = vpop.f32.mrf.mxu0
    %v11040 = vadd.f32 %v11011, %v11039
    %v11041 = vpop.f32.mrf.mxu0
    %v11042 = vadd.f32 %v11013, %v11041
    %11043 = vmatmul.bf16.gmra.mxu0 %v10599
    %v11044 = vpop.f32.mrf.mxu0
    %v11045 = vadd.f32 %v11016, %v11044
    %v11046 = vpop.f32.mrf.mxu0
    %v11047 = vadd.f32 %v11018, %v11046
    %11048 = vmatmul.bf16.gmra.mxu0 %v10603
    %v11049 = vpop.f32.mrf.mxu0
    %v11050 = vadd.f32 %v11021, %v11049
    %v11051 = vpop.f32.mrf.mxu0
    %v11052 = vadd.f32 %v11023, %v11051
    %11053 = vdwg.mxu0
    %11054 = vmatpush.bf16.msra.mxu0 %v10914
    %11055 = vmatpush.bf16.msra.mxu0 %v10912
    %11056 = vmatpush.bf16.msra.mxu0 %v10910
    %11057 = vmatpush.bf16.msra.mxu0 %v10908
    %11058 = vmatpush.bf16.msra.mxu0 %v10906
    %11059 = vmatpush.bf16.msra.mxu0 %v10904
    %11060 = vmatpush.bf16.msra.mxu0 %v10902
    %11061 = vmatpush.bf16.msra.mxu0 %v10900
    %11062 = vmatmul.bf16.gmra.mxu0 %v10592
    %v11063 = vpop.f32.mrf.mxu0
    %v11064 = vadd.f32 %v11035, %v11063
    %v11065 = vpop.f32.mrf.mxu0
    %v11066 = vadd.f32 %v11037, %v11065
    %11067 = vmatmul.bf16.gmra.mxu0 %v10596
    %v11068 = vpop.f32.mrf.mxu0
    %v11069 = vadd.f32 %v11040, %v11068
    %v11070 = vpop.f32.mrf.mxu0
    %v11071 = vadd.f32 %v11042, %v11070
    %11072 = vmatmul.bf16.gmra.mxu0 %v10600
    %v11073 = vpop.f32.mrf.mxu0
    %v11074 = vadd.f32 %v11045, %v11073
    %v11075 = vpop.f32.mrf.mxu0
    %v11076 = vadd.f32 %v11047, %v11075
    %11077 = vmatmul.bf16.gmra.mxu0 %v10604
    %v11078 = vpop.f32.mrf.mxu0
    %v11079 = vadd.f32 %v11050, %v11078
    %v11080 = vpop.f32.mrf.mxu0
    %v11081 = vadd.f32 %v11052, %v11080
    %11082 = vdwg.mxu0
    %11083 = vmatpush.bf16.msra.mxu0 %v10930
    %11084 = vmatpush.bf16.msra.mxu0 %v10928
    %11085 = vmatpush.bf16.msra.mxu0 %v10926
    %11086 = vmatpush.bf16.msra.mxu0 %v10924
    %11087 = vmatpush.bf16.msra.mxu0 %v10922
    %11088 = vmatpush.bf16.msra.mxu0 %v10920
    %11089 = vmatpush.bf16.msra.mxu0 %v10918
    %11090 = vmatpush.bf16.msra.mxu0 %v10916
    %11091 = vmatmul.bf16.gmra.mxu0 %v10593
    %v11092 = vpop.f32.mrf.mxu0
    %v11093 = vadd.f32 %v11064, %v11092
    %v11094 = vpop.f32.mrf.mxu0
    %v11095 = vadd.f32 %v11066, %v11094
    %11096 = vmatmul.bf16.gmra.mxu0 %v10597
    %v11097 = vpop.f32.mrf.mxu0
    %v11098 = vadd.f32 %v11069, %v11097
    %v11099 = vpop.f32.mrf.mxu0
    %v11100 = vadd.f32 %v11071, %v11099
    %11101 = vmatmul.bf16.gmra.mxu0 %v10601
    %v11102 = vpop.f32.mrf.mxu0
    %v11103 = vadd.f32 %v11074, %v11102
    %v11104 = vpop.f32.mrf.mxu0
    %v11105 = vadd.f32 %v11076, %v11104
    %11106 = vmatmul.bf16.gmra.mxu0 %v10605
    %v11107 = vpop.f32.mrf.mxu0
    %v11108 = vadd.f32 %v11079, %v11107
    %v11109 = vpop.f32.mrf.mxu0
    %v11110 = vadd.f32 %v11081, %v11109
    %11111 = vdwg.mxu0
    %11112 = vmatpush.bf16.msra.mxu0 %v10883
    %11113 = vmatpush.bf16.msra.mxu0 %v10881
    %11114 = vmatpush.bf16.msra.mxu0 %v10879
    %11115 = vmatpush.bf16.msra.mxu0 %v10877
    %11116 = vmatpush.bf16.msra.mxu0 %v10875
    %11117 = vmatpush.bf16.msra.mxu0 %v10873
    %11118 = vmatpush.bf16.msra.mxu0 %v10871
    %11119 = vmatpush.bf16.msra.mxu0 %v10869
    %11120 = vmatmul.bf16.gmra.mxu0 %v10590
    %v11121 = vpop.f32.mrf.mxu0
    %v11122 = vadd.f32 %v10673, %v11121
    %v11123 = vpop.f32.mrf.mxu0
    %v11124 = vadd.f32 %v10673, %v11123
    %11125 = vmatmul.bf16.gmra.mxu0 %v10594
    %v11126 = vpop.f32.mrf.mxu0
    %v11127 = vadd.f32 %v10673, %v11126
    %v11128 = vpop.f32.mrf.mxu0
    %v11129 = vadd.f32 %v10673, %v11128
    %11130 = vmatmul.bf16.gmra.mxu0 %v10598
    %v11131 = vpop.f32.mrf.mxu0
    %v11132 = vadd.f32 %v10673, %v11131
    %v11133 = vpop.f32.mrf.mxu0
    %v11134 = vadd.f32 %v10673, %v11133
    %11135 = vmatmul.bf16.gmra.mxu0 %v10602
    %v11136 = vpop.f32.mrf.mxu0
    %v11137 = vadd.f32 %v10673, %v11136
    %v11138 = vpop.f32.mrf.mxu0
    %v11139 = vadd.f32 %v10673, %v11138
    %11140 = vdwg.mxu0
    %11141 = vmatpush.bf16.msra.mxu0 %v10899
    %11142 = vmatpush.bf16.msra.mxu0 %v10897
    %11143 = vmatpush.bf16.msra.mxu0 %v10895
    %11144 = vmatpush.bf16.msra.mxu0 %v10893
    %11145 = vmatpush.bf16.msra.mxu0 %v10891
    %11146 = vmatpush.bf16.msra.mxu0 %v10889
    %11147 = vmatpush.bf16.msra.mxu0 %v10887
    %11148 = vmatpush.bf16.msra.mxu0 %v10885
    %11149 = vmatmul.bf16.gmra.mxu0 %v10591
    %v11150 = vpop.f32.mrf.mxu0
    %v11151 = vadd.f32 %v11122, %v11150
    %v11152 = vpop.f32.mrf.mxu0
    %v11153 = vadd.f32 %v11124, %v11152
    %11154 = vmatmul.bf16.gmra.mxu0 %v10595
    %v11155 = vpop.f32.mrf.mxu0
    %v11156 = vadd.f32 %v11127, %v11155
    %v11157 = vpop.f32.mrf.mxu0
    %v11158 = vadd.f32 %v11129, %v11157
    %11159 = vmatmul.bf16.gmra.mxu0 %v10599
    %v11160 = vpop.f32.mrf.mxu0
    %v11161 = vadd.f32 %v11132, %v11160
    %v11162 = vpop.f32.mrf.mxu0
    %v11163 = vadd.f32 %v11134, %v11162
    %11164 = vmatmul.bf16.gmra.mxu0 %v10603
    %v11165 = vpop.f32.mrf.mxu0
    %v11166 = vadd.f32 %v11137, %v11165
    %v11167 = vpop.f32.mrf.mxu0
    %v11168 = vadd.f32 %v11139, %v11167
    %11169 = vdwg.mxu0
    %11170 = vmatpush.bf16.msra.mxu0 %v10915
    %11171 = vmatpush.bf16.msra.mxu0 %v10913
    %11172 = vmatpush.bf16.msra.mxu0 %v10911
    %11173 = vmatpush.bf16.msra.mxu0 %v10909
    %11174 = vmatpush.bf16.msra.mxu0 %v10907
    %11175 = vmatpush.bf16.msra.mxu0 %v10905
    %11176 = vmatpush.bf16.msra.mxu0 %v10903
    %11177 = vmatpush.bf16.msra.mxu0 %v10901
    %11178 = vmatmul.bf16.gmra.mxu0 %v10592
    %v11179 = vpop.f32.mrf.mxu0
    %v11180 = vadd.f32 %v11151, %v11179
    %v11181 = vpop.f32.mrf.mxu0
    %v11182 = vadd.f32 %v11153, %v11181
    %11183 = vmatmul.bf16.gmra.mxu0 %v10596
    %v11184 = vpop.f32.mrf.mxu0
    %v11185 = vadd.f32 %v11156, %v11184
    %v11186 = vpop.f32.mrf.mxu0
    %v11187 = vadd.f32 %v11158, %v11186
    %11188 = vmatmul.bf16.gmra.mxu0 %v10600
    %v11189 = vpop.f32.mrf.mxu0
    %v11190 = vadd.f32 %v11161, %v11189
    %v11191 = vpop.f32.mrf.mxu0
    %v11192 = vadd.f32 %v11163, %v11191
    %11193 = vmatmul.bf16.gmra.mxu0 %v10604
    %v11194 = vpop.f32.mrf.mxu0
    %v11195 = vadd.f32 %v11166, %v11194
    %v11196 = vpop.f32.mrf.mxu0
    %v11197 = vadd.f32 %v11168, %v11196
    %11198 = vdwg.mxu0
    %11199 = vmatpush.bf16.msra.mxu0 %v10931
    %11200 = vmatpush.bf16.msra.mxu0 %v10929
    %11201 = vmatpush.bf16.msra.mxu0 %v10927
    %11202 = vmatpush.bf16.msra.mxu0 %v10925
    %11203 = vmatpush.bf16.msra.mxu0 %v10923
    %11204 = vmatpush.bf16.msra.mxu0 %v10921
    %11205 = vmatpush.bf16.msra.mxu0 %v10919
    %11206 = vmatpush.bf16.msra.mxu0 %v10917
    %11207 = vmatmul.bf16.gmra.mxu0 %v10593
    %v11208 = vpop.f32.mrf.mxu0
    %v11209 = vadd.f32 %v11180, %v11208
    %v11210 = vpop.f32.mrf.mxu0
    %v11211 = vadd.f32 %v11182, %v11210
    %11212 = vmatmul.bf16.gmra.mxu0 %v10597
    %v11213 = vpop.f32.mrf.mxu0
    %v11214 = vadd.f32 %v11185, %v11213
    %v11215 = vpop.f32.mrf.mxu0
    %v11216 = vadd.f32 %v11187, %v11215
    %11217 = vmatmul.bf16.gmra.mxu0 %v10601
    %v11218 = vpop.f32.mrf.mxu0
    %v11219 = vadd.f32 %v11190, %v11218
    %v11220 = vpop.f32.mrf.mxu0
    %v11221 = vadd.f32 %v11192, %v11220
    %11222 = vmatmul.bf16.gmra.mxu0 %v10605
    %v11223 = vpop.f32.mrf.mxu0
    %v11224 = vadd.f32 %v11195, %v11223
    %v11225 = vpop.f32.mrf.mxu0
    %v11226 = vadd.f32 %v11197, %v11225
    %11227 = vdwg.mxu0
    %v11228 = vmax.f32 %v11093, 0.0
    %v11229 = vmax.f32 %v11209, 0.0
    %v11230 = vmax.f32 %v11095, 0.0
    %v11231 = vmax.f32 %v11211, 0.0
    %v11232 = vmax.f32 %v11098, 0.0
    %v11233 = vmax.f32 %v11214, 0.0
    %v11234 = vmax.f32 %v11100, 0.0
    %v11235 = vmax.f32 %v11216, 0.0
    %v11236 = vmax.f32 %v11103, 0.0
    %v11237 = vmax.f32 %v11219, 0.0
    %v11238 = vmax.f32 %v11105, 0.0
    %v11239 = vmax.f32 %v11221, 0.0
    %v11240 = vmax.f32 %v11108, 0.0
    %v11241 = vmax.f32 %v11224, 0.0
    %v11242 = vmax.f32 %v11110, 0.0
    %v11243 = vmax.f32 %v11226, 0.0
    %v11244 = vpack.c.bf16 %v11230, %v11228
    %v11245 = vpack.c.bf16 %v11231, %v11229
    %v11246 = vpack.c.bf16 %v11234, %v11232
    %v11247 = vpack.c.bf16 %v11235, %v11233
    %v11248 = vpack.c.bf16 %v11238, %v11236
    %v11249 = vpack.c.bf16 %v11239, %v11237
    %v11250 = vpack.c.bf16 %v11242, %v11240
    %v11251 = vpack.c.bf16 %v11243, %v11241
    %v11252 = vld [vmem:[%s9] sm:$0xf]
    %v11253 = vld [vmem:[%s9 + $0x4] sm:$0xf]
    %v11254 = vld [vmem:[%s9 + $0x8] sm:$0xf]
    %v11255 = vld [vmem:[%s9 + $0xc] sm:$0xf]
    %v11256 = vld [vmem:[%s9 + $0x10] sm:$0xf]
    %v11257 = vld [vmem:[%s9 + $0x14] sm:$0xf]
    %v11258 = vld [vmem:[%s9 + $0x18] sm:$0xf]
    %v11259 = vld [vmem:[%s9 + $0x1c] sm:$0xf]
    %v11260 = vld [vmem:[%s9 + $0x20] sm:$0xf]
    %v11261 = vld [vmem:[%s9 + $0x24] sm:$0xf]
    %v11262 = vld [vmem:[%s9 + $0x28] sm:$0xf]
    %v11263 = vld [vmem:[%s9 + $0x2c] sm:$0xf]
    %v11264 = vld [vmem:[%s9 + $0x30] sm:$0xf]
    %v11265 = vld [vmem:[%s9 + $0x34] sm:$0xf]
    %v11266 = vld [vmem:[%s9 + $0x38] sm:$0xf]
    %v11267 = vld [vmem:[%s9 + $0x3c] sm:$0xf]
    %v11268 = vld [vmem:[%s9 + $0x40] sm:$0xf]
    %v11269 = vld [vmem:[%s9 + $0x44] sm:$0xf]
    %v11270 = vld [vmem:[%s9 + $0x48] sm:$0xf]
    %v11271 = vld [vmem:[%s9 + $0x4c] sm:$0xf]
    %v11272 = vld [vmem:[%s9 + $0x50] sm:$0xf]
    %v11273 = vld [vmem:[%s9 + $0x54] sm:$0xf]
    %v11274 = vld [vmem:[%s9 + $0x58] sm:$0xf]
    %v11275 = vld [vmem:[%s9 + $0x5c] sm:$0xf]
    %v11276 = vld [vmem:[%s9 + $0x60] sm:$0xf]
    %v11277 = vld [vmem:[%s9 + $0x64] sm:$0xf]
    %v11278 = vld [vmem:[%s9 + $0x68] sm:$0xf]
    %v11279 = vld [vmem:[%s9 + $0x6c] sm:$0xf]
    %v11280 = vld [vmem:[%s9 + $0x70] sm:$0xf]
    %v11281 = vld [vmem:[%s9 + $0x74] sm:$0xf]
    %v11282 = vld [vmem:[%s9 + $0x78] sm:$0xf]
    %v11283 = vld [vmem:[%s9 + $0x7c] sm:$0xf]
    %v11284 = vld [vmem:[%s10] sm:$0x1]
    %v11286 = vperm.slane %v11284, 0
    %v11320 = vunpack.c.l.b16 %v11252
    %v11321 = vunpack.c.l.b16 %v11253
    %v11322 = vunpack.c.l.b16 %v11254
    %v11323 = vunpack.c.l.b16 %v11255
    %v11324 = vunpack.c.l.b16 %v11256
    %v11325 = vunpack.c.l.b16 %v11257
    %v11326 = vunpack.c.l.b16 %v11258
    %v11327 = vunpack.c.l.b16 %v11259
    %v11328 = vunpack.c.l.b16 %v11260
    %v11329 = vunpack.c.l.b16 %v11261
    %v11330 = vunpack.c.l.b16 %v11262
    %v11331 = vunpack.c.l.b16 %v11263
    %v11332 = vunpack.c.l.b16 %v11264
    %v11333 = vunpack.c.l.b16 %v11265
    %v11334 = vunpack.c.l.b16 %v11266
    %v11335 = vunpack.c.l.b16 %v11267
    %v11336 = vunpack.c.l.b16 %v11268
    %v11337 = vunpack.c.l.b16 %v11269
    %v11338 = vunpack.c.l.b16 %v11270
    %v11339 = vunpack.c.l.b16 %v11271
    %v11340 = vunpack.c.l.b16 %v11272
    %v11341 = vunpack.c.l.b16 %v11273
    %v11342 = vunpack.c.l.b16 %v11274
    %v11343 = vunpack.c.l.b16 %v11275
    %v11344 = vunpack.c.l.b16 %v11276
    %v11345 = vunpack.c.l.b16 %v11277
    %v11346 = vunpack.c.l.b16 %v11278
    %v11347 = vunpack.c.l.b16 %v11279
    %v11348 = vunpack.c.l.b16 %v11280
    %v11349 = vunpack.c.l.b16 %v11281
    %v11350 = vunpack.c.l.b16 %v11282
    %v11351 = vunpack.c.l.b16 %v11283
    %v11352 = vpack.c.b16 %v11321, %v11320
    %v11353 = vpack.c.b16 %v11323, %v11322
    %v11354 = vpack.c.b16 %v11325, %v11324
    %v11355 = vpack.c.b16 %v11327, %v11326
    %v11356 = vpack.c.b16 %v11329, %v11328
    %v11357 = vpack.c.b16 %v11331, %v11330
    %v11358 = vpack.c.b16 %v11333, %v11332
    %v11359 = vpack.c.b16 %v11335, %v11334
    %v11360 = vpack.c.b16 %v11337, %v11336
    %v11361 = vpack.c.b16 %v11339, %v11338
    %v11362 = vpack.c.b16 %v11341, %v11340
    %v11363 = vpack.c.b16 %v11343, %v11342
    %v11364 = vpack.c.b16 %v11345, %v11344
    %v11365 = vpack.c.b16 %v11347, %v11346
    %v11366 = vpack.c.b16 %v11349, %v11348
    %v11367 = vpack.c.b16 %v11351, %v11350
    %11384 = vmatpush.bf16.msra.mxu0 %v11359
    %11385 = vmatpush.bf16.msra.mxu0 %v11358
    %11386 = vmatpush.bf16.msra.mxu0 %v11357
    %11387 = vmatpush.bf16.msra.mxu0 %v11356
    %11388 = vmatpush.bf16.msra.mxu0 %v11355
    %11389 = vmatpush.bf16.msra.mxu0 %v11354
    %11390 = vmatpush.bf16.msra.mxu0 %v11353
    %11391 = vmatpush.bf16.msra.mxu0 %v11352
    %11392 = vmatmul.bf16.gmra.mxu0 %v11244
    %v11393 = vpop.f32.mrf.mxu0
    %v11394 = vadd.f32 %v11286, %v11393
    %v11395 = vpop.f32.mrf.mxu0
    %v11396 = vadd.f32 %v11286, %v11395
    %11397 = vmatmul.bf16.gmra.mxu0 %v11246
    %v11398 = vpop.f32.mrf.mxu0
    %v11399 = vadd.f32 %v11286, %v11398
    %v11400 = vpop.f32.mrf.mxu0
    %v11401 = vadd.f32 %v11286, %v11400
    %11402 = vmatmul.bf16.gmra.mxu0 %v11248
    %v11403 = vpop.f32.mrf.mxu0
    %v11404 = vadd.f32 %v11286, %v11403
    %v11405 = vpop.f32.mrf.mxu0
    %v11406 = vadd.f32 %v11286, %v11405
    %11407 = vmatmul.bf16.gmra.mxu0 %v11250
    %v11408 = vpop.f32.mrf.mxu0
    %v11409 = vadd.f32 %v11286, %v11408
    %v11410 = vpop.f32.mrf.mxu0
    %v11411 = vadd.f32 %v11286, %v11410
    %11412 = vdwg.mxu0
    %11413 = vmatpush.bf16.msra.mxu0 %v11367
    %11414 = vmatpush.bf16.msra.mxu0 %v11366
    %11415 = vmatpush.bf16.msra.mxu0 %v11365
    %11416 = vmatpush.bf16.msra.mxu0 %v11364
    %11417 = vmatpush.bf16.msra.mxu0 %v11363
    %11418 = vmatpush.bf16.msra.mxu0 %v11362
    %11419 = vmatpush.bf16.msra.mxu0 %v11361
    %11420 = vmatpush.bf16.msra.mxu0 %v11360
    %11421 = vmatmul.bf16.gmra.mxu0 %v11245
    %v11422 = vpop.f32.mrf.mxu0
    %v11423 = vadd.f32 %v11394, %v11422
    %v11424 = vpop.f32.mrf.mxu0
    %v11425 = vadd.f32 %v11396, %v11424
    %11426 = vmatmul.bf16.gmra.mxu0 %v11247
    %v11427 = vpop.f32.mrf.mxu0
    %v11428 = vadd.f32 %v11399, %v11427
    %v11429 = vpop.f32.mrf.mxu0
    %v11430 = vadd.f32 %v11401, %v11429
    %11431 = vmatmul.bf16.gmra.mxu0 %v11249
    %v11432 = vpop.f32.mrf.mxu0
    %v11433 = vadd.f32 %v11404, %v11432
    %v11434 = vpop.f32.mrf.mxu0
    %v11435 = vadd.f32 %v11406, %v11434
    %11436 = vmatmul.bf16.gmra.mxu0 %v11251
    %v11437 = vpop.f32.mrf.mxu0
    %v11438 = vadd.f32 %v11409, %v11437
    %v11439 = vpop.f32.mrf.mxu0
    %v11440 = vadd.f32 %v11411, %v11439
    %11441 = vdwg.mxu0
    %v11442 = vmax.f32 %v11423, 0.0
    %v11443 = vmax.f32 %v11425, 0.0
    %v11444 = vmax.f32 %v11428, 0.0
    %v11445 = vmax.f32 %v11430, 0.0
    %v11446 = vmax.f32 %v11433, 0.0
    %v11447 = vmax.f32 %v11435, 0.0
    %v11448 = vmax.f32 %v11438, 0.0
    %v11449 = vmax.f32 %v11440, 0.0
    %11450 = vst [vmem:[%s11] sm:$0xff] %v11442
    %11451 = vst [vmem:[%s11 + $0x8] sm:$0xff] %v11443
    %11452 = vst [vmem:[%s11 + $0x10] sm:$0xff] %v11444
    %11453 = vst [vmem:[%s11 + $0x18] sm:$0xff] %v11445
    %11454 = vst [vmem:[%s11 + $0x20] sm:$0xff] %v11446
    %11455 = vst [vmem:[%s11 + $0x28] sm:$0xff] %v11447
    %11456 = vst [vmem:[%s11 + $0x30] sm:$0xff] %v11448
    %11457 = vst [vmem:[%s11 + $0x38] sm:$0xff] %v11449
    // Predicated region
    $region62: #{lstm_model_forward.1} parent=1 // pred_check
      _
    $region63: #{lstm_model_forward.1} parent=1 // pred_check_branch
      %11459 = sbr.rel (0) target = $region65
    $region64: #{lstm_model_forward.1} parent=1 // pred_region
      _
    $region65: #{lstm_model_forward.1} parent=1 // pred_fallthru
      _
    // Predicated region
    $region66: #{lstm_model_forward.1} parent=1 // pred_check
      _
    $region67: #{lstm_model_forward.1} parent=1 // pred_check_branch
      %11461 = sbr.rel (0) target = $region69
    $region68: #{lstm_model_forward.1} parent=1 // pred_region
      _
    $region69: #{lstm_model_forward.1} parent=1 // pred_fallthru
      _
    %11462 = vsyncpa [#allocation6], 1
    %11463 = vsyncpa [#allocation8], 1
    %11464 = vsyncpa [#allocation11], 1

</llo_original>
